<compile_context>
chip_gen: v6e
topology: v6e:2x2x1
jax: 0.10.0
libtpu: 0.0.40
codegen_flags: <defaults>
</compile_context>

<pallas_src>
import functools

import jax
import jax.numpy as jnp
import numpy as np
from jax.experimental import pallas as pl
from jax.experimental.pallas import tpu as pltpu

K = 3                      # kernel size (3x3)
LEAKY_SLOPE = 0.01         # nn.LeakyReLU default
IN_EPS = 1e-5              # nn.InstanceNorm2d default
LANE = 128                 # TPU lane width


def _round_up(v, m):
    return (v + m - 1) // m * m


# ----------------------------- Pallas kernel -------------------------------

def _fused_upsample_kernel(x_ref, w1_ref, w2_ref, o_ref, y1_ref, y2_ref, *, H, W, Cp, WL):
    """Fused UpSample2D for one batch element (all intermediates stay in VMEM).

    x_ref : (1, H+1, W+1, Cp)   input, one zero row/col appended bottom/right
    w1_ref: (3, 3, Cp, Cp)      conv1 per-tap (Cin, Cout) matrices (no spatial flip), bf16
    w2_ref: (9*Cp, Cp)          conv2 im2col weight (flipped taps stacked), bf16
    o_ref : (1, 4, H, W, Cp)    phase-planar output, phase index q = 2*pr + pc
    y1_ref: (4, H+2, W+WL+1, Cp) conv1 phase planes, interior at [1:H+1, WL:WL+W] (f32 scratch)
    y2_ref: (4, H, W, Cp)       pre-norm conv2 phase planes (f32 scratch)
    """
    cdt = w1_ref.dtype            # matmul compute dtype (bf16)
    HW = H * W

    def mm(a, w):
        return jnp.dot(a, w, preferred_element_type=jnp.float32)

    # ---- conv1: ConvTranspose2d(k=3, s=2, p=1, op=1) via sub-pixel phase decomposition
    #   y1[2m  , 2n  ] = x[m,n]@W11
    #   y1[2m  , 2n+1] = x[m,n]@W12 + x[m,n+1]@W10
    #   y1[2m+1, 2n  ] = x[m,n]@W21 + x[m+1,n]@W01
    #   y1[2m+1, 2n+1] = x[m,n]@W22 + x[m,n+1]@W20 + x[m+1,n]@W02 + x[m+1,n+1]@W00
    y1_ref[...] = jnp.zeros_like(y1_ref)          # zero halos; interiors overwritten below

    xp = x_ref[0]                                                   # (H+1, W+1, Cp)
    A = xp[:H, :W, :].reshape(HW, Cp).astype(cdt)                   # x[m,   n  ]
    B = xp[:H, 1:W + 1, :].reshape(HW, Cp).astype(cdt)              # x[m,   n+1]
    Cs = xp[1:H + 1, :W, :].reshape(HW, Cp).astype(cdt)             # x[m+1, n  ]
    D = xp[1:H + 1, 1:W + 1, :].reshape(HW, Cp).astype(cdt)         # x[m+1, n+1]

    w1 = w1_ref
    phases = (
        mm(A, w1[1, 1]),                                                        # (0,0)
        mm(A, w1[1, 2]) + mm(B, w1[1, 0]),                                      # (0,1)
        mm(A, w1[2, 1]) + mm(Cs, w1[0, 1]),                                     # (1,0)
        mm(A, w1[2, 2]) + mm(B, w1[2, 0]) + mm(Cs, w1[0, 2]) + mm(D, w1[0, 0]), # (1,1)
    )
    for q, p in enumerate(phases):
        y1_ref[q, 1:H + 1, WL:WL + W, :] = p.reshape(H, W, Cp)

    # ---- conv2: ConvTranspose2d(k=3, s=1, p=1) == 3x3 conv of y1 with flipped taps ----
    # Done per output phase with one im2col matmul; InstanceNorm sum/sumsq accumulated.
    w2 = w2_ref[...]                                               # (9*Cp, Cp)
    planes = [y1_ref[q] for q in range(4)]                         # (H+2, W+WL+1, Cp)
    ssum = jnp.zeros((1, Cp), jnp.float32)
    ssq = jnp.zeros((1, Cp), jnp.float32)
    for pr in range(2):
        for pc in range(2):
            cols = []
            for dh in (-1, 0, 1):
                for dw in (-1, 0, 1):
                    qr, sr = (pr + dh) % 2, (pr + dh) // 2
                    qc, sc = (pc + dw) % 2, (pc + dw) // 2
                    src = planes[2 * qr + qc][1 + sr:1 + sr + H,
                                              WL + sc:WL + sc + W, :]
                    cols.append(src.reshape(HW, Cp).astype(cdt))
            patch = jnp.concatenate(cols, axis=-1)                 # (HW, 9*Cp) bf16
            acc = mm(patch, w2)                                    # (HW, Cp)  f32
            ssum = ssum + jnp.sum(acc, axis=0, keepdims=True)
            ssq = ssq + jnp.sum(acc * acc, axis=0, keepdims=True)
            y2_ref[2 * pr + pc] = acc.reshape(H, W, Cp)

    # ---- InstanceNorm2d (biased variance, no affine) + LeakyReLU ----
    inv_n = 1.0 / (4.0 * HW)
    mean = ssum * inv_n
    var = ssq * inv_n - mean * mean
    inv_std = jax.lax.rsqrt(var + IN_EPS)
    mean_b = mean.reshape(1, 1, Cp)
    inv_b = inv_std.reshape(1, 1, Cp)
    for q in range(4):
        y = (y2_ref[q] - mean_b) * inv_b
        o_ref[0, q] = jnp.where(y >= 0, y, LEAKY_SLOPE * y).astype(o_ref.dtype)


# ------------------------------- wrappers -----------------------------------

def prepare_weights(w1, w2, c_pad, compute_dtype=jnp.bfloat16):
    """Pack ConvTranspose2d weights (Cin, Cout, 3, 3) once, outside the hot path.

    Returns:
      w1_taps : (3, 3, c_pad, c_pad)  conv1 per-tap (Cin, Cout) matrices (no flip).
      w2_stack: (9*c_pad, c_pad)      conv2 im2col weight: spatially flipped taps,
                stacked in (dh, dw) row-major order to match the kernel's patch.
    """
    c = w1.shape[0]
    pad = ((0, c_pad - c), (0, c_pad - c), (0, 0), (0, 0))
    w1p = jnp.pad(w1, pad)
    w2p = jnp.pad(w2, pad)
    w1_taps = jnp.transpose(w1p, (2, 3, 0, 1)).astype(compute_dtype)
    w2_taps = jnp.transpose(w2p[:, :, ::-1, ::-1], (2, 3, 0, 1))      # flipped, (kh,kw,Ci,Co)
    w2_stack = w2_taps.reshape(K * K * c_pad, c_pad).astype(compute_dtype)
    return w1_taps, w2_stack


@jax.jit
def upsample2d_forward(x_nchw, w1_taps, w2_stack):
    """UpSample2D forward. x: (N, C, H, W) -> (N, C, 2H, 2W)."""
    n, c, h, w = x_nchw.shape
    cp = w1_taps.shape[-1]
    ho, wo = 2 * h, 2 * w
    wl = 8   # left halo in the y1 scratch keeps interior stores sublane-aligned

    # NCHW -> NHWC, pad channels to a lane-dense multiple of 128, append one zero
    # row/col (bottom/right) so the shifted phase reads stay in-bounds.
    x = jnp.transpose(x_nchw, (0, 2, 3, 1))
    xp = jnp.pad(x, ((0, 0), (0, 1), (0, 1), (0, cp - c)))

    # Explicit VMEM budget (double-buffered blocks + scratch + temporaries), clamped
    # so it is safe on v5e/v6e (128 MiB) and v7x (64 MiB physical).
    block_bytes = ((h + 1) * (w + 1) * cp * xp.dtype.itemsize            # x block
                   + 2 * K * K * cp * cp * w1_taps.dtype.itemsize        # w1 + w2
                   + 4 * h * w * cp * x_nchw.dtype.itemsize)             # out block
    scratch_bytes = (4 * (h + 2) * (w + wl + 1) * cp * 4                 # y1 planes
                     + 4 * h * w * cp * 4)                               # y2 planes
    vmem_bytes = int(min(max(3 * block_bytes + 2 * scratch_bytes, 32 << 20), 48 << 20))

    kernel = functools.partial(_fused_upsample_kernel, H=h, W=w, Cp=cp, WL=wl)
    out_phased = pl.pallas_call(
        kernel,
        out_shape=jax.ShapeDtypeStruct((n, 4, h, w, cp), x_nchw.dtype),
        grid=(n,),
        in_specs=[
            pl.BlockSpec((1, h + 1, w + 1, cp), lambda b: (b, 0, 0, 0)),
            pl.BlockSpec((K, K, cp, cp), lambda b: (0, 0, 0, 0)),
            pl.BlockSpec((K * K * cp, cp), lambda b: (0, 0)),
        ],
        out_specs=pl.BlockSpec((1, 4, h, w, cp), lambda b: (b, 0, 0, 0, 0)),
        scratch_shapes=[
            pltpu.VMEM((4, h + 2, w + wl + 1, cp), jnp.float32),   # y1 phase planes (+halo)
            pltpu.VMEM((4, h, w, cp), jnp.float32),                # pre-norm y2 phase planes
        ],
        compiler_params=pltpu.CompilerParams(
            dimension_semantics=("parallel",),
            vmem_limit_bytes=vmem_bytes),
    )(xp, w1_taps, w2_stack)

    # Phase-planar (N, 4, H, W, Cp) -> (N, C, 2H, 2W). The de-phasing fuses with the
    # NHWC -> NCHW layout transpose in XLA (one pass over the output).
    out = out_phased[..., :c].reshape(n, 2, 2, h, w, c)
    out = jnp.transpose(out, (0, 3, 1, 4, 2, 5)).reshape(n, ho, wo, c)
    return jnp.transpose(out, (0, 3, 1, 2))


# ---------------------------- pure-JAX reference -----------------------------

def _ref_forward(x, w1, w2):
    def conv_t(xx, wt, s, p, op):
        w_eq = jnp.transpose(wt[:, :, ::-1, ::-1], (1, 0, 2, 3))  # (O, I, kh, kw)
        return jax.lax.conv_general_dilated(
            xx, w_eq, window_strides=(1, 1),
            padding=[(K - 1 - p, K - 1 - p + op)] * 2,
            lhs_dilation=(s, s),
            dimension_numbers=("NCHW", "OIHW", "NCHW"),
            preferred_element_type=jnp.float32)
    y = conv_t(x, w1, 2, 1, 1)
    y = conv_t(y, w2, 1, 1, 0)
    mean = jnp.mean(y, axis=(2, 3), keepdims=True)
    var = jnp.var(y, axis=(2, 3), keepdims=True)
    y = (y - mean) / jnp.sqrt(var + IN_EPS)
    return jnp.where(y >= 0, y, LEAKY_SLOPE * y)


# ---------------------------------- main -------------------------------------

if __name__ == "__main__":
    key = jax.random.PRNGKey(0)
    kx, k1, k2 = jax.random.split(key, 3)

    N, C, H, W = 2, 4, 16, 16
    x = jax.random.normal(kx, (N, C, H, W), jnp.float32)
    # ConvTranspose2d weights: (in_channels, out_channels, kh, kw), bias=False.
    w1 = 0.1 * jax.random.normal(k1, (C, C, K, K), jnp.float32)
    w2 = 0.1 * jax.random.normal(k2, (C, C, K, K), jnp.float32)

    # Weight packing happens once, outside the per-call hot path.
    cp = _round_up(C, LANE)
    w1_taps, w2_stack = prepare_weights(w1, w2, cp)

    out = jax.block_until_ready(upsample2d_forward(x, w1_taps, w2_stack))
    ref = jax.block_until_ready(_ref_forward(x, w1, w2))

    assert out.shape == (N, C, 2 * H, 2 * W), out.shape
    err = float(np.max(np.abs(np.asarray(out) - np.asarray(ref))))
    # bf16 matmul operands (f32 accumulation) => slightly looser tolerance than pure f32.
    assert np.allclose(np.asarray(out), np.asarray(ref), rtol=5e-2, atol=5e-2), (
        f"mismatch vs reference: max abs err = {err}")
    print("KERNEL_OK")
</pallas_src>

<mosaic_0001>
module attributes {stable_mosaic.version = 11 : i64} {
  func.func @_fused_upsample_kernel(%arg0: i32, %arg1: memref<1x17x17x128xf32, #tpu.memory_space<vmem>>, %arg2: memref<3x3x128x128xbf16, #tpu.memory_space<vmem>>, %arg3: memref<1152x128xbf16, #tpu.memory_space<vmem>>, %arg4: memref<1x4x16x16x128xf32, #tpu.memory_space<vmem>>, %arg5: memref<4x18x25x128xf32, #tpu.memory_space<vmem>>, %arg6: memref<4x16x16x128xf32, #tpu.memory_space<vmem>>) attributes {dimension_semantics = [#tpu.dimension_semantics<parallel>], iteration_bounds = array<i64: 2>, scalar_prefetch = 0 : i64, scratch_operands = 2 : i64, tpu.core_type = #tpu.core_type<tc>, window_params = [{transform_indices = @transform_0, window_bounds = array<i64: 1, 17, 17, 128>}, {pipeline_mode = #tpu.pipeline_mode<synchronous>, transform_indices = @transform_1, window_bounds = array<i64: 3, 3, 128, 128>}, {pipeline_mode = #tpu.pipeline_mode<synchronous>, transform_indices = @transform_2, window_bounds = array<i64: 1152, 128>}, {transform_indices = @transform_3, window_bounds = array<i64: 1, 4, 16, 16, 128>}]} {
    %cst = arith.constant 0.000000e+00 : f32
    %0 = vector.broadcast %cst : f32 to vector<4x18x25x128xf32>
    %c0 = arith.constant 0 : index
    %c0_0 = arith.constant 0 : index
    %c0_1 = arith.constant 0 : index
    %c0_2 = arith.constant 0 : index
    %1 = vector.load %arg5[%c0, %c0_0, %c0_1, %c0_2] : memref<4x18x25x128xf32, #tpu.memory_space<vmem>>, vector<4x18x25x128xf32>
    tpu.vector_store %arg5[%c0, %c0_0, %c0_1, %c0_2], %0 {strides = array<i32>} : memref<4x18x25x128xf32, #tpu.memory_space<vmem>>, vector<4x18x25x128xf32>,
    %c0_3 = arith.constant 0 : index
    %c0_4 = arith.constant 0 : index
    %c0_5 = arith.constant 0 : index
    %c0_6 = arith.constant 0 : index
    %2 = vector.load %arg1[%c0_3, %c0_4, %c0_5, %c0_6] : memref<1x17x17x128xf32, #tpu.memory_space<vmem>>, vector<1x17x17x128xf32>
    %3 = vector.shape_cast %2 : vector<1x17x17x128xf32> to vector<17x17x128xf32>
    %4 = vector.extract_strided_slice %3 {offsets = [0, 0, 0], sizes = [16, 16, 128], strides = [1, 1, 1]} : vector<17x17x128xf32> to vector<16x16x128xf32>
    %5 = vector.shape_cast %4 : vector<16x16x128xf32> to vector<256x128xf32>
    %6 = arith.truncf %5 : vector<256x128xf32> to vector<256x128xbf16>
    %7 = vector.extract_strided_slice %3 {offsets = [0, 1, 0], sizes = [16, 16, 128], strides = [1, 1, 1]} : vector<17x17x128xf32> to vector<16x16x128xf32>
    %8 = vector.shape_cast %7 : vector<16x16x128xf32> to vector<256x128xf32>
    %9 = arith.truncf %8 : vector<256x128xf32> to vector<256x128xbf16>
    %10 = vector.extract_strided_slice %3 {offsets = [1, 0, 0], sizes = [16, 16, 128], strides = [1, 1, 1]} : vector<17x17x128xf32> to vector<16x16x128xf32>
    %11 = vector.shape_cast %10 : vector<16x16x128xf32> to vector<256x128xf32>
    %12 = arith.truncf %11 : vector<256x128xf32> to vector<256x128xbf16>
    %13 = vector.extract_strided_slice %3 {offsets = [1, 1, 0], sizes = [16, 16, 128], strides = [1, 1, 1]} : vector<17x17x128xf32> to vector<16x16x128xf32>
    %14 = vector.shape_cast %13 : vector<16x16x128xf32> to vector<256x128xf32>
    %15 = arith.truncf %14 : vector<256x128xf32> to vector<256x128xbf16>
    %c1 = arith.constant 1 : index
    %c1_7 = arith.constant 1 : index
    %c0_8 = arith.constant 0 : index
    %c0_9 = arith.constant 0 : index
    %16 = vector.load %arg2[%c1, %c1_7, %c0_8, %c0_9] : memref<3x3x128x128xbf16, #tpu.memory_space<vmem>>, vector<1x1x128x128xbf16>
    %17 = vector.shape_cast %16 : vector<1x1x128x128xbf16> to vector<128x128xbf16>
    %cst_10 = arith.constant dense<0.000000e+00> : vector<256x128xf32>
    %18 = tpu.matmul %6, %17, %cst_10 {dimension_numbers = #tpu.dot_dimension_numbers<[1], [0], [0], [1], [0, 0, 1, 1], [], []>} : vector<256x128xbf16>, vector<128x128xbf16>, vector<256x128xf32> -> vector<256x128xf32>
    %c1_11 = arith.constant 1 : index
    %c2 = arith.constant 2 : index
    %c0_12 = arith.constant 0 : index
    %c0_13 = arith.constant 0 : index
    %19 = vector.load %arg2[%c1_11, %c2, %c0_12, %c0_13] : memref<3x3x128x128xbf16, #tpu.memory_space<vmem>>, vector<1x1x128x128xbf16>
    %20 = vector.shape_cast %19 : vector<1x1x128x128xbf16> to vector<128x128xbf16>
    %cst_14 = arith.constant dense<0.000000e+00> : vector<256x128xf32>
    %21 = tpu.matmul %6, %20, %cst_14 {dimension_numbers = #tpu.dot_dimension_numbers<[1], [0], [0], [1], [0, 0, 1, 1], [], []>} : vector<256x128xbf16>, vector<128x128xbf16>, vector<256x128xf32> -> vector<256x128xf32>
    %c1_15 = arith.constant 1 : index
    %c0_16 = arith.constant 0 : index
    %c0_17 = arith.constant 0 : index
    %c0_18 = arith.constant 0 : index
    %22 = vector.load %arg2[%c1_15, %c0_16, %c0_17, %c0_18] : memref<3x3x128x128xbf16, #tpu.memory_space<vmem>>, vector<1x1x128x128xbf16>
    %23 = vector.shape_cast %22 : vector<1x1x128x128xbf16> to vector<128x128xbf16>
    %cst_19 = arith.constant dense<0.000000e+00> : vector<256x128xf32>
    %24 = tpu.matmul %9, %23, %cst_19 {dimension_numbers = #tpu.dot_dimension_numbers<[1], [0], [0], [1], [0, 0, 1, 1], [], []>} : vector<256x128xbf16>, vector<128x128xbf16>, vector<256x128xf32> -> vector<256x128xf32>
    %25 = arith.addf %21, %24 : vector<256x128xf32>
    %c2_20 = arith.constant 2 : index
    %c1_21 = arith.constant 1 : index
    %c0_22 = arith.constant 0 : index
    %c0_23 = arith.constant 0 : index
    %26 = vector.load %arg2[%c2_20, %c1_21, %c0_22, %c0_23] : memref<3x3x128x128xbf16, #tpu.memory_space<vmem>>, vector<1x1x128x128xbf16>
    %27 = vector.shape_cast %26 : vector<1x1x128x128xbf16> to vector<128x128xbf16>
    %cst_24 = arith.constant dense<0.000000e+00> : vector<256x128xf32>
    %28 = tpu.matmul %6, %27, %cst_24 {dimension_numbers = #tpu.dot_dimension_numbers<[1], [0], [0], [1], [0, 0, 1, 1], [], []>} : vector<256x128xbf16>, vector<128x128xbf16>, vector<256x128xf32> -> vector<256x128xf32>
    %c0_25 = arith.constant 0 : index
    %c1_26 = arith.constant 1 : index
    %c0_27 = arith.constant 0 : index
    %c0_28 = arith.constant 0 : index
    %29 = vector.load %arg2[%c0_25, %c1_26, %c0_27, %c0_28] : memref<3x3x128x128xbf16, #tpu.memory_space<vmem>>, vector<1x1x128x128xbf16>
    %30 = vector.shape_cast %29 : vector<1x1x128x128xbf16> to vector<128x128xbf16>
    %cst_29 = arith.constant dense<0.000000e+00> : vector<256x128xf32>
    %31 = tpu.matmul %12, %30, %cst_29 {dimension_numbers = #tpu.dot_dimension_numbers<[1], [0], [0], [1], [0, 0, 1, 1], [], []>} : vector<256x128xbf16>, vector<128x128xbf16>, vector<256x128xf32> -> vector<256x128xf32>
    %32 = arith.addf %28, %31 : vector<256x128xf32>
    %c2_30 = arith.constant 2 : index
    %c2_31 = arith.constant 2 : index
    %c0_32 = arith.constant 0 : index
    %c0_33 = arith.constant 0 : index
    %33 = vector.load %arg2[%c2_30, %c2_31, %c0_32, %c0_33] : memref<3x3x128x128xbf16, #tpu.memory_space<vmem>>, vector<1x1x128x128xbf16>
    %34 = vector.shape_cast %33 : vector<1x1x128x128xbf16> to vector<128x128xbf16>
    %cst_34 = arith.constant dense<0.000000e+00> : vector<256x128xf32>
    %35 = tpu.matmul %6, %34, %cst_34 {dimension_numbers = #tpu.dot_dimension_numbers<[1], [0], [0], [1], [0, 0, 1, 1], [], []>} : vector<256x128xbf16>, vector<128x128xbf16>, vector<256x128xf32> -> vector<256x128xf32>
    %c2_35 = arith.constant 2 : index
    %c0_36 = arith.constant 0 : index
    %c0_37 = arith.constant 0 : index
    %c0_38 = arith.constant 0 : index
    %36 = vector.load %arg2[%c2_35, %c0_36, %c0_37, %c0_38] : memref<3x3x128x128xbf16, #tpu.memory_space<vmem>>, vector<1x1x128x128xbf16>
    %37 = vector.shape_cast %36 : vector<1x1x128x128xbf16> to vector<128x128xbf16>
    %cst_39 = arith.constant dense<0.000000e+00> : vector<256x128xf32>
    %38 = tpu.matmul %9, %37, %cst_39 {dimension_numbers = #tpu.dot_dimension_numbers<[1], [0], [0], [1], [0, 0, 1, 1], [], []>} : vector<256x128xbf16>, vector<128x128xbf16>, vector<256x128xf32> -> vector<256x128xf32>
    %39 = arith.addf %35, %38 : vector<256x128xf32>
    %c0_40 = arith.constant 0 : index
    %c2_41 = arith.constant 2 : index
    %c0_42 = arith.constant 0 : index
    %c0_43 = arith.constant 0 : index
    %40 = vector.load %arg2[%c0_40, %c2_41, %c0_42, %c0_43] : memref<3x3x128x128xbf16, #tpu.memory_space<vmem>>, vector<1x1x128x128xbf16>
    %41 = vector.shape_cast %40 : vector<1x1x128x128xbf16> to vector<128x128xbf16>
    %cst_44 = arith.constant dense<0.000000e+00> : vector<256x128xf32>
    %42 = tpu.matmul %12, %41, %cst_44 {dimension_numbers = #tpu.dot_dimension_numbers<[1], [0], [0], [1], [0, 0, 1, 1], [], []>} : vector<256x128xbf16>, vector<128x128xbf16>, vector<256x128xf32> -> vector<256x128xf32>
    %43 = arith.addf %39, %42 : vector<256x128xf32>
    %c0_45 = arith.constant 0 : index
    %c0_46 = arith.constant 0 : index
    %c0_47 = arith.constant 0 : index
    %c0_48 = arith.constant 0 : index
    %44 = vector.load %arg2[%c0_45, %c0_46, %c0_47, %c0_48] : memref<3x3x128x128xbf16, #tpu.memory_space<vmem>>, vector<1x1x128x128xbf16>
    %45 = vector.shape_cast %44 : vector<1x1x128x128xbf16> to vector<128x128xbf16>
    %cst_49 = arith.constant dense<0.000000e+00> : vector<256x128xf32>
    %46 = tpu.matmul %15, %45, %cst_49 {dimension_numbers = #tpu.dot_dimension_numbers<[1], [0], [0], [1], [0, 0, 1, 1], [], []>} : vector<256x128xbf16>, vector<128x128xbf16>, vector<256x128xf32> -> vector<256x128xf32>
    %47 = arith.addf %43, %46 : vector<256x128xf32>
    %48 = vector.shape_cast %18 : vector<256x128xf32> to vector<16x16x128xf32>
    %c0_50 = arith.constant 0 : index
    %c1_51 = arith.constant 1 : index
    %c8 = arith.constant 8 : index
    %c0_52 = arith.constant 0 : index
    %49 = vector.load %arg5[%c0_50, %c1_51, %c8, %c0_52] : memref<4x18x25x128xf32, #tpu.memory_space<vmem>>, vector<1x16x16x128xf32>
    %50 = vector.shape_cast %49 : vector<1x16x16x128xf32> to vector<16x16x128xf32>
    %51 = vector.shape_cast %48 : vector<16x16x128xf32> to vector<1x16x16x128xf32>
    tpu.vector_store %arg5[%c0_50, %c1_51, %c8, %c0_52], %51 {strides = array<i32>} : memref<4x18x25x128xf32, #tpu.memory_space<vmem>>, vector<1x16x16x128xf32>,
    %52 = vector.shape_cast %25 : vector<256x128xf32> to vector<16x16x128xf32>
    %c1_53 = arith.constant 1 : index
    %c1_54 = arith.constant 1 : index
    %c8_55 = arith.constant 8 : index
    %c0_56 = arith.constant 0 : index
    %53 = vector.load %arg5[%c1_53, %c1_54, %c8_55, %c0_56] : memref<4x18x25x128xf32, #tpu.memory_space<vmem>>, vector<1x16x16x128xf32>
    %54 = vector.shape_cast %53 : vector<1x16x16x128xf32> to vector<16x16x128xf32>
    %55 = vector.shape_cast %52 : vector<16x16x128xf32> to vector<1x16x16x128xf32>
    tpu.vector_store %arg5[%c1_53, %c1_54, %c8_55, %c0_56], %55 {strides = array<i32>} : memref<4x18x25x128xf32, #tpu.memory_space<vmem>>, vector<1x16x16x128xf32>,
    %56 = vector.shape_cast %32 : vector<256x128xf32> to vector<16x16x128xf32>
    %c2_57 = arith.constant 2 : index
    %c1_58 = arith.constant 1 : index
    %c8_59 = arith.constant 8 : index
    %c0_60 = arith.constant 0 : index
    %57 = vector.load %arg5[%c2_57, %c1_58, %c8_59, %c0_60] : memref<4x18x25x128xf32, #tpu.memory_space<vmem>>, vector<1x16x16x128xf32>
    %58 = vector.shape_cast %57 : vector<1x16x16x128xf32> to vector<16x16x128xf32>
    %59 = vector.shape_cast %56 : vector<16x16x128xf32> to vector<1x16x16x128xf32>
    tpu.vector_store %arg5[%c2_57, %c1_58, %c8_59, %c0_60], %59 {strides = array<i32>} : memref<4x18x25x128xf32, #tpu.memory_space<vmem>>, vector<1x16x16x128xf32>,
    %60 = vector.shape_cast %47 : vector<256x128xf32> to vector<16x16x128xf32>
    %c3 = arith.constant 3 : index
    %c1_61 = arith.constant 1 : index
    %c8_62 = arith.constant 8 : index
    %c0_63 = arith.constant 0 : index
    %61 = vector.load %arg5[%c3, %c1_61, %c8_62, %c0_63] : memref<4x18x25x128xf32, #tpu.memory_space<vmem>>, vector<1x16x16x128xf32>
    %62 = vector.shape_cast %61 : vector<1x16x16x128xf32> to vector<16x16x128xf32>
    %63 = vector.shape_cast %60 : vector<16x16x128xf32> to vector<1x16x16x128xf32>
    tpu.vector_store %arg5[%c3, %c1_61, %c8_62, %c0_63], %63 {strides = array<i32>} : memref<4x18x25x128xf32, #tpu.memory_space<vmem>>, vector<1x16x16x128xf32>,
    %c0_64 = arith.constant 0 : index
    %c0_65 = arith.constant 0 : index
    %64 = vector.load %arg3[%c0_64, %c0_65] : memref<1152x128xbf16, #tpu.memory_space<vmem>>, vector<1152x128xbf16>
    %c0_66 = arith.constant 0 : index
    %c0_67 = arith.constant 0 : index
    %c0_68 = arith.constant 0 : index
    %c0_69 = arith.constant 0 : index
    %65 = vector.load %arg5[%c0_66, %c0_67, %c0_68, %c0_69] : memref<4x18x25x128xf32, #tpu.memory_space<vmem>>, vector<1x18x25x128xf32>
    %66 = vector.shape_cast %65 : vector<1x18x25x128xf32> to vector<18x25x128xf32>
    %c1_70 = arith.constant 1 : index
    %c0_71 = arith.constant 0 : index
    %c0_72 = arith.constant 0 : index
    %c0_73 = arith.constant 0 : index
    %67 = vector.load %arg5[%c1_70, %c0_71, %c0_72, %c0_73] : memref<4x18x25x128xf32, #tpu.memory_space<vmem>>, vector<1x18x25x128xf32>
    %68 = vector.shape_cast %67 : vector<1x18x25x128xf32> to vector<18x25x128xf32>
    %c2_74 = arith.constant 2 : index
    %c0_75 = arith.constant 0 : index
    %c0_76 = arith.constant 0 : index
    %c0_77 = arith.constant 0 : index
    %69 = vector.load %arg5[%c2_74, %c0_75, %c0_76, %c0_77] : memref<4x18x25x128xf32, #tpu.memory_space<vmem>>, vector<1x18x25x128xf32>
    %70 = vector.shape_cast %69 : vector<1x18x25x128xf32> to vector<18x25x128xf32>
    %c3_78 = arith.constant 3 : index
    %c0_79 = arith.constant 0 : index
    %c0_80 = arith.constant 0 : index
    %c0_81 = arith.constant 0 : index
    %71 = vector.load %arg5[%c3_78, %c0_79, %c0_80, %c0_81] : memref<4x18x25x128xf32, #tpu.memory_space<vmem>>, vector<1x18x25x128xf32>
    %72 = vector.shape_cast %71 : vector<1x18x25x128xf32> to vector<18x25x128xf32>
    %cst_82 = arith.constant 0.000000e+00 : f32
    %73 = vector.broadcast %cst_82 : f32 to vector<1x128xf32>
    %cst_83 = arith.constant 0.000000e+00 : f32
    %74 = vector.broadcast %cst_83 : f32 to vector<1x128xf32>
    %75 = vector.extract_strided_slice %72 {offsets = [0, 7, 0], sizes = [16, 16, 128], strides = [1, 1, 1]} : vector<18x25x128xf32> to vector<16x16x128xf32>
    %76 = vector.shape_cast %75 : vector<16x16x128xf32> to vector<256x128xf32>
    %77 = arith.truncf %76 : vector<256x128xf32> to vector<256x128xbf16>
    %78 = vector.extract_strided_slice %70 {offsets = [0, 8, 0], sizes = [16, 16, 128], strides = [1, 1, 1]} : vector<18x25x128xf32> to vector<16x16x128xf32>
    %79 = vector.shape_cast %78 : vector<16x16x128xf32> to vector<256x128xf32>
    %80 = arith.truncf %79 : vector<256x128xf32> to vector<256x128xbf16>
    %81 = vector.extract_strided_slice %72 {offsets = [0, 8, 0], sizes = [16, 16, 128], strides = [1, 1, 1]} : vector<18x25x128xf32> to vector<16x16x128xf32>
    %82 = vector.shape_cast %81 : vector<16x16x128xf32> to vector<256x128xf32>
    %83 = arith.truncf %82 : vector<256x128xf32> to vector<256x128xbf16>
    %84 = vector.extract_strided_slice %68 {offsets = [1, 7, 0], sizes = [16, 16, 128], strides = [1, 1, 1]} : vector<18x25x128xf32> to vector<16x16x128xf32>
    %85 = vector.shape_cast %84 : vector<16x16x128xf32> to vector<256x128xf32>
    %86 = arith.truncf %85 : vector<256x128xf32> to vector<256x128xbf16>
    %87 = vector.extract_strided_slice %66 {offsets = [1, 8, 0], sizes = [16, 16, 128], strides = [1, 1, 1]} : vector<18x25x128xf32> to vector<16x16x128xf32>
    %88 = vector.shape_cast %87 : vector<16x16x128xf32> to vector<256x128xf32>
    %89 = arith.truncf %88 : vector<256x128xf32> to vector<256x128xbf16>
    %90 = vector.extract_strided_slice %68 {offsets = [1, 8, 0], sizes = [16, 16, 128], strides = [1, 1, 1]} : vector<18x25x128xf32> to vector<16x16x128xf32>
    %91 = vector.shape_cast %90 : vector<16x16x128xf32> to vector<256x128xf32>
    %92 = arith.truncf %91 : vector<256x128xf32> to vector<256x128xbf16>
    %93 = vector.extract_strided_slice %72 {offsets = [1, 7, 0], sizes = [16, 16, 128], strides = [1, 1, 1]} : vector<18x25x128xf32> to vector<16x16x128xf32>
    %94 = vector.shape_cast %93 : vector<16x16x128xf32> to vector<256x128xf32>
    %95 = arith.truncf %94 : vector<256x128xf32> to vector<256x128xbf16>
    %96 = vector.extract_strided_slice %70 {offsets = [1, 8, 0], sizes = [16, 16, 128], strides = [1, 1, 1]} : vector<18x25x128xf32> to vector<16x16x128xf32>
    %97 = vector.shape_cast %96 : vector<16x16x128xf32> to vector<256x128xf32>
    %98 = arith.truncf %97 : vector<256x128xf32> to vector<256x128xbf16>
    %99 = vector.extract_strided_slice %72 {offsets = [1, 8, 0], sizes = [16, 16, 128], strides = [1, 1, 1]} : vector<18x25x128xf32> to vector<16x16x128xf32>
    %100 = vector.shape_cast %99 : vector<16x16x128xf32> to vector<256x128xf32>
    %101 = arith.truncf %100 : vector<256x128xf32> to vector<256x128xbf16>
    %102 = tpu.concatenate %77, %80, %83, %86, %89, %92, %95, %98, %101 in 1 : vector<256x128xbf16>, vector<256x128xbf16>, vector<256x128xbf16>, vector<256x128xbf16>, vector<256x128xbf16>, vector<256x128xbf16>, vector<256x128xbf16>, vector<256x128xbf16>, vector<256x128xbf16> -> vector<256x1152xbf16>
    %cst_84 = arith.constant dense<0.000000e+00> : vector<256x128xf32>
    %103 = tpu.matmul %102, %64, %cst_84 {dimension_numbers = #tpu.dot_dimension_numbers<[1], [0], [0], [1], [0, 0, 1, 1], [], []>} : vector<256x1152xbf16>, vector<1152x128xbf16>, vector<256x128xf32> -> vector<256x128xf32>
    %cst_85 = arith.constant dense<0.000000e+00> : vector<128xf32>
    %104 = vector.multi_reduction <add>, %103, %cst_85 [0] : vector<256x128xf32> to vector<128xf32>
    %105 = vector.shape_cast %104 : vector<128xf32> to vector<1x128xf32>
    %106 = arith.addf %73, %105 : vector<1x128xf32>
    %107 = arith.mulf %103, %103 : vector<256x128xf32>
    %cst_86 = arith.constant dense<0.000000e+00> : vector<128xf32>
    %108 = vector.multi_reduction <add>, %107, %cst_86 [0] : vector<256x128xf32> to vector<128xf32>
    %109 = vector.shape_cast %108 : vector<128xf32> to vector<1x128xf32>
    %110 = arith.addf %74, %109 : vector<1x128xf32>
    %111 = vector.shape_cast %103 : vector<256x128xf32> to vector<16x16x128xf32>
    %c0_87 = arith.constant 0 : index
    %c0_88 = arith.constant 0 : index
    %c0_89 = arith.constant 0 : index
    %c0_90 = arith.constant 0 : index
    %112 = vector.load %arg6[%c0_87, %c0_88, %c0_89, %c0_90] : memref<4x16x16x128xf32, #tpu.memory_space<vmem>>, vector<1x16x16x128xf32>
    %113 = vector.shape_cast %112 : vector<1x16x16x128xf32> to vector<16x16x128xf32>
    %114 = vector.shape_cast %111 : vector<16x16x128xf32> to vector<1x16x16x128xf32>
    tpu.vector_store %arg6[%c0_87, %c0_88, %c0_89, %c0_90], %114 {strides = array<i32>} : memref<4x16x16x128xf32, #tpu.memory_space<vmem>>, vector<1x16x16x128xf32>,
    %115 = vector.extract_strided_slice %70 {offsets = [0, 8, 0], sizes = [16, 16, 128], strides = [1, 1, 1]} : vector<18x25x128xf32> to vector<16x16x128xf32>
    %116 = vector.shape_cast %115 : vector<16x16x128xf32> to vector<256x128xf32>
    %117 = arith.truncf %116 : vector<256x128xf32> to vector<256x128xbf16>
    %118 = vector.extract_strided_slice %72 {offsets = [0, 8, 0], sizes = [16, 16, 128], strides = [1, 1, 1]} : vector<18x25x128xf32> to vector<16x16x128xf32>
    %119 = vector.shape_cast %118 : vector<16x16x128xf32> to vector<256x128xf32>
    %120 = arith.truncf %119 : vector<256x128xf32> to vector<256x128xbf16>
    %121 = vector.extract_strided_slice %70 {offsets = [0, 9, 0], sizes = [16, 16, 128], strides = [1, 1, 1]} : vector<18x25x128xf32> to vector<16x16x128xf32>
    %122 = vector.shape_cast %121 : vector<16x16x128xf32> to vector<256x128xf32>
    %123 = arith.truncf %122 : vector<256x128xf32> to vector<256x128xbf16>
    %124 = vector.extract_strided_slice %66 {offsets = [1, 8, 0], sizes = [16, 16, 128], strides = [1, 1, 1]} : vector<18x25x128xf32> to vector<16x16x128xf32>
    %125 = vector.shape_cast %124 : vector<16x16x128xf32> to vector<256x128xf32>
    %126 = arith.truncf %125 : vector<256x128xf32> to vector<256x128xbf16>
    %127 = vector.extract_strided_slice %68 {offsets = [1, 8, 0], sizes = [16, 16, 128], strides = [1, 1, 1]} : vector<18x25x128xf32> to vector<16x16x128xf32>
    %128 = vector.shape_cast %127 : vector<16x16x128xf32> to vector<256x128xf32>
    %129 = arith.truncf %128 : vector<256x128xf32> to vector<256x128xbf16>
    %130 = vector.extract_strided_slice %66 {offsets = [1, 9, 0], sizes = [16, 16, 128], strides = [1, 1, 1]} : vector<18x25x128xf32> to vector<16x16x128xf32>
    %131 = vector.shape_cast %130 : vector<16x16x128xf32> to vector<256x128xf32>
    %132 = arith.truncf %131 : vector<256x128xf32> to vector<256x128xbf16>
    %133 = vector.extract_strided_slice %70 {offsets = [1, 8, 0], sizes = [16, 16, 128], strides = [1, 1, 1]} : vector<18x25x128xf32> to vector<16x16x128xf32>
    %134 = vector.shape_cast %133 : vector<16x16x128xf32> to vector<256x128xf32>
    %135 = arith.truncf %134 : vector<256x128xf32> to vector<256x128xbf16>
    %136 = vector.extract_strided_slice %72 {offsets = [1, 8, 0], sizes = [16, 16, 128], strides = [1, 1, 1]} : vector<18x25x128xf32> to vector<16x16x128xf32>
    %137 = vector.shape_cast %136 : vector<16x16x128xf32> to vector<256x128xf32>
    %138 = arith.truncf %137 : vector<256x128xf32> to vector<256x128xbf16>
    %139 = vector.extract_strided_slice %70 {offsets = [1, 9, 0], sizes = [16, 16, 128], strides = [1, 1, 1]} : vector<18x25x128xf32> to vector<16x16x128xf32>
    %140 = vector.shape_cast %139 : vector<16x16x128xf32> to vector<256x128xf32>
    %141 = arith.truncf %140 : vector<256x128xf32> to vector<256x128xbf16>
    %142 = tpu.concatenate %117, %120, %123, %126, %129, %132, %135, %138, %141 in 1 : vector<256x128xbf16>, vector<256x128xbf16>, vector<256x128xbf16>, vector<256x128xbf16>, vector<256x128xbf16>, vector<256x128xbf16>, vector<256x128xbf16>, vector<256x128xbf16>, vector<256x128xbf16> -> vector<256x1152xbf16>
    %cst_91 = arith.constant dense<0.000000e+00> : vector<256x128xf32>
    %143 = tpu.matmul %142, %64, %cst_91 {dimension_numbers = #tpu.dot_dimension_numbers<[1], [0], [0], [1], [0, 0, 1, 1], [], []>} : vector<256x1152xbf16>, vector<1152x128xbf16>, vector<256x128xf32> -> vector<256x128xf32>
    %cst_92 = arith.constant dense<0.000000e+00> : vector<128xf32>
    %144 = vector.multi_reduction <add>, %143, %cst_92 [0] : vector<256x128xf32> to vector<128xf32>
    %145 = vector.shape_cast %144 : vector<128xf32> to vector<1x128xf32>
    %146 = arith.addf %106, %145 : vector<1x128xf32>
    %147 = arith.mulf %143, %143 : vector<256x128xf32>
    %cst_93 = arith.constant dense<0.000000e+00> : vector<128xf32>
    %148 = vector.multi_reduction <add>, %147, %cst_93 [0] : vector<256x128xf32> to vector<128xf32>
    %149 = vector.shape_cast %148 : vector<128xf32> to vector<1x128xf32>
    %150 = arith.addf %110, %149 : vector<1x128xf32>
    %151 = vector.shape_cast %143 : vector<256x128xf32> to vector<16x16x128xf32>
    %c1_94 = arith.constant 1 : index
    %c0_95 = arith.constant 0 : index
    %c0_96 = arith.constant 0 : index
    %c0_97 = arith.constant 0 : index
    %152 = vector.load %arg6[%c1_94, %c0_95, %c0_96, %c0_97] : memref<4x16x16x128xf32, #tpu.memory_space<vmem>>, vector<1x16x16x128xf32>
    %153 = vector.shape_cast %152 : vector<1x16x16x128xf32> to vector<16x16x128xf32>
    %154 = vector.shape_cast %151 : vector<16x16x128xf32> to vector<1x16x16x128xf32>
    tpu.vector_store %arg6[%c1_94, %c0_95, %c0_96, %c0_97], %154 {strides = array<i32>} : memref<4x16x16x128xf32, #tpu.memory_space<vmem>>, vector<1x16x16x128xf32>,
    %155 = vector.extract_strided_slice %68 {offsets = [1, 7, 0], sizes = [16, 16, 128], strides = [1, 1, 1]} : vector<18x25x128xf32> to vector<16x16x128xf32>
    %156 = vector.shape_cast %155 : vector<16x16x128xf32> to vector<256x128xf32>
    %157 = arith.truncf %156 : vector<256x128xf32> to vector<256x128xbf16>
    %158 = vector.extract_strided_slice %66 {offsets = [1, 8, 0], sizes = [16, 16, 128], strides = [1, 1, 1]} : vector<18x25x128xf32> to vector<16x16x128xf32>
    %159 = vector.shape_cast %158 : vector<16x16x128xf32> to vector<256x128xf32>
    %160 = arith.truncf %159 : vector<256x128xf32> to vector<256x128xbf16>
    %161 = vector.extract_strided_slice %68 {offsets = [1, 8, 0], sizes = [16, 16, 128], strides = [1, 1, 1]} : vector<18x25x128xf32> to vector<16x16x128xf32>
    %162 = vector.shape_cast %161 : vector<16x16x128xf32> to vector<256x128xf32>
    %163 = arith.truncf %162 : vector<256x128xf32> to vector<256x128xbf16>
    %164 = vector.extract_strided_slice %72 {offsets = [1, 7, 0], sizes = [16, 16, 128], strides = [1, 1, 1]} : vector<18x25x128xf32> to vector<16x16x128xf32>
    %165 = vector.shape_cast %164 : vector<16x16x128xf32> to vector<256x128xf32>
    %166 = arith.truncf %165 : vector<256x128xf32> to vector<256x128xbf16>
    %167 = vector.extract_strided_slice %70 {offsets = [1, 8, 0], sizes = [16, 16, 128], strides = [1, 1, 1]} : vector<18x25x128xf32> to vector<16x16x128xf32>
    %168 = vector.shape_cast %167 : vector<16x16x128xf32> to vector<256x128xf32>
    %169 = arith.truncf %168 : vector<256x128xf32> to vector<256x128xbf16>
    %170 = vector.extract_strided_slice %72 {offsets = [1, 8, 0], sizes = [16, 16, 128], strides = [1, 1, 1]} : vector<18x25x128xf32> to vector<16x16x128xf32>
    %171 = vector.shape_cast %170 : vector<16x16x128xf32> to vector<256x128xf32>
    %172 = arith.truncf %171 : vector<256x128xf32> to vector<256x128xbf16>
    %173 = vector.extract_strided_slice %68 {offsets = [2, 7, 0], sizes = [16, 16, 128], strides = [1, 1, 1]} : vector<18x25x128xf32> to vector<16x16x128xf32>
    %174 = vector.shape_cast %173 : vector<16x16x128xf32> to vector<256x128xf32>
    %175 = arith.truncf %174 : vector<256x128xf32> to vector<256x128xbf16>
    %176 = vector.extract_strided_slice %66 {offsets = [2, 8, 0], sizes = [16, 16, 128], strides = [1, 1, 1]} : vector<18x25x128xf32> to vector<16x16x128xf32>
    %177 = vector.shape_cast %176 : vector<16x16x128xf32> to vector<256x128xf32>
    %178 = arith.truncf %177 : vector<256x128xf32> to vector<256x128xbf16>
    %179 = vector.extract_strided_slice %68 {offsets = [2, 8, 0], sizes = [16, 16, 128], strides = [1, 1, 1]} : vector<18x25x128xf32> to vector<16x16x128xf32>
    %180 = vector.shape_cast %179 : vector<16x16x128xf32> to vector<256x128xf32>
    %181 = arith.truncf %180 : vector<256x128xf32> to vector<256x128xbf16>
    %182 = tpu.concatenate %157, %160, %163, %166, %169, %172, %175, %178, %181 in 1 : vector<256x128xbf16>, vector<256x128xbf16>, vector<256x128xbf16>, vector<256x128xbf16>, vector<256x128xbf16>, vector<256x128xbf16>, vector<256x128xbf16>, vector<256x128xbf16>, vector<256x128xbf16> -> vector<256x1152xbf16>
    %cst_98 = arith.constant dense<0.000000e+00> : vector<256x128xf32>
    %183 = tpu.matmul %182, %64, %cst_98 {dimension_numbers = #tpu.dot_dimension_numbers<[1], [0], [0], [1], [0, 0, 1, 1], [], []>} : vector<256x1152xbf16>, vector<1152x128xbf16>, vector<256x128xf32> -> vector<256x128xf32>
    %cst_99 = arith.constant dense<0.000000e+00> : vector<128xf32>
    %184 = vector.multi_reduction <add>, %183, %cst_99 [0] : vector<256x128xf32> to vector<128xf32>
    %185 = vector.shape_cast %184 : vector<128xf32> to vector<1x128xf32>
    %186 = arith.addf %146, %185 : vector<1x128xf32>
    %187 = arith.mulf %183, %183 : vector<256x128xf32>
    %cst_100 = arith.constant dense<0.000000e+00> : vector<128xf32>
    %188 = vector.multi_reduction <add>, %187, %cst_100 [0] : vector<256x128xf32> to vector<128xf32>
    %189 = vector.shape_cast %188 : vector<128xf32> to vector<1x128xf32>
    %190 = arith.addf %150, %189 : vector<1x128xf32>
    %191 = vector.shape_cast %183 : vector<256x128xf32> to vector<16x16x128xf32>
    %c2_101 = arith.constant 2 : index
    %c0_102 = arith.constant 0 : index
    %c0_103 = arith.constant 0 : index
    %c0_104 = arith.constant 0 : index
    %192 = vector.load %arg6[%c2_101, %c0_102, %c0_103, %c0_104] : memref<4x16x16x128xf32, #tpu.memory_space<vmem>>, vector<1x16x16x128xf32>
    %193 = vector.shape_cast %192 : vector<1x16x16x128xf32> to vector<16x16x128xf32>
    %194 = vector.shape_cast %191 : vector<16x16x128xf32> to vector<1x16x16x128xf32>
    tpu.vector_store %arg6[%c2_101, %c0_102, %c0_103, %c0_104], %194 {strides = array<i32>} : memref<4x16x16x128xf32, #tpu.memory_space<vmem>>, vector<1x16x16x128xf32>,
    %195 = vector.extract_strided_slice %66 {offsets = [1, 8, 0], sizes = [16, 16, 128], strides = [1, 1, 1]} : vector<18x25x128xf32> to vector<16x16x128xf32>
    %196 = vector.shape_cast %195 : vector<16x16x128xf32> to vector<256x128xf32>
    %197 = arith.truncf %196 : vector<256x128xf32> to vector<256x128xbf16>
    %198 = vector.extract_strided_slice %68 {offsets = [1, 8, 0], sizes = [16, 16, 128], strides = [1, 1, 1]} : vector<18x25x128xf32> to vector<16x16x128xf32>
    %199 = vector.shape_cast %198 : vector<16x16x128xf32> to vector<256x128xf32>
    %200 = arith.truncf %199 : vector<256x128xf32> to vector<256x128xbf16>
    %201 = vector.extract_strided_slice %66 {offsets = [1, 9, 0], sizes = [16, 16, 128], strides = [1, 1, 1]} : vector<18x25x128xf32> to vector<16x16x128xf32>
    %202 = vector.shape_cast %201 : vector<16x16x128xf32> to vector<256x128xf32>
    %203 = arith.truncf %202 : vector<256x128xf32> to vector<256x128xbf16>
    %204 = vector.extract_strided_slice %70 {offsets = [1, 8, 0], sizes = [16, 16, 128], strides = [1, 1, 1]} : vector<18x25x128xf32> to vector<16x16x128xf32>
    %205 = vector.shape_cast %204 : vector<16x16x128xf32> to vector<256x128xf32>
    %206 = arith.truncf %205 : vector<256x128xf32> to vector<256x128xbf16>
    %207 = vector.extract_strided_slice %72 {offsets = [1, 8, 0], sizes = [16, 16, 128], strides = [1, 1, 1]} : vector<18x25x128xf32> to vector<16x16x128xf32>
    %208 = vector.shape_cast %207 : vector<16x16x128xf32> to vector<256x128xf32>
    %209 = arith.truncf %208 : vector<256x128xf32> to vector<256x128xbf16>
    %210 = vector.extract_strided_slice %70 {offsets = [1, 9, 0], sizes = [16, 16, 128], strides = [1, 1, 1]} : vector<18x25x128xf32> to vector<16x16x128xf32>
    %211 = vector.shape_cast %210 : vector<16x16x128xf32> to vector<256x128xf32>
    %212 = arith.truncf %211 : vector<256x128xf32> to vector<256x128xbf16>
    %213 = vector.extract_strided_slice %66 {offsets = [2, 8, 0], sizes = [16, 16, 128], strides = [1, 1, 1]} : vector<18x25x128xf32> to vector<16x16x128xf32>
    %214 = vector.shape_cast %213 : vector<16x16x128xf32> to vector<256x128xf32>
    %215 = arith.truncf %214 : vector<256x128xf32> to vector<256x128xbf16>
    %216 = vector.extract_strided_slice %68 {offsets = [2, 8, 0], sizes = [16, 16, 128], strides = [1, 1, 1]} : vector<18x25x128xf32> to vector<16x16x128xf32>
    %217 = vector.shape_cast %216 : vector<16x16x128xf32> to vector<256x128xf32>
    %218 = arith.truncf %217 : vector<256x128xf32> to vector<256x128xbf16>
    %219 = vector.extract_strided_slice %66 {offsets = [2, 9, 0], sizes = [16, 16, 128], strides = [1, 1, 1]} : vector<18x25x128xf32> to vector<16x16x128xf32>
    %220 = vector.shape_cast %219 : vector<16x16x128xf32> to vector<256x128xf32>
    %221 = arith.truncf %220 : vector<256x128xf32> to vector<256x128xbf16>
    %222 = tpu.concatenate %197, %200, %203, %206, %209, %212, %215, %218, %221 in 1 : vector<256x128xbf16>, vector<256x128xbf16>, vector<256x128xbf16>, vector<256x128xbf16>, vector<256x128xbf16>, vector<256x128xbf16>, vector<256x128xbf16>, vector<256x128xbf16>, vector<256x128xbf16> -> vector<256x1152xbf16>
    %cst_105 = arith.constant dense<0.000000e+00> : vector<256x128xf32>
    %223 = tpu.matmul %222, %64, %cst_105 {dimension_numbers = #tpu.dot_dimension_numbers<[1], [0], [0], [1], [0, 0, 1, 1], [], []>} : vector<256x1152xbf16>, vector<1152x128xbf16>, vector<256x128xf32> -> vector<256x128xf32>
    %cst_106 = arith.constant dense<0.000000e+00> : vector<128xf32>
    %224 = vector.multi_reduction <add>, %223, %cst_106 [0] : vector<256x128xf32> to vector<128xf32>
    %225 = vector.shape_cast %224 : vector<128xf32> to vector<1x128xf32>
    %226 = arith.addf %186, %225 : vector<1x128xf32>
    %227 = arith.mulf %223, %223 : vector<256x128xf32>
    %cst_107 = arith.constant dense<0.000000e+00> : vector<128xf32>
    %228 = vector.multi_reduction <add>, %227, %cst_107 [0] : vector<256x128xf32> to vector<128xf32>
    %229 = vector.shape_cast %228 : vector<128xf32> to vector<1x128xf32>
    %230 = arith.addf %190, %229 : vector<1x128xf32>
    %231 = vector.shape_cast %223 : vector<256x128xf32> to vector<16x16x128xf32>
    %c3_108 = arith.constant 3 : index
    %c0_109 = arith.constant 0 : index
    %c0_110 = arith.constant 0 : index
    %c0_111 = arith.constant 0 : index
    %232 = vector.load %arg6[%c3_108, %c0_109, %c0_110, %c0_111] : memref<4x16x16x128xf32, #tpu.memory_space<vmem>>, vector<1x16x16x128xf32>
    %233 = vector.shape_cast %232 : vector<1x16x16x128xf32> to vector<16x16x128xf32>
    %234 = vector.shape_cast %231 : vector<16x16x128xf32> to vector<1x16x16x128xf32>
    tpu.vector_store %arg6[%c3_108, %c0_109, %c0_110, %c0_111], %234 {strides = array<i32>} : memref<4x16x16x128xf32, #tpu.memory_space<vmem>>, vector<1x16x16x128xf32>,
    %cst_112 = arith.constant 9.765625E-4 : f32
    %235 = vector.broadcast %cst_112 : f32 to vector<1x128xf32>
    %236 = arith.mulf %226, %235 : vector<1x128xf32>
    %cst_113 = arith.constant 9.765625E-4 : f32
    %237 = vector.broadcast %cst_113 : f32 to vector<1x128xf32>
    %238 = arith.mulf %230, %237 : vector<1x128xf32>
    %239 = arith.mulf %236, %236 : vector<1x128xf32>
    %240 = arith.subf %238, %239 : vector<1x128xf32>
    %cst_114 = arith.constant 9.99999974E-6 : f32
    %241 = vector.broadcast %cst_114 : f32 to vector<1x128xf32>
    %242 = arith.addf %240, %241 : vector<1x128xf32>
    %243 = math.rsqrt %242 : vector<1x128xf32>
    %244 = vector.shape_cast %236 : vector<1x128xf32> to vector<1x1x128xf32>
    %245 = vector.shape_cast %243 : vector<1x128xf32> to vector<1x1x128xf32>
    %c0_115 = arith.constant 0 : index
    %c0_116 = arith.constant 0 : index
    %c0_117 = arith.constant 0 : index
    %c0_118 = arith.constant 0 : index
    %246 = vector.load %arg6[%c0_115, %c0_116, %c0_117, %c0_118] : memref<4x16x16x128xf32, #tpu.memory_space<vmem>>, vector<1x16x16x128xf32>
    %247 = vector.shape_cast %246 : vector<1x16x16x128xf32> to vector<16x16x128xf32>
    %248 = vector.broadcast %244 : vector<1x1x128xf32> to vector<16x16x128xf32>
    %249 = arith.subf %247, %248 : vector<16x16x128xf32>
    %250 = vector.broadcast %245 : vector<1x1x128xf32> to vector<16x16x128xf32>
    %251 = arith.mulf %249, %250 : vector<16x16x128xf32>
    %cst_119 = arith.constant 0.000000e+00 : f32
    %252 = vector.broadcast %cst_119 : f32 to vector<16x16x128xf32>
    %253 = arith.cmpf oge, %251, %252 : vector<16x16x128xf32>
    %cst_120 = arith.constant 0.00999999977 : f32
    %254 = vector.broadcast %cst_120 : f32 to vector<16x16x128xf32>
    %255 = arith.mulf %254, %251 : vector<16x16x128xf32>
    %256 = arith.select %253, %251, %255 : vector<16x16x128xi1>, vector<16x16x128xf32>
    %c0_121 = arith.constant 0 : index
    %c0_122 = arith.constant 0 : index
    %c0_123 = arith.constant 0 : index
    %c0_124 = arith.constant 0 : index
    %c0_125 = arith.constant 0 : index
    %257 = vector.load %arg4[%c0_121, %c0_122, %c0_123, %c0_124, %c0_125] : memref<1x4x16x16x128xf32, #tpu.memory_space<vmem>>, vector<1x1x16x16x128xf32>
    %258 = vector.shape_cast %257 : vector<1x1x16x16x128xf32> to vector<16x16x128xf32>
    %259 = vector.shape_cast %256 : vector<16x16x128xf32> to vector<1x1x16x16x128xf32>
    tpu.vector_store %arg4[%c0_121, %c0_122, %c0_123, %c0_124, %c0_125], %259 {strides = array<i32>} : memref<1x4x16x16x128xf32, #tpu.memory_space<vmem>>, vector<1x1x16x16x128xf32>,
    %c1_126 = arith.constant 1 : index
    %c0_127 = arith.constant 0 : index
    %c0_128 = arith.constant 0 : index
    %c0_129 = arith.constant 0 : index
    %260 = vector.load %arg6[%c1_126, %c0_127, %c0_128, %c0_129] : memref<4x16x16x128xf32, #tpu.memory_space<vmem>>, vector<1x16x16x128xf32>
    %261 = vector.shape_cast %260 : vector<1x16x16x128xf32> to vector<16x16x128xf32>
    %262 = vector.broadcast %244 : vector<1x1x128xf32> to vector<16x16x128xf32>
    %263 = arith.subf %261, %262 : vector<16x16x128xf32>
    %264 = vector.broadcast %245 : vector<1x1x128xf32> to vector<16x16x128xf32>
    %265 = arith.mulf %263, %264 : vector<16x16x128xf32>
    %cst_130 = arith.constant 0.000000e+00 : f32
    %266 = vector.broadcast %cst_130 : f32 to vector<16x16x128xf32>
    %267 = arith.cmpf oge, %265, %266 : vector<16x16x128xf32>
    %cst_131 = arith.constant 0.00999999977 : f32
    %268 = vector.broadcast %cst_131 : f32 to vector<16x16x128xf32>
    %269 = arith.mulf %268, %265 : vector<16x16x128xf32>
    %270 = arith.select %267, %265, %269 : vector<16x16x128xi1>, vector<16x16x128xf32>
    %c0_132 = arith.constant 0 : index
    %c1_133 = arith.constant 1 : index
    %c0_134 = arith.constant 0 : index
    %c0_135 = arith.constant 0 : index
    %c0_136 = arith.constant 0 : index
    %271 = vector.load %arg4[%c0_132, %c1_133, %c0_134, %c0_135, %c0_136] : memref<1x4x16x16x128xf32, #tpu.memory_space<vmem>>, vector<1x1x16x16x128xf32>
    %272 = vector.shape_cast %271 : vector<1x1x16x16x128xf32> to vector<16x16x128xf32>
    %273 = vector.shape_cast %270 : vector<16x16x128xf32> to vector<1x1x16x16x128xf32>
    tpu.vector_store %arg4[%c0_132, %c1_133, %c0_134, %c0_135, %c0_136], %273 {strides = array<i32>} : memref<1x4x16x16x128xf32, #tpu.memory_space<vmem>>, vector<1x1x16x16x128xf32>,
    %c2_137 = arith.constant 2 : index
    %c0_138 = arith.constant 0 : index
    %c0_139 = arith.constant 0 : index
    %c0_140 = arith.constant 0 : index
    %274 = vector.load %arg6[%c2_137, %c0_138, %c0_139, %c0_140] : memref<4x16x16x128xf32, #tpu.memory_space<vmem>>, vector<1x16x16x128xf32>
    %275 = vector.shape_cast %274 : vector<1x16x16x128xf32> to vector<16x16x128xf32>
    %276 = vector.broadcast %244 : vector<1x1x128xf32> to vector<16x16x128xf32>
    %277 = arith.subf %275, %276 : vector<16x16x128xf32>
    %278 = vector.broadcast %245 : vector<1x1x128xf32> to vector<16x16x128xf32>
    %279 = arith.mulf %277, %278 : vector<16x16x128xf32>
    %cst_141 = arith.constant 0.000000e+00 : f32
    %280 = vector.broadcast %cst_141 : f32 to vector<16x16x128xf32>
    %281 = arith.cmpf oge, %279, %280 : vector<16x16x128xf32>
    %cst_142 = arith.constant 0.00999999977 : f32
    %282 = vector.broadcast %cst_142 : f32 to vector<16x16x128xf32>
    %283 = arith.mulf %282, %279 : vector<16x16x128xf32>
    %284 = arith.select %281, %279, %283 : vector<16x16x128xi1>, vector<16x16x128xf32>
    %c0_143 = arith.constant 0 : index
    %c2_144 = arith.constant 2 : index
    %c0_145 = arith.constant 0 : index
    %c0_146 = arith.constant 0 : index
    %c0_147 = arith.constant 0 : index
    %285 = vector.load %arg4[%c0_143, %c2_144, %c0_145, %c0_146, %c0_147] : memref<1x4x16x16x128xf32, #tpu.memory_space<vmem>>, vector<1x1x16x16x128xf32>
    %286 = vector.shape_cast %285 : vector<1x1x16x16x128xf32> to vector<16x16x128xf32>
    %287 = vector.shape_cast %284 : vector<16x16x128xf32> to vector<1x1x16x16x128xf32>
    tpu.vector_store %arg4[%c0_143, %c2_144, %c0_145, %c0_146, %c0_147], %287 {strides = array<i32>} : memref<1x4x16x16x128xf32, #tpu.memory_space<vmem>>, vector<1x1x16x16x128xf32>,
    %c3_148 = arith.constant 3 : index
    %c0_149 = arith.constant 0 : index
    %c0_150 = arith.constant 0 : index
    %c0_151 = arith.constant 0 : index
    %288 = vector.load %arg6[%c3_148, %c0_149, %c0_150, %c0_151] : memref<4x16x16x128xf32, #tpu.memory_space<vmem>>, vector<1x16x16x128xf32>
    %289 = vector.shape_cast %288 : vector<1x16x16x128xf32> to vector<16x16x128xf32>
    %290 = vector.broadcast %244 : vector<1x1x128xf32> to vector<16x16x128xf32>
    %291 = arith.subf %289, %290 : vector<16x16x128xf32>
    %292 = vector.broadcast %245 : vector<1x1x128xf32> to vector<16x16x128xf32>
    %293 = arith.mulf %291, %292 : vector<16x16x128xf32>
    %cst_152 = arith.constant 0.000000e+00 : f32
    %294 = vector.broadcast %cst_152 : f32 to vector<16x16x128xf32>
    %295 = arith.cmpf oge, %293, %294 : vector<16x16x128xf32>
    %cst_153 = arith.constant 0.00999999977 : f32
    %296 = vector.broadcast %cst_153 : f32 to vector<16x16x128xf32>
    %297 = arith.mulf %296, %293 : vector<16x16x128xf32>
    %298 = arith.select %295, %293, %297 : vector<16x16x128xi1>, vector<16x16x128xf32>
    %c0_154 = arith.constant 0 : index
    %c3_155 = arith.constant 3 : index
    %c0_156 = arith.constant 0 : index
    %c0_157 = arith.constant 0 : index
    %c0_158 = arith.constant 0 : index
    %299 = vector.load %arg4[%c0_154, %c3_155, %c0_156, %c0_157, %c0_158] : memref<1x4x16x16x128xf32, #tpu.memory_space<vmem>>, vector<1x1x16x16x128xf32>
    %300 = vector.shape_cast %299 : vector<1x1x16x16x128xf32> to vector<16x16x128xf32>
    %301 = vector.shape_cast %298 : vector<16x16x128xf32> to vector<1x1x16x16x128xf32>
    tpu.vector_store %arg4[%c0_154, %c3_155, %c0_156, %c0_157, %c0_158], %301 {strides = array<i32>} : memref<1x4x16x16x128xf32, #tpu.memory_space<vmem>>, vector<1x1x16x16x128xf32>,
    return
  }
  func.func @transform_0(%arg0: i32) -> (i32, i32, i32, i32) {
    %c0_i32 = arith.constant 0 : i32
    %c0_i32_0 = arith.constant 0 : i32
    %c0_i32_1 = arith.constant 0 : i32
    %c0_i32_2 = arith.constant 0 : i32
    return %arg0, %c0_i32, %c0_i32_0, %c0_i32_1 : i32, i32, i32, i32
  }
  func.func @transform_1(%arg0: i32) -> (i32, i32, i32, i32) {
    %c0_i32 = arith.constant 0 : i32
    %c0_i32_0 = arith.constant 0 : i32
    %c0_i32_1 = arith.constant 0 : i32
    %c0_i32_2 = arith.constant 0 : i32
    %c0_i32_3 = arith.constant 0 : i32
    return %c0_i32, %c0_i32_0, %c0_i32_1, %c0_i32_2 : i32, i32, i32, i32
  }
  func.func @transform_2(%arg0: i32) -> (i32, i32) {
    %c0_i32 = arith.constant 0 : i32
    %c0_i32_0 = arith.constant 0 : i32
    %c0_i32_1 = arith.constant 0 : i32
    return %c0_i32, %c0_i32_0 : i32, i32
  }
  func.func @transform_3(%arg0: i32) -> (i32, i32, i32, i32, i32) {
    %c0_i32 = arith.constant 0 : i32
    %c0_i32_0 = arith.constant 0 : i32
    %c0_i32_1 = arith.constant 0 : i32
    %c0_i32_2 = arith.constant 0 : i32
    %c0_i32_3 = arith.constant 0 : i32
    return %arg0, %c0_i32, %c0_i32_0, %c0_i32_1, %c0_i32_2 : i32, i32, i32, i32, i32
  }
}

</mosaic_0001>

<llo_original>
// kernel: upsample2d_forward.1
$region0: #{upsample2d_forward.1}
  #allocation0 [shape = 'u32[]', space=smem, size = 0x4, offset = 0x4, fixed_abs, tag = 'smem constant byte address 0x4 - core index']
  #allocation1 [shape = 'u32[144,128]{1,0:T(1,128)}', space=vmem, size = 0x12000, scoped, tag = 'internal scratch']
  #allocation2 [shape = 'f32[4,18,25,128]{3,2,1,0:T(8,128)}', space=vmem, size = 0x120000, scoped, tag = 'scratch operand']
  #allocation3 [shape = 'f32[4,16,16,128]{3,2,1,0:T(8,128)}', space=vmem, size = 0x80000, scoped, tag = 'scratch operand']
  %s0 = inlined_call_operand.vmem [shape: f32[2,17,17,128], index: 0, kind: input, shape index: {}]
  %s1 = inlined_call_operand.vmem [shape: bf16[3,3,128,128], index: 1, kind: input, shape index: {}]
  %s2 = inlined_call_operand.vmem [shape: bf16[1152,128], index: 2, kind: input, shape index: {}]
  %s3 = inlined_call_operand.vmem [shape: f32[2,4,16,16,128], index: 3, kind: output, shape index: {}]
  %s4 = sld [smem:[#allocation0]]
  $region45: #{upsample2d_forward.1} parent=0
    _
  %s6 = ssub.s32 1, %s4
  %s7 = scalar_select 0, %s6, %s4
  loop: start=0, step=1, limit=4
  $region2: #{upsample2d_forward.1} parent=0 // loop_pre_header
    _
  $region3: #{upsample2d_forward.1} parent=0 // loop_header
    %s9 = sphi 0, %s13
    %p10 = scmp.ge.s32.totalorder %s9, 4
    %s19 = sphi 0, %s21
    %s22 = sphi 0, %s19
    %s23 = sphi 0, %s22
    %s39 = sphi 0, %s23
    %s43 = sphi 0, %s43
    %s45 = sphi 0, %s43
    %s46 = sphi 0, %s45
    %s60 = sphi 0, %s46
    %s64 = sphi 0, %s64
    %s66 = sphi 0, %s64
    %s67 = sphi 0, %s66
    %s81 = sphi 0, %s67
    %s87 = sphi 0, %s89
    %s90 = sphi 0, %s87
    %s91 = sphi 0, %s90
    %s107 = sphi 0, %s91
  $region4: #{upsample2d_forward.1} parent=0 // loop_header_branch
    %12 = sbr.rel (%p10) target = $region8
  $region5: #{upsample2d_forward.1} parent=0 // loop_body
    %s14 = ssub.s32 %s9, 1
    %s15 = ssub.s32 %s9, 2
    %s16 = sadd.s32 %s9, 1
    %s17 = ssub.s32 %s9, %s16
    %p18 = scmp.eq.s32.totalorder %s17, 0
    %s20 = sadd.s32 %s19, 1
    %s21 = scalar_select %p18, %s19, %s20
    %p24 = pneg %p18
    %p25 = scmp.eq.s32.totalorder %s9, 1
    %p26 = por %p24, %p25
    %p27 = scmp.ne.s32.totalorder %s19, %s22
    %p28 = scmp.eq.s32.totalorder %s9, 0
    %p29 = por %p27, %p28
    %p30 = scmp.ne.s32.totalorder %s19, %s22
    %p31 = scmp.eq.s32.totalorder %s14, 1
    %p32 = por %p30, %p31
    %p33 = scmp.ne.s32.totalorder %s22, %s23
    %p34 = scmp.eq.s32.totalorder %s14, 0
    %p35 = por %p33, %p34
    %p36 = scmp.ne.s32.totalorder %s22, %s23
    %p37 = scmp.eq.s32.totalorder %s15, 1
    %p38 = por %p36, %p37
    %p40 = scmp.ne.s32.totalorder %s23, %s39
    %p41 = scmp.eq.s32.totalorder %s15, 0
    %p42 = por %p40, %p41
    %s44 = sadd.s32 %s43, 1
    %p47 = scmp.eq.s32.totalorder %s9, 1
    %p48 = scmp.ne.s32.totalorder %s43, %s45
    %p49 = scmp.eq.s32.totalorder %s9, 0
    %p50 = por %p48, %p49
    %p51 = scmp.ne.s32.totalorder %s43, %s45
    %p52 = scmp.eq.s32.totalorder %s14, 1
    %p53 = por %p51, %p52
    %p54 = scmp.ne.s32.totalorder %s45, %s46
    %p55 = scmp.eq.s32.totalorder %s14, 0
    %p56 = por %p54, %p55
    %p57 = scmp.ne.s32.totalorder %s45, %s46
    %p58 = scmp.eq.s32.totalorder %s15, 1
    %p59 = por %p57, %p58
    %p61 = scmp.ne.s32.totalorder %s46, %s60
    %p62 = scmp.eq.s32.totalorder %s15, 0
    %p63 = por %p61, %p62
    %s65 = sadd.s32 %s64, 1
    %p68 = scmp.eq.s32.totalorder %s9, 1
    %p69 = scmp.ne.s32.totalorder %s64, %s66
    %p70 = scmp.eq.s32.totalorder %s9, 0
    %p71 = por %p69, %p70
    %p72 = scmp.ne.s32.totalorder %s64, %s66
    %p73 = scmp.eq.s32.totalorder %s14, 1
    %p74 = por %p72, %p73
    %p75 = scmp.ne.s32.totalorder %s66, %s67
    %p76 = scmp.eq.s32.totalorder %s14, 0
    %p77 = por %p75, %p76
    %p78 = scmp.ne.s32.totalorder %s66, %s67
    %p79 = scmp.eq.s32.totalorder %s15, 1
    %p80 = por %p78, %p79
    %p82 = scmp.ne.s32.totalorder %s67, %s81
    %p83 = scmp.eq.s32.totalorder %s15, 0
    %p84 = por %p82, %p83
    %s85 = ssub.s32 %s9, %s16
    %p86 = scmp.eq.s32.totalorder %s85, 0
    %s88 = sadd.s32 %s87, 1
    %s89 = scalar_select %p86, %s87, %s88
    %p92 = pneg %p86
    %p93 = scmp.eq.s32.totalorder %s9, 1
    %p94 = por %p92, %p93
    %p95 = scmp.ne.s32.totalorder %s87, %s90
    %p96 = scmp.eq.s32.totalorder %s9, 0
    %p97 = por %p95, %p96
    %p98 = scmp.ne.s32.totalorder %s87, %s90
    %p99 = scmp.eq.s32.totalorder %s14, 1
    %p100 = por %p98, %p99
    %p101 = scmp.ne.s32.totalorder %s90, %s91
    %p102 = scmp.eq.s32.totalorder %s14, 0
    %p103 = por %p101, %p102
    %p104 = scmp.ne.s32.totalorder %s90, %s91
    %p105 = scmp.eq.s32.totalorder %s15, 1
    %p106 = por %p104, %p105
    %p108 = scmp.ne.s32.totalorder %s91, %s107
    %p109 = scmp.eq.s32.totalorder %s15, 0
    %p110 = por %p108, %p109
    %p111 = scmp.le.s32.totalorder 1, %s9
    %p112 = scmp.lt.s32.totalorder %s9, 3
    %p113 = pnand %p111, %p112
    %p114 = pneg %p113
    // Predicated region
    $region9: #{upsample2d_forward.1} parent=5 // pred_check
      _
    $region10: #{upsample2d_forward.1} parent=5 // pred_check_branch
      %116 = sbr.rel (%p113) target = $region12
    $region11: #{upsample2d_forward.1} parent=5 // pred_region
      %s117 = ssub.s32 %s9, 1
      // Predicated region
      $region13: #{upsample2d_forward.1} parent=11 // pred_check
        %p118 = pneg %p56
      $region14: #{upsample2d_forward.1} parent=11 // pred_check_branch
        %120 = sbr.rel (%p118) target = $region16
      $region15: #{upsample2d_forward.1} parent=11 // pred_region
        _
      $region16: #{upsample2d_forward.1} parent=11 // pred_fallthru
        _
      // Predicated region
      $region17: #{upsample2d_forward.1} parent=11 // pred_check
        %p121 = pneg %p77
      $region18: #{upsample2d_forward.1} parent=11 // pred_check_branch
        %123 = sbr.rel (%p121) target = $region20
      $region19: #{upsample2d_forward.1} parent=11 // pred_region
        _
      $region20: #{upsample2d_forward.1} parent=11 // pred_fallthru
        _
    $region12: #{upsample2d_forward.1} parent=5 // pred_fallthru
      _
    %p124 = scmp.lt.s32.totalorder %s9, 2
    // Predicated region
    $region21: #{upsample2d_forward.1} parent=5 // pred_check
      %p125 = pneg %p124
    $region22: #{upsample2d_forward.1} parent=5 // pred_check_branch
      %127 = sbr.rel (%p125) target = $region24
    $region23: #{upsample2d_forward.1} parent=5 // pred_region
      // Predicated region
      $region25: #{upsample2d_forward.1} parent=23 // pred_check
        %p128 = pneg %p29
      $region26: #{upsample2d_forward.1} parent=23 // pred_check_branch
        %130 = sbr.rel (%p128) target = $region28
      $region27: #{upsample2d_forward.1} parent=23 // pred_region
        %p131 = scmp.lt.s32.totalorder %s9, 1
        %s132 = scalar_select %p131, %s9, 1
        %s133 = smul.addr %s132, 51
        %s134 = smul.addr %s133, 8
        %s135 = scalar_lea.vmem %s0, %s134
      $region28: #{upsample2d_forward.1} parent=23 // pred_fallthru
        _
    $region24: #{upsample2d_forward.1} parent=5 // pred_fallthru
      _
    %p136 = scmp.le.s32.totalorder 1, %s9
    %p137 = scmp.lt.s32.totalorder %s9, 3
    %p138 = pnand %p136, %p137
    %p139 = pneg %p138
    // Predicated region
    $region29: #{upsample2d_forward.1} parent=5 // pred_check
      _
    $region30: #{upsample2d_forward.1} parent=5 // pred_check_branch
      %141 = sbr.rel (%p138) target = $region32
    $region31: #{upsample2d_forward.1} parent=5 // pred_region
      %s142 = ssub.s32 %s9, 1
      %p143 = scmp.lt.s32.totalorder %s14, 1
      %s144 = scalar_select %p143, %s14, 1
      %s145 = smul.addr %s144, 51
      %s146 = smul.addr %s145, 8
      %s147 = scalar_lea.vmem %s0, %s146
      %p148 = pneg %p35
      %p149 = pneg %p32
      %p150 = pneg %p56
      %p151 = pneg %p53
      %p152 = pneg %p77
      %p153 = pneg %p74
      %p154 = pneg %p103
      %p155 = pneg %p100
      %p156 = scmp.lt.s32.totalorder %s14, 1
      %s157 = scalar_select %p156, %s14, 1
      %s158 = smul.addr %s157, 128
      %s159 = smul.addr %s158, 8
      %s160 = scalar_lea.vmem %s3, %s159
      %p161 = scmp.lt.s32.totalorder %s14, 1
      %s162 = scalar_select %p161, %s14, 1
      %s163 = smul.addr %s162, 51
      %s164 = smul.addr %s163, 8
      %s165 = scalar_lea.vmem %s0, %s164
      %p166 = scmp.lt.s32.totalorder %s14, 1
      %s167 = scalar_select %p166, %s14, 1
      %s168 = smul.addr %s167, 128
      %s169 = smul.addr %s168, 8
      %s170 = scalar_lea.vmem %s3, %s169
      %172 = vst [vmem:[#allocation2] sm:$0xff] 0.0
      %173 = vst [vmem:[#allocation2 + $0x8] sm:$0xff] 0.0
      %174 = vst [vmem:[#allocation2 + $0x10] sm:$0xff] 0.0
      %175 = vst [vmem:[#allocation2 + $0x18] sm:$0x1] 0.0
      %176 = vst [vmem:[#allocation2 + $0x20] sm:$0xff] 0.0
      %177 = vst [vmem:[#allocation2 + $0x28] sm:$0xff] 0.0
      %178 = vst [vmem:[#allocation2 + $0x30] sm:$0xff] 0.0
      %179 = vst [vmem:[#allocation2 + $0x38] sm:$0x1] 0.0
      %180 = vst [vmem:[#allocation2 + $0x40] sm:$0xff] 0.0
      %181 = vst [vmem:[#allocation2 + $0x48] sm:$0xff] 0.0
      %182 = vst [vmem:[#allocation2 + $0x50] sm:$0xff] 0.0
      %183 = vst [vmem:[#allocation2 + $0x58] sm:$0x1] 0.0
      %184 = vst [vmem:[#allocation2 + $0x60] sm:$0xff] 0.0
      %185 = vst [vmem:[#allocation2 + $0x68] sm:$0xff] 0.0
      %186 = vst [vmem:[#allocation2 + $0x70] sm:$0xff] 0.0
      %187 = vst [vmem:[#allocation2 + $0x78] sm:$0x1] 0.0
      %188 = vst [vmem:[#allocation2 + $0x80] sm:$0xff] 0.0
      %189 = vst [vmem:[#allocation2 + $0x88] sm:$0xff] 0.0
      %190 = vst [vmem:[#allocation2 + $0x90] sm:$0xff] 0.0
      %191 = vst [vmem:[#allocation2 + $0x98] sm:$0x1] 0.0
      %192 = vst [vmem:[#allocation2 + $0xa0] sm:$0xff] 0.0
      %193 = vst [vmem:[#allocation2 + $0xa8] sm:$0xff] 0.0
      %194 = vst [vmem:[#allocation2 + $0xb0] sm:$0xff] 0.0
      %195 = vst [vmem:[#allocation2 + $0xb8] sm:$0x1] 0.0
      %196 = vst [vmem:[#allocation2 + $0xc0] sm:$0xff] 0.0
      %197 = vst [vmem:[#allocation2 + $0xc8] sm:$0xff] 0.0
      %198 = vst [vmem:[#allocation2 + $0xd0] sm:$0xff] 0.0
      %199 = vst [vmem:[#allocation2 + $0xd8] sm:$0x1] 0.0
      %200 = vst [vmem:[#allocation2 + $0xe0] sm:$0xff] 0.0
      %201 = vst [vmem:[#allocation2 + $0xe8] sm:$0xff] 0.0
      %202 = vst [vmem:[#allocation2 + $0xf0] sm:$0xff] 0.0
      %203 = vst [vmem:[#allocation2 + $0xf8] sm:$0x1] 0.0
      %204 = vst [vmem:[#allocation2 + $0x100] sm:$0xff] 0.0
      %205 = vst [vmem:[#allocation2 + $0x108] sm:$0xff] 0.0
      %206 = vst [vmem:[#allocation2 + $0x110] sm:$0xff] 0.0
      %207 = vst [vmem:[#allocation2 + $0x118] sm:$0x1] 0.0
      %208 = vst [vmem:[#allocation2 + $0x120] sm:$0xff] 0.0
      %209 = vst [vmem:[#allocation2 + $0x128] sm:$0xff] 0.0
      %210 = vst [vmem:[#allocation2 + $0x130] sm:$0xff] 0.0
      %211 = vst [vmem:[#allocation2 + $0x138] sm:$0x1] 0.0
      %212 = vst [vmem:[#allocation2 + $0x140] sm:$0xff] 0.0
      %213 = vst [vmem:[#allocation2 + $0x148] sm:$0xff] 0.0
      %214 = vst [vmem:[#allocation2 + $0x150] sm:$0xff] 0.0
      %215 = vst [vmem:[#allocation2 + $0x158] sm:$0x1] 0.0
      %216 = vst [vmem:[#allocation2 + $0x160] sm:$0xff] 0.0
      %217 = vst [vmem:[#allocation2 + $0x168] sm:$0xff] 0.0
      %218 = vst [vmem:[#allocation2 + $0x170] sm:$0xff] 0.0
      %219 = vst [vmem:[#allocation2 + $0x178] sm:$0x1] 0.0
      %220 = vst [vmem:[#allocation2 + $0x180] sm:$0xff] 0.0
      %221 = vst [vmem:[#allocation2 + $0x188] sm:$0xff] 0.0
      %222 = vst [vmem:[#allocation2 + $0x190] sm:$0xff] 0.0
      %223 = vst [vmem:[#allocation2 + $0x198] sm:$0x1] 0.0
      %224 = vst [vmem:[#allocation2 + $0x1a0] sm:$0xff] 0.0
      %225 = vst [vmem:[#allocation2 + $0x1a8] sm:$0xff] 0.0
      %226 = vst [vmem:[#allocation2 + $0x1b0] sm:$0xff] 0.0
      %227 = vst [vmem:[#allocation2 + $0x1b8] sm:$0x1] 0.0
      %228 = vst [vmem:[#allocation2 + $0x1c0] sm:$0xff] 0.0
      %229 = vst [vmem:[#allocation2 + $0x1c8] sm:$0xff] 0.0
      %230 = vst [vmem:[#allocation2 + $0x1d0] sm:$0xff] 0.0
      %231 = vst [vmem:[#allocation2 + $0x1d8] sm:$0x1] 0.0
      %232 = vst [vmem:[#allocation2 + $0x1e0] sm:$0xff] 0.0
      %233 = vst [vmem:[#allocation2 + $0x1e8] sm:$0xff] 0.0
      %234 = vst [vmem:[#allocation2 + $0x1f0] sm:$0xff] 0.0
      %235 = vst [vmem:[#allocation2 + $0x1f8] sm:$0x1] 0.0
      %236 = vst [vmem:[#allocation2 + $0x200] sm:$0xff] 0.0
      %237 = vst [vmem:[#allocation2 + $0x208] sm:$0xff] 0.0
      %238 = vst [vmem:[#allocation2 + $0x210] sm:$0xff] 0.0
      %239 = vst [vmem:[#allocation2 + $0x218] sm:$0x1] 0.0
      %240 = vst [vmem:[#allocation2 + $0x220] sm:$0xff] 0.0
      %241 = vst [vmem:[#allocation2 + $0x228] sm:$0xff] 0.0
      %242 = vst [vmem:[#allocation2 + $0x230] sm:$0xff] 0.0
      %243 = vst [vmem:[#allocation2 + $0x238] sm:$0x1] 0.0
      %244 = vst [vmem:[#allocation2 + $0x240] sm:$0xff] 0.0
      %245 = vst [vmem:[#allocation2 + $0x248] sm:$0xff] 0.0
      %246 = vst [vmem:[#allocation2 + $0x250] sm:$0xff] 0.0
      %247 = vst [vmem:[#allocation2 + $0x258] sm:$0x1] 0.0
      %248 = vst [vmem:[#allocation2 + $0x260] sm:$0xff] 0.0
      %249 = vst [vmem:[#allocation2 + $0x268] sm:$0xff] 0.0
      %250 = vst [vmem:[#allocation2 + $0x270] sm:$0xff] 0.0
      %251 = vst [vmem:[#allocation2 + $0x278] sm:$0x1] 0.0
      %252 = vst [vmem:[#allocation2 + $0x280] sm:$0xff] 0.0
      %253 = vst [vmem:[#allocation2 + $0x288] sm:$0xff] 0.0
      %254 = vst [vmem:[#allocation2 + $0x290] sm:$0xff] 0.0
      %255 = vst [vmem:[#allocation2 + $0x298] sm:$0x1] 0.0
      %256 = vst [vmem:[#allocation2 + $0x2a0] sm:$0xff] 0.0
      %257 = vst [vmem:[#allocation2 + $0x2a8] sm:$0xff] 0.0
      %258 = vst [vmem:[#allocation2 + $0x2b0] sm:$0xff] 0.0
      %259 = vst [vmem:[#allocation2 + $0x2b8] sm:$0x1] 0.0
      %260 = vst [vmem:[#allocation2 + $0x2c0] sm:$0xff] 0.0
      %261 = vst [vmem:[#allocation2 + $0x2c8] sm:$0xff] 0.0
      %262 = vst [vmem:[#allocation2 + $0x2d0] sm:$0xff] 0.0
      %263 = vst [vmem:[#allocation2 + $0x2d8] sm:$0x1] 0.0
      %264 = vst [vmem:[#allocation2 + $0x2e0] sm:$0xff] 0.0
      %265 = vst [vmem:[#allocation2 + $0x2e8] sm:$0xff] 0.0
      %266 = vst [vmem:[#allocation2 + $0x2f0] sm:$0xff] 0.0
      %267 = vst [vmem:[#allocation2 + $0x2f8] sm:$0x1] 0.0
      %268 = vst [vmem:[#allocation2 + $0x300] sm:$0xff] 0.0
      %269 = vst [vmem:[#allocation2 + $0x308] sm:$0xff] 0.0
      %270 = vst [vmem:[#allocation2 + $0x310] sm:$0xff] 0.0
      %271 = vst [vmem:[#allocation2 + $0x318] sm:$0x1] 0.0
      %272 = vst [vmem:[#allocation2 + $0x320] sm:$0xff] 0.0
      %273 = vst [vmem:[#allocation2 + $0x328] sm:$0xff] 0.0
      %274 = vst [vmem:[#allocation2 + $0x330] sm:$0xff] 0.0
      %275 = vst [vmem:[#allocation2 + $0x338] sm:$0x1] 0.0
      %276 = vst [vmem:[#allocation2 + $0x340] sm:$0xff] 0.0
      %277 = vst [vmem:[#allocation2 + $0x348] sm:$0xff] 0.0
      %278 = vst [vmem:[#allocation2 + $0x350] sm:$0xff] 0.0
      %279 = vst [vmem:[#allocation2 + $0x358] sm:$0x1] 0.0
      %280 = vst [vmem:[#allocation2 + $0x360] sm:$0xff] 0.0
      %281 = vst [vmem:[#allocation2 + $0x368] sm:$0xff] 0.0
      %282 = vst [vmem:[#allocation2 + $0x370] sm:$0xff] 0.0
      %283 = vst [vmem:[#allocation2 + $0x378] sm:$0x1] 0.0
      %284 = vst [vmem:[#allocation2 + $0x380] sm:$0xff] 0.0
      %285 = vst [vmem:[#allocation2 + $0x388] sm:$0xff] 0.0
      %286 = vst [vmem:[#allocation2 + $0x390] sm:$0xff] 0.0
      %287 = vst [vmem:[#allocation2 + $0x398] sm:$0x1] 0.0
      %288 = vst [vmem:[#allocation2 + $0x3a0] sm:$0xff] 0.0
      %289 = vst [vmem:[#allocation2 + $0x3a8] sm:$0xff] 0.0
      %290 = vst [vmem:[#allocation2 + $0x3b0] sm:$0xff] 0.0
      %291 = vst [vmem:[#allocation2 + $0x3b8] sm:$0x1] 0.0
      %292 = vst [vmem:[#allocation2 + $0x3c0] sm:$0xff] 0.0
      %293 = vst [vmem:[#allocation2 + $0x3c8] sm:$0xff] 0.0
      %294 = vst [vmem:[#allocation2 + $0x3d0] sm:$0xff] 0.0
      %295 = vst [vmem:[#allocation2 + $0x3d8] sm:$0x1] 0.0
      %296 = vst [vmem:[#allocation2 + $0x3e0] sm:$0xff] 0.0
      %297 = vst [vmem:[#allocation2 + $0x3e8] sm:$0xff] 0.0
      %298 = vst [vmem:[#allocation2 + $0x3f0] sm:$0xff] 0.0
      %299 = vst [vmem:[#allocation2 + $0x3f8] sm:$0x1] 0.0
      %300 = vst [vmem:[#allocation2 + $0x400] sm:$0xff] 0.0
      %301 = vst [vmem:[#allocation2 + $0x408] sm:$0xff] 0.0
      %302 = vst [vmem:[#allocation2 + $0x410] sm:$0xff] 0.0
      %303 = vst [vmem:[#allocation2 + $0x418] sm:$0x1] 0.0
      %304 = vst [vmem:[#allocation2 + $0x420] sm:$0xff] 0.0
      %305 = vst [vmem:[#allocation2 + $0x428] sm:$0xff] 0.0
      %306 = vst [vmem:[#allocation2 + $0x430] sm:$0xff] 0.0
      %307 = vst [vmem:[#allocation2 + $0x438] sm:$0x1] 0.0
      %308 = vst [vmem:[#allocation2 + $0x440] sm:$0xff] 0.0
      %309 = vst [vmem:[#allocation2 + $0x448] sm:$0xff] 0.0
      %310 = vst [vmem:[#allocation2 + $0x450] sm:$0xff] 0.0
      %311 = vst [vmem:[#allocation2 + $0x458] sm:$0x1] 0.0
      %312 = vst [vmem:[#allocation2 + $0x460] sm:$0xff] 0.0
      %313 = vst [vmem:[#allocation2 + $0x468] sm:$0xff] 0.0
      %314 = vst [vmem:[#allocation2 + $0x470] sm:$0xff] 0.0
      %315 = vst [vmem:[#allocation2 + $0x478] sm:$0x1] 0.0
      %316 = vst [vmem:[#allocation2 + $0x480] sm:$0xff] 0.0
      %317 = vst [vmem:[#allocation2 + $0x488] sm:$0xff] 0.0
      %318 = vst [vmem:[#allocation2 + $0x490] sm:$0xff] 0.0
      %319 = vst [vmem:[#allocation2 + $0x498] sm:$0x1] 0.0
      %320 = vst [vmem:[#allocation2 + $0x4a0] sm:$0xff] 0.0
      %321 = vst [vmem:[#allocation2 + $0x4a8] sm:$0xff] 0.0
      %322 = vst [vmem:[#allocation2 + $0x4b0] sm:$0xff] 0.0
      %323 = vst [vmem:[#allocation2 + $0x4b8] sm:$0x1] 0.0
      %324 = vst [vmem:[#allocation2 + $0x4c0] sm:$0xff] 0.0
      %325 = vst [vmem:[#allocation2 + $0x4c8] sm:$0xff] 0.0
      %326 = vst [vmem:[#allocation2 + $0x4d0] sm:$0xff] 0.0
      %327 = vst [vmem:[#allocation2 + $0x4d8] sm:$0x1] 0.0
      %328 = vst [vmem:[#allocation2 + $0x4e0] sm:$0xff] 0.0
      %329 = vst [vmem:[#allocation2 + $0x4e8] sm:$0xff] 0.0
      %330 = vst [vmem:[#allocation2 + $0x4f0] sm:$0xff] 0.0
      %331 = vst [vmem:[#allocation2 + $0x4f8] sm:$0x1] 0.0
      %332 = vst [vmem:[#allocation2 + $0x500] sm:$0xff] 0.0
      %333 = vst [vmem:[#allocation2 + $0x508] sm:$0xff] 0.0
      %334 = vst [vmem:[#allocation2 + $0x510] sm:$0xff] 0.0
      %335 = vst [vmem:[#allocation2 + $0x518] sm:$0x1] 0.0
      %336 = vst [vmem:[#allocation2 + $0x520] sm:$0xff] 0.0
      %337 = vst [vmem:[#allocation2 + $0x528] sm:$0xff] 0.0
      %338 = vst [vmem:[#allocation2 + $0x530] sm:$0xff] 0.0
      %339 = vst [vmem:[#allocation2 + $0x538] sm:$0x1] 0.0
      %340 = vst [vmem:[#allocation2 + $0x540] sm:$0xff] 0.0
      %341 = vst [vmem:[#allocation2 + $0x548] sm:$0xff] 0.0
      %342 = vst [vmem:[#allocation2 + $0x550] sm:$0xff] 0.0
      %343 = vst [vmem:[#allocation2 + $0x558] sm:$0x1] 0.0
      %344 = vst [vmem:[#allocation2 + $0x560] sm:$0xff] 0.0
      %345 = vst [vmem:[#allocation2 + $0x568] sm:$0xff] 0.0
      %346 = vst [vmem:[#allocation2 + $0x570] sm:$0xff] 0.0
      %347 = vst [vmem:[#allocation2 + $0x578] sm:$0x1] 0.0
      %348 = vst [vmem:[#allocation2 + $0x580] sm:$0xff] 0.0
      %349 = vst [vmem:[#allocation2 + $0x588] sm:$0xff] 0.0
      %350 = vst [vmem:[#allocation2 + $0x590] sm:$0xff] 0.0
      %351 = vst [vmem:[#allocation2 + $0x598] sm:$0x1] 0.0
      %352 = vst [vmem:[#allocation2 + $0x5a0] sm:$0xff] 0.0
      %353 = vst [vmem:[#allocation2 + $0x5a8] sm:$0xff] 0.0
      %354 = vst [vmem:[#allocation2 + $0x5b0] sm:$0xff] 0.0
      %355 = vst [vmem:[#allocation2 + $0x5b8] sm:$0x1] 0.0
      %356 = vst [vmem:[#allocation2 + $0x5c0] sm:$0xff] 0.0
      %357 = vst [vmem:[#allocation2 + $0x5c8] sm:$0xff] 0.0
      %358 = vst [vmem:[#allocation2 + $0x5d0] sm:$0xff] 0.0
      %359 = vst [vmem:[#allocation2 + $0x5d8] sm:$0x1] 0.0
      %360 = vst [vmem:[#allocation2 + $0x5e0] sm:$0xff] 0.0
      %361 = vst [vmem:[#allocation2 + $0x5e8] sm:$0xff] 0.0
      %362 = vst [vmem:[#allocation2 + $0x5f0] sm:$0xff] 0.0
      %363 = vst [vmem:[#allocation2 + $0x5f8] sm:$0x1] 0.0
      %364 = vst [vmem:[#allocation2 + $0x600] sm:$0xff] 0.0
      %365 = vst [vmem:[#allocation2 + $0x608] sm:$0xff] 0.0
      %366 = vst [vmem:[#allocation2 + $0x610] sm:$0xff] 0.0
      %367 = vst [vmem:[#allocation2 + $0x618] sm:$0x1] 0.0
      %368 = vst [vmem:[#allocation2 + $0x620] sm:$0xff] 0.0
      %369 = vst [vmem:[#allocation2 + $0x628] sm:$0xff] 0.0
      %370 = vst [vmem:[#allocation2 + $0x630] sm:$0xff] 0.0
      %371 = vst [vmem:[#allocation2 + $0x638] sm:$0x1] 0.0
      %372 = vst [vmem:[#allocation2 + $0x640] sm:$0xff] 0.0
      %373 = vst [vmem:[#allocation2 + $0x648] sm:$0xff] 0.0
      %374 = vst [vmem:[#allocation2 + $0x650] sm:$0xff] 0.0
      %375 = vst [vmem:[#allocation2 + $0x658] sm:$0x1] 0.0
      %376 = vst [vmem:[#allocation2 + $0x660] sm:$0xff] 0.0
      %377 = vst [vmem:[#allocation2 + $0x668] sm:$0xff] 0.0
      %378 = vst [vmem:[#allocation2 + $0x670] sm:$0xff] 0.0
      %379 = vst [vmem:[#allocation2 + $0x678] sm:$0x1] 0.0
      %380 = vst [vmem:[#allocation2 + $0x680] sm:$0xff] 0.0
      %381 = vst [vmem:[#allocation2 + $0x688] sm:$0xff] 0.0
      %382 = vst [vmem:[#allocation2 + $0x690] sm:$0xff] 0.0
      %383 = vst [vmem:[#allocation2 + $0x698] sm:$0x1] 0.0
      %384 = vst [vmem:[#allocation2 + $0x6a0] sm:$0xff] 0.0
      %385 = vst [vmem:[#allocation2 + $0x6a8] sm:$0xff] 0.0
      %386 = vst [vmem:[#allocation2 + $0x6b0] sm:$0xff] 0.0
      %387 = vst [vmem:[#allocation2 + $0x6b8] sm:$0x1] 0.0
      %388 = vst [vmem:[#allocation2 + $0x6c0] sm:$0xff] 0.0
      %389 = vst [vmem:[#allocation2 + $0x6c8] sm:$0xff] 0.0
      %390 = vst [vmem:[#allocation2 + $0x6d0] sm:$0xff] 0.0
      %391 = vst [vmem:[#allocation2 + $0x6d8] sm:$0x1] 0.0
      %392 = vst [vmem:[#allocation2 + $0x6e0] sm:$0xff] 0.0
      %393 = vst [vmem:[#allocation2 + $0x6e8] sm:$0xff] 0.0
      %394 = vst [vmem:[#allocation2 + $0x6f0] sm:$0xff] 0.0
      %395 = vst [vmem:[#allocation2 + $0x6f8] sm:$0x1] 0.0
      %396 = vst [vmem:[#allocation2 + $0x700] sm:$0xff] 0.0
      %397 = vst [vmem:[#allocation2 + $0x708] sm:$0xff] 0.0
      %398 = vst [vmem:[#allocation2 + $0x710] sm:$0xff] 0.0
      %399 = vst [vmem:[#allocation2 + $0x718] sm:$0x1] 0.0
      %400 = vst [vmem:[#allocation2 + $0x720] sm:$0xff] 0.0
      %401 = vst [vmem:[#allocation2 + $0x728] sm:$0xff] 0.0
      %402 = vst [vmem:[#allocation2 + $0x730] sm:$0xff] 0.0
      %403 = vst [vmem:[#allocation2 + $0x738] sm:$0x1] 0.0
      %404 = vst [vmem:[#allocation2 + $0x740] sm:$0xff] 0.0
      %405 = vst [vmem:[#allocation2 + $0x748] sm:$0xff] 0.0
      %406 = vst [vmem:[#allocation2 + $0x750] sm:$0xff] 0.0
      %407 = vst [vmem:[#allocation2 + $0x758] sm:$0x1] 0.0
      %408 = vst [vmem:[#allocation2 + $0x760] sm:$0xff] 0.0
      %409 = vst [vmem:[#allocation2 + $0x768] sm:$0xff] 0.0
      %410 = vst [vmem:[#allocation2 + $0x770] sm:$0xff] 0.0
      %411 = vst [vmem:[#allocation2 + $0x778] sm:$0x1] 0.0
      %412 = vst [vmem:[#allocation2 + $0x780] sm:$0xff] 0.0
      %413 = vst [vmem:[#allocation2 + $0x788] sm:$0xff] 0.0
      %414 = vst [vmem:[#allocation2 + $0x790] sm:$0xff] 0.0
      %415 = vst [vmem:[#allocation2 + $0x798] sm:$0x1] 0.0
      %416 = vst [vmem:[#allocation2 + $0x7a0] sm:$0xff] 0.0
      %417 = vst [vmem:[#allocation2 + $0x7a8] sm:$0xff] 0.0
      %418 = vst [vmem:[#allocation2 + $0x7b0] sm:$0xff] 0.0
      %419 = vst [vmem:[#allocation2 + $0x7b8] sm:$0x1] 0.0
      %420 = vst [vmem:[#allocation2 + $0x7c0] sm:$0xff] 0.0
      %421 = vst [vmem:[#allocation2 + $0x7c8] sm:$0xff] 0.0
      %422 = vst [vmem:[#allocation2 + $0x7d0] sm:$0xff] 0.0
      %423 = vst [vmem:[#allocation2 + $0x7d8] sm:$0x1] 0.0
      %424 = vst [vmem:[#allocation2 + $0x7e0] sm:$0xff] 0.0
      %425 = vst [vmem:[#allocation2 + $0x7e8] sm:$0xff] 0.0
      %426 = vst [vmem:[#allocation2 + $0x7f0] sm:$0xff] 0.0
      %427 = vst [vmem:[#allocation2 + $0x7f8] sm:$0x1] 0.0
      %428 = vst [vmem:[#allocation2 + $0x800] sm:$0xff] 0.0
      %429 = vst [vmem:[#allocation2 + $0x808] sm:$0xff] 0.0
      %430 = vst [vmem:[#allocation2 + $0x810] sm:$0xff] 0.0
      %431 = vst [vmem:[#allocation2 + $0x818] sm:$0x1] 0.0
      %432 = vst [vmem:[#allocation2 + $0x820] sm:$0xff] 0.0
      %433 = vst [vmem:[#allocation2 + $0x828] sm:$0xff] 0.0
      %434 = vst [vmem:[#allocation2 + $0x830] sm:$0xff] 0.0
      %435 = vst [vmem:[#allocation2 + $0x838] sm:$0x1] 0.0
      %436 = vst [vmem:[#allocation2 + $0x840] sm:$0xff] 0.0
      %437 = vst [vmem:[#allocation2 + $0x848] sm:$0xff] 0.0
      %438 = vst [vmem:[#allocation2 + $0x850] sm:$0xff] 0.0
      %439 = vst [vmem:[#allocation2 + $0x858] sm:$0x1] 0.0
      %440 = vst [vmem:[#allocation2 + $0x860] sm:$0xff] 0.0
      %441 = vst [vmem:[#allocation2 + $0x868] sm:$0xff] 0.0
      %442 = vst [vmem:[#allocation2 + $0x870] sm:$0xff] 0.0
      %443 = vst [vmem:[#allocation2 + $0x878] sm:$0x1] 0.0
      %444 = vst [vmem:[#allocation2 + $0x880] sm:$0xff] 0.0
      %445 = vst [vmem:[#allocation2 + $0x888] sm:$0xff] 0.0
      %446 = vst [vmem:[#allocation2 + $0x890] sm:$0xff] 0.0
      %447 = vst [vmem:[#allocation2 + $0x898] sm:$0x1] 0.0
      %448 = vst [vmem:[#allocation2 + $0x8a0] sm:$0xff] 0.0
      %449 = vst [vmem:[#allocation2 + $0x8a8] sm:$0xff] 0.0
      %450 = vst [vmem:[#allocation2 + $0x8b0] sm:$0xff] 0.0
      %451 = vst [vmem:[#allocation2 + $0x8b8] sm:$0x1] 0.0
      %452 = vst [vmem:[#allocation2 + $0x8c0] sm:$0xff] 0.0
      %453 = vst [vmem:[#allocation2 + $0x8c8] sm:$0xff] 0.0
      %454 = vst [vmem:[#allocation2 + $0x8d0] sm:$0xff] 0.0
      %455 = vst [vmem:[#allocation2 + $0x8d8] sm:$0x1] 0.0
      %456 = vst [vmem:[#allocation2 + $0x8e0] sm:$0xff] 0.0
      %457 = vst [vmem:[#allocation2 + $0x8e8] sm:$0xff] 0.0
      %458 = vst [vmem:[#allocation2 + $0x8f0] sm:$0xff] 0.0
      %459 = vst [vmem:[#allocation2 + $0x8f8] sm:$0x1] 0.0
      %v460 = vld [vmem:[%s165] sm:$0xff]
      %v461 = vld [vmem:[%s165 + $0x8] sm:$0xff]
      %v462 = vld [vmem:[%s165 + $0x10] sm:$0x1]
      %v463 = vld [vmem:[%s165 + $0x18] sm:$0xff]
      %v464 = vld [vmem:[%s165 + $0x20] sm:$0xff]
      %v465 = vld [vmem:[%s165 + $0x28] sm:$0x1]
      %v466 = vld [vmem:[%s165 + $0x30] sm:$0xff]
      %v467 = vld [vmem:[%s165 + $0x38] sm:$0xff]
      %v468 = vld [vmem:[%s165 + $0x40] sm:$0x1]
      %v469 = vld [vmem:[%s165 + $0x48] sm:$0xff]
      %v470 = vld [vmem:[%s165 + $0x50] sm:$0xff]
      %v471 = vld [vmem:[%s165 + $0x58] sm:$0x1]
      %v472 = vld [vmem:[%s165 + $0x60] sm:$0xff]
      %v473 = vld [vmem:[%s165 + $0x68] sm:$0xff]
      %v474 = vld [vmem:[%s165 + $0x70] sm:$0x1]
      %v475 = vld [vmem:[%s165 + $0x78] sm:$0xff]
      %v476 = vld [vmem:[%s165 + $0x80] sm:$0xff]
      %v477 = vld [vmem:[%s165 + $0x88] sm:$0x1]
      %v478 = vld [vmem:[%s165 + $0x90] sm:$0xff]
      %v479 = vld [vmem:[%s165 + $0x98] sm:$0xff]
      %v480 = vld [vmem:[%s165 + $0xa0] sm:$0x1]
      %v481 = vld [vmem:[%s165 + $0xa8] sm:$0xff]
      %v482 = vld [vmem:[%s165 + $0xb0] sm:$0xff]
      %v483 = vld [vmem:[%s165 + $0xb8] sm:$0x1]
      %v484 = vld [vmem:[%s165 + $0xc0] sm:$0xff]
      %v485 = vld [vmem:[%s165 + $0xc8] sm:$0xff]
      %v486 = vld [vmem:[%s165 + $0xd0] sm:$0x1]
      %v487 = vld [vmem:[%s165 + $0xd8] sm:$0xff]
      %v488 = vld [vmem:[%s165 + $0xe0] sm:$0xff]
      %v489 = vld [vmem:[%s165 + $0xe8] sm:$0x1]
      %v490 = vld [vmem:[%s165 + $0xf0] sm:$0xff]
      %v491 = vld [vmem:[%s165 + $0xf8] sm:$0xff]
      %v492 = vld [vmem:[%s165 + $0x100] sm:$0x1]
      %v493 = vld [vmem:[%s165 + $0x108] sm:$0xff]
      %v494 = vld [vmem:[%s165 + $0x110] sm:$0xff]
      %v495 = vld [vmem:[%s165 + $0x118] sm:$0x1]
      %v496 = vld [vmem:[%s165 + $0x120] sm:$0xff]
      %v497 = vld [vmem:[%s165 + $0x128] sm:$0xff]
      %v498 = vld [vmem:[%s165 + $0x130] sm:$0x1]
      %v499 = vld [vmem:[%s165 + $0x138] sm:$0xff]
      %v500 = vld [vmem:[%s165 + $0x140] sm:$0xff]
      %v501 = vld [vmem:[%s165 + $0x148] sm:$0x1]
      %v502 = vld [vmem:[%s165 + $0x150] sm:$0xff]
      %v503 = vld [vmem:[%s165 + $0x158] sm:$0xff]
      %v504 = vld [vmem:[%s165 + $0x160] sm:$0x1]
      %v505 = vld [vmem:[%s165 + $0x168] sm:$0xff]
      %v506 = vld [vmem:[%s165 + $0x170] sm:$0xff]
      %v507 = vld [vmem:[%s165 + $0x178] sm:$0x1]
      %v508 = vld [vmem:[%s165 + $0x180] sm:$0xff]
      %v509 = vld [vmem:[%s165 + $0x188] sm:$0xff]
      %v510 = vld [vmem:[%s165 + $0x190] sm:$0x1]
      %v511 = vpack.c.bf16 %v461, %v460
      %v512 = vpack.c.bf16 %v464, %v463
      %v513 = vpack.c.bf16 %v467, %v466
      %v514 = vpack.c.bf16 %v470, %v469
      %v515 = vpack.c.bf16 %v473, %v472
      %v516 = vpack.c.bf16 %v476, %v475
      %v517 = vpack.c.bf16 %v479, %v478
      %v518 = vpack.c.bf16 %v482, %v481
      %v519 = vpack.c.bf16 %v485, %v484
      %v520 = vpack.c.bf16 %v488, %v487
      %v521 = vpack.c.bf16 %v491, %v490
      %v522 = vpack.c.bf16 %v494, %v493
      %v523 = vpack.c.bf16 %v497, %v496
      %v524 = vpack.c.bf16 %v500, %v499
      %v525 = vpack.c.bf16 %v503, %v502
      %v526 = vpack.c.bf16 %v506, %v505
      %vm575 = vcmask 1046528
      %v576 = vrot.slane %v460, 1
      %v577 = vrot.slane %v461, 1
      %v578 = vsel %vm575, %v576, %v577
      %v579 = vrot.slane %v462, 1
      %v580 = vsel %vm575, %v577, %v579
      %v581 = vrot.slane %v463, 1
      %v582 = vrot.slane %v464, 1
      %v583 = vsel %vm575, %v581, %v582
      %v584 = vrot.slane %v465, 1
      %v585 = vsel %vm575, %v582, %v584
      %v586 = vrot.slane %v466, 1
      %v587 = vrot.slane %v467, 1
      %v588 = vsel %vm575, %v586, %v587
      %v589 = vrot.slane %v468, 1
      %v590 = vsel %vm575, %v587, %v589
      %v591 = vrot.slane %v469, 1
      %v592 = vrot.slane %v470, 1
      %v593 = vsel %vm575, %v591, %v592
      %v594 = vrot.slane %v471, 1
      %v595 = vsel %vm575, %v592, %v594
      %v596 = vrot.slane %v472, 1
      %v597 = vrot.slane %v473, 1
      %v598 = vsel %vm575, %v596, %v597
      %v599 = vrot.slane %v474, 1
      %v600 = vsel %vm575, %v597, %v599
      %v601 = vrot.slane %v475, 1
      %v602 = vrot.slane %v476, 1
      %v603 = vsel %vm575, %v601, %v602
      %v604 = vrot.slane %v477, 1
      %v605 = vsel %vm575, %v602, %v604
      %v606 = vrot.slane %v478, 1
      %v607 = vrot.slane %v479, 1
      %v608 = vsel %vm575, %v606, %v607
      %v609 = vrot.slane %v480, 1
      %v610 = vsel %vm575, %v607, %v609
      %v611 = vrot.slane %v481, 1
      %v612 = vrot.slane %v482, 1
      %v613 = vsel %vm575, %v611, %v612
      %v614 = vrot.slane %v483, 1
      %v615 = vsel %vm575, %v612, %v614
      %v616 = vrot.slane %v484, 1
      %v617 = vrot.slane %v485, 1
      %v618 = vsel %vm575, %v616, %v617
      %v619 = vrot.slane %v486, 1
      %v620 = vsel %vm575, %v617, %v619
      %v621 = vrot.slane %v487, 1
      %v622 = vrot.slane %v488, 1
      %v623 = vsel %vm575, %v621, %v622
      %v624 = vrot.slane %v489, 1
      %v625 = vsel %vm575, %v622, %v624
      %v626 = vrot.slane %v490, 1
      %v627 = vrot.slane %v491, 1
      %v628 = vsel %vm575, %v626, %v627
      %v629 = vrot.slane %v492, 1
      %v630 = vsel %vm575, %v627, %v629
      %v631 = vrot.slane %v493, 1
      %v632 = vrot.slane %v494, 1
      %v633 = vsel %vm575, %v631, %v632
      %v634 = vrot.slane %v495, 1
      %v635 = vsel %vm575, %v632, %v634
      %v636 = vrot.slane %v496, 1
      %v637 = vrot.slane %v497, 1
      %v638 = vsel %vm575, %v636, %v637
      %v639 = vrot.slane %v498, 1
      %v640 = vsel %vm575, %v637, %v639
      %v641 = vrot.slane %v499, 1
      %v642 = vrot.slane %v500, 1
      %v643 = vsel %vm575, %v641, %v642
      %v644 = vrot.slane %v501, 1
      %v645 = vsel %vm575, %v642, %v644
      %v646 = vrot.slane %v502, 1
      %v647 = vrot.slane %v503, 1
      %v648 = vsel %vm575, %v646, %v647
      %v649 = vrot.slane %v504, 1
      %v650 = vsel %vm575, %v647, %v649
      %v651 = vrot.slane %v505, 1
      %v652 = vrot.slane %v506, 1
      %v653 = vsel %vm575, %v651, %v652
      %v654 = vrot.slane %v507, 1
      %v655 = vsel %vm575, %v652, %v654
      %v688 = vpack.c.bf16 %v580, %v578
      %v689 = vpack.c.bf16 %v585, %v583
      %v690 = vpack.c.bf16 %v590, %v588
      %v691 = vpack.c.bf16 %v595, %v593
      %v692 = vpack.c.bf16 %v600, %v598
      %v693 = vpack.c.bf16 %v605, %v603
      %v694 = vpack.c.bf16 %v610, %v608
      %v695 = vpack.c.bf16 %v615, %v613
      %v696 = vpack.c.bf16 %v620, %v618
      %v697 = vpack.c.bf16 %v625, %v623
      %v698 = vpack.c.bf16 %v630, %v628
      %v699 = vpack.c.bf16 %v635, %v633
      %v700 = vpack.c.bf16 %v640, %v638
      %v701 = vpack.c.bf16 %v645, %v643
      %v702 = vpack.c.bf16 %v650, %v648
      %v703 = vpack.c.bf16 %v655, %v653
      %v704 = vpack.c.bf16 %v509, %v508
      %v708 = vrot.slane %v508, 1
      %v709 = vrot.slane %v509, 1
      %v710 = vsel %vm575, %v708, %v709
      %v711 = vrot.slane %v510, 1
      %v712 = vsel %vm575, %v709, %v711
      %v715 = vpack.c.bf16 %v712, %v710
      %s716 = scalar_lea.vmem %s1, 256
      %v717 = vld [vmem:[%s716] sm:$0xf]
      %v718 = vld [vmem:[%s716 + $0x4] sm:$0xf]
      %v719 = vld [vmem:[%s716 + $0x8] sm:$0xf]
      %v720 = vld [vmem:[%s716 + $0xc] sm:$0xf]
      %v721 = vld [vmem:[%s716 + $0x10] sm:$0xf]
      %v722 = vld [vmem:[%s716 + $0x14] sm:$0xf]
      %v723 = vld [vmem:[%s716 + $0x18] sm:$0xf]
      %v724 = vld [vmem:[%s716 + $0x1c] sm:$0xf]
      %v725 = vld [vmem:[%s716 + $0x20] sm:$0xf]
      %v726 = vld [vmem:[%s716 + $0x24] sm:$0xf]
      %v727 = vld [vmem:[%s716 + $0x28] sm:$0xf]
      %v728 = vld [vmem:[%s716 + $0x2c] sm:$0xf]
      %v729 = vld [vmem:[%s716 + $0x30] sm:$0xf]
      %v730 = vld [vmem:[%s716 + $0x34] sm:$0xf]
      %v731 = vld [vmem:[%s716 + $0x38] sm:$0xf]
      %v732 = vld [vmem:[%s716 + $0x3c] sm:$0xf]
      %v749 = vunpack.c.l.b16 %v717
      %v750 = vunpack.c.l.b16 %v718
      %v751 = vunpack.c.l.b16 %v719
      %v752 = vunpack.c.l.b16 %v720
      %v753 = vunpack.c.l.b16 %v721
      %v754 = vunpack.c.l.b16 %v722
      %v755 = vunpack.c.l.b16 %v723
      %v756 = vunpack.c.l.b16 %v724
      %v757 = vunpack.c.l.b16 %v725
      %v758 = vunpack.c.l.b16 %v726
      %v759 = vunpack.c.l.b16 %v727
      %v760 = vunpack.c.l.b16 %v728
      %v761 = vunpack.c.l.b16 %v729
      %v762 = vunpack.c.l.b16 %v730
      %v763 = vunpack.c.l.b16 %v731
      %v764 = vunpack.c.l.b16 %v732
      %v765 = vpack.c.b16 %v750, %v749
      %v766 = vpack.c.b16 %v752, %v751
      %v767 = vpack.c.b16 %v754, %v753
      %v768 = vpack.c.b16 %v756, %v755
      %v769 = vpack.c.b16 %v758, %v757
      %v770 = vpack.c.b16 %v760, %v759
      %v771 = vpack.c.b16 %v762, %v761
      %v772 = vpack.c.b16 %v764, %v763
      %781 = vmatprep.subr.bf16.mxu0 0
      %782 = vmatpush1.bf16.msra.mxu0 %v772
      %783 = vmatprep.subr.bf16.mxu0 0
      %784 = vmatpush1.bf16.msra.mxu0 %v771
      %785 = vmatprep.subr.bf16.mxu0 0
      %786 = vmatpush1.bf16.msra.mxu0 %v770
      %787 = vmatprep.subr.bf16.mxu0 0
      %788 = vmatpush1.bf16.msra.mxu0 %v769
      %789 = vmatprep.subr.bf16.mxu0 0
      %790 = vmatpush1.bf16.msra.mxu0 %v768
      %791 = vmatprep.subr.bf16.mxu0 0
      %792 = vmatpush1.bf16.msra.mxu0 %v767
      %793 = vmatprep.subr.bf16.mxu0 0
      %794 = vmatpush1.bf16.msra.mxu0 %v766
      %795 = vmatprep.subr.bf16.mxu0 0
      %796 = vmatpush1.bf16.msra.mxu0 %v765
      %797 = vmatprep.subr.bf16.mxu0 0
      %798 = vmatpush2.bf16.msra.mxu0 0
      %799 = vmatprep.subr.bf16.mxu0 0
      %800 = vmatpush2.bf16.msra.mxu0 0
      %801 = vmatprep.subr.bf16.mxu0 0
      %802 = vmatpush2.bf16.msra.mxu0 0
      %803 = vmatprep.subr.bf16.mxu0 0
      %804 = vmatpush2.bf16.msra.mxu0 0
      %805 = vmatprep.subr.bf16.mxu0 0
      %806 = vmatpush2.bf16.msra.mxu0 0
      %807 = vmatprep.subr.bf16.mxu0 0
      %808 = vmatpush2.bf16.msra.mxu0 0
      %809 = vmatprep.subr.bf16.mxu0 0
      %810 = vmatpush2.bf16.msra.mxu0 0
      %811 = vmatprep.subr.bf16.mxu0 0
      %812 = vmatpush2.bf16.msra.mxu0 0
      %813 = vmatprep.mubr.bf16.mxu0 0
      %814 = vmatmul.mubr.bf16.gmra.mxu0 %v511
      %v815 = vpop.f32.mrf.mxu0
      %v816 = vadd.f32 0.0, %v815
      %v817 = vpop.f32.mrf.mxu0
      %v818 = vpop.f32.mrf.mxu0
      %v819 = vadd.f32 0.0, %v818
      %v820 = vpop.f32.mrf.mxu0
      %821 = vmatprep.mubr.bf16.mxu0 0
      %822 = vmatmul.mubr.bf16.gmra.mxu0 %v512
      %v823 = vpop.f32.mrf.mxu0
      %v824 = vadd.f32 0.0, %v823
      %v825 = vpop.f32.mrf.mxu0
      %v826 = vpop.f32.mrf.mxu0
      %v827 = vadd.f32 0.0, %v826
      %v828 = vpop.f32.mrf.mxu0
      %829 = vmatprep.mubr.bf16.mxu0 0
      %830 = vmatmul.mubr.bf16.gmra.mxu0 %v513
      %v831 = vpop.f32.mrf.mxu0
      %v832 = vadd.f32 0.0, %v831
      %v833 = vpop.f32.mrf.mxu0
      %v834 = vpop.f32.mrf.mxu0
      %v835 = vadd.f32 0.0, %v834
      %v836 = vpop.f32.mrf.mxu0
      %837 = vmatprep.mubr.bf16.mxu0 0
      %838 = vmatmul.mubr.bf16.gmra.mxu0 %v514
      %v839 = vpop.f32.mrf.mxu0
      %v840 = vadd.f32 0.0, %v839
      %v841 = vpop.f32.mrf.mxu0
      %v842 = vpop.f32.mrf.mxu0
      %v843 = vadd.f32 0.0, %v842
      %v844 = vpop.f32.mrf.mxu0
      %845 = vmatprep.mubr.bf16.mxu0 0
      %846 = vmatmul.mubr.bf16.gmra.mxu0 %v515
      %v847 = vpop.f32.mrf.mxu0
      %v848 = vadd.f32 0.0, %v847
      %v849 = vpop.f32.mrf.mxu0
      %v850 = vpop.f32.mrf.mxu0
      %v851 = vadd.f32 0.0, %v850
      %v852 = vpop.f32.mrf.mxu0
      %853 = vmatprep.mubr.bf16.mxu0 0
      %854 = vmatmul.mubr.bf16.gmra.mxu0 %v516
      %v855 = vpop.f32.mrf.mxu0
      %v856 = vadd.f32 0.0, %v855
      %v857 = vpop.f32.mrf.mxu0
      %v858 = vpop.f32.mrf.mxu0
      %v859 = vadd.f32 0.0, %v858
      %v860 = vpop.f32.mrf.mxu0
      %861 = vmatprep.mubr.bf16.mxu0 0
      %862 = vmatmul.mubr.bf16.gmra.mxu0 %v517
      %v863 = vpop.f32.mrf.mxu0
      %v864 = vadd.f32 0.0, %v863
      %v865 = vpop.f32.mrf.mxu0
      %v866 = vpop.f32.mrf.mxu0
      %v867 = vadd.f32 0.0, %v866
      %v868 = vpop.f32.mrf.mxu0
      %869 = vmatprep.mubr.bf16.mxu0 0
      %870 = vmatmul.mubr.bf16.gmra.mxu0 %v518
      %v871 = vpop.f32.mrf.mxu0
      %v872 = vadd.f32 0.0, %v871
      %v873 = vpop.f32.mrf.mxu0
      %v874 = vpop.f32.mrf.mxu0
      %v875 = vadd.f32 0.0, %v874
      %v876 = vpop.f32.mrf.mxu0
      %877 = vmatprep.mubr.bf16.mxu0 0
      %878 = vmatmul.mubr.bf16.gmra.mxu0 %v519
      %v879 = vpop.f32.mrf.mxu0
      %v880 = vadd.f32 0.0, %v879
      %v881 = vpop.f32.mrf.mxu0
      %v882 = vpop.f32.mrf.mxu0
      %v883 = vadd.f32 0.0, %v882
      %v884 = vpop.f32.mrf.mxu0
      %885 = vmatprep.mubr.bf16.mxu0 0
      %886 = vmatmul.mubr.bf16.gmra.mxu0 %v520
      %v887 = vpop.f32.mrf.mxu0
      %v888 = vadd.f32 0.0, %v887
      %v889 = vpop.f32.mrf.mxu0
      %v890 = vpop.f32.mrf.mxu0
      %v891 = vadd.f32 0.0, %v890
      %v892 = vpop.f32.mrf.mxu0
      %893 = vmatprep.mubr.bf16.mxu0 0
      %894 = vmatmul.mubr.bf16.gmra.mxu0 %v521
      %v895 = vpop.f32.mrf.mxu0
      %v896 = vadd.f32 0.0, %v895
      %v897 = vpop.f32.mrf.mxu0
      %v898 = vpop.f32.mrf.mxu0
      %v899 = vadd.f32 0.0, %v898
      %v900 = vpop.f32.mrf.mxu0
      %901 = vmatprep.mubr.bf16.mxu0 0
      %902 = vmatmul.mubr.bf16.gmra.mxu0 %v522
      %v903 = vpop.f32.mrf.mxu0
      %v904 = vadd.f32 0.0, %v903
      %v905 = vpop.f32.mrf.mxu0
      %v906 = vpop.f32.mrf.mxu0
      %v907 = vadd.f32 0.0, %v906
      %v908 = vpop.f32.mrf.mxu0
      %909 = vmatprep.mubr.bf16.mxu0 0
      %910 = vmatmul.mubr.bf16.gmra.mxu0 %v523
      %v911 = vpop.f32.mrf.mxu0
      %v912 = vadd.f32 0.0, %v911
      %v913 = vpop.f32.mrf.mxu0
      %v914 = vpop.f32.mrf.mxu0
      %v915 = vadd.f32 0.0, %v914
      %v916 = vpop.f32.mrf.mxu0
      %917 = vmatprep.mubr.bf16.mxu0 0
      %918 = vmatmul.mubr.bf16.gmra.mxu0 %v524
      %v919 = vpop.f32.mrf.mxu0
      %v920 = vadd.f32 0.0, %v919
      %v921 = vpop.f32.mrf.mxu0
      %v922 = vpop.f32.mrf.mxu0
      %v923 = vadd.f32 0.0, %v922
      %v924 = vpop.f32.mrf.mxu0
      %925 = vmatprep.mubr.bf16.mxu0 0
      %926 = vmatmul.mubr.bf16.gmra.mxu0 %v525
      %v927 = vpop.f32.mrf.mxu0
      %v928 = vadd.f32 0.0, %v927
      %v929 = vpop.f32.mrf.mxu0
      %v930 = vpop.f32.mrf.mxu0
      %v931 = vadd.f32 0.0, %v930
      %v932 = vpop.f32.mrf.mxu0
      %933 = vmatprep.mubr.bf16.mxu0 0
      %934 = vmatmul.mubr.bf16.gmra.mxu0 %v526
      %v935 = vpop.f32.mrf.mxu0
      %v936 = vadd.f32 0.0, %v935
      %v937 = vpop.f32.mrf.mxu0
      %v938 = vpop.f32.mrf.mxu0
      %v939 = vadd.f32 0.0, %v938
      %v940 = vpop.f32.mrf.mxu0
      %941 = vdwg.mxu0
      %s942 = scalar_lea.vmem %s1, 320
      %v943 = vld [vmem:[%s942] sm:$0xf]
      %v944 = vld [vmem:[%s942 + $0x4] sm:$0xf]
      %v945 = vld [vmem:[%s942 + $0x8] sm:$0xf]
      %v946 = vld [vmem:[%s942 + $0xc] sm:$0xf]
      %v947 = vld [vmem:[%s942 + $0x10] sm:$0xf]
      %v948 = vld [vmem:[%s942 + $0x14] sm:$0xf]
      %v949 = vld [vmem:[%s942 + $0x18] sm:$0xf]
      %v950 = vld [vmem:[%s942 + $0x1c] sm:$0xf]
      %v951 = vld [vmem:[%s942 + $0x20] sm:$0xf]
      %v952 = vld [vmem:[%s942 + $0x24] sm:$0xf]
      %v953 = vld [vmem:[%s942 + $0x28] sm:$0xf]
      %v954 = vld [vmem:[%s942 + $0x2c] sm:$0xf]
      %v955 = vld [vmem:[%s942 + $0x30] sm:$0xf]
      %v956 = vld [vmem:[%s942 + $0x34] sm:$0xf]
      %v957 = vld [vmem:[%s942 + $0x38] sm:$0xf]
      %v958 = vld [vmem:[%s942 + $0x3c] sm:$0xf]
      %s959 = scalar_lea.vmem %s1, 192
      %v960 = vld [vmem:[%s959] sm:$0xf]
      %v961 = vld [vmem:[%s959 + $0x4] sm:$0xf]
      %v962 = vld [vmem:[%s959 + $0x8] sm:$0xf]
      %v963 = vld [vmem:[%s959 + $0xc] sm:$0xf]
      %v964 = vld [vmem:[%s959 + $0x10] sm:$0xf]
      %v965 = vld [vmem:[%s959 + $0x14] sm:$0xf]
      %v966 = vld [vmem:[%s959 + $0x18] sm:$0xf]
      %v967 = vld [vmem:[%s959 + $0x1c] sm:$0xf]
      %v968 = vld [vmem:[%s959 + $0x20] sm:$0xf]
      %v969 = vld [vmem:[%s959 + $0x24] sm:$0xf]
      %v970 = vld [vmem:[%s959 + $0x28] sm:$0xf]
      %v971 = vld [vmem:[%s959 + $0x2c] sm:$0xf]
      %v972 = vld [vmem:[%s959 + $0x30] sm:$0xf]
      %v973 = vld [vmem:[%s959 + $0x34] sm:$0xf]
      %v974 = vld [vmem:[%s959 + $0x38] sm:$0xf]
      %v975 = vld [vmem:[%s959 + $0x3c] sm:$0xf]
      %v992 = vunpack.c.l.b16 %v960
      %v993 = vunpack.c.l.b16 %v961
      %v994 = vunpack.c.l.b16 %v962
      %v995 = vunpack.c.l.b16 %v963
      %v996 = vunpack.c.l.b16 %v964
      %v997 = vunpack.c.l.b16 %v965
      %v998 = vunpack.c.l.b16 %v966
      %v999 = vunpack.c.l.b16 %v967
      %v1000 = vunpack.c.l.b16 %v968
      %v1001 = vunpack.c.l.b16 %v969
      %v1002 = vunpack.c.l.b16 %v970
      %v1003 = vunpack.c.l.b16 %v971
      %v1004 = vunpack.c.l.b16 %v972
      %v1005 = vunpack.c.l.b16 %v973
      %v1006 = vunpack.c.l.b16 %v974
      %v1007 = vunpack.c.l.b16 %v975
      %v1008 = vpack.c.b16 %v993, %v992
      %v1009 = vpack.c.b16 %v995, %v994
      %v1010 = vpack.c.b16 %v997, %v996
      %v1011 = vpack.c.b16 %v999, %v998
      %v1012 = vpack.c.b16 %v1001, %v1000
      %v1013 = vpack.c.b16 %v1003, %v1002
      %v1014 = vpack.c.b16 %v1005, %v1004
      %v1015 = vpack.c.b16 %v1007, %v1006
      %1024 = vmatprep.subr.bf16.mxu0 0
      %1025 = vmatpush1.bf16.msra.mxu0 %v1015
      %1026 = vmatprep.subr.bf16.mxu0 0
      %1027 = vmatpush1.bf16.msra.mxu0 %v1014
      %1028 = vmatprep.subr.bf16.mxu0 0
      %1029 = vmatpush1.bf16.msra.mxu0 %v1013
      %1030 = vmatprep.subr.bf16.mxu0 0
      %1031 = vmatpush1.bf16.msra.mxu0 %v1012
      %1032 = vmatprep.subr.bf16.mxu0 0
      %1033 = vmatpush1.bf16.msra.mxu0 %v1011
      %1034 = vmatprep.subr.bf16.mxu0 0
      %1035 = vmatpush1.bf16.msra.mxu0 %v1010
      %1036 = vmatprep.subr.bf16.mxu0 0
      %1037 = vmatpush1.bf16.msra.mxu0 %v1009
      %1038 = vmatprep.subr.bf16.mxu0 0
      %1039 = vmatpush1.bf16.msra.mxu0 %v1008
      %1040 = vmatprep.subr.bf16.mxu0 0
      %1041 = vmatpush2.bf16.msra.mxu0 0
      %1042 = vmatprep.subr.bf16.mxu0 0
      %1043 = vmatpush2.bf16.msra.mxu0 0
      %1044 = vmatprep.subr.bf16.mxu0 0
      %1045 = vmatpush2.bf16.msra.mxu0 0
      %1046 = vmatprep.subr.bf16.mxu0 0
      %1047 = vmatpush2.bf16.msra.mxu0 0
      %1048 = vmatprep.subr.bf16.mxu0 0
      %1049 = vmatpush2.bf16.msra.mxu0 0
      %1050 = vmatprep.subr.bf16.mxu0 0
      %1051 = vmatpush2.bf16.msra.mxu0 0
      %1052 = vmatprep.subr.bf16.mxu0 0
      %1053 = vmatpush2.bf16.msra.mxu0 0
      %1054 = vmatprep.subr.bf16.mxu0 0
      %1055 = vmatpush2.bf16.msra.mxu0 0
      %1056 = vmatprep.mubr.bf16.mxu0 0
      %1057 = vmatmul.mubr.bf16.gmra.mxu0 %v688
      %v1058 = vpop.f32.mrf.mxu0
      %v1059 = vadd.f32 0.0, %v1058
      %v1060 = vpop.f32.mrf.mxu0
      %v1061 = vpop.f32.mrf.mxu0
      %v1062 = vadd.f32 0.0, %v1061
      %v1063 = vpop.f32.mrf.mxu0
      %1064 = vmatprep.mubr.bf16.mxu0 0
      %1065 = vmatmul.mubr.bf16.gmra.mxu0 %v689
      %v1066 = vpop.f32.mrf.mxu0
      %v1067 = vadd.f32 0.0, %v1066
      %v1068 = vpop.f32.mrf.mxu0
      %v1069 = vpop.f32.mrf.mxu0
      %v1070 = vadd.f32 0.0, %v1069
      %v1071 = vpop.f32.mrf.mxu0
      %1072 = vmatprep.mubr.bf16.mxu0 0
      %1073 = vmatmul.mubr.bf16.gmra.mxu0 %v690
      %v1074 = vpop.f32.mrf.mxu0
      %v1075 = vadd.f32 0.0, %v1074
      %v1076 = vpop.f32.mrf.mxu0
      %v1077 = vpop.f32.mrf.mxu0
      %v1078 = vadd.f32 0.0, %v1077
      %v1079 = vpop.f32.mrf.mxu0
      %1080 = vmatprep.mubr.bf16.mxu0 0
      %1081 = vmatmul.mubr.bf16.gmra.mxu0 %v691
      %v1082 = vpop.f32.mrf.mxu0
      %v1083 = vadd.f32 0.0, %v1082
      %v1084 = vpop.f32.mrf.mxu0
      %v1085 = vpop.f32.mrf.mxu0
      %v1086 = vadd.f32 0.0, %v1085
      %v1087 = vpop.f32.mrf.mxu0
      %1088 = vmatprep.mubr.bf16.mxu0 0
      %1089 = vmatmul.mubr.bf16.gmra.mxu0 %v692
      %v1090 = vpop.f32.mrf.mxu0
      %v1091 = vadd.f32 0.0, %v1090
      %v1092 = vpop.f32.mrf.mxu0
      %v1093 = vpop.f32.mrf.mxu0
      %v1094 = vadd.f32 0.0, %v1093
      %v1095 = vpop.f32.mrf.mxu0
      %1096 = vmatprep.mubr.bf16.mxu0 0
      %1097 = vmatmul.mubr.bf16.gmra.mxu0 %v693
      %v1098 = vpop.f32.mrf.mxu0
      %v1099 = vadd.f32 0.0, %v1098
      %v1100 = vpop.f32.mrf.mxu0
      %v1101 = vpop.f32.mrf.mxu0
      %v1102 = vadd.f32 0.0, %v1101
      %v1103 = vpop.f32.mrf.mxu0
      %1104 = vmatprep.mubr.bf16.mxu0 0
      %1105 = vmatmul.mubr.bf16.gmra.mxu0 %v694
      %v1106 = vpop.f32.mrf.mxu0
      %v1107 = vadd.f32 0.0, %v1106
      %v1108 = vpop.f32.mrf.mxu0
      %v1109 = vpop.f32.mrf.mxu0
      %v1110 = vadd.f32 0.0, %v1109
      %v1111 = vpop.f32.mrf.mxu0
      %1112 = vmatprep.mubr.bf16.mxu0 0
      %1113 = vmatmul.mubr.bf16.gmra.mxu0 %v695
      %v1114 = vpop.f32.mrf.mxu0
      %v1115 = vadd.f32 0.0, %v1114
      %v1116 = vpop.f32.mrf.mxu0
      %v1117 = vpop.f32.mrf.mxu0
      %v1118 = vadd.f32 0.0, %v1117
      %v1119 = vpop.f32.mrf.mxu0
      %1120 = vmatprep.mubr.bf16.mxu0 0
      %1121 = vmatmul.mubr.bf16.gmra.mxu0 %v696
      %v1122 = vpop.f32.mrf.mxu0
      %v1123 = vadd.f32 0.0, %v1122
      %v1124 = vpop.f32.mrf.mxu0
      %v1125 = vpop.f32.mrf.mxu0
      %v1126 = vadd.f32 0.0, %v1125
      %v1127 = vpop.f32.mrf.mxu0
      %1128 = vmatprep.mubr.bf16.mxu0 0
      %1129 = vmatmul.mubr.bf16.gmra.mxu0 %v697
      %v1130 = vpop.f32.mrf.mxu0
      %v1131 = vadd.f32 0.0, %v1130
      %v1132 = vpop.f32.mrf.mxu0
      %v1133 = vpop.f32.mrf.mxu0
      %v1134 = vadd.f32 0.0, %v1133
      %v1135 = vpop.f32.mrf.mxu0
      %1136 = vmatprep.mubr.bf16.mxu0 0
      %1137 = vmatmul.mubr.bf16.gmra.mxu0 %v698
      %v1138 = vpop.f32.mrf.mxu0
      %v1139 = vadd.f32 0.0, %v1138
      %v1140 = vpop.f32.mrf.mxu0
      %v1141 = vpop.f32.mrf.mxu0
      %v1142 = vadd.f32 0.0, %v1141
      %v1143 = vpop.f32.mrf.mxu0
      %1144 = vmatprep.mubr.bf16.mxu0 0
      %1145 = vmatmul.mubr.bf16.gmra.mxu0 %v699
      %v1146 = vpop.f32.mrf.mxu0
      %v1147 = vadd.f32 0.0, %v1146
      %v1148 = vpop.f32.mrf.mxu0
      %v1149 = vpop.f32.mrf.mxu0
      %v1150 = vadd.f32 0.0, %v1149
      %v1151 = vpop.f32.mrf.mxu0
      %1152 = vmatprep.mubr.bf16.mxu0 0
      %1153 = vmatmul.mubr.bf16.gmra.mxu0 %v700
      %v1154 = vpop.f32.mrf.mxu0
      %v1155 = vadd.f32 0.0, %v1154
      %v1156 = vpop.f32.mrf.mxu0
      %v1157 = vpop.f32.mrf.mxu0
      %v1158 = vadd.f32 0.0, %v1157
      %v1159 = vpop.f32.mrf.mxu0
      %1160 = vmatprep.mubr.bf16.mxu0 0
      %1161 = vmatmul.mubr.bf16.gmra.mxu0 %v701
      %v1162 = vpop.f32.mrf.mxu0
      %v1163 = vadd.f32 0.0, %v1162
      %v1164 = vpop.f32.mrf.mxu0
      %v1165 = vpop.f32.mrf.mxu0
      %v1166 = vadd.f32 0.0, %v1165
      %v1167 = vpop.f32.mrf.mxu0
      %1168 = vmatprep.mubr.bf16.mxu0 0
      %1169 = vmatmul.mubr.bf16.gmra.mxu0 %v702
      %v1170 = vpop.f32.mrf.mxu0
      %v1171 = vadd.f32 0.0, %v1170
      %v1172 = vpop.f32.mrf.mxu0
      %v1173 = vpop.f32.mrf.mxu0
      %v1174 = vadd.f32 0.0, %v1173
      %v1175 = vpop.f32.mrf.mxu0
      %1176 = vmatprep.mubr.bf16.mxu0 0
      %1177 = vmatmul.mubr.bf16.gmra.mxu0 %v703
      %v1178 = vpop.f32.mrf.mxu0
      %v1179 = vadd.f32 0.0, %v1178
      %v1180 = vpop.f32.mrf.mxu0
      %v1181 = vpop.f32.mrf.mxu0
      %v1182 = vadd.f32 0.0, %v1181
      %v1183 = vpop.f32.mrf.mxu0
      %1184 = vdwg.mxu0
      %v1201 = vunpack.c.l.b16 %v943
      %v1202 = vunpack.c.l.b16 %v944
      %v1203 = vunpack.c.l.b16 %v945
      %v1204 = vunpack.c.l.b16 %v946
      %v1205 = vunpack.c.l.b16 %v947
      %v1206 = vunpack.c.l.b16 %v948
      %v1207 = vunpack.c.l.b16 %v949
      %v1208 = vunpack.c.l.b16 %v950
      %v1209 = vunpack.c.l.b16 %v951
      %v1210 = vunpack.c.l.b16 %v952
      %v1211 = vunpack.c.l.b16 %v953
      %v1212 = vunpack.c.l.b16 %v954
      %v1213 = vunpack.c.l.b16 %v955
      %v1214 = vunpack.c.l.b16 %v956
      %v1215 = vunpack.c.l.b16 %v957
      %v1216 = vunpack.c.l.b16 %v958
      %v1217 = vpack.c.b16 %v1202, %v1201
      %v1218 = vpack.c.b16 %v1204, %v1203
      %v1219 = vpack.c.b16 %v1206, %v1205
      %v1220 = vpack.c.b16 %v1208, %v1207
      %v1221 = vpack.c.b16 %v1210, %v1209
      %v1222 = vpack.c.b16 %v1212, %v1211
      %v1223 = vpack.c.b16 %v1214, %v1213
      %v1224 = vpack.c.b16 %v1216, %v1215
      %1233 = vmatprep.subr.bf16.mxu0 0
      %1234 = vmatpush1.bf16.msra.mxu0 %v1224
      %1235 = vmatprep.subr.bf16.mxu0 0
      %1236 = vmatpush1.bf16.msra.mxu0 %v1223
      %1237 = vmatprep.subr.bf16.mxu0 0
      %1238 = vmatpush1.bf16.msra.mxu0 %v1222
      %1239 = vmatprep.subr.bf16.mxu0 0
      %1240 = vmatpush1.bf16.msra.mxu0 %v1221
      %1241 = vmatprep.subr.bf16.mxu0 0
      %1242 = vmatpush1.bf16.msra.mxu0 %v1220
      %1243 = vmatprep.subr.bf16.mxu0 0
      %1244 = vmatpush1.bf16.msra.mxu0 %v1219
      %1245 = vmatprep.subr.bf16.mxu0 0
      %1246 = vmatpush1.bf16.msra.mxu0 %v1218
      %1247 = vmatprep.subr.bf16.mxu0 0
      %1248 = vmatpush1.bf16.msra.mxu0 %v1217
      %1249 = vmatprep.subr.bf16.mxu0 0
      %1250 = vmatpush2.bf16.msra.mxu0 0
      %1251 = vmatprep.subr.bf16.mxu0 0
      %1252 = vmatpush2.bf16.msra.mxu0 0
      %1253 = vmatprep.subr.bf16.mxu0 0
      %1254 = vmatpush2.bf16.msra.mxu0 0
      %1255 = vmatprep.subr.bf16.mxu0 0
      %1256 = vmatpush2.bf16.msra.mxu0 0
      %1257 = vmatprep.subr.bf16.mxu0 0
      %1258 = vmatpush2.bf16.msra.mxu0 0
      %1259 = vmatprep.subr.bf16.mxu0 0
      %1260 = vmatpush2.bf16.msra.mxu0 0
      %1261 = vmatprep.subr.bf16.mxu0 0
      %1262 = vmatpush2.bf16.msra.mxu0 0
      %1263 = vmatprep.subr.bf16.mxu0 0
      %1264 = vmatpush2.bf16.msra.mxu0 0
      %1265 = vmatprep.mubr.bf16.mxu0 0
      %1266 = vmatmul.mubr.bf16.gmra.mxu0 %v511
      %v1267 = vpop.f32.mrf.mxu0
      %v1268 = vadd.f32 %v1059, %v1267
      %v1269 = vpop.f32.mrf.mxu0
      %v1270 = vpop.f32.mrf.mxu0
      %v1271 = vadd.f32 %v1062, %v1270
      %v1272 = vpop.f32.mrf.mxu0
      %1273 = vmatprep.mubr.bf16.mxu0 0
      %1274 = vmatmul.mubr.bf16.gmra.mxu0 %v512
      %v1275 = vpop.f32.mrf.mxu0
      %v1276 = vadd.f32 %v1067, %v1275
      %v1277 = vpop.f32.mrf.mxu0
      %v1278 = vpop.f32.mrf.mxu0
      %v1279 = vadd.f32 %v1070, %v1278
      %v1280 = vpop.f32.mrf.mxu0
      %1281 = vmatprep.mubr.bf16.mxu0 0
      %1282 = vmatmul.mubr.bf16.gmra.mxu0 %v513
      %v1283 = vpop.f32.mrf.mxu0
      %v1284 = vadd.f32 %v1075, %v1283
      %v1285 = vpop.f32.mrf.mxu0
      %v1286 = vpop.f32.mrf.mxu0
      %v1287 = vadd.f32 %v1078, %v1286
      %v1288 = vpop.f32.mrf.mxu0
      %1289 = vmatprep.mubr.bf16.mxu0 0
      %1290 = vmatmul.mubr.bf16.gmra.mxu0 %v514
      %v1291 = vpop.f32.mrf.mxu0
      %v1292 = vadd.f32 %v1083, %v1291
      %v1293 = vpop.f32.mrf.mxu0
      %v1294 = vpop.f32.mrf.mxu0
      %v1295 = vadd.f32 %v1086, %v1294
      %v1296 = vpop.f32.mrf.mxu0
      %1297 = vmatprep.mubr.bf16.mxu0 0
      %1298 = vmatmul.mubr.bf16.gmra.mxu0 %v515
      %v1299 = vpop.f32.mrf.mxu0
      %v1300 = vadd.f32 %v1091, %v1299
      %v1301 = vpop.f32.mrf.mxu0
      %v1302 = vpop.f32.mrf.mxu0
      %v1303 = vadd.f32 %v1094, %v1302
      %v1304 = vpop.f32.mrf.mxu0
      %1305 = vmatprep.mubr.bf16.mxu0 0
      %1306 = vmatmul.mubr.bf16.gmra.mxu0 %v516
      %v1307 = vpop.f32.mrf.mxu0
      %v1308 = vadd.f32 %v1099, %v1307
      %v1309 = vpop.f32.mrf.mxu0
      %v1310 = vpop.f32.mrf.mxu0
      %v1311 = vadd.f32 %v1102, %v1310
      %v1312 = vpop.f32.mrf.mxu0
      %1313 = vmatprep.mubr.bf16.mxu0 0
      %1314 = vmatmul.mubr.bf16.gmra.mxu0 %v517
      %v1315 = vpop.f32.mrf.mxu0
      %v1316 = vadd.f32 %v1107, %v1315
      %v1317 = vpop.f32.mrf.mxu0
      %v1318 = vpop.f32.mrf.mxu0
      %v1319 = vadd.f32 %v1110, %v1318
      %v1320 = vpop.f32.mrf.mxu0
      %1321 = vmatprep.mubr.bf16.mxu0 0
      %1322 = vmatmul.mubr.bf16.gmra.mxu0 %v518
      %v1323 = vpop.f32.mrf.mxu0
      %v1324 = vadd.f32 %v1115, %v1323
      %v1325 = vpop.f32.mrf.mxu0
      %v1326 = vpop.f32.mrf.mxu0
      %v1327 = vadd.f32 %v1118, %v1326
      %v1328 = vpop.f32.mrf.mxu0
      %1329 = vmatprep.mubr.bf16.mxu0 0
      %1330 = vmatmul.mubr.bf16.gmra.mxu0 %v519
      %v1331 = vpop.f32.mrf.mxu0
      %v1332 = vadd.f32 %v1123, %v1331
      %v1333 = vpop.f32.mrf.mxu0
      %v1334 = vpop.f32.mrf.mxu0
      %v1335 = vadd.f32 %v1126, %v1334
      %v1336 = vpop.f32.mrf.mxu0
      %1337 = vmatprep.mubr.bf16.mxu0 0
      %1338 = vmatmul.mubr.bf16.gmra.mxu0 %v520
      %v1339 = vpop.f32.mrf.mxu0
      %v1340 = vadd.f32 %v1131, %v1339
      %v1341 = vpop.f32.mrf.mxu0
      %v1342 = vpop.f32.mrf.mxu0
      %v1343 = vadd.f32 %v1134, %v1342
      %v1344 = vpop.f32.mrf.mxu0
      %1345 = vmatprep.mubr.bf16.mxu0 0
      %1346 = vmatmul.mubr.bf16.gmra.mxu0 %v521
      %v1347 = vpop.f32.mrf.mxu0
      %v1348 = vadd.f32 %v1139, %v1347
      %v1349 = vpop.f32.mrf.mxu0
      %v1350 = vpop.f32.mrf.mxu0
      %v1351 = vadd.f32 %v1142, %v1350
      %v1352 = vpop.f32.mrf.mxu0
      %1353 = vmatprep.mubr.bf16.mxu0 0
      %1354 = vmatmul.mubr.bf16.gmra.mxu0 %v522
      %v1355 = vpop.f32.mrf.mxu0
      %v1356 = vadd.f32 %v1147, %v1355
      %v1357 = vpop.f32.mrf.mxu0
      %v1358 = vpop.f32.mrf.mxu0
      %v1359 = vadd.f32 %v1150, %v1358
      %v1360 = vpop.f32.mrf.mxu0
      %1361 = vmatprep.mubr.bf16.mxu0 0
      %1362 = vmatmul.mubr.bf16.gmra.mxu0 %v523
      %v1363 = vpop.f32.mrf.mxu0
      %v1364 = vadd.f32 %v1155, %v1363
      %v1365 = vpop.f32.mrf.mxu0
      %v1366 = vpop.f32.mrf.mxu0
      %v1367 = vadd.f32 %v1158, %v1366
      %v1368 = vpop.f32.mrf.mxu0
      %1369 = vmatprep.mubr.bf16.mxu0 0
      %1370 = vmatmul.mubr.bf16.gmra.mxu0 %v524
      %v1371 = vpop.f32.mrf.mxu0
      %v1372 = vadd.f32 %v1163, %v1371
      %v1373 = vpop.f32.mrf.mxu0
      %v1374 = vpop.f32.mrf.mxu0
      %v1375 = vadd.f32 %v1166, %v1374
      %v1376 = vpop.f32.mrf.mxu0
      %1377 = vmatprep.mubr.bf16.mxu0 0
      %1378 = vmatmul.mubr.bf16.gmra.mxu0 %v525
      %v1379 = vpop.f32.mrf.mxu0
      %v1380 = vadd.f32 %v1171, %v1379
      %v1381 = vpop.f32.mrf.mxu0
      %v1382 = vpop.f32.mrf.mxu0
      %v1383 = vadd.f32 %v1174, %v1382
      %v1384 = vpop.f32.mrf.mxu0
      %1385 = vmatprep.mubr.bf16.mxu0 0
      %1386 = vmatmul.mubr.bf16.gmra.mxu0 %v526
      %v1387 = vpop.f32.mrf.mxu0
      %v1388 = vadd.f32 %v1179, %v1387
      %v1389 = vpop.f32.mrf.mxu0
      %v1390 = vpop.f32.mrf.mxu0
      %v1391 = vadd.f32 %v1182, %v1390
      %v1392 = vpop.f32.mrf.mxu0
      %1393 = vdwg.mxu0
      %s1394 = scalar_lea.vmem %s1, 448
      %v1395 = vld [vmem:[%s1394] sm:$0xf]
      %v1396 = vld [vmem:[%s1394 + $0x4] sm:$0xf]
      %v1397 = vld [vmem:[%s1394 + $0x8] sm:$0xf]
      %v1398 = vld [vmem:[%s1394 + $0xc] sm:$0xf]
      %v1399 = vld [vmem:[%s1394 + $0x10] sm:$0xf]
      %v1400 = vld [vmem:[%s1394 + $0x14] sm:$0xf]
      %v1401 = vld [vmem:[%s1394 + $0x18] sm:$0xf]
      %v1402 = vld [vmem:[%s1394 + $0x1c] sm:$0xf]
      %v1403 = vld [vmem:[%s1394 + $0x20] sm:$0xf]
      %v1404 = vld [vmem:[%s1394 + $0x24] sm:$0xf]
      %v1405 = vld [vmem:[%s1394 + $0x28] sm:$0xf]
      %v1406 = vld [vmem:[%s1394 + $0x2c] sm:$0xf]
      %v1407 = vld [vmem:[%s1394 + $0x30] sm:$0xf]
      %v1408 = vld [vmem:[%s1394 + $0x34] sm:$0xf]
      %v1409 = vld [vmem:[%s1394 + $0x38] sm:$0xf]
      %v1410 = vld [vmem:[%s1394 + $0x3c] sm:$0xf]
      %s1411 = scalar_lea.vmem %s1, 64
      %v1412 = vld [vmem:[%s1411] sm:$0xf]
      %v1413 = vld [vmem:[%s1411 + $0x4] sm:$0xf]
      %v1414 = vld [vmem:[%s1411 + $0x8] sm:$0xf]
      %v1415 = vld [vmem:[%s1411 + $0xc] sm:$0xf]
      %v1416 = vld [vmem:[%s1411 + $0x10] sm:$0xf]
      %v1417 = vld [vmem:[%s1411 + $0x14] sm:$0xf]
      %v1418 = vld [vmem:[%s1411 + $0x18] sm:$0xf]
      %v1419 = vld [vmem:[%s1411 + $0x1c] sm:$0xf]
      %v1420 = vld [vmem:[%s1411 + $0x20] sm:$0xf]
      %v1421 = vld [vmem:[%s1411 + $0x24] sm:$0xf]
      %v1422 = vld [vmem:[%s1411 + $0x28] sm:$0xf]
      %v1423 = vld [vmem:[%s1411 + $0x2c] sm:$0xf]
      %v1424 = vld [vmem:[%s1411 + $0x30] sm:$0xf]
      %v1425 = vld [vmem:[%s1411 + $0x34] sm:$0xf]
      %v1426 = vld [vmem:[%s1411 + $0x38] sm:$0xf]
      %v1427 = vld [vmem:[%s1411 + $0x3c] sm:$0xf]
      %v1444 = vunpack.c.l.b16 %v1412
      %v1445 = vunpack.c.l.b16 %v1413
      %v1446 = vunpack.c.l.b16 %v1414
      %v1447 = vunpack.c.l.b16 %v1415
      %v1448 = vunpack.c.l.b16 %v1416
      %v1449 = vunpack.c.l.b16 %v1417
      %v1450 = vunpack.c.l.b16 %v1418
      %v1451 = vunpack.c.l.b16 %v1419
      %v1452 = vunpack.c.l.b16 %v1420
      %v1453 = vunpack.c.l.b16 %v1421
      %v1454 = vunpack.c.l.b16 %v1422
      %v1455 = vunpack.c.l.b16 %v1423
      %v1456 = vunpack.c.l.b16 %v1424
      %v1457 = vunpack.c.l.b16 %v1425
      %v1458 = vunpack.c.l.b16 %v1426
      %v1459 = vunpack.c.l.b16 %v1427
      %v1460 = vpack.c.b16 %v1445, %v1444
      %v1461 = vpack.c.b16 %v1447, %v1446
      %v1462 = vpack.c.b16 %v1449, %v1448
      %v1463 = vpack.c.b16 %v1451, %v1450
      %v1464 = vpack.c.b16 %v1453, %v1452
      %v1465 = vpack.c.b16 %v1455, %v1454
      %v1466 = vpack.c.b16 %v1457, %v1456
      %v1467 = vpack.c.b16 %v1459, %v1458
      %1476 = vmatprep.subr.bf16.mxu0 0
      %1477 = vmatpush1.bf16.msra.mxu0 %v1467
      %1478 = vmatprep.subr.bf16.mxu0 0
      %1479 = vmatpush1.bf16.msra.mxu0 %v1466
      %1480 = vmatprep.subr.bf16.mxu0 0
      %1481 = vmatpush1.bf16.msra.mxu0 %v1465
      %1482 = vmatprep.subr.bf16.mxu0 0
      %1483 = vmatpush1.bf16.msra.mxu0 %v1464
      %1484 = vmatprep.subr.bf16.mxu0 0
      %1485 = vmatpush1.bf16.msra.mxu0 %v1463
      %1486 = vmatprep.subr.bf16.mxu0 0
      %1487 = vmatpush1.bf16.msra.mxu0 %v1462
      %1488 = vmatprep.subr.bf16.mxu0 0
      %1489 = vmatpush1.bf16.msra.mxu0 %v1461
      %1490 = vmatprep.subr.bf16.mxu0 0
      %1491 = vmatpush1.bf16.msra.mxu0 %v1460
      %1492 = vmatprep.subr.bf16.mxu0 0
      %1493 = vmatpush2.bf16.msra.mxu0 0
      %1494 = vmatprep.subr.bf16.mxu0 0
      %1495 = vmatpush2.bf16.msra.mxu0 0
      %1496 = vmatprep.subr.bf16.mxu0 0
      %1497 = vmatpush2.bf16.msra.mxu0 0
      %1498 = vmatprep.subr.bf16.mxu0 0
      %1499 = vmatpush2.bf16.msra.mxu0 0
      %1500 = vmatprep.subr.bf16.mxu0 0
      %1501 = vmatpush2.bf16.msra.mxu0 0
      %1502 = vmatprep.subr.bf16.mxu0 0
      %1503 = vmatpush2.bf16.msra.mxu0 0
      %1504 = vmatprep.subr.bf16.mxu0 0
      %1505 = vmatpush2.bf16.msra.mxu0 0
      %1506 = vmatprep.subr.bf16.mxu0 0
      %1507 = vmatpush2.bf16.msra.mxu0 0
      %1508 = vmatprep.mubr.bf16.mxu0 0
      %1509 = vmatmul.mubr.bf16.gmra.mxu0 %v512
      %v1510 = vpop.f32.mrf.mxu0
      %v1511 = vadd.f32 0.0, %v1510
      %v1512 = vpop.f32.mrf.mxu0
      %v1513 = vpop.f32.mrf.mxu0
      %v1514 = vadd.f32 0.0, %v1513
      %v1515 = vpop.f32.mrf.mxu0
      %1516 = vmatprep.mubr.bf16.mxu0 0
      %1517 = vmatmul.mubr.bf16.gmra.mxu0 %v513
      %v1518 = vpop.f32.mrf.mxu0
      %v1519 = vadd.f32 0.0, %v1518
      %v1520 = vpop.f32.mrf.mxu0
      %v1521 = vpop.f32.mrf.mxu0
      %v1522 = vadd.f32 0.0, %v1521
      %v1523 = vpop.f32.mrf.mxu0
      %1524 = vmatprep.mubr.bf16.mxu0 0
      %1525 = vmatmul.mubr.bf16.gmra.mxu0 %v514
      %v1526 = vpop.f32.mrf.mxu0
      %v1527 = vadd.f32 0.0, %v1526
      %v1528 = vpop.f32.mrf.mxu0
      %v1529 = vpop.f32.mrf.mxu0
      %v1530 = vadd.f32 0.0, %v1529
      %v1531 = vpop.f32.mrf.mxu0
      %1532 = vmatprep.mubr.bf16.mxu0 0
      %1533 = vmatmul.mubr.bf16.gmra.mxu0 %v515
      %v1534 = vpop.f32.mrf.mxu0
      %v1535 = vadd.f32 0.0, %v1534
      %v1536 = vpop.f32.mrf.mxu0
      %v1537 = vpop.f32.mrf.mxu0
      %v1538 = vadd.f32 0.0, %v1537
      %v1539 = vpop.f32.mrf.mxu0
      %1540 = vmatprep.mubr.bf16.mxu0 0
      %1541 = vmatmul.mubr.bf16.gmra.mxu0 %v516
      %v1542 = vpop.f32.mrf.mxu0
      %v1543 = vadd.f32 0.0, %v1542
      %v1544 = vpop.f32.mrf.mxu0
      %v1545 = vpop.f32.mrf.mxu0
      %v1546 = vadd.f32 0.0, %v1545
      %v1547 = vpop.f32.mrf.mxu0
      %1548 = vmatprep.mubr.bf16.mxu0 0
      %1549 = vmatmul.mubr.bf16.gmra.mxu0 %v517
      %v1550 = vpop.f32.mrf.mxu0
      %v1551 = vadd.f32 0.0, %v1550
      %v1552 = vpop.f32.mrf.mxu0
      %v1553 = vpop.f32.mrf.mxu0
      %v1554 = vadd.f32 0.0, %v1553
      %v1555 = vpop.f32.mrf.mxu0
      %1556 = vmatprep.mubr.bf16.mxu0 0
      %1557 = vmatmul.mubr.bf16.gmra.mxu0 %v518
      %v1558 = vpop.f32.mrf.mxu0
      %v1559 = vadd.f32 0.0, %v1558
      %v1560 = vpop.f32.mrf.mxu0
      %v1561 = vpop.f32.mrf.mxu0
      %v1562 = vadd.f32 0.0, %v1561
      %v1563 = vpop.f32.mrf.mxu0
      %1564 = vmatprep.mubr.bf16.mxu0 0
      %1565 = vmatmul.mubr.bf16.gmra.mxu0 %v519
      %v1566 = vpop.f32.mrf.mxu0
      %v1567 = vadd.f32 0.0, %v1566
      %v1568 = vpop.f32.mrf.mxu0
      %v1569 = vpop.f32.mrf.mxu0
      %v1570 = vadd.f32 0.0, %v1569
      %v1571 = vpop.f32.mrf.mxu0
      %1572 = vmatprep.mubr.bf16.mxu0 0
      %1573 = vmatmul.mubr.bf16.gmra.mxu0 %v520
      %v1574 = vpop.f32.mrf.mxu0
      %v1575 = vadd.f32 0.0, %v1574
      %v1576 = vpop.f32.mrf.mxu0
      %v1577 = vpop.f32.mrf.mxu0
      %v1578 = vadd.f32 0.0, %v1577
      %v1579 = vpop.f32.mrf.mxu0
      %1580 = vmatprep.mubr.bf16.mxu0 0
      %1581 = vmatmul.mubr.bf16.gmra.mxu0 %v521
      %v1582 = vpop.f32.mrf.mxu0
      %v1583 = vadd.f32 0.0, %v1582
      %v1584 = vpop.f32.mrf.mxu0
      %v1585 = vpop.f32.mrf.mxu0
      %v1586 = vadd.f32 0.0, %v1585
      %v1587 = vpop.f32.mrf.mxu0
      %1588 = vmatprep.mubr.bf16.mxu0 0
      %1589 = vmatmul.mubr.bf16.gmra.mxu0 %v522
      %v1590 = vpop.f32.mrf.mxu0
      %v1591 = vadd.f32 0.0, %v1590
      %v1592 = vpop.f32.mrf.mxu0
      %v1593 = vpop.f32.mrf.mxu0
      %v1594 = vadd.f32 0.0, %v1593
      %v1595 = vpop.f32.mrf.mxu0
      %1596 = vmatprep.mubr.bf16.mxu0 0
      %1597 = vmatmul.mubr.bf16.gmra.mxu0 %v523
      %v1598 = vpop.f32.mrf.mxu0
      %v1599 = vadd.f32 0.0, %v1598
      %v1600 = vpop.f32.mrf.mxu0
      %v1601 = vpop.f32.mrf.mxu0
      %v1602 = vadd.f32 0.0, %v1601
      %v1603 = vpop.f32.mrf.mxu0
      %1604 = vmatprep.mubr.bf16.mxu0 0
      %1605 = vmatmul.mubr.bf16.gmra.mxu0 %v524
      %v1606 = vpop.f32.mrf.mxu0
      %v1607 = vadd.f32 0.0, %v1606
      %v1608 = vpop.f32.mrf.mxu0
      %v1609 = vpop.f32.mrf.mxu0
      %v1610 = vadd.f32 0.0, %v1609
      %v1611 = vpop.f32.mrf.mxu0
      %1612 = vmatprep.mubr.bf16.mxu0 0
      %1613 = vmatmul.mubr.bf16.gmra.mxu0 %v525
      %v1614 = vpop.f32.mrf.mxu0
      %v1615 = vadd.f32 0.0, %v1614
      %v1616 = vpop.f32.mrf.mxu0
      %v1617 = vpop.f32.mrf.mxu0
      %v1618 = vadd.f32 0.0, %v1617
      %v1619 = vpop.f32.mrf.mxu0
      %1620 = vmatprep.mubr.bf16.mxu0 0
      %1621 = vmatmul.mubr.bf16.gmra.mxu0 %v526
      %v1622 = vpop.f32.mrf.mxu0
      %v1623 = vadd.f32 0.0, %v1622
      %v1624 = vpop.f32.mrf.mxu0
      %v1625 = vpop.f32.mrf.mxu0
      %v1626 = vadd.f32 0.0, %v1625
      %v1627 = vpop.f32.mrf.mxu0
      %1628 = vmatprep.mubr.bf16.mxu0 0
      %1629 = vmatmul.mubr.bf16.gmra.mxu0 %v704
      %v1630 = vpop.f32.mrf.mxu0
      %v1631 = vadd.f32 0.0, %v1630
      %v1632 = vpop.f32.mrf.mxu0
      %v1633 = vpop.f32.mrf.mxu0
      %v1634 = vadd.f32 0.0, %v1633
      %v1635 = vpop.f32.mrf.mxu0
      %1636 = vdwg.mxu0
      %v1653 = vunpack.c.l.b16 %v1395
      %v1654 = vunpack.c.l.b16 %v1396
      %v1655 = vunpack.c.l.b16 %v1397
      %v1656 = vunpack.c.l.b16 %v1398
      %v1657 = vunpack.c.l.b16 %v1399
      %v1658 = vunpack.c.l.b16 %v1400
      %v1659 = vunpack.c.l.b16 %v1401
      %v1660 = vunpack.c.l.b16 %v1402
      %v1661 = vunpack.c.l.b16 %v1403
      %v1662 = vunpack.c.l.b16 %v1404
      %v1663 = vunpack.c.l.b16 %v1405
      %v1664 = vunpack.c.l.b16 %v1406
      %v1665 = vunpack.c.l.b16 %v1407
      %v1666 = vunpack.c.l.b16 %v1408
      %v1667 = vunpack.c.l.b16 %v1409
      %v1668 = vunpack.c.l.b16 %v1410
      %v1669 = vpack.c.b16 %v1654, %v1653
      %v1670 = vpack.c.b16 %v1656, %v1655
      %v1671 = vpack.c.b16 %v1658, %v1657
      %v1672 = vpack.c.b16 %v1660, %v1659
      %v1673 = vpack.c.b16 %v1662, %v1661
      %v1674 = vpack.c.b16 %v1664, %v1663
      %v1675 = vpack.c.b16 %v1666, %v1665
      %v1676 = vpack.c.b16 %v1668, %v1667
      %1685 = vmatprep.subr.bf16.mxu0 0
      %1686 = vmatpush1.bf16.msra.mxu0 %v1676
      %1687 = vmatprep.subr.bf16.mxu0 0
      %1688 = vmatpush1.bf16.msra.mxu0 %v1675
      %1689 = vmatprep.subr.bf16.mxu0 0
      %1690 = vmatpush1.bf16.msra.mxu0 %v1674
      %1691 = vmatprep.subr.bf16.mxu0 0
      %1692 = vmatpush1.bf16.msra.mxu0 %v1673
      %1693 = vmatprep.subr.bf16.mxu0 0
      %1694 = vmatpush1.bf16.msra.mxu0 %v1672
      %1695 = vmatprep.subr.bf16.mxu0 0
      %1696 = vmatpush1.bf16.msra.mxu0 %v1671
      %1697 = vmatprep.subr.bf16.mxu0 0
      %1698 = vmatpush1.bf16.msra.mxu0 %v1670
      %1699 = vmatprep.subr.bf16.mxu0 0
      %1700 = vmatpush1.bf16.msra.mxu0 %v1669
      %1701 = vmatprep.subr.bf16.mxu0 0
      %1702 = vmatpush2.bf16.msra.mxu0 0
      %1703 = vmatprep.subr.bf16.mxu0 0
      %1704 = vmatpush2.bf16.msra.mxu0 0
      %1705 = vmatprep.subr.bf16.mxu0 0
      %1706 = vmatpush2.bf16.msra.mxu0 0
      %1707 = vmatprep.subr.bf16.mxu0 0
      %1708 = vmatpush2.bf16.msra.mxu0 0
      %1709 = vmatprep.subr.bf16.mxu0 0
      %1710 = vmatpush2.bf16.msra.mxu0 0
      %1711 = vmatprep.subr.bf16.mxu0 0
      %1712 = vmatpush2.bf16.msra.mxu0 0
      %1713 = vmatprep.subr.bf16.mxu0 0
      %1714 = vmatpush2.bf16.msra.mxu0 0
      %1715 = vmatprep.subr.bf16.mxu0 0
      %1716 = vmatpush2.bf16.msra.mxu0 0
      %1717 = vmatprep.mubr.bf16.mxu0 0
      %1718 = vmatmul.mubr.bf16.gmra.mxu0 %v511
      %v1719 = vpop.f32.mrf.mxu0
      %v1720 = vadd.f32 %v1511, %v1719
      %v1721 = vpop.f32.mrf.mxu0
      %v1722 = vpop.f32.mrf.mxu0
      %v1723 = vadd.f32 %v1514, %v1722
      %v1724 = vpop.f32.mrf.mxu0
      %1725 = vmatprep.mubr.bf16.mxu0 0
      %1726 = vmatmul.mubr.bf16.gmra.mxu0 %v512
      %v1727 = vpop.f32.mrf.mxu0
      %v1728 = vadd.f32 %v1519, %v1727
      %v1729 = vpop.f32.mrf.mxu0
      %v1730 = vpop.f32.mrf.mxu0
      %v1731 = vadd.f32 %v1522, %v1730
      %v1732 = vpop.f32.mrf.mxu0
      %1733 = vmatprep.mubr.bf16.mxu0 0
      %1734 = vmatmul.mubr.bf16.gmra.mxu0 %v513
      %v1735 = vpop.f32.mrf.mxu0
      %v1736 = vadd.f32 %v1527, %v1735
      %v1737 = vpop.f32.mrf.mxu0
      %v1738 = vpop.f32.mrf.mxu0
      %v1739 = vadd.f32 %v1530, %v1738
      %v1740 = vpop.f32.mrf.mxu0
      %1741 = vmatprep.mubr.bf16.mxu0 0
      %1742 = vmatmul.mubr.bf16.gmra.mxu0 %v514
      %v1743 = vpop.f32.mrf.mxu0
      %v1744 = vadd.f32 %v1535, %v1743
      %v1745 = vpop.f32.mrf.mxu0
      %v1746 = vpop.f32.mrf.mxu0
      %v1747 = vadd.f32 %v1538, %v1746
      %v1748 = vpop.f32.mrf.mxu0
      %1749 = vmatprep.mubr.bf16.mxu0 0
      %1750 = vmatmul.mubr.bf16.gmra.mxu0 %v515
      %v1751 = vpop.f32.mrf.mxu0
      %v1752 = vadd.f32 %v1543, %v1751
      %v1753 = vpop.f32.mrf.mxu0
      %v1754 = vpop.f32.mrf.mxu0
      %v1755 = vadd.f32 %v1546, %v1754
      %v1756 = vpop.f32.mrf.mxu0
      %1757 = vmatprep.mubr.bf16.mxu0 0
      %1758 = vmatmul.mubr.bf16.gmra.mxu0 %v516
      %v1759 = vpop.f32.mrf.mxu0
      %v1760 = vadd.f32 %v1551, %v1759
      %v1761 = vpop.f32.mrf.mxu0
      %v1762 = vpop.f32.mrf.mxu0
      %v1763 = vadd.f32 %v1554, %v1762
      %v1764 = vpop.f32.mrf.mxu0
      %1765 = vmatprep.mubr.bf16.mxu0 0
      %1766 = vmatmul.mubr.bf16.gmra.mxu0 %v517
      %v1767 = vpop.f32.mrf.mxu0
      %v1768 = vadd.f32 %v1559, %v1767
      %v1769 = vpop.f32.mrf.mxu0
      %v1770 = vpop.f32.mrf.mxu0
      %v1771 = vadd.f32 %v1562, %v1770
      %v1772 = vpop.f32.mrf.mxu0
      %1773 = vmatprep.mubr.bf16.mxu0 0
      %1774 = vmatmul.mubr.bf16.gmra.mxu0 %v518
      %v1775 = vpop.f32.mrf.mxu0
      %v1776 = vadd.f32 %v1567, %v1775
      %v1777 = vpop.f32.mrf.mxu0
      %v1778 = vpop.f32.mrf.mxu0
      %v1779 = vadd.f32 %v1570, %v1778
      %v1780 = vpop.f32.mrf.mxu0
      %1781 = vmatprep.mubr.bf16.mxu0 0
      %1782 = vmatmul.mubr.bf16.gmra.mxu0 %v519
      %v1783 = vpop.f32.mrf.mxu0
      %v1784 = vadd.f32 %v1575, %v1783
      %v1785 = vpop.f32.mrf.mxu0
      %v1786 = vpop.f32.mrf.mxu0
      %v1787 = vadd.f32 %v1578, %v1786
      %v1788 = vpop.f32.mrf.mxu0
      %1789 = vmatprep.mubr.bf16.mxu0 0
      %1790 = vmatmul.mubr.bf16.gmra.mxu0 %v520
      %v1791 = vpop.f32.mrf.mxu0
      %v1792 = vadd.f32 %v1583, %v1791
      %v1793 = vpop.f32.mrf.mxu0
      %v1794 = vpop.f32.mrf.mxu0
      %v1795 = vadd.f32 %v1586, %v1794
      %v1796 = vpop.f32.mrf.mxu0
      %1797 = vmatprep.mubr.bf16.mxu0 0
      %1798 = vmatmul.mubr.bf16.gmra.mxu0 %v521
      %v1799 = vpop.f32.mrf.mxu0
      %v1800 = vadd.f32 %v1591, %v1799
      %v1801 = vpop.f32.mrf.mxu0
      %v1802 = vpop.f32.mrf.mxu0
      %v1803 = vadd.f32 %v1594, %v1802
      %v1804 = vpop.f32.mrf.mxu0
      %1805 = vmatprep.mubr.bf16.mxu0 0
      %1806 = vmatmul.mubr.bf16.gmra.mxu0 %v522
      %v1807 = vpop.f32.mrf.mxu0
      %v1808 = vadd.f32 %v1599, %v1807
      %v1809 = vpop.f32.mrf.mxu0
      %v1810 = vpop.f32.mrf.mxu0
      %v1811 = vadd.f32 %v1602, %v1810
      %v1812 = vpop.f32.mrf.mxu0
      %1813 = vmatprep.mubr.bf16.mxu0 0
      %1814 = vmatmul.mubr.bf16.gmra.mxu0 %v523
      %v1815 = vpop.f32.mrf.mxu0
      %v1816 = vadd.f32 %v1607, %v1815
      %v1817 = vpop.f32.mrf.mxu0
      %v1818 = vpop.f32.mrf.mxu0
      %v1819 = vadd.f32 %v1610, %v1818
      %v1820 = vpop.f32.mrf.mxu0
      %1821 = vmatprep.mubr.bf16.mxu0 0
      %1822 = vmatmul.mubr.bf16.gmra.mxu0 %v524
      %v1823 = vpop.f32.mrf.mxu0
      %v1824 = vadd.f32 %v1615, %v1823
      %v1825 = vpop.f32.mrf.mxu0
      %v1826 = vpop.f32.mrf.mxu0
      %v1827 = vadd.f32 %v1618, %v1826
      %v1828 = vpop.f32.mrf.mxu0
      %1829 = vmatprep.mubr.bf16.mxu0 0
      %1830 = vmatmul.mubr.bf16.gmra.mxu0 %v525
      %v1831 = vpop.f32.mrf.mxu0
      %v1832 = vadd.f32 %v1623, %v1831
      %v1833 = vpop.f32.mrf.mxu0
      %v1834 = vpop.f32.mrf.mxu0
      %v1835 = vadd.f32 %v1626, %v1834
      %v1836 = vpop.f32.mrf.mxu0
      %1837 = vmatprep.mubr.bf16.mxu0 0
      %1838 = vmatmul.mubr.bf16.gmra.mxu0 %v526
      %v1839 = vpop.f32.mrf.mxu0
      %v1840 = vadd.f32 %v1631, %v1839
      %v1841 = vpop.f32.mrf.mxu0
      %v1842 = vpop.f32.mrf.mxu0
      %v1843 = vadd.f32 %v1634, %v1842
      %v1844 = vpop.f32.mrf.mxu0
      %1845 = vdwg.mxu0
      %s1846 = scalar_lea.vmem %s1, 512
      %v1847 = vld [vmem:[%s1846] sm:$0xf]
      %v1848 = vld [vmem:[%s1846 + $0x4] sm:$0xf]
      %v1849 = vld [vmem:[%s1846 + $0x8] sm:$0xf]
      %v1850 = vld [vmem:[%s1846 + $0xc] sm:$0xf]
      %v1851 = vld [vmem:[%s1846 + $0x10] sm:$0xf]
      %v1852 = vld [vmem:[%s1846 + $0x14] sm:$0xf]
      %v1853 = vld [vmem:[%s1846 + $0x18] sm:$0xf]
      %v1854 = vld [vmem:[%s1846 + $0x1c] sm:$0xf]
      %v1855 = vld [vmem:[%s1846 + $0x20] sm:$0xf]
      %v1856 = vld [vmem:[%s1846 + $0x24] sm:$0xf]
      %v1857 = vld [vmem:[%s1846 + $0x28] sm:$0xf]
      %v1858 = vld [vmem:[%s1846 + $0x2c] sm:$0xf]
      %v1859 = vld [vmem:[%s1846 + $0x30] sm:$0xf]
      %v1860 = vld [vmem:[%s1846 + $0x34] sm:$0xf]
      %v1861 = vld [vmem:[%s1846 + $0x38] sm:$0xf]
      %v1862 = vld [vmem:[%s1846 + $0x3c] sm:$0xf]
      %s1863 = scalar_lea.vmem %s1, 384
      %v1864 = vld [vmem:[%s1863] sm:$0xf]
      %v1865 = vld [vmem:[%s1863 + $0x4] sm:$0xf]
      %v1866 = vld [vmem:[%s1863 + $0x8] sm:$0xf]
      %v1867 = vld [vmem:[%s1863 + $0xc] sm:$0xf]
      %v1868 = vld [vmem:[%s1863 + $0x10] sm:$0xf]
      %v1869 = vld [vmem:[%s1863 + $0x14] sm:$0xf]
      %v1870 = vld [vmem:[%s1863 + $0x18] sm:$0xf]
      %v1871 = vld [vmem:[%s1863 + $0x1c] sm:$0xf]
      %v1872 = vld [vmem:[%s1863 + $0x20] sm:$0xf]
      %v1873 = vld [vmem:[%s1863 + $0x24] sm:$0xf]
      %v1874 = vld [vmem:[%s1863 + $0x28] sm:$0xf]
      %v1875 = vld [vmem:[%s1863 + $0x2c] sm:$0xf]
      %v1876 = vld [vmem:[%s1863 + $0x30] sm:$0xf]
      %v1877 = vld [vmem:[%s1863 + $0x34] sm:$0xf]
      %v1878 = vld [vmem:[%s1863 + $0x38] sm:$0xf]
      %v1879 = vld [vmem:[%s1863 + $0x3c] sm:$0xf]
      %v1896 = vunpack.c.l.b16 %v1864
      %v1897 = vunpack.c.l.b16 %v1865
      %v1898 = vunpack.c.l.b16 %v1866
      %v1899 = vunpack.c.l.b16 %v1867
      %v1900 = vunpack.c.l.b16 %v1868
      %v1901 = vunpack.c.l.b16 %v1869
      %v1902 = vunpack.c.l.b16 %v1870
      %v1903 = vunpack.c.l.b16 %v1871
      %v1904 = vunpack.c.l.b16 %v1872
      %v1905 = vunpack.c.l.b16 %v1873
      %v1906 = vunpack.c.l.b16 %v1874
      %v1907 = vunpack.c.l.b16 %v1875
      %v1908 = vunpack.c.l.b16 %v1876
      %v1909 = vunpack.c.l.b16 %v1877
      %v1910 = vunpack.c.l.b16 %v1878
      %v1911 = vunpack.c.l.b16 %v1879
      %v1912 = vpack.c.b16 %v1897, %v1896
      %v1913 = vpack.c.b16 %v1899, %v1898
      %v1914 = vpack.c.b16 %v1901, %v1900
      %v1915 = vpack.c.b16 %v1903, %v1902
      %v1916 = vpack.c.b16 %v1905, %v1904
      %v1917 = vpack.c.b16 %v1907, %v1906
      %v1918 = vpack.c.b16 %v1909, %v1908
      %v1919 = vpack.c.b16 %v1911, %v1910
      %1928 = vmatprep.subr.bf16.mxu0 0
      %1929 = vmatpush1.bf16.msra.mxu0 %v1919
      %1930 = vmatprep.subr.bf16.mxu0 0
      %1931 = vmatpush1.bf16.msra.mxu0 %v1918
      %1932 = vmatprep.subr.bf16.mxu0 0
      %1933 = vmatpush1.bf16.msra.mxu0 %v1917
      %1934 = vmatprep.subr.bf16.mxu0 0
      %1935 = vmatpush1.bf16.msra.mxu0 %v1916
      %1936 = vmatprep.subr.bf16.mxu0 0
      %1937 = vmatpush1.bf16.msra.mxu0 %v1915
      %1938 = vmatprep.subr.bf16.mxu0 0
      %1939 = vmatpush1.bf16.msra.mxu0 %v1914
      %1940 = vmatprep.subr.bf16.mxu0 0
      %1941 = vmatpush1.bf16.msra.mxu0 %v1913
      %1942 = vmatprep.subr.bf16.mxu0 0
      %1943 = vmatpush1.bf16.msra.mxu0 %v1912
      %1944 = vmatprep.subr.bf16.mxu0 0
      %1945 = vmatpush2.bf16.msra.mxu0 0
      %1946 = vmatprep.subr.bf16.mxu0 0
      %1947 = vmatpush2.bf16.msra.mxu0 0
      %1948 = vmatprep.subr.bf16.mxu0 0
      %1949 = vmatpush2.bf16.msra.mxu0 0
      %1950 = vmatprep.subr.bf16.mxu0 0
      %1951 = vmatpush2.bf16.msra.mxu0 0
      %1952 = vmatprep.subr.bf16.mxu0 0
      %1953 = vmatpush2.bf16.msra.mxu0 0
      %1954 = vmatprep.subr.bf16.mxu0 0
      %1955 = vmatpush2.bf16.msra.mxu0 0
      %1956 = vmatprep.subr.bf16.mxu0 0
      %1957 = vmatpush2.bf16.msra.mxu0 0
      %1958 = vmatprep.subr.bf16.mxu0 0
      %1959 = vmatpush2.bf16.msra.mxu0 0
      %1960 = vmatprep.mubr.bf16.mxu0 0
      %1961 = vmatmul.mubr.bf16.gmra.mxu0 %v688
      %v1962 = vpop.f32.mrf.mxu0
      %v1963 = vadd.f32 0.0, %v1962
      %v1964 = vpop.f32.mrf.mxu0
      %v1965 = vpop.f32.mrf.mxu0
      %v1966 = vadd.f32 0.0, %v1965
      %v1967 = vpop.f32.mrf.mxu0
      %1968 = vmatprep.mubr.bf16.mxu0 0
      %1969 = vmatmul.mubr.bf16.gmra.mxu0 %v689
      %v1970 = vpop.f32.mrf.mxu0
      %v1971 = vadd.f32 0.0, %v1970
      %v1972 = vpop.f32.mrf.mxu0
      %v1973 = vpop.f32.mrf.mxu0
      %v1974 = vadd.f32 0.0, %v1973
      %v1975 = vpop.f32.mrf.mxu0
      %1976 = vmatprep.mubr.bf16.mxu0 0
      %1977 = vmatmul.mubr.bf16.gmra.mxu0 %v690
      %v1978 = vpop.f32.mrf.mxu0
      %v1979 = vadd.f32 0.0, %v1978
      %v1980 = vpop.f32.mrf.mxu0
      %v1981 = vpop.f32.mrf.mxu0
      %v1982 = vadd.f32 0.0, %v1981
      %v1983 = vpop.f32.mrf.mxu0
      %1984 = vmatprep.mubr.bf16.mxu0 0
      %1985 = vmatmul.mubr.bf16.gmra.mxu0 %v691
      %v1986 = vpop.f32.mrf.mxu0
      %v1987 = vadd.f32 0.0, %v1986
      %v1988 = vpop.f32.mrf.mxu0
      %v1989 = vpop.f32.mrf.mxu0
      %v1990 = vadd.f32 0.0, %v1989
      %v1991 = vpop.f32.mrf.mxu0
      %1992 = vmatprep.mubr.bf16.mxu0 0
      %1993 = vmatmul.mubr.bf16.gmra.mxu0 %v692
      %v1994 = vpop.f32.mrf.mxu0
      %v1995 = vadd.f32 0.0, %v1994
      %v1996 = vpop.f32.mrf.mxu0
      %v1997 = vpop.f32.mrf.mxu0
      %v1998 = vadd.f32 0.0, %v1997
      %v1999 = vpop.f32.mrf.mxu0
      %2000 = vmatprep.mubr.bf16.mxu0 0
      %2001 = vmatmul.mubr.bf16.gmra.mxu0 %v693
      %v2002 = vpop.f32.mrf.mxu0
      %v2003 = vadd.f32 0.0, %v2002
      %v2004 = vpop.f32.mrf.mxu0
      %v2005 = vpop.f32.mrf.mxu0
      %v2006 = vadd.f32 0.0, %v2005
      %v2007 = vpop.f32.mrf.mxu0
      %2008 = vmatprep.mubr.bf16.mxu0 0
      %2009 = vmatmul.mubr.bf16.gmra.mxu0 %v694
      %v2010 = vpop.f32.mrf.mxu0
      %v2011 = vadd.f32 0.0, %v2010
      %v2012 = vpop.f32.mrf.mxu0
      %v2013 = vpop.f32.mrf.mxu0
      %v2014 = vadd.f32 0.0, %v2013
      %v2015 = vpop.f32.mrf.mxu0
      %2016 = vmatprep.mubr.bf16.mxu0 0
      %2017 = vmatmul.mubr.bf16.gmra.mxu0 %v695
      %v2018 = vpop.f32.mrf.mxu0
      %v2019 = vadd.f32 0.0, %v2018
      %v2020 = vpop.f32.mrf.mxu0
      %v2021 = vpop.f32.mrf.mxu0
      %v2022 = vadd.f32 0.0, %v2021
      %v2023 = vpop.f32.mrf.mxu0
      %2024 = vmatprep.mubr.bf16.mxu0 0
      %2025 = vmatmul.mubr.bf16.gmra.mxu0 %v696
      %v2026 = vpop.f32.mrf.mxu0
      %v2027 = vadd.f32 0.0, %v2026
      %v2028 = vpop.f32.mrf.mxu0
      %v2029 = vpop.f32.mrf.mxu0
      %v2030 = vadd.f32 0.0, %v2029
      %v2031 = vpop.f32.mrf.mxu0
      %2032 = vmatprep.mubr.bf16.mxu0 0
      %2033 = vmatmul.mubr.bf16.gmra.mxu0 %v697
      %v2034 = vpop.f32.mrf.mxu0
      %v2035 = vadd.f32 0.0, %v2034
      %v2036 = vpop.f32.mrf.mxu0
      %v2037 = vpop.f32.mrf.mxu0
      %v2038 = vadd.f32 0.0, %v2037
      %v2039 = vpop.f32.mrf.mxu0
      %2040 = vmatprep.mubr.bf16.mxu0 0
      %2041 = vmatmul.mubr.bf16.gmra.mxu0 %v698
      %v2042 = vpop.f32.mrf.mxu0
      %v2043 = vadd.f32 0.0, %v2042
      %v2044 = vpop.f32.mrf.mxu0
      %v2045 = vpop.f32.mrf.mxu0
      %v2046 = vadd.f32 0.0, %v2045
      %v2047 = vpop.f32.mrf.mxu0
      %2048 = vmatprep.mubr.bf16.mxu0 0
      %2049 = vmatmul.mubr.bf16.gmra.mxu0 %v699
      %v2050 = vpop.f32.mrf.mxu0
      %v2051 = vadd.f32 0.0, %v2050
      %v2052 = vpop.f32.mrf.mxu0
      %v2053 = vpop.f32.mrf.mxu0
      %v2054 = vadd.f32 0.0, %v2053
      %v2055 = vpop.f32.mrf.mxu0
      %2056 = vmatprep.mubr.bf16.mxu0 0
      %2057 = vmatmul.mubr.bf16.gmra.mxu0 %v700
      %v2058 = vpop.f32.mrf.mxu0
      %v2059 = vadd.f32 0.0, %v2058
      %v2060 = vpop.f32.mrf.mxu0
      %v2061 = vpop.f32.mrf.mxu0
      %v2062 = vadd.f32 0.0, %v2061
      %v2063 = vpop.f32.mrf.mxu0
      %2064 = vmatprep.mubr.bf16.mxu0 0
      %2065 = vmatmul.mubr.bf16.gmra.mxu0 %v701
      %v2066 = vpop.f32.mrf.mxu0
      %v2067 = vadd.f32 0.0, %v2066
      %v2068 = vpop.f32.mrf.mxu0
      %v2069 = vpop.f32.mrf.mxu0
      %v2070 = vadd.f32 0.0, %v2069
      %v2071 = vpop.f32.mrf.mxu0
      %2072 = vmatprep.mubr.bf16.mxu0 0
      %2073 = vmatmul.mubr.bf16.gmra.mxu0 %v702
      %v2074 = vpop.f32.mrf.mxu0
      %v2075 = vadd.f32 0.0, %v2074
      %v2076 = vpop.f32.mrf.mxu0
      %v2077 = vpop.f32.mrf.mxu0
      %v2078 = vadd.f32 0.0, %v2077
      %v2079 = vpop.f32.mrf.mxu0
      %2080 = vmatprep.mubr.bf16.mxu0 0
      %2081 = vmatmul.mubr.bf16.gmra.mxu0 %v703
      %v2082 = vpop.f32.mrf.mxu0
      %v2083 = vadd.f32 0.0, %v2082
      %v2084 = vpop.f32.mrf.mxu0
      %v2085 = vpop.f32.mrf.mxu0
      %v2086 = vadd.f32 0.0, %v2085
      %v2087 = vpop.f32.mrf.mxu0
      %2088 = vdwg.mxu0
      %v2105 = vunpack.c.l.b16 %v1847
      %v2106 = vunpack.c.l.b16 %v1848
      %v2107 = vunpack.c.l.b16 %v1849
      %v2108 = vunpack.c.l.b16 %v1850
      %v2109 = vunpack.c.l.b16 %v1851
      %v2110 = vunpack.c.l.b16 %v1852
      %v2111 = vunpack.c.l.b16 %v1853
      %v2112 = vunpack.c.l.b16 %v1854
      %v2113 = vunpack.c.l.b16 %v1855
      %v2114 = vunpack.c.l.b16 %v1856
      %v2115 = vunpack.c.l.b16 %v1857
      %v2116 = vunpack.c.l.b16 %v1858
      %v2117 = vunpack.c.l.b16 %v1859
      %v2118 = vunpack.c.l.b16 %v1860
      %v2119 = vunpack.c.l.b16 %v1861
      %v2120 = vunpack.c.l.b16 %v1862
      %v2121 = vpack.c.b16 %v2106, %v2105
      %v2122 = vpack.c.b16 %v2108, %v2107
      %v2123 = vpack.c.b16 %v2110, %v2109
      %v2124 = vpack.c.b16 %v2112, %v2111
      %v2125 = vpack.c.b16 %v2114, %v2113
      %v2126 = vpack.c.b16 %v2116, %v2115
      %v2127 = vpack.c.b16 %v2118, %v2117
      %v2128 = vpack.c.b16 %v2120, %v2119
      %2137 = vmatprep.subr.bf16.mxu0 0
      %2138 = vmatpush1.bf16.msra.mxu0 %v2128
      %2139 = vmatprep.subr.bf16.mxu0 0
      %2140 = vmatpush1.bf16.msra.mxu0 %v2127
      %2141 = vmatprep.subr.bf16.mxu0 0
      %2142 = vmatpush1.bf16.msra.mxu0 %v2126
      %2143 = vmatprep.subr.bf16.mxu0 0
      %2144 = vmatpush1.bf16.msra.mxu0 %v2125
      %2145 = vmatprep.subr.bf16.mxu0 0
      %2146 = vmatpush1.bf16.msra.mxu0 %v2124
      %2147 = vmatprep.subr.bf16.mxu0 0
      %2148 = vmatpush1.bf16.msra.mxu0 %v2123
      %2149 = vmatprep.subr.bf16.mxu0 0
      %2150 = vmatpush1.bf16.msra.mxu0 %v2122
      %2151 = vmatprep.subr.bf16.mxu0 0
      %2152 = vmatpush1.bf16.msra.mxu0 %v2121
      %2153 = vmatprep.subr.bf16.mxu0 0
      %2154 = vmatpush2.bf16.msra.mxu0 0
      %2155 = vmatprep.subr.bf16.mxu0 0
      %2156 = vmatpush2.bf16.msra.mxu0 0
      %2157 = vmatprep.subr.bf16.mxu0 0
      %2158 = vmatpush2.bf16.msra.mxu0 0
      %2159 = vmatprep.subr.bf16.mxu0 0
      %2160 = vmatpush2.bf16.msra.mxu0 0
      %2161 = vmatprep.subr.bf16.mxu0 0
      %2162 = vmatpush2.bf16.msra.mxu0 0
      %2163 = vmatprep.subr.bf16.mxu0 0
      %2164 = vmatpush2.bf16.msra.mxu0 0
      %2165 = vmatprep.subr.bf16.mxu0 0
      %2166 = vmatpush2.bf16.msra.mxu0 0
      %2167 = vmatprep.subr.bf16.mxu0 0
      %2168 = vmatpush2.bf16.msra.mxu0 0
      %2169 = vmatprep.mubr.bf16.mxu0 0
      %2170 = vmatmul.mubr.bf16.gmra.mxu0 %v511
      %v2171 = vpop.f32.mrf.mxu0
      %v2172 = vadd.f32 %v1963, %v2171
      %v2173 = vpop.f32.mrf.mxu0
      %v2174 = vpop.f32.mrf.mxu0
      %v2175 = vadd.f32 %v1966, %v2174
      %v2176 = vpop.f32.mrf.mxu0
      %2177 = vmatprep.mubr.bf16.mxu0 0
      %2178 = vmatmul.mubr.bf16.gmra.mxu0 %v512
      %v2179 = vpop.f32.mrf.mxu0
      %v2180 = vadd.f32 %v1971, %v2179
      %v2181 = vpop.f32.mrf.mxu0
      %v2182 = vpop.f32.mrf.mxu0
      %v2183 = vadd.f32 %v1974, %v2182
      %v2184 = vpop.f32.mrf.mxu0
      %2185 = vmatprep.mubr.bf16.mxu0 0
      %2186 = vmatmul.mubr.bf16.gmra.mxu0 %v513
      %v2187 = vpop.f32.mrf.mxu0
      %v2188 = vadd.f32 %v1979, %v2187
      %v2189 = vpop.f32.mrf.mxu0
      %v2190 = vpop.f32.mrf.mxu0
      %v2191 = vadd.f32 %v1982, %v2190
      %v2192 = vpop.f32.mrf.mxu0
      %2193 = vmatprep.mubr.bf16.mxu0 0
      %2194 = vmatmul.mubr.bf16.gmra.mxu0 %v514
      %v2195 = vpop.f32.mrf.mxu0
      %v2196 = vadd.f32 %v1987, %v2195
      %v2197 = vpop.f32.mrf.mxu0
      %v2198 = vpop.f32.mrf.mxu0
      %v2199 = vadd.f32 %v1990, %v2198
      %v2200 = vpop.f32.mrf.mxu0
      %2201 = vmatprep.mubr.bf16.mxu0 0
      %2202 = vmatmul.mubr.bf16.gmra.mxu0 %v515
      %v2203 = vpop.f32.mrf.mxu0
      %v2204 = vadd.f32 %v1995, %v2203
      %v2205 = vpop.f32.mrf.mxu0
      %v2206 = vpop.f32.mrf.mxu0
      %v2207 = vadd.f32 %v1998, %v2206
      %v2208 = vpop.f32.mrf.mxu0
      %2209 = vmatprep.mubr.bf16.mxu0 0
      %2210 = vmatmul.mubr.bf16.gmra.mxu0 %v516
      %v2211 = vpop.f32.mrf.mxu0
      %v2212 = vadd.f32 %v2003, %v2211
      %v2213 = vpop.f32.mrf.mxu0
      %v2214 = vpop.f32.mrf.mxu0
      %v2215 = vadd.f32 %v2006, %v2214
      %v2216 = vpop.f32.mrf.mxu0
      %2217 = vmatprep.mubr.bf16.mxu0 0
      %2218 = vmatmul.mubr.bf16.gmra.mxu0 %v517
      %v2219 = vpop.f32.mrf.mxu0
      %v2220 = vadd.f32 %v2011, %v2219
      %v2221 = vpop.f32.mrf.mxu0
      %v2222 = vpop.f32.mrf.mxu0
      %v2223 = vadd.f32 %v2014, %v2222
      %v2224 = vpop.f32.mrf.mxu0
      %2225 = vmatprep.mubr.bf16.mxu0 0
      %2226 = vmatmul.mubr.bf16.gmra.mxu0 %v518
      %v2227 = vpop.f32.mrf.mxu0
      %v2228 = vadd.f32 %v2019, %v2227
      %v2229 = vpop.f32.mrf.mxu0
      %v2230 = vpop.f32.mrf.mxu0
      %v2231 = vadd.f32 %v2022, %v2230
      %v2232 = vpop.f32.mrf.mxu0
      %2233 = vmatprep.mubr.bf16.mxu0 0
      %2234 = vmatmul.mubr.bf16.gmra.mxu0 %v519
      %v2235 = vpop.f32.mrf.mxu0
      %v2236 = vadd.f32 %v2027, %v2235
      %v2237 = vpop.f32.mrf.mxu0
      %v2238 = vpop.f32.mrf.mxu0
      %v2239 = vadd.f32 %v2030, %v2238
      %v2240 = vpop.f32.mrf.mxu0
      %2241 = vmatprep.mubr.bf16.mxu0 0
      %2242 = vmatmul.mubr.bf16.gmra.mxu0 %v520
      %v2243 = vpop.f32.mrf.mxu0
      %v2244 = vadd.f32 %v2035, %v2243
      %v2245 = vpop.f32.mrf.mxu0
      %v2246 = vpop.f32.mrf.mxu0
      %v2247 = vadd.f32 %v2038, %v2246
      %v2248 = vpop.f32.mrf.mxu0
      %2249 = vmatprep.mubr.bf16.mxu0 0
      %2250 = vmatmul.mubr.bf16.gmra.mxu0 %v521
      %v2251 = vpop.f32.mrf.mxu0
      %v2252 = vadd.f32 %v2043, %v2251
      %v2253 = vpop.f32.mrf.mxu0
      %v2254 = vpop.f32.mrf.mxu0
      %v2255 = vadd.f32 %v2046, %v2254
      %v2256 = vpop.f32.mrf.mxu0
      %2257 = vmatprep.mubr.bf16.mxu0 0
      %2258 = vmatmul.mubr.bf16.gmra.mxu0 %v522
      %v2259 = vpop.f32.mrf.mxu0
      %v2260 = vadd.f32 %v2051, %v2259
      %v2261 = vpop.f32.mrf.mxu0
      %v2262 = vpop.f32.mrf.mxu0
      %v2263 = vadd.f32 %v2054, %v2262
      %v2264 = vpop.f32.mrf.mxu0
      %2265 = vmatprep.mubr.bf16.mxu0 0
      %2266 = vmatmul.mubr.bf16.gmra.mxu0 %v523
      %v2267 = vpop.f32.mrf.mxu0
      %v2268 = vadd.f32 %v2059, %v2267
      %v2269 = vpop.f32.mrf.mxu0
      %v2270 = vpop.f32.mrf.mxu0
      %v2271 = vadd.f32 %v2062, %v2270
      %v2272 = vpop.f32.mrf.mxu0
      %2273 = vmatprep.mubr.bf16.mxu0 0
      %2274 = vmatmul.mubr.bf16.gmra.mxu0 %v524
      %v2275 = vpop.f32.mrf.mxu0
      %v2276 = vadd.f32 %v2067, %v2275
      %v2277 = vpop.f32.mrf.mxu0
      %v2278 = vpop.f32.mrf.mxu0
      %v2279 = vadd.f32 %v2070, %v2278
      %v2280 = vpop.f32.mrf.mxu0
      %2281 = vmatprep.mubr.bf16.mxu0 0
      %2282 = vmatmul.mubr.bf16.gmra.mxu0 %v525
      %v2283 = vpop.f32.mrf.mxu0
      %v2284 = vadd.f32 %v2075, %v2283
      %v2285 = vpop.f32.mrf.mxu0
      %v2286 = vpop.f32.mrf.mxu0
      %v2287 = vadd.f32 %v2078, %v2286
      %v2288 = vpop.f32.mrf.mxu0
      %2289 = vmatprep.mubr.bf16.mxu0 0
      %2290 = vmatmul.mubr.bf16.gmra.mxu0 %v526
      %v2291 = vpop.f32.mrf.mxu0
      %v2292 = vadd.f32 %v2083, %v2291
      %v2293 = vpop.f32.mrf.mxu0
      %v2294 = vpop.f32.mrf.mxu0
      %v2295 = vadd.f32 %v2086, %v2294
      %v2296 = vpop.f32.mrf.mxu0
      %2297 = vdwg.mxu0
      %s2298 = scalar_lea.vmem %s1, 128
      %v2299 = vld [vmem:[%s2298] sm:$0xf]
      %v2300 = vld [vmem:[%s2298 + $0x4] sm:$0xf]
      %v2301 = vld [vmem:[%s2298 + $0x8] sm:$0xf]
      %v2302 = vld [vmem:[%s2298 + $0xc] sm:$0xf]
      %v2303 = vld [vmem:[%s2298 + $0x10] sm:$0xf]
      %v2304 = vld [vmem:[%s2298 + $0x14] sm:$0xf]
      %v2305 = vld [vmem:[%s2298 + $0x18] sm:$0xf]
      %v2306 = vld [vmem:[%s2298 + $0x1c] sm:$0xf]
      %v2307 = vld [vmem:[%s2298 + $0x20] sm:$0xf]
      %v2308 = vld [vmem:[%s2298 + $0x24] sm:$0xf]
      %v2309 = vld [vmem:[%s2298 + $0x28] sm:$0xf]
      %v2310 = vld [vmem:[%s2298 + $0x2c] sm:$0xf]
      %v2311 = vld [vmem:[%s2298 + $0x30] sm:$0xf]
      %v2312 = vld [vmem:[%s2298 + $0x34] sm:$0xf]
      %v2313 = vld [vmem:[%s2298 + $0x38] sm:$0xf]
      %v2314 = vld [vmem:[%s2298 + $0x3c] sm:$0xf]
      %v2331 = vunpack.c.l.b16 %v2299
      %v2332 = vunpack.c.l.b16 %v2300
      %v2333 = vunpack.c.l.b16 %v2301
      %v2334 = vunpack.c.l.b16 %v2302
      %v2335 = vunpack.c.l.b16 %v2303
      %v2336 = vunpack.c.l.b16 %v2304
      %v2337 = vunpack.c.l.b16 %v2305
      %v2338 = vunpack.c.l.b16 %v2306
      %v2339 = vunpack.c.l.b16 %v2307
      %v2340 = vunpack.c.l.b16 %v2308
      %v2341 = vunpack.c.l.b16 %v2309
      %v2342 = vunpack.c.l.b16 %v2310
      %v2343 = vunpack.c.l.b16 %v2311
      %v2344 = vunpack.c.l.b16 %v2312
      %v2345 = vunpack.c.l.b16 %v2313
      %v2346 = vunpack.c.l.b16 %v2314
      %v2347 = vpack.c.b16 %v2332, %v2331
      %v2348 = vpack.c.b16 %v2334, %v2333
      %v2349 = vpack.c.b16 %v2336, %v2335
      %v2350 = vpack.c.b16 %v2338, %v2337
      %v2351 = vpack.c.b16 %v2340, %v2339
      %v2352 = vpack.c.b16 %v2342, %v2341
      %v2353 = vpack.c.b16 %v2344, %v2343
      %v2354 = vpack.c.b16 %v2346, %v2345
      %2363 = vmatprep.subr.bf16.mxu0 0
      %2364 = vmatpush1.bf16.msra.mxu0 %v2354
      %2365 = vmatprep.subr.bf16.mxu0 0
      %2366 = vmatpush1.bf16.msra.mxu0 %v2353
      %2367 = vmatprep.subr.bf16.mxu0 0
      %2368 = vmatpush1.bf16.msra.mxu0 %v2352
      %2369 = vmatprep.subr.bf16.mxu0 0
      %2370 = vmatpush1.bf16.msra.mxu0 %v2351
      %2371 = vmatprep.subr.bf16.mxu0 0
      %2372 = vmatpush1.bf16.msra.mxu0 %v2350
      %2373 = vmatprep.subr.bf16.mxu0 0
      %2374 = vmatpush1.bf16.msra.mxu0 %v2349
      %2375 = vmatprep.subr.bf16.mxu0 0
      %2376 = vmatpush1.bf16.msra.mxu0 %v2348
      %2377 = vmatprep.subr.bf16.mxu0 0
      %2378 = vmatpush1.bf16.msra.mxu0 %v2347
      %2379 = vmatprep.subr.bf16.mxu0 0
      %2380 = vmatpush2.bf16.msra.mxu0 0
      %2381 = vmatprep.subr.bf16.mxu0 0
      %2382 = vmatpush2.bf16.msra.mxu0 0
      %2383 = vmatprep.subr.bf16.mxu0 0
      %2384 = vmatpush2.bf16.msra.mxu0 0
      %2385 = vmatprep.subr.bf16.mxu0 0
      %2386 = vmatpush2.bf16.msra.mxu0 0
      %2387 = vmatprep.subr.bf16.mxu0 0
      %2388 = vmatpush2.bf16.msra.mxu0 0
      %2389 = vmatprep.subr.bf16.mxu0 0
      %2390 = vmatpush2.bf16.msra.mxu0 0
      %2391 = vmatprep.subr.bf16.mxu0 0
      %2392 = vmatpush2.bf16.msra.mxu0 0
      %2393 = vmatprep.subr.bf16.mxu0 0
      %2394 = vmatpush2.bf16.msra.mxu0 0
      %2395 = vmatprep.mubr.bf16.mxu0 0
      %2396 = vmatmul.mubr.bf16.gmra.mxu0 %v512
      %v2397 = vpop.f32.mrf.mxu0
      %v2398 = vadd.f32 0.0, %v2397
      %v2399 = vpop.f32.mrf.mxu0
      %v2400 = vpop.f32.mrf.mxu0
      %v2401 = vadd.f32 0.0, %v2400
      %v2402 = vpop.f32.mrf.mxu0
      %2403 = vmatprep.mubr.bf16.mxu0 0
      %2404 = vmatmul.mubr.bf16.gmra.mxu0 %v513
      %v2405 = vpop.f32.mrf.mxu0
      %v2406 = vadd.f32 0.0, %v2405
      %v2407 = vpop.f32.mrf.mxu0
      %v2408 = vpop.f32.mrf.mxu0
      %v2409 = vadd.f32 0.0, %v2408
      %v2410 = vpop.f32.mrf.mxu0
      %2411 = vmatprep.mubr.bf16.mxu0 0
      %2412 = vmatmul.mubr.bf16.gmra.mxu0 %v514
      %v2413 = vpop.f32.mrf.mxu0
      %v2414 = vadd.f32 0.0, %v2413
      %v2415 = vpop.f32.mrf.mxu0
      %v2416 = vpop.f32.mrf.mxu0
      %v2417 = vadd.f32 0.0, %v2416
      %v2418 = vpop.f32.mrf.mxu0
      %2419 = vmatprep.mubr.bf16.mxu0 0
      %2420 = vmatmul.mubr.bf16.gmra.mxu0 %v515
      %v2421 = vpop.f32.mrf.mxu0
      %v2422 = vadd.f32 0.0, %v2421
      %v2423 = vpop.f32.mrf.mxu0
      %v2424 = vpop.f32.mrf.mxu0
      %v2425 = vadd.f32 0.0, %v2424
      %v2426 = vpop.f32.mrf.mxu0
      %2427 = vmatprep.mubr.bf16.mxu0 0
      %2428 = vmatmul.mubr.bf16.gmra.mxu0 %v516
      %v2429 = vpop.f32.mrf.mxu0
      %v2430 = vadd.f32 0.0, %v2429
      %v2431 = vpop.f32.mrf.mxu0
      %v2432 = vpop.f32.mrf.mxu0
      %v2433 = vadd.f32 0.0, %v2432
      %v2434 = vpop.f32.mrf.mxu0
      %2435 = vmatprep.mubr.bf16.mxu0 0
      %2436 = vmatmul.mubr.bf16.gmra.mxu0 %v517
      %v2437 = vpop.f32.mrf.mxu0
      %v2438 = vadd.f32 0.0, %v2437
      %v2439 = vpop.f32.mrf.mxu0
      %v2440 = vpop.f32.mrf.mxu0
      %v2441 = vadd.f32 0.0, %v2440
      %v2442 = vpop.f32.mrf.mxu0
      %2443 = vmatprep.mubr.bf16.mxu0 0
      %2444 = vmatmul.mubr.bf16.gmra.mxu0 %v518
      %v2445 = vpop.f32.mrf.mxu0
      %v2446 = vadd.f32 0.0, %v2445
      %v2447 = vpop.f32.mrf.mxu0
      %v2448 = vpop.f32.mrf.mxu0
      %v2449 = vadd.f32 0.0, %v2448
      %v2450 = vpop.f32.mrf.mxu0
      %2451 = vmatprep.mubr.bf16.mxu0 0
      %2452 = vmatmul.mubr.bf16.gmra.mxu0 %v519
      %v2453 = vpop.f32.mrf.mxu0
      %v2454 = vadd.f32 0.0, %v2453
      %v2455 = vpop.f32.mrf.mxu0
      %v2456 = vpop.f32.mrf.mxu0
      %v2457 = vadd.f32 0.0, %v2456
      %v2458 = vpop.f32.mrf.mxu0
      %2459 = vmatprep.mubr.bf16.mxu0 0
      %2460 = vmatmul.mubr.bf16.gmra.mxu0 %v520
      %v2461 = vpop.f32.mrf.mxu0
      %v2462 = vadd.f32 0.0, %v2461
      %v2463 = vpop.f32.mrf.mxu0
      %v2464 = vpop.f32.mrf.mxu0
      %v2465 = vadd.f32 0.0, %v2464
      %v2466 = vpop.f32.mrf.mxu0
      %2467 = vmatprep.mubr.bf16.mxu0 0
      %2468 = vmatmul.mubr.bf16.gmra.mxu0 %v521
      %v2469 = vpop.f32.mrf.mxu0
      %v2470 = vadd.f32 0.0, %v2469
      %v2471 = vpop.f32.mrf.mxu0
      %v2472 = vpop.f32.mrf.mxu0
      %v2473 = vadd.f32 0.0, %v2472
      %v2474 = vpop.f32.mrf.mxu0
      %2475 = vmatprep.mubr.bf16.mxu0 0
      %2476 = vmatmul.mubr.bf16.gmra.mxu0 %v522
      %v2477 = vpop.f32.mrf.mxu0
      %v2478 = vadd.f32 0.0, %v2477
      %v2479 = vpop.f32.mrf.mxu0
      %v2480 = vpop.f32.mrf.mxu0
      %v2481 = vadd.f32 0.0, %v2480
      %v2482 = vpop.f32.mrf.mxu0
      %2483 = vmatprep.mubr.bf16.mxu0 0
      %2484 = vmatmul.mubr.bf16.gmra.mxu0 %v523
      %v2485 = vpop.f32.mrf.mxu0
      %v2486 = vadd.f32 0.0, %v2485
      %v2487 = vpop.f32.mrf.mxu0
      %v2488 = vpop.f32.mrf.mxu0
      %v2489 = vadd.f32 0.0, %v2488
      %v2490 = vpop.f32.mrf.mxu0
      %2491 = vmatprep.mubr.bf16.mxu0 0
      %2492 = vmatmul.mubr.bf16.gmra.mxu0 %v524
      %v2493 = vpop.f32.mrf.mxu0
      %v2494 = vadd.f32 0.0, %v2493
      %v2495 = vpop.f32.mrf.mxu0
      %v2496 = vpop.f32.mrf.mxu0
      %v2497 = vadd.f32 0.0, %v2496
      %v2498 = vpop.f32.mrf.mxu0
      %2499 = vmatprep.mubr.bf16.mxu0 0
      %2500 = vmatmul.mubr.bf16.gmra.mxu0 %v525
      %v2501 = vpop.f32.mrf.mxu0
      %v2502 = vadd.f32 0.0, %v2501
      %v2503 = vpop.f32.mrf.mxu0
      %v2504 = vpop.f32.mrf.mxu0
      %v2505 = vadd.f32 0.0, %v2504
      %v2506 = vpop.f32.mrf.mxu0
      %2507 = vmatprep.mubr.bf16.mxu0 0
      %2508 = vmatmul.mubr.bf16.gmra.mxu0 %v526
      %v2509 = vpop.f32.mrf.mxu0
      %v2510 = vadd.f32 0.0, %v2509
      %v2511 = vpop.f32.mrf.mxu0
      %v2512 = vpop.f32.mrf.mxu0
      %v2513 = vadd.f32 0.0, %v2512
      %v2514 = vpop.f32.mrf.mxu0
      %2515 = vmatprep.mubr.bf16.mxu0 0
      %2516 = vmatmul.mubr.bf16.gmra.mxu0 %v704
      %v2517 = vpop.f32.mrf.mxu0
      %v2518 = vadd.f32 0.0, %v2517
      %v2519 = vpop.f32.mrf.mxu0
      %v2520 = vpop.f32.mrf.mxu0
      %v2521 = vadd.f32 0.0, %v2520
      %v2522 = vpop.f32.mrf.mxu0
      %2523 = vdwg.mxu0
      %v2524 = vadd.f32 %v2172, %v2398
      %v2525 = vadd.f32 %v2175, %v2401
      %v2526 = vadd.f32 %v2180, %v2406
      %v2527 = vadd.f32 %v2183, %v2409
      %v2528 = vadd.f32 %v2188, %v2414
      %v2529 = vadd.f32 %v2191, %v2417
      %v2530 = vadd.f32 %v2196, %v2422
      %v2531 = vadd.f32 %v2199, %v2425
      %v2532 = vadd.f32 %v2204, %v2430
      %v2533 = vadd.f32 %v2207, %v2433
      %v2534 = vadd.f32 %v2212, %v2438
      %v2535 = vadd.f32 %v2215, %v2441
      %v2536 = vadd.f32 %v2220, %v2446
      %v2537 = vadd.f32 %v2223, %v2449
      %v2538 = vadd.f32 %v2228, %v2454
      %v2539 = vadd.f32 %v2231, %v2457
      %v2540 = vadd.f32 %v2236, %v2462
      %v2541 = vadd.f32 %v2239, %v2465
      %v2542 = vadd.f32 %v2244, %v2470
      %v2543 = vadd.f32 %v2247, %v2473
      %v2544 = vadd.f32 %v2252, %v2478
      %v2545 = vadd.f32 %v2255, %v2481
      %v2546 = vadd.f32 %v2260, %v2486
      %v2547 = vadd.f32 %v2263, %v2489
      %v2548 = vadd.f32 %v2268, %v2494
      %v2549 = vadd.f32 %v2271, %v2497
      %v2550 = vadd.f32 %v2276, %v2502
      %v2551 = vadd.f32 %v2279, %v2505
      %v2552 = vadd.f32 %v2284, %v2510
      %v2553 = vadd.f32 %v2287, %v2513
      %v2554 = vadd.f32 %v2292, %v2518
      %v2555 = vadd.f32 %v2295, %v2521
      %v2556 = vld [vmem:[%s1] sm:$0xf]
      %v2557 = vld [vmem:[%s1 + $0x4] sm:$0xf]
      %v2558 = vld [vmem:[%s1 + $0x8] sm:$0xf]
      %v2559 = vld [vmem:[%s1 + $0xc] sm:$0xf]
      %v2560 = vld [vmem:[%s1 + $0x10] sm:$0xf]
      %v2561 = vld [vmem:[%s1 + $0x14] sm:$0xf]
      %v2562 = vld [vmem:[%s1 + $0x18] sm:$0xf]
      %v2563 = vld [vmem:[%s1 + $0x1c] sm:$0xf]
      %v2564 = vld [vmem:[%s1 + $0x20] sm:$0xf]
      %v2565 = vld [vmem:[%s1 + $0x24] sm:$0xf]
      %v2566 = vld [vmem:[%s1 + $0x28] sm:$0xf]
      %v2567 = vld [vmem:[%s1 + $0x2c] sm:$0xf]
      %v2568 = vld [vmem:[%s1 + $0x30] sm:$0xf]
      %v2569 = vld [vmem:[%s1 + $0x34] sm:$0xf]
      %v2570 = vld [vmem:[%s1 + $0x38] sm:$0xf]
      %v2571 = vld [vmem:[%s1 + $0x3c] sm:$0xf]
      %v2588 = vunpack.c.l.b16 %v2556
      %v2589 = vunpack.c.l.b16 %v2557
      %v2590 = vunpack.c.l.b16 %v2558
      %v2591 = vunpack.c.l.b16 %v2559
      %v2592 = vunpack.c.l.b16 %v2560
      %v2593 = vunpack.c.l.b16 %v2561
      %v2594 = vunpack.c.l.b16 %v2562
      %v2595 = vunpack.c.l.b16 %v2563
      %v2596 = vunpack.c.l.b16 %v2564
      %v2597 = vunpack.c.l.b16 %v2565
      %v2598 = vunpack.c.l.b16 %v2566
      %v2599 = vunpack.c.l.b16 %v2567
      %v2600 = vunpack.c.l.b16 %v2568
      %v2601 = vunpack.c.l.b16 %v2569
      %v2602 = vunpack.c.l.b16 %v2570
      %v2603 = vunpack.c.l.b16 %v2571
      %v2604 = vpack.c.b16 %v2589, %v2588
      %v2605 = vpack.c.b16 %v2591, %v2590
      %v2606 = vpack.c.b16 %v2593, %v2592
      %v2607 = vpack.c.b16 %v2595, %v2594
      %v2608 = vpack.c.b16 %v2597, %v2596
      %v2609 = vpack.c.b16 %v2599, %v2598
      %v2610 = vpack.c.b16 %v2601, %v2600
      %v2611 = vpack.c.b16 %v2603, %v2602
      %2620 = vmatprep.subr.bf16.mxu0 0
      %2621 = vmatpush1.bf16.msra.mxu0 %v2611
      %2622 = vmatprep.subr.bf16.mxu0 0
      %2623 = vmatpush1.bf16.msra.mxu0 %v2610
      %2624 = vmatprep.subr.bf16.mxu0 0
      %2625 = vmatpush1.bf16.msra.mxu0 %v2609
      %2626 = vmatprep.subr.bf16.mxu0 0
      %2627 = vmatpush1.bf16.msra.mxu0 %v2608
      %2628 = vmatprep.subr.bf16.mxu0 0
      %2629 = vmatpush1.bf16.msra.mxu0 %v2607
      %2630 = vmatprep.subr.bf16.mxu0 0
      %2631 = vmatpush1.bf16.msra.mxu0 %v2606
      %2632 = vmatprep.subr.bf16.mxu0 0
      %2633 = vmatpush1.bf16.msra.mxu0 %v2605
      %2634 = vmatprep.subr.bf16.mxu0 0
      %2635 = vmatpush1.bf16.msra.mxu0 %v2604
      %2636 = vmatprep.subr.bf16.mxu0 0
      %2637 = vmatpush2.bf16.msra.mxu0 0
      %2638 = vmatprep.subr.bf16.mxu0 0
      %2639 = vmatpush2.bf16.msra.mxu0 0
      %2640 = vmatprep.subr.bf16.mxu0 0
      %2641 = vmatpush2.bf16.msra.mxu0 0
      %2642 = vmatprep.subr.bf16.mxu0 0
      %2643 = vmatpush2.bf16.msra.mxu0 0
      %2644 = vmatprep.subr.bf16.mxu0 0
      %2645 = vmatpush2.bf16.msra.mxu0 0
      %2646 = vmatprep.subr.bf16.mxu0 0
      %2647 = vmatpush2.bf16.msra.mxu0 0
      %2648 = vmatprep.subr.bf16.mxu0 0
      %2649 = vmatpush2.bf16.msra.mxu0 0
      %2650 = vmatprep.subr.bf16.mxu0 0
      %2651 = vmatpush2.bf16.msra.mxu0 0
      %2652 = vmatprep.mubr.bf16.mxu0 0
      %2653 = vmatmul.mubr.bf16.gmra.mxu0 %v689
      %v2654 = vpop.f32.mrf.mxu0
      %v2655 = vadd.f32 0.0, %v2654
      %v2656 = vpop.f32.mrf.mxu0
      %v2657 = vpop.f32.mrf.mxu0
      %v2658 = vadd.f32 0.0, %v2657
      %v2659 = vpop.f32.mrf.mxu0
      %2660 = vmatprep.mubr.bf16.mxu0 0
      %2661 = vmatmul.mubr.bf16.gmra.mxu0 %v690
      %v2662 = vpop.f32.mrf.mxu0
      %v2663 = vadd.f32 0.0, %v2662
      %v2664 = vpop.f32.mrf.mxu0
      %v2665 = vpop.f32.mrf.mxu0
      %v2666 = vadd.f32 0.0, %v2665
      %v2667 = vpop.f32.mrf.mxu0
      %2668 = vmatprep.mubr.bf16.mxu0 0
      %2669 = vmatmul.mubr.bf16.gmra.mxu0 %v691
      %v2670 = vpop.f32.mrf.mxu0
      %v2671 = vadd.f32 0.0, %v2670
      %v2672 = vpop.f32.mrf.mxu0
      %v2673 = vpop.f32.mrf.mxu0
      %v2674 = vadd.f32 0.0, %v2673
      %v2675 = vpop.f32.mrf.mxu0
      %2676 = vmatprep.mubr.bf16.mxu0 0
      %2677 = vmatmul.mubr.bf16.gmra.mxu0 %v692
      %v2678 = vpop.f32.mrf.mxu0
      %v2679 = vadd.f32 0.0, %v2678
      %v2680 = vpop.f32.mrf.mxu0
      %v2681 = vpop.f32.mrf.mxu0
      %v2682 = vadd.f32 0.0, %v2681
      %v2683 = vpop.f32.mrf.mxu0
      %2684 = vmatprep.mubr.bf16.mxu0 0
      %2685 = vmatmul.mubr.bf16.gmra.mxu0 %v693
      %v2686 = vpop.f32.mrf.mxu0
      %v2687 = vadd.f32 0.0, %v2686
      %v2688 = vpop.f32.mrf.mxu0
      %v2689 = vpop.f32.mrf.mxu0
      %v2690 = vadd.f32 0.0, %v2689
      %v2691 = vpop.f32.mrf.mxu0
      %2692 = vmatprep.mubr.bf16.mxu0 0
      %2693 = vmatmul.mubr.bf16.gmra.mxu0 %v694
      %v2694 = vpop.f32.mrf.mxu0
      %v2695 = vadd.f32 0.0, %v2694
      %v2696 = vpop.f32.mrf.mxu0
      %v2697 = vpop.f32.mrf.mxu0
      %v2698 = vadd.f32 0.0, %v2697
      %v2699 = vpop.f32.mrf.mxu0
      %2700 = vmatprep.mubr.bf16.mxu0 0
      %2701 = vmatmul.mubr.bf16.gmra.mxu0 %v695
      %v2702 = vpop.f32.mrf.mxu0
      %v2703 = vadd.f32 0.0, %v2702
      %v2704 = vpop.f32.mrf.mxu0
      %v2705 = vpop.f32.mrf.mxu0
      %v2706 = vadd.f32 0.0, %v2705
      %v2707 = vpop.f32.mrf.mxu0
      %2708 = vmatprep.mubr.bf16.mxu0 0
      %2709 = vmatmul.mubr.bf16.gmra.mxu0 %v696
      %v2710 = vpop.f32.mrf.mxu0
      %v2711 = vadd.f32 0.0, %v2710
      %v2712 = vpop.f32.mrf.mxu0
      %v2713 = vpop.f32.mrf.mxu0
      %v2714 = vadd.f32 0.0, %v2713
      %v2715 = vpop.f32.mrf.mxu0
      %2716 = vmatprep.mubr.bf16.mxu0 0
      %2717 = vmatmul.mubr.bf16.gmra.mxu0 %v697
      %v2718 = vpop.f32.mrf.mxu0
      %v2719 = vadd.f32 0.0, %v2718
      %v2720 = vpop.f32.mrf.mxu0
      %v2721 = vpop.f32.mrf.mxu0
      %v2722 = vadd.f32 0.0, %v2721
      %v2723 = vpop.f32.mrf.mxu0
      %2724 = vmatprep.mubr.bf16.mxu0 0
      %2725 = vmatmul.mubr.bf16.gmra.mxu0 %v698
      %v2726 = vpop.f32.mrf.mxu0
      %v2727 = vadd.f32 0.0, %v2726
      %v2728 = vpop.f32.mrf.mxu0
      %v2729 = vpop.f32.mrf.mxu0
      %v2730 = vadd.f32 0.0, %v2729
      %v2731 = vpop.f32.mrf.mxu0
      %2732 = vmatprep.mubr.bf16.mxu0 0
      %2733 = vmatmul.mubr.bf16.gmra.mxu0 %v699
      %v2734 = vpop.f32.mrf.mxu0
      %v2735 = vadd.f32 0.0, %v2734
      %v2736 = vpop.f32.mrf.mxu0
      %v2737 = vpop.f32.mrf.mxu0
      %v2738 = vadd.f32 0.0, %v2737
      %v2739 = vpop.f32.mrf.mxu0
      %2740 = vmatprep.mubr.bf16.mxu0 0
      %2741 = vmatmul.mubr.bf16.gmra.mxu0 %v700
      %v2742 = vpop.f32.mrf.mxu0
      %v2743 = vadd.f32 0.0, %v2742
      %v2744 = vpop.f32.mrf.mxu0
      %v2745 = vpop.f32.mrf.mxu0
      %v2746 = vadd.f32 0.0, %v2745
      %v2747 = vpop.f32.mrf.mxu0
      %2748 = vmatprep.mubr.bf16.mxu0 0
      %2749 = vmatmul.mubr.bf16.gmra.mxu0 %v701
      %v2750 = vpop.f32.mrf.mxu0
      %v2751 = vadd.f32 0.0, %v2750
      %v2752 = vpop.f32.mrf.mxu0
      %v2753 = vpop.f32.mrf.mxu0
      %v2754 = vadd.f32 0.0, %v2753
      %v2755 = vpop.f32.mrf.mxu0
      %2756 = vmatprep.mubr.bf16.mxu0 0
      %2757 = vmatmul.mubr.bf16.gmra.mxu0 %v702
      %v2758 = vpop.f32.mrf.mxu0
      %v2759 = vadd.f32 0.0, %v2758
      %v2760 = vpop.f32.mrf.mxu0
      %v2761 = vpop.f32.mrf.mxu0
      %v2762 = vadd.f32 0.0, %v2761
      %v2763 = vpop.f32.mrf.mxu0
      %2764 = vmatprep.mubr.bf16.mxu0 0
      %2765 = vmatmul.mubr.bf16.gmra.mxu0 %v703
      %v2766 = vpop.f32.mrf.mxu0
      %v2767 = vadd.f32 0.0, %v2766
      %v2768 = vpop.f32.mrf.mxu0
      %v2769 = vpop.f32.mrf.mxu0
      %v2770 = vadd.f32 0.0, %v2769
      %v2771 = vpop.f32.mrf.mxu0
      %2772 = vmatprep.mubr.bf16.mxu0 0
      %2773 = vmatmul.mubr.bf16.gmra.mxu0 %v715
      %v2774 = vpop.f32.mrf.mxu0
      %v2775 = vadd.f32 0.0, %v2774
      %v2776 = vpop.f32.mrf.mxu0
      %v2777 = vpop.f32.mrf.mxu0
      %v2778 = vadd.f32 0.0, %v2777
      %v2779 = vpop.f32.mrf.mxu0
      %2780 = vdwg.mxu0
      %v2781 = vadd.f32 %v2524, %v2655
      %v2782 = vadd.f32 %v2525, %v2658
      %v2783 = vadd.f32 %v2526, %v2663
      %v2784 = vadd.f32 %v2527, %v2666
      %v2785 = vadd.f32 %v2528, %v2671
      %v2786 = vadd.f32 %v2529, %v2674
      %v2787 = vadd.f32 %v2530, %v2679
      %v2788 = vadd.f32 %v2531, %v2682
      %v2789 = vadd.f32 %v2532, %v2687
      %v2790 = vadd.f32 %v2533, %v2690
      %v2791 = vadd.f32 %v2534, %v2695
      %v2792 = vadd.f32 %v2535, %v2698
      %v2793 = vadd.f32 %v2536, %v2703
      %v2794 = vadd.f32 %v2537, %v2706
      %v2795 = vadd.f32 %v2538, %v2711
      %v2796 = vadd.f32 %v2539, %v2714
      %v2797 = vadd.f32 %v2540, %v2719
      %v2798 = vadd.f32 %v2541, %v2722
      %v2799 = vadd.f32 %v2542, %v2727
      %v2800 = vadd.f32 %v2543, %v2730
      %v2801 = vadd.f32 %v2544, %v2735
      %v2802 = vadd.f32 %v2545, %v2738
      %v2803 = vadd.f32 %v2546, %v2743
      %v2804 = vadd.f32 %v2547, %v2746
      %v2805 = vadd.f32 %v2548, %v2751
      %v2806 = vadd.f32 %v2549, %v2754
      %v2807 = vadd.f32 %v2550, %v2759
      %v2808 = vadd.f32 %v2551, %v2762
      %v2809 = vadd.f32 %v2552, %v2767
      %v2810 = vadd.f32 %v2553, %v2770
      %v2811 = vadd.f32 %v2554, %v2775
      %v2812 = vadd.f32 %v2555, %v2778
      %s2813 = scalar_lea.vmem [#allocation2], 32
      %2814 = vst [vmem:[%s2813 + $0x8] sm:$0xff] %v816
      %2815 = vst [vmem:[%s2813 + $0x10] sm:$0xff] %v819
      %2816 = vst [vmem:[%s2813 + $0x28] sm:$0xff] %v824
      %2817 = vst [vmem:[%s2813 + $0x30] sm:$0xff] %v827
      %2818 = vst [vmem:[%s2813 + $0x48] sm:$0xff] %v832
      %2819 = vst [vmem:[%s2813 + $0x50] sm:$0xff] %v835
      %2820 = vst [vmem:[%s2813 + $0x68] sm:$0xff] %v840
      %2821 = vst [vmem:[%s2813 + $0x70] sm:$0xff] %v843
      %2822 = vst [vmem:[%s2813 + $0x88] sm:$0xff] %v848
      %2823 = vst [vmem:[%s2813 + $0x90] sm:$0xff] %v851
      %2824 = vst [vmem:[%s2813 + $0xa8] sm:$0xff] %v856
      %2825 = vst [vmem:[%s2813 + $0xb0] sm:$0xff] %v859
      %2826 = vst [vmem:[%s2813 + $0xc8] sm:$0xff] %v864
      %2827 = vst [vmem:[%s2813 + $0xd0] sm:$0xff] %v867
      %2828 = vst [vmem:[%s2813 + $0xe8] sm:$0xff] %v872
      %2829 = vst [vmem:[%s2813 + $0xf0] sm:$0xff] %v875
      %2830 = vst [vmem:[%s2813 + $0x108] sm:$0xff] %v880
      %2831 = vst [vmem:[%s2813 + $0x110] sm:$0xff] %v883
      %2832 = vst [vmem:[%s2813 + $0x128] sm:$0xff] %v888
      %2833 = vst [vmem:[%s2813 + $0x130] sm:$0xff] %v891
      %2834 = vst [vmem:[%s2813 + $0x148] sm:$0xff] %v896
      %2835 = vst [vmem:[%s2813 + $0x150] sm:$0xff] %v899
      %2836 = vst [vmem:[%s2813 + $0x168] sm:$0xff] %v904
      %2837 = vst [vmem:[%s2813 + $0x170] sm:$0xff] %v907
      %2838 = vst [vmem:[%s2813 + $0x188] sm:$0xff] %v912
      %2839 = vst [vmem:[%s2813 + $0x190] sm:$0xff] %v915
      %2840 = vst [vmem:[%s2813 + $0x1a8] sm:$0xff] %v920
      %2841 = vst [vmem:[%s2813 + $0x1b0] sm:$0xff] %v923
      %2842 = vst [vmem:[%s2813 + $0x1c8] sm:$0xff] %v928
      %2843 = vst [vmem:[%s2813 + $0x1d0] sm:$0xff] %v931
      %2844 = vst [vmem:[%s2813 + $0x1e8] sm:$0xff] %v936
      %2845 = vst [vmem:[%s2813 + $0x1f0] sm:$0xff] %v939
      %s2846 = scalar_lea.vmem [#allocation2], 608
      %2847 = vst [vmem:[%s2846 + $0x8] sm:$0xff] %v1268
      %2848 = vst [vmem:[%s2846 + $0x10] sm:$0xff] %v1271
      %2849 = vst [vmem:[%s2846 + $0x28] sm:$0xff] %v1276
      %2850 = vst [vmem:[%s2846 + $0x30] sm:$0xff] %v1279
      %2851 = vst [vmem:[%s2846 + $0x48] sm:$0xff] %v1284
      %2852 = vst [vmem:[%s2846 + $0x50] sm:$0xff] %v1287
      %2853 = vst [vmem:[%s2846 + $0x68] sm:$0xff] %v1292
      %2854 = vst [vmem:[%s2846 + $0x70] sm:$0xff] %v1295
      %2855 = vst [vmem:[%s2846 + $0x88] sm:$0xff] %v1300
      %2856 = vst [vmem:[%s2846 + $0x90] sm:$0xff] %v1303
      %2857 = vst [vmem:[%s2846 + $0xa8] sm:$0xff] %v1308
      %2858 = vst [vmem:[%s2846 + $0xb0] sm:$0xff] %v1311
      %2859 = vst [vmem:[%s2846 + $0xc8] sm:$0xff] %v1316
      %2860 = vst [vmem:[%s2846 + $0xd0] sm:$0xff] %v1319
      %2861 = vst [vmem:[%s2846 + $0xe8] sm:$0xff] %v1324
      %2862 = vst [vmem:[%s2846 + $0xf0] sm:$0xff] %v1327
      %2863 = vst [vmem:[%s2846 + $0x108] sm:$0xff] %v1332
      %2864 = vst [vmem:[%s2846 + $0x110] sm:$0xff] %v1335
      %2865 = vst [vmem:[%s2846 + $0x128] sm:$0xff] %v1340
      %2866 = vst [vmem:[%s2846 + $0x130] sm:$0xff] %v1343
      %2867 = vst [vmem:[%s2846 + $0x148] sm:$0xff] %v1348
      %2868 = vst [vmem:[%s2846 + $0x150] sm:$0xff] %v1351
      %2869 = vst [vmem:[%s2846 + $0x168] sm:$0xff] %v1356
      %2870 = vst [vmem:[%s2846 + $0x170] sm:$0xff] %v1359
      %2871 = vst [vmem:[%s2846 + $0x188] sm:$0xff] %v1364
      %2872 = vst [vmem:[%s2846 + $0x190] sm:$0xff] %v1367
      %2873 = vst [vmem:[%s2846 + $0x1a8] sm:$0xff] %v1372
      %2874 = vst [vmem:[%s2846 + $0x1b0] sm:$0xff] %v1375
      %2875 = vst [vmem:[%s2846 + $0x1c8] sm:$0xff] %v1380
      %2876 = vst [vmem:[%s2846 + $0x1d0] sm:$0xff] %v1383
      %2877 = vst [vmem:[%s2846 + $0x1e8] sm:$0xff] %v1388
      %2878 = vst [vmem:[%s2846 + $0x1f0] sm:$0xff] %v1391
      %s2879 = scalar_lea.vmem [#allocation2], 1184
      %2880 = vst [vmem:[%s2879 + $0x8] sm:$0xff] %v1720
      %2881 = vst [vmem:[%s2879 + $0x10] sm:$0xff] %v1723
      %2882 = vst [vmem:[%s2879 + $0x28] sm:$0xff] %v1728
      %2883 = vst [vmem:[%s2879 + $0x30] sm:$0xff] %v1731
      %2884 = vst [vmem:[%s2879 + $0x48] sm:$0xff] %v1736
      %2885 = vst [vmem:[%s2879 + $0x50] sm:$0xff] %v1739
      %2886 = vst [vmem:[%s2879 + $0x68] sm:$0xff] %v1744
      %2887 = vst [vmem:[%s2879 + $0x70] sm:$0xff] %v1747
      %2888 = vst [vmem:[%s2879 + $0x88] sm:$0xff] %v1752
      %2889 = vst [vmem:[%s2879 + $0x90] sm:$0xff] %v1755
      %2890 = vst [vmem:[%s2879 + $0xa8] sm:$0xff] %v1760
      %2891 = vst [vmem:[%s2879 + $0xb0] sm:$0xff] %v1763
      %2892 = vst [vmem:[%s2879 + $0xc8] sm:$0xff] %v1768
      %2893 = vst [vmem:[%s2879 + $0xd0] sm:$0xff] %v1771
      %2894 = vst [vmem:[%s2879 + $0xe8] sm:$0xff] %v1776
      %2895 = vst [vmem:[%s2879 + $0xf0] sm:$0xff] %v1779
      %2896 = vst [vmem:[%s2879 + $0x108] sm:$0xff] %v1784
      %2897 = vst [vmem:[%s2879 + $0x110] sm:$0xff] %v1787
      %2898 = vst [vmem:[%s2879 + $0x128] sm:$0xff] %v1792
      %2899 = vst [vmem:[%s2879 + $0x130] sm:$0xff] %v1795
      %2900 = vst [vmem:[%s2879 + $0x148] sm:$0xff] %v1800
      %2901 = vst [vmem:[%s2879 + $0x150] sm:$0xff] %v1803
      %2902 = vst [vmem:[%s2879 + $0x168] sm:$0xff] %v1808
      %2903 = vst [vmem:[%s2879 + $0x170] sm:$0xff] %v1811
      %2904 = vst [vmem:[%s2879 + $0x188] sm:$0xff] %v1816
      %2905 = vst [vmem:[%s2879 + $0x190] sm:$0xff] %v1819
      %2906 = vst [vmem:[%s2879 + $0x1a8] sm:$0xff] %v1824
      %2907 = vst [vmem:[%s2879 + $0x1b0] sm:$0xff] %v1827
      %2908 = vst [vmem:[%s2879 + $0x1c8] sm:$0xff] %v1832
      %2909 = vst [vmem:[%s2879 + $0x1d0] sm:$0xff] %v1835
      %2910 = vst [vmem:[%s2879 + $0x1e8] sm:$0xff] %v1840
      %2911 = vst [vmem:[%s2879 + $0x1f0] sm:$0xff] %v1843
      %s2912 = scalar_lea.vmem [#allocation2], 1760
      %2913 = vst [vmem:[%s2912 + $0x8] sm:$0xff] %v2781
      %2914 = vst [vmem:[%s2912 + $0x10] sm:$0xff] %v2782
      %2915 = vst [vmem:[%s2912 + $0x28] sm:$0xff] %v2783
      %2916 = vst [vmem:[%s2912 + $0x30] sm:$0xff] %v2784
      %2917 = vst [vmem:[%s2912 + $0x48] sm:$0xff] %v2785
      %2918 = vst [vmem:[%s2912 + $0x50] sm:$0xff] %v2786
      %2919 = vst [vmem:[%s2912 + $0x68] sm:$0xff] %v2787
      %2920 = vst [vmem:[%s2912 + $0x70] sm:$0xff] %v2788
      %2921 = vst [vmem:[%s2912 + $0x88] sm:$0xff] %v2789
      %2922 = vst [vmem:[%s2912 + $0x90] sm:$0xff] %v2790
      %2923 = vst [vmem:[%s2912 + $0xa8] sm:$0xff] %v2791
      %2924 = vst [vmem:[%s2912 + $0xb0] sm:$0xff] %v2792
      %2925 = vst [vmem:[%s2912 + $0xc8] sm:$0xff] %v2793
      %2926 = vst [vmem:[%s2912 + $0xd0] sm:$0xff] %v2794
      %2927 = vst [vmem:[%s2912 + $0xe8] sm:$0xff] %v2795
      %2928 = vst [vmem:[%s2912 + $0xf0] sm:$0xff] %v2796
      %2929 = vst [vmem:[%s2912 + $0x108] sm:$0xff] %v2797
      %2930 = vst [vmem:[%s2912 + $0x110] sm:$0xff] %v2798
      %2931 = vst [vmem:[%s2912 + $0x128] sm:$0xff] %v2799
      %2932 = vst [vmem:[%s2912 + $0x130] sm:$0xff] %v2800
      %2933 = vst [vmem:[%s2912 + $0x148] sm:$0xff] %v2801
      %2934 = vst [vmem:[%s2912 + $0x150] sm:$0xff] %v2802
      %2935 = vst [vmem:[%s2912 + $0x168] sm:$0xff] %v2803
      %2936 = vst [vmem:[%s2912 + $0x170] sm:$0xff] %v2804
      %2937 = vst [vmem:[%s2912 + $0x188] sm:$0xff] %v2805
      %2938 = vst [vmem:[%s2912 + $0x190] sm:$0xff] %v2806
      %2939 = vst [vmem:[%s2912 + $0x1a8] sm:$0xff] %v2807
      %2940 = vst [vmem:[%s2912 + $0x1b0] sm:$0xff] %v2808
      %2941 = vst [vmem:[%s2912 + $0x1c8] sm:$0xff] %v2809
      %2942 = vst [vmem:[%s2912 + $0x1d0] sm:$0xff] %v2810
      %2943 = vst [vmem:[%s2912 + $0x1e8] sm:$0xff] %v2811
      %2944 = vst [vmem:[%s2912 + $0x1f0] sm:$0xff] %v2812
      %v2945 = vld [vmem:[%s2] sm:$0xf]
      %v2946 = vld [vmem:[%s2 + $0x4] sm:$0xf]
      %v2947 = vld [vmem:[%s2 + $0x8] sm:$0xf]
      %v2948 = vld [vmem:[%s2 + $0xc] sm:$0xf]
      %v2949 = vld [vmem:[%s2 + $0x10] sm:$0xf]
      %v2950 = vld [vmem:[%s2 + $0x14] sm:$0xf]
      %v2951 = vld [vmem:[%s2 + $0x18] sm:$0xf]
      %v2952 = vld [vmem:[%s2 + $0x1c] sm:$0xf]
      %v2953 = vld [vmem:[%s2 + $0x20] sm:$0xf]
      %v2954 = vld [vmem:[%s2 + $0x24] sm:$0xf]
      %v2955 = vld [vmem:[%s2 + $0x28] sm:$0xf]
      %v2956 = vld [vmem:[%s2 + $0x2c] sm:$0xf]
      %v2957 = vld [vmem:[%s2 + $0x30] sm:$0xf]
      %v2958 = vld [vmem:[%s2 + $0x34] sm:$0xf]
      %v2959 = vld [vmem:[%s2 + $0x38] sm:$0xf]
      %v2960 = vld [vmem:[%s2 + $0x3c] sm:$0xf]
      %v2961 = vld [vmem:[%s2 + $0x40] sm:$0xf]
      %v2962 = vld [vmem:[%s2 + $0x44] sm:$0xf]
      %v2963 = vld [vmem:[%s2 + $0x48] sm:$0xf]
      %v2964 = vld [vmem:[%s2 + $0x4c] sm:$0xf]
      %v2965 = vld [vmem:[%s2 + $0x50] sm:$0xf]
      %v2966 = vld [vmem:[%s2 + $0x54] sm:$0xf]
      %v2967 = vld [vmem:[%s2 + $0x58] sm:$0xf]
      %v2968 = vld [vmem:[%s2 + $0x5c] sm:$0xf]
      %v2969 = vld [vmem:[%s2 + $0x60] sm:$0xf]
      %v2970 = vld [vmem:[%s2 + $0x64] sm:$0xf]
      %v2971 = vld [vmem:[%s2 + $0x68] sm:$0xf]
      %v2972 = vld [vmem:[%s2 + $0x6c] sm:$0xf]
      %v2973 = vld [vmem:[%s2 + $0x70] sm:$0xf]
      %v2974 = vld [vmem:[%s2 + $0x74] sm:$0xf]
      %v2975 = vld [vmem:[%s2 + $0x78] sm:$0xf]
      %v2976 = vld [vmem:[%s2 + $0x7c] sm:$0xf]
      %v2977 = vld [vmem:[%s2 + $0x80] sm:$0xf]
      %v2978 = vld [vmem:[%s2 + $0x84] sm:$0xf]
      %v2979 = vld [vmem:[%s2 + $0x88] sm:$0xf]
      %v2980 = vld [vmem:[%s2 + $0x8c] sm:$0xf]
      %v2981 = vld [vmem:[%s2 + $0x90] sm:$0xf]
      %v2982 = vld [vmem:[%s2 + $0x94] sm:$0xf]
      %v2983 = vld [vmem:[%s2 + $0x98] sm:$0xf]
      %v2984 = vld [vmem:[%s2 + $0x9c] sm:$0xf]
      %v2985 = vld [vmem:[%s2 + $0xa0] sm:$0xf]
      %v2986 = vld [vmem:[%s2 + $0xa4] sm:$0xf]
      %v2987 = vld [vmem:[%s2 + $0xa8] sm:$0xf]
      %v2988 = vld [vmem:[%s2 + $0xac] sm:$0xf]
      %v2989 = vld [vmem:[%s2 + $0xb0] sm:$0xf]
      %v2990 = vld [vmem:[%s2 + $0xb4] sm:$0xf]
      %v2991 = vld [vmem:[%s2 + $0xb8] sm:$0xf]
      %v2992 = vld [vmem:[%s2 + $0xbc] sm:$0xf]
      %v2993 = vld [vmem:[%s2 + $0xc0] sm:$0xf]
      %v2994 = vld [vmem:[%s2 + $0xc4] sm:$0xf]
      %v2995 = vld [vmem:[%s2 + $0xc8] sm:$0xf]
      %v2996 = vld [vmem:[%s2 + $0xcc] sm:$0xf]
      %v2997 = vld [vmem:[%s2 + $0xd0] sm:$0xf]
      %v2998 = vld [vmem:[%s2 + $0xd4] sm:$0xf]
      %v2999 = vld [vmem:[%s2 + $0xd8] sm:$0xf]
      %v3000 = vld [vmem:[%s2 + $0xdc] sm:$0xf]
      %v3001 = vld [vmem:[%s2 + $0xe0] sm:$0xf]
      %v3002 = vld [vmem:[%s2 + $0xe4] sm:$0xf]
      %v3003 = vld [vmem:[%s2 + $0xe8] sm:$0xf]
      %v3004 = vld [vmem:[%s2 + $0xec] sm:$0xf]
      %v3005 = vld [vmem:[%s2 + $0xf0] sm:$0xf]
      %v3006 = vld [vmem:[%s2 + $0xf4] sm:$0xf]
      %v3007 = vld [vmem:[%s2 + $0xf8] sm:$0xf]
      %v3008 = vld [vmem:[%s2 + $0xfc] sm:$0xf]
      %v3009 = vld [vmem:[%s2 + $0x100] sm:$0xf]
      %v3010 = vld [vmem:[%s2 + $0x104] sm:$0xf]
      %v3011 = vld [vmem:[%s2 + $0x108] sm:$0xf]
      %v3012 = vld [vmem:[%s2 + $0x10c] sm:$0xf]
      %v3013 = vld [vmem:[%s2 + $0x110] sm:$0xf]
      %v3014 = vld [vmem:[%s2 + $0x114] sm:$0xf]
      %v3015 = vld [vmem:[%s2 + $0x118] sm:$0xf]
      %v3016 = vld [vmem:[%s2 + $0x11c] sm:$0xf]
      %v3017 = vld [vmem:[%s2 + $0x120] sm:$0xf]
      %v3018 = vld [vmem:[%s2 + $0x124] sm:$0xf]
      %v3019 = vld [vmem:[%s2 + $0x128] sm:$0xf]
      %v3020 = vld [vmem:[%s2 + $0x12c] sm:$0xf]
      %v3021 = vld [vmem:[%s2 + $0x130] sm:$0xf]
      %v3022 = vld [vmem:[%s2 + $0x134] sm:$0xf]
      %v3023 = vld [vmem:[%s2 + $0x138] sm:$0xf]
      %v3024 = vld [vmem:[%s2 + $0x13c] sm:$0xf]
      %v3025 = vld [vmem:[%s2 + $0x140] sm:$0xf]
      %v3026 = vld [vmem:[%s2 + $0x144] sm:$0xf]
      %v3027 = vld [vmem:[%s2 + $0x148] sm:$0xf]
      %v3028 = vld [vmem:[%s2 + $0x14c] sm:$0xf]
      %v3029 = vld [vmem:[%s2 + $0x150] sm:$0xf]
      %v3030 = vld [vmem:[%s2 + $0x154] sm:$0xf]
      %v3031 = vld [vmem:[%s2 + $0x158] sm:$0xf]
      %v3032 = vld [vmem:[%s2 + $0x15c] sm:$0xf]
      %v3033 = vld [vmem:[%s2 + $0x160] sm:$0xf]
      %v3034 = vld [vmem:[%s2 + $0x164] sm:$0xf]
      %v3035 = vld [vmem:[%s2 + $0x168] sm:$0xf]
      %v3036 = vld [vmem:[%s2 + $0x16c] sm:$0xf]
      %v3037 = vld [vmem:[%s2 + $0x170] sm:$0xf]
      %v3038 = vld [vmem:[%s2 + $0x174] sm:$0xf]
      %v3039 = vld [vmem:[%s2 + $0x178] sm:$0xf]
      %v3040 = vld [vmem:[%s2 + $0x17c] sm:$0xf]
      %v3041 = vld [vmem:[%s2 + $0x180] sm:$0xf]
      %v3042 = vld [vmem:[%s2 + $0x184] sm:$0xf]
      %v3043 = vld [vmem:[%s2 + $0x188] sm:$0xf]
      %v3044 = vld [vmem:[%s2 + $0x18c] sm:$0xf]
      %v3045 = vld [vmem:[%s2 + $0x190] sm:$0xf]
      %v3046 = vld [vmem:[%s2 + $0x194] sm:$0xf]
      %v3047 = vld [vmem:[%s2 + $0x198] sm:$0xf]
      %v3048 = vld [vmem:[%s2 + $0x19c] sm:$0xf]
      %v3049 = vld [vmem:[%s2 + $0x1a0] sm:$0xf]
      %v3050 = vld [vmem:[%s2 + $0x1a4] sm:$0xf]
      %v3051 = vld [vmem:[%s2 + $0x1a8] sm:$0xf]
      %v3052 = vld [vmem:[%s2 + $0x1ac] sm:$0xf]
      %v3053 = vld [vmem:[%s2 + $0x1b0] sm:$0xf]
      %v3054 = vld [vmem:[%s2 + $0x1b4] sm:$0xf]
      %v3055 = vld [vmem:[%s2 + $0x1b8] sm:$0xf]
      %v3056 = vld [vmem:[%s2 + $0x1bc] sm:$0xf]
      %v3057 = vld [vmem:[%s2 + $0x1c0] sm:$0xf]
      %v3058 = vld [vmem:[%s2 + $0x1c4] sm:$0xf]
      %v3059 = vld [vmem:[%s2 + $0x1c8] sm:$0xf]
      %v3060 = vld [vmem:[%s2 + $0x1cc] sm:$0xf]
      %v3061 = vld [vmem:[%s2 + $0x1d0] sm:$0xf]
      %v3062 = vld [vmem:[%s2 + $0x1d4] sm:$0xf]
      %v3063 = vld [vmem:[%s2 + $0x1d8] sm:$0xf]
      %v3064 = vld [vmem:[%s2 + $0x1dc] sm:$0xf]
      %v3065 = vld [vmem:[%s2 + $0x1e0] sm:$0xf]
      %v3066 = vld [vmem:[%s2 + $0x1e4] sm:$0xf]
      %v3067 = vld [vmem:[%s2 + $0x1e8] sm:$0xf]
      %v3068 = vld [vmem:[%s2 + $0x1ec] sm:$0xf]
      %v3069 = vld [vmem:[%s2 + $0x1f0] sm:$0xf]
      %v3070 = vld [vmem:[%s2 + $0x1f4] sm:$0xf]
      %v3071 = vld [vmem:[%s2 + $0x1f8] sm:$0xf]
      %v3072 = vld [vmem:[%s2 + $0x1fc] sm:$0xf]
      %v3073 = vld [vmem:[%s2 + $0x200] sm:$0xf]
      %v3074 = vld [vmem:[%s2 + $0x204] sm:$0xf]
      %v3075 = vld [vmem:[%s2 + $0x208] sm:$0xf]
      %v3076 = vld [vmem:[%s2 + $0x20c] sm:$0xf]
      %v3077 = vld [vmem:[%s2 + $0x210] sm:$0xf]
      %v3078 = vld [vmem:[%s2 + $0x214] sm:$0xf]
      %v3079 = vld [vmem:[%s2 + $0x218] sm:$0xf]
      %v3080 = vld [vmem:[%s2 + $0x21c] sm:$0xf]
      %v3081 = vld [vmem:[%s2 + $0x220] sm:$0xf]
      %v3082 = vld [vmem:[%s2 + $0x224] sm:$0xf]
      %v3083 = vld [vmem:[%s2 + $0x228] sm:$0xf]
      %v3084 = vld [vmem:[%s2 + $0x22c] sm:$0xf]
      %v3085 = vld [vmem:[%s2 + $0x230] sm:$0xf]
      %v3086 = vld [vmem:[%s2 + $0x234] sm:$0xf]
      %v3087 = vld [vmem:[%s2 + $0x238] sm:$0xf]
      %v3088 = vld [vmem:[%s2 + $0x23c] sm:$0xf]
      %v3089 = vld [vmem:[#allocation2 + $0x28] sm:$0xff]
      %v3090 = vld [vmem:[#allocation2 + $0x30] sm:$0xff]
      %v3091 = vld [vmem:[#allocation2 + $0x38] sm:$0x1]
      %v3092 = vld [vmem:[#allocation2 + $0x48] sm:$0xff]
      %v3093 = vld [vmem:[#allocation2 + $0x50] sm:$0xff]
      %v3094 = vld [vmem:[#allocation2 + $0x58] sm:$0x1]
      %v3095 = vld [vmem:[#allocation2 + $0x68] sm:$0xff]
      %v3096 = vld [vmem:[#allocation2 + $0x70] sm:$0xff]
      %v3097 = vld [vmem:[#allocation2 + $0x78] sm:$0x1]
      %v3098 = vld [vmem:[#allocation2 + $0x88] sm:$0xff]
      %v3099 = vld [vmem:[#allocation2 + $0x90] sm:$0xff]
      %v3100 = vld [vmem:[#allocation2 + $0x98] sm:$0x1]
      %v3101 = vld [vmem:[#allocation2 + $0xa8] sm:$0xff]
      %v3102 = vld [vmem:[#allocation2 + $0xb0] sm:$0xff]
      %v3103 = vld [vmem:[#allocation2 + $0xb8] sm:$0x1]
      %v3104 = vld [vmem:[#allocation2 + $0xc8] sm:$0xff]
      %v3105 = vld [vmem:[#allocation2 + $0xd0] sm:$0xff]
      %v3106 = vld [vmem:[#allocation2 + $0xd8] sm:$0x1]
      %v3107 = vld [vmem:[#allocation2 + $0xe8] sm:$0xff]
      %v3108 = vld [vmem:[#allocation2 + $0xf0] sm:$0xff]
      %v3109 = vld [vmem:[#allocation2 + $0xf8] sm:$0x1]
      %v3110 = vld [vmem:[#allocation2 + $0x108] sm:$0xff]
      %v3111 = vld [vmem:[#allocation2 + $0x110] sm:$0xff]
      %v3112 = vld [vmem:[#allocation2 + $0x118] sm:$0x1]
      %v3113 = vld [vmem:[#allocation2 + $0x128] sm:$0xff]
      %v3114 = vld [vmem:[#allocation2 + $0x130] sm:$0xff]
      %v3115 = vld [vmem:[#allocation2 + $0x138] sm:$0x1]
      %v3116 = vld [vmem:[#allocation2 + $0x148] sm:$0xff]
      %v3117 = vld [vmem:[#allocation2 + $0x150] sm:$0xff]
      %v3118 = vld [vmem:[#allocation2 + $0x158] sm:$0x1]
      %v3119 = vld [vmem:[#allocation2 + $0x168] sm:$0xff]
      %v3120 = vld [vmem:[#allocation2 + $0x170] sm:$0xff]
      %v3121 = vld [vmem:[#allocation2 + $0x178] sm:$0x1]
      %v3122 = vld [vmem:[#allocation2 + $0x188] sm:$0xff]
      %v3123 = vld [vmem:[#allocation2 + $0x190] sm:$0xff]
      %v3124 = vld [vmem:[#allocation2 + $0x198] sm:$0x1]
      %v3125 = vld [vmem:[#allocation2 + $0x1a8] sm:$0xff]
      %v3126 = vld [vmem:[#allocation2 + $0x1b0] sm:$0xff]
      %v3127 = vld [vmem:[#allocation2 + $0x1b8] sm:$0x1]
      %v3128 = vld [vmem:[#allocation2 + $0x1c8] sm:$0xff]
      %v3129 = vld [vmem:[#allocation2 + $0x1d0] sm:$0xff]
      %v3130 = vld [vmem:[#allocation2 + $0x1d8] sm:$0x1]
      %v3131 = vld [vmem:[#allocation2 + $0x1e8] sm:$0xff]
      %v3132 = vld [vmem:[#allocation2 + $0x1f0] sm:$0xff]
      %v3133 = vld [vmem:[#allocation2 + $0x1f8] sm:$0x1]
      %v3134 = vld [vmem:[#allocation2 + $0x208] sm:$0xff]
      %v3135 = vld [vmem:[#allocation2 + $0x210] sm:$0xff]
      %v3136 = vld [vmem:[#allocation2 + $0x218] sm:$0x1]
      %v3137 = vld [vmem:[#allocation2 + $0x228] sm:$0xff]
      %v3138 = vld [vmem:[#allocation2 + $0x230] sm:$0xff]
      %v3139 = vld [vmem:[#allocation2 + $0x238] sm:$0x1]
      %s3140 = scalar_lea.vmem [#allocation2], 576
      %v3141 = vld [vmem:[%s3140 + $0x20] sm:$0xff]
      %v3142 = vld [vmem:[%s3140 + $0x28] sm:$0xff]
      %v3143 = vld [vmem:[%s3140 + $0x30] sm:$0xff]
      %v3144 = vld [vmem:[%s3140 + $0x40] sm:$0xff]
      %v3145 = vld [vmem:[%s3140 + $0x48] sm:$0xff]
      %v3146 = vld [vmem:[%s3140 + $0x50] sm:$0xff]
      %v3147 = vld [vmem:[%s3140 + $0x60] sm:$0xff]
      %v3148 = vld [vmem:[%s3140 + $0x68] sm:$0xff]
      %v3149 = vld [vmem:[%s3140 + $0x70] sm:$0xff]
      %v3150 = vld [vmem:[%s3140 + $0x80] sm:$0xff]
      %v3151 = vld [vmem:[%s3140 + $0x88] sm:$0xff]
      %v3152 = vld [vmem:[%s3140 + $0x90] sm:$0xff]
      %v3153 = vld [vmem:[%s3140 + $0xa0] sm:$0xff]
      %v3154 = vld [vmem:[%s3140 + $0xa8] sm:$0xff]
      %v3155 = vld [vmem:[%s3140 + $0xb0] sm:$0xff]
      %v3156 = vld [vmem:[%s3140 + $0xc0] sm:$0xff]
      %v3157 = vld [vmem:[%s3140 + $0xc8] sm:$0xff]
      %v3158 = vld [vmem:[%s3140 + $0xd0] sm:$0xff]
      %v3159 = vld [vmem:[%s3140 + $0xe0] sm:$0xff]
      %v3160 = vld [vmem:[%s3140 + $0xe8] sm:$0xff]
      %v3161 = vld [vmem:[%s3140 + $0xf0] sm:$0xff]
      %v3162 = vld [vmem:[%s3140 + $0x100] sm:$0xff]
      %v3163 = vld [vmem:[%s3140 + $0x108] sm:$0xff]
      %v3164 = vld [vmem:[%s3140 + $0x110] sm:$0xff]
      %v3165 = vld [vmem:[%s3140 + $0x120] sm:$0xff]
      %v3166 = vld [vmem:[%s3140 + $0x128] sm:$0xff]
      %v3167 = vld [vmem:[%s3140 + $0x130] sm:$0xff]
      %v3168 = vld [vmem:[%s3140 + $0x140] sm:$0xff]
      %v3169 = vld [vmem:[%s3140 + $0x148] sm:$0xff]
      %v3170 = vld [vmem:[%s3140 + $0x150] sm:$0xff]
      %v3171 = vld [vmem:[%s3140 + $0x160] sm:$0xff]
      %v3172 = vld [vmem:[%s3140 + $0x168] sm:$0xff]
      %v3173 = vld [vmem:[%s3140 + $0x170] sm:$0xff]
      %v3174 = vld [vmem:[%s3140 + $0x180] sm:$0xff]
      %v3175 = vld [vmem:[%s3140 + $0x188] sm:$0xff]
      %v3176 = vld [vmem:[%s3140 + $0x190] sm:$0xff]
      %v3177 = vld [vmem:[%s3140 + $0x1a0] sm:$0xff]
      %v3178 = vld [vmem:[%s3140 + $0x1a8] sm:$0xff]
      %v3179 = vld [vmem:[%s3140 + $0x1b0] sm:$0xff]
      %v3180 = vld [vmem:[%s3140 + $0x1c0] sm:$0xff]
      %v3181 = vld [vmem:[%s3140 + $0x1c8] sm:$0xff]
      %v3182 = vld [vmem:[%s3140 + $0x1d0] sm:$0xff]
      %v3183 = vld [vmem:[%s3140 + $0x1e0] sm:$0xff]
      %v3184 = vld [vmem:[%s3140 + $0x1e8] sm:$0xff]
      %v3185 = vld [vmem:[%s3140 + $0x1f0] sm:$0xff]
      %v3186 = vld [vmem:[%s3140 + $0x200] sm:$0xff]
      %v3187 = vld [vmem:[%s3140 + $0x208] sm:$0xff]
      %v3188 = vld [vmem:[%s3140 + $0x210] sm:$0xff]
      %v3189 = vld [vmem:[%s3140 + $0x220] sm:$0xff]
      %v3190 = vld [vmem:[%s3140 + $0x228] sm:$0xff]
      %v3191 = vld [vmem:[%s3140 + $0x230] sm:$0xff]
      %s3192 = scalar_lea.vmem [#allocation2], 1152
      %v3193 = vld [vmem:[%s3192 + $0x8] sm:$0xff]
      %v3194 = vld [vmem:[%s3192 + $0x10] sm:$0xff]
      %v3195 = vld [vmem:[%s3192 + $0x18] sm:$0x1]
      %v3196 = vld [vmem:[%s3192 + $0x28] sm:$0xff]
      %v3197 = vld [vmem:[%s3192 + $0x30] sm:$0xff]
      %v3198 = vld [vmem:[%s3192 + $0x38] sm:$0x1]
      %v3199 = vld [vmem:[%s3192 + $0x48] sm:$0xff]
      %v3200 = vld [vmem:[%s3192 + $0x50] sm:$0xff]
      %v3201 = vld [vmem:[%s3192 + $0x58] sm:$0x1]
      %v3202 = vld [vmem:[%s3192 + $0x68] sm:$0xff]
      %v3203 = vld [vmem:[%s3192 + $0x70] sm:$0xff]
      %v3204 = vld [vmem:[%s3192 + $0x78] sm:$0x1]
      %v3205 = vld [vmem:[%s3192 + $0x88] sm:$0xff]
      %v3206 = vld [vmem:[%s3192 + $0x90] sm:$0xff]
      %v3207 = vld [vmem:[%s3192 + $0x98] sm:$0x1]
      %v3208 = vld [vmem:[%s3192 + $0xa8] sm:$0xff]
      %v3209 = vld [vmem:[%s3192 + $0xb0] sm:$0xff]
      %v3210 = vld [vmem:[%s3192 + $0xb8] sm:$0x1]
      %v3211 = vld [vmem:[%s3192 + $0xc8] sm:$0xff]
      %v3212 = vld [vmem:[%s3192 + $0xd0] sm:$0xff]
      %v3213 = vld [vmem:[%s3192 + $0xd8] sm:$0x1]
      %v3214 = vld [vmem:[%s3192 + $0xe8] sm:$0xff]
      %v3215 = vld [vmem:[%s3192 + $0xf0] sm:$0xff]
      %v3216 = vld [vmem:[%s3192 + $0xf8] sm:$0x1]
      %v3217 = vld [vmem:[%s3192 + $0x108] sm:$0xff]
      %v3218 = vld [vmem:[%s3192 + $0x110] sm:$0xff]
      %v3219 = vld [vmem:[%s3192 + $0x118] sm:$0x1]
      %v3220 = vld [vmem:[%s3192 + $0x128] sm:$0xff]
      %v3221 = vld [vmem:[%s3192 + $0x130] sm:$0xff]
      %v3222 = vld [vmem:[%s3192 + $0x138] sm:$0x1]
      %v3223 = vld [vmem:[%s3192 + $0x148] sm:$0xff]
      %v3224 = vld [vmem:[%s3192 + $0x150] sm:$0xff]
      %v3225 = vld [vmem:[%s3192 + $0x158] sm:$0x1]
      %v3226 = vld [vmem:[%s3192 + $0x168] sm:$0xff]
      %v3227 = vld [vmem:[%s3192 + $0x170] sm:$0xff]
      %v3228 = vld [vmem:[%s3192 + $0x178] sm:$0x1]
      %v3229 = vld [vmem:[%s3192 + $0x188] sm:$0xff]
      %v3230 = vld [vmem:[%s3192 + $0x190] sm:$0xff]
      %v3231 = vld [vmem:[%s3192 + $0x198] sm:$0x1]
      %v3232 = vld [vmem:[%s3192 + $0x1a8] sm:$0xff]
      %v3233 = vld [vmem:[%s3192 + $0x1b0] sm:$0xff]
      %v3234 = vld [vmem:[%s3192 + $0x1b8] sm:$0x1]
      %v3235 = vld [vmem:[%s3192 + $0x1c8] sm:$0xff]
      %v3236 = vld [vmem:[%s3192 + $0x1d0] sm:$0xff]
      %v3237 = vld [vmem:[%s3192 + $0x1d8] sm:$0x1]
      %v3238 = vld [vmem:[%s3192 + $0x1e8] sm:$0xff]
      %v3239 = vld [vmem:[%s3192 + $0x1f0] sm:$0xff]
      %v3240 = vld [vmem:[%s3192 + $0x1f8] sm:$0x1]
      %v3241 = vld [vmem:[%s3192 + $0x208] sm:$0xff]
      %v3242 = vld [vmem:[%s3192 + $0x210] sm:$0xff]
      %v3243 = vld [vmem:[%s3192 + $0x218] sm:$0x1]
      %s3244 = scalar_lea.vmem [#allocation2], 1728
      %v3245 = vld [vmem:[%s3244] sm:$0xff]
      %v3246 = vld [vmem:[%s3244 + $0x8] sm:$0xff]
      %v3247 = vld [vmem:[%s3244 + $0x10] sm:$0xff]
      %v3248 = vld [vmem:[%s3244 + $0x20] sm:$0xff]
      %v3249 = vld [vmem:[%s3244 + $0x28] sm:$0xff]
      %v3250 = vld [vmem:[%s3244 + $0x30] sm:$0xff]
      %v3251 = vld [vmem:[%s3244 + $0x40] sm:$0xff]
      %v3252 = vld [vmem:[%s3244 + $0x48] sm:$0xff]
      %v3253 = vld [vmem:[%s3244 + $0x50] sm:$0xff]
      %v3254 = vld [vmem:[%s3244 + $0x60] sm:$0xff]
      %v3255 = vld [vmem:[%s3244 + $0x68] sm:$0xff]
      %v3256 = vld [vmem:[%s3244 + $0x70] sm:$0xff]
      %v3257 = vld [vmem:[%s3244 + $0x80] sm:$0xff]
      %v3258 = vld [vmem:[%s3244 + $0x88] sm:$0xff]
      %v3259 = vld [vmem:[%s3244 + $0x90] sm:$0xff]
      %v3260 = vld [vmem:[%s3244 + $0xa0] sm:$0xff]
      %v3261 = vld [vmem:[%s3244 + $0xa8] sm:$0xff]
      %v3262 = vld [vmem:[%s3244 + $0xb0] sm:$0xff]
      %v3263 = vld [vmem:[%s3244 + $0xc0] sm:$0xff]
      %v3264 = vld [vmem:[%s3244 + $0xc8] sm:$0xff]
      %v3265 = vld [vmem:[%s3244 + $0xd0] sm:$0xff]
      %v3266 = vld [vmem:[%s3244 + $0xe0] sm:$0xff]
      %v3267 = vld [vmem:[%s3244 + $0xe8] sm:$0xff]
      %v3268 = vld [vmem:[%s3244 + $0xf0] sm:$0xff]
      %v3269 = vld [vmem:[%s3244 + $0x100] sm:$0xff]
      %v3270 = vld [vmem:[%s3244 + $0x108] sm:$0xff]
      %v3271 = vld [vmem:[%s3244 + $0x110] sm:$0xff]
      %v3272 = vld [vmem:[%s3244 + $0x120] sm:$0xff]
      %v3273 = vld [vmem:[%s3244 + $0x128] sm:$0xff]
      %v3274 = vld [vmem:[%s3244 + $0x130] sm:$0xff]
      %v3275 = vld [vmem:[%s3244 + $0x140] sm:$0xff]
      %v3276 = vld [vmem:[%s3244 + $0x148] sm:$0xff]
      %v3277 = vld [vmem:[%s3244 + $0x150] sm:$0xff]
      %v3278 = vld [vmem:[%s3244 + $0x160] sm:$0xff]
      %v3279 = vld [vmem:[%s3244 + $0x168] sm:$0xff]
      %v3280 = vld [vmem:[%s3244 + $0x170] sm:$0xff]
      %v3281 = vld [vmem:[%s3244 + $0x180] sm:$0xff]
      %v3282 = vld [vmem:[%s3244 + $0x188] sm:$0xff]
      %v3283 = vld [vmem:[%s3244 + $0x190] sm:$0xff]
      %v3284 = vld [vmem:[%s3244 + $0x1a0] sm:$0xff]
      %v3285 = vld [vmem:[%s3244 + $0x1a8] sm:$0xff]
      %v3286 = vld [vmem:[%s3244 + $0x1b0] sm:$0xff]
      %v3287 = vld [vmem:[%s3244 + $0x1c0] sm:$0xff]
      %v3288 = vld [vmem:[%s3244 + $0x1c8] sm:$0xff]
      %v3289 = vld [vmem:[%s3244 + $0x1d0] sm:$0xff]
      %v3290 = vld [vmem:[%s3244 + $0x1e0] sm:$0xff]
      %v3291 = vld [vmem:[%s3244 + $0x1e8] sm:$0xff]
      %v3292 = vld [vmem:[%s3244 + $0x1f0] sm:$0xff]
      %v3293 = vld [vmem:[%s3244 + $0x200] sm:$0xff]
      %v3294 = vld [vmem:[%s3244 + $0x208] sm:$0xff]
      %v3295 = vld [vmem:[%s3244 + $0x210] sm:$0xff]
      %vm3344 = vcmask 1040384
      %v3345 = vrot.slane %v3245, 7
      %v3346 = vrot.slane %v3246, 7
      %v3347 = vsel %vm3344, %v3345, %v3346
      %v3348 = vrot.slane %v3247, 7
      %v3349 = vsel %vm3344, %v3346, %v3348
      %v3350 = vrot.slane %v3248, 7
      %v3351 = vrot.slane %v3249, 7
      %v3352 = vsel %vm3344, %v3350, %v3351
      %v3353 = vrot.slane %v3250, 7
      %v3354 = vsel %vm3344, %v3351, %v3353
      %v3355 = vrot.slane %v3251, 7
      %v3356 = vrot.slane %v3252, 7
      %v3357 = vsel %vm3344, %v3355, %v3356
      %v3358 = vrot.slane %v3253, 7
      %v3359 = vsel %vm3344, %v3356, %v3358
      %v3360 = vrot.slane %v3254, 7
      %v3361 = vrot.slane %v3255, 7
      %v3362 = vsel %vm3344, %v3360, %v3361
      %v3363 = vrot.slane %v3256, 7
      %v3364 = vsel %vm3344, %v3361, %v3363
      %v3365 = vrot.slane %v3257, 7
      %v3366 = vrot.slane %v3258, 7
      %v3367 = vsel %vm3344, %v3365, %v3366
      %v3368 = vrot.slane %v3259, 7
      %v3369 = vsel %vm3344, %v3366, %v3368
      %v3370 = vrot.slane %v3260, 7
      %v3371 = vrot.slane %v3261, 7
      %v3372 = vsel %vm3344, %v3370, %v3371
      %v3373 = vrot.slane %v3262, 7
      %v3374 = vsel %vm3344, %v3371, %v3373
      %v3375 = vrot.slane %v3263, 7
      %v3376 = vrot.slane %v3264, 7
      %v3377 = vsel %vm3344, %v3375, %v3376
      %v3378 = vrot.slane %v3265, 7
      %v3379 = vsel %vm3344, %v3376, %v3378
      %v3380 = vrot.slane %v3266, 7
      %v3381 = vrot.slane %v3267, 7
      %v3382 = vsel %vm3344, %v3380, %v3381
      %v3383 = vrot.slane %v3268, 7
      %v3384 = vsel %vm3344, %v3381, %v3383
      %v3385 = vrot.slane %v3269, 7
      %v3386 = vrot.slane %v3270, 7
      %v3387 = vsel %vm3344, %v3385, %v3386
      %v3388 = vrot.slane %v3271, 7
      %v3389 = vsel %vm3344, %v3386, %v3388
      %v3390 = vrot.slane %v3272, 7
      %v3391 = vrot.slane %v3273, 7
      %v3392 = vsel %vm3344, %v3390, %v3391
      %v3393 = vrot.slane %v3274, 7
      %v3394 = vsel %vm3344, %v3391, %v3393
      %v3395 = vrot.slane %v3275, 7
      %v3396 = vrot.slane %v3276, 7
      %v3397 = vsel %vm3344, %v3395, %v3396
      %v3398 = vrot.slane %v3277, 7
      %v3399 = vsel %vm3344, %v3396, %v3398
      %v3400 = vrot.slane %v3278, 7
      %v3401 = vrot.slane %v3279, 7
      %v3402 = vsel %vm3344, %v3400, %v3401
      %v3403 = vrot.slane %v3280, 7
      %v3404 = vsel %vm3344, %v3401, %v3403
      %v3405 = vrot.slane %v3281, 7
      %v3406 = vrot.slane %v3282, 7
      %v3407 = vsel %vm3344, %v3405, %v3406
      %v3408 = vrot.slane %v3283, 7
      %v3409 = vsel %vm3344, %v3406, %v3408
      %v3410 = vrot.slane %v3284, 7
      %v3411 = vrot.slane %v3285, 7
      %v3412 = vsel %vm3344, %v3410, %v3411
      %v3413 = vrot.slane %v3286, 7
      %v3414 = vsel %vm3344, %v3411, %v3413
      %v3415 = vrot.slane %v3287, 7
      %v3416 = vrot.slane %v3288, 7
      %v3417 = vsel %vm3344, %v3415, %v3416
      %v3418 = vrot.slane %v3289, 7
      %v3419 = vsel %vm3344, %v3416, %v3418
      %v3420 = vrot.slane %v3290, 7
      %v3421 = vrot.slane %v3291, 7
      %v3422 = vsel %vm3344, %v3420, %v3421
      %v3423 = vrot.slane %v3292, 7
      %v3424 = vsel %vm3344, %v3421, %v3423
      %v3457 = vpack.c.bf16 %v3349, %v3347
      %v3458 = vpack.c.bf16 %v3354, %v3352
      %v3459 = vpack.c.bf16 %v3359, %v3357
      %v3460 = vpack.c.bf16 %v3364, %v3362
      %v3461 = vpack.c.bf16 %v3369, %v3367
      %v3462 = vpack.c.bf16 %v3374, %v3372
      %v3463 = vpack.c.bf16 %v3379, %v3377
      %v3464 = vpack.c.bf16 %v3384, %v3382
      %v3465 = vpack.c.bf16 %v3389, %v3387
      %v3466 = vpack.c.bf16 %v3394, %v3392
      %v3467 = vpack.c.bf16 %v3399, %v3397
      %v3468 = vpack.c.bf16 %v3404, %v3402
      %v3469 = vpack.c.bf16 %v3409, %v3407
      %v3470 = vpack.c.bf16 %v3414, %v3412
      %v3471 = vpack.c.bf16 %v3419, %v3417
      %v3472 = vpack.c.bf16 %v3424, %v3422
      %v3473 = vpack.c.bf16 %v3194, %v3193
      %v3474 = vpack.c.bf16 %v3197, %v3196
      %v3475 = vpack.c.bf16 %v3200, %v3199
      %v3476 = vpack.c.bf16 %v3203, %v3202
      %v3477 = vpack.c.bf16 %v3206, %v3205
      %v3478 = vpack.c.bf16 %v3209, %v3208
      %v3479 = vpack.c.bf16 %v3212, %v3211
      %v3480 = vpack.c.bf16 %v3215, %v3214
      %v3481 = vpack.c.bf16 %v3218, %v3217
      %v3482 = vpack.c.bf16 %v3221, %v3220
      %v3483 = vpack.c.bf16 %v3224, %v3223
      %v3484 = vpack.c.bf16 %v3227, %v3226
      %v3485 = vpack.c.bf16 %v3230, %v3229
      %v3486 = vpack.c.bf16 %v3233, %v3232
      %v3487 = vpack.c.bf16 %v3236, %v3235
      %v3488 = vpack.c.bf16 %v3239, %v3238
      %v3489 = vpack.c.bf16 %v3247, %v3246
      %v3490 = vpack.c.bf16 %v3250, %v3249
      %v3491 = vpack.c.bf16 %v3253, %v3252
      %v3492 = vpack.c.bf16 %v3256, %v3255
      %v3493 = vpack.c.bf16 %v3259, %v3258
      %v3494 = vpack.c.bf16 %v3262, %v3261
      %v3495 = vpack.c.bf16 %v3265, %v3264
      %v3496 = vpack.c.bf16 %v3268, %v3267
      %v3497 = vpack.c.bf16 %v3271, %v3270
      %v3498 = vpack.c.bf16 %v3274, %v3273
      %v3499 = vpack.c.bf16 %v3277, %v3276
      %v3500 = vpack.c.bf16 %v3280, %v3279
      %v3501 = vpack.c.bf16 %v3283, %v3282
      %v3502 = vpack.c.bf16 %v3286, %v3285
      %v3503 = vpack.c.bf16 %v3289, %v3288
      %v3504 = vpack.c.bf16 %v3292, %v3291
      %v3553 = vrot.slane %v3141, 7
      %v3554 = vrot.slane %v3142, 7
      %v3555 = vsel %vm3344, %v3553, %v3554
      %v3556 = vrot.slane %v3143, 7
      %v3557 = vsel %vm3344, %v3554, %v3556
      %v3558 = vrot.slane %v3144, 7
      %v3559 = vrot.slane %v3145, 7
      %v3560 = vsel %vm3344, %v3558, %v3559
      %v3561 = vrot.slane %v3146, 7
      %v3562 = vsel %vm3344, %v3559, %v3561
      %v3563 = vrot.slane %v3147, 7
      %v3564 = vrot.slane %v3148, 7
      %v3565 = vsel %vm3344, %v3563, %v3564
      %v3566 = vrot.slane %v3149, 7
      %v3567 = vsel %vm3344, %v3564, %v3566
      %v3568 = vrot.slane %v3150, 7
      %v3569 = vrot.slane %v3151, 7
      %v3570 = vsel %vm3344, %v3568, %v3569
      %v3571 = vrot.slane %v3152, 7
      %v3572 = vsel %vm3344, %v3569, %v3571
      %v3573 = vrot.slane %v3153, 7
      %v3574 = vrot.slane %v3154, 7
      %v3575 = vsel %vm3344, %v3573, %v3574
      %v3576 = vrot.slane %v3155, 7
      %v3577 = vsel %vm3344, %v3574, %v3576
      %v3578 = vrot.slane %v3156, 7
      %v3579 = vrot.slane %v3157, 7
      %v3580 = vsel %vm3344, %v3578, %v3579
      %v3581 = vrot.slane %v3158, 7
      %v3582 = vsel %vm3344, %v3579, %v3581
      %v3583 = vrot.slane %v3159, 7
      %v3584 = vrot.slane %v3160, 7
      %v3585 = vsel %vm3344, %v3583, %v3584
      %v3586 = vrot.slane %v3161, 7
      %v3587 = vsel %vm3344, %v3584, %v3586
      %v3588 = vrot.slane %v3162, 7
      %v3589 = vrot.slane %v3163, 7
      %v3590 = vsel %vm3344, %v3588, %v3589
      %v3591 = vrot.slane %v3164, 7
      %v3592 = vsel %vm3344, %v3589, %v3591
      %v3593 = vrot.slane %v3165, 7
      %v3594 = vrot.slane %v3166, 7
      %v3595 = vsel %vm3344, %v3593, %v3594
      %v3596 = vrot.slane %v3167, 7
      %v3597 = vsel %vm3344, %v3594, %v3596
      %v3598 = vrot.slane %v3168, 7
      %v3599 = vrot.slane %v3169, 7
      %v3600 = vsel %vm3344, %v3598, %v3599
      %v3601 = vrot.slane %v3170, 7
      %v3602 = vsel %vm3344, %v3599, %v3601
      %v3603 = vrot.slane %v3171, 7
      %v3604 = vrot.slane %v3172, 7
      %v3605 = vsel %vm3344, %v3603, %v3604
      %v3606 = vrot.slane %v3173, 7
      %v3607 = vsel %vm3344, %v3604, %v3606
      %v3608 = vrot.slane %v3174, 7
      %v3609 = vrot.slane %v3175, 7
      %v3610 = vsel %vm3344, %v3608, %v3609
      %v3611 = vrot.slane %v3176, 7
      %v3612 = vsel %vm3344, %v3609, %v3611
      %v3613 = vrot.slane %v3177, 7
      %v3614 = vrot.slane %v3178, 7
      %v3615 = vsel %vm3344, %v3613, %v3614
      %v3616 = vrot.slane %v3179, 7
      %v3617 = vsel %vm3344, %v3614, %v3616
      %v3618 = vrot.slane %v3180, 7
      %v3619 = vrot.slane %v3181, 7
      %v3620 = vsel %vm3344, %v3618, %v3619
      %v3621 = vrot.slane %v3182, 7
      %v3622 = vsel %vm3344, %v3619, %v3621
      %v3623 = vrot.slane %v3183, 7
      %v3624 = vrot.slane %v3184, 7
      %v3625 = vsel %vm3344, %v3623, %v3624
      %v3626 = vrot.slane %v3185, 7
      %v3627 = vsel %vm3344, %v3624, %v3626
      %v3628 = vrot.slane %v3186, 7
      %v3629 = vrot.slane %v3187, 7
      %v3630 = vsel %vm3344, %v3628, %v3629
      %v3631 = vrot.slane %v3188, 7
      %v3632 = vsel %vm3344, %v3629, %v3631
      %v3665 = vpack.c.bf16 %v3557, %v3555
      %v3666 = vpack.c.bf16 %v3562, %v3560
      %v3667 = vpack.c.bf16 %v3567, %v3565
      %v3668 = vpack.c.bf16 %v3572, %v3570
      %v3669 = vpack.c.bf16 %v3577, %v3575
      %v3670 = vpack.c.bf16 %v3582, %v3580
      %v3671 = vpack.c.bf16 %v3587, %v3585
      %v3672 = vpack.c.bf16 %v3592, %v3590
      %v3673 = vpack.c.bf16 %v3597, %v3595
      %v3674 = vpack.c.bf16 %v3602, %v3600
      %v3675 = vpack.c.bf16 %v3607, %v3605
      %v3676 = vpack.c.bf16 %v3612, %v3610
      %v3677 = vpack.c.bf16 %v3617, %v3615
      %v3678 = vpack.c.bf16 %v3622, %v3620
      %v3679 = vpack.c.bf16 %v3627, %v3625
      %v3680 = vpack.c.bf16 %v3632, %v3630
      %v3681 = vpack.c.bf16 %v3090, %v3089
      %v3682 = vpack.c.bf16 %v3093, %v3092
      %v3683 = vpack.c.bf16 %v3096, %v3095
      %v3684 = vpack.c.bf16 %v3099, %v3098
      %v3685 = vpack.c.bf16 %v3102, %v3101
      %v3686 = vpack.c.bf16 %v3105, %v3104
      %v3687 = vpack.c.bf16 %v3108, %v3107
      %v3688 = vpack.c.bf16 %v3111, %v3110
      %v3689 = vpack.c.bf16 %v3114, %v3113
      %v3690 = vpack.c.bf16 %v3117, %v3116
      %v3691 = vpack.c.bf16 %v3120, %v3119
      %v3692 = vpack.c.bf16 %v3123, %v3122
      %v3693 = vpack.c.bf16 %v3126, %v3125
      %v3694 = vpack.c.bf16 %v3129, %v3128
      %v3695 = vpack.c.bf16 %v3132, %v3131
      %v3696 = vpack.c.bf16 %v3135, %v3134
      %v3697 = vpack.c.bf16 %v3143, %v3142
      %v3698 = vpack.c.bf16 %v3146, %v3145
      %v3699 = vpack.c.bf16 %v3149, %v3148
      %v3700 = vpack.c.bf16 %v3152, %v3151
      %v3701 = vpack.c.bf16 %v3155, %v3154
      %v3702 = vpack.c.bf16 %v3158, %v3157
      %v3703 = vpack.c.bf16 %v3161, %v3160
      %v3704 = vpack.c.bf16 %v3164, %v3163
      %v3705 = vpack.c.bf16 %v3167, %v3166
      %v3706 = vpack.c.bf16 %v3170, %v3169
      %v3707 = vpack.c.bf16 %v3173, %v3172
      %v3708 = vpack.c.bf16 %v3176, %v3175
      %v3709 = vpack.c.bf16 %v3179, %v3178
      %v3710 = vpack.c.bf16 %v3182, %v3181
      %v3711 = vpack.c.bf16 %v3185, %v3184
      %v3712 = vpack.c.bf16 %v3188, %v3187
      %v3716 = vrot.slane %v3293, 7
      %v3717 = vrot.slane %v3294, 7
      %v3718 = vsel %vm3344, %v3716, %v3717
      %v3719 = vrot.slane %v3295, 7
      %v3720 = vsel %vm3344, %v3717, %v3719
      %v3723 = vpack.c.bf16 %v3720, %v3718
      %v3724 = vpack.c.bf16 %v3242, %v3241
      %v3725 = vpack.c.bf16 %v3295, %v3294
      %v3870 = vunpack.c.l.b16 %v2945
      %v3871 = vunpack.c.l.b16 %v2946
      %v3872 = vunpack.c.l.b16 %v2947
      %v3873 = vunpack.c.l.b16 %v2948
      %v3874 = vunpack.c.l.b16 %v2949
      %v3875 = vunpack.c.l.b16 %v2950
      %v3876 = vunpack.c.l.b16 %v2951
      %v3877 = vunpack.c.l.b16 %v2952
      %v3878 = vunpack.c.l.b16 %v2953
      %v3879 = vunpack.c.l.b16 %v2954
      %v3880 = vunpack.c.l.b16 %v2955
      %v3881 = vunpack.c.l.b16 %v2956
      %v3882 = vunpack.c.l.b16 %v2957
      %v3883 = vunpack.c.l.b16 %v2958
      %v3884 = vunpack.c.l.b16 %v2959
      %v3885 = vunpack.c.l.b16 %v2960
      %v3886 = vunpack.c.l.b16 %v2961
      %v3887 = vunpack.c.l.b16 %v2962
      %v3888 = vunpack.c.l.b16 %v2963
      %v3889 = vunpack.c.l.b16 %v2964
      %v3890 = vunpack.c.l.b16 %v2965
      %v3891 = vunpack.c.l.b16 %v2966
      %v3892 = vunpack.c.l.b16 %v2967
      %v3893 = vunpack.c.l.b16 %v2968
      %v3894 = vunpack.c.l.b16 %v2969
      %v3895 = vunpack.c.l.b16 %v2970
      %v3896 = vunpack.c.l.b16 %v2971
      %v3897 = vunpack.c.l.b16 %v2972
      %v3898 = vunpack.c.l.b16 %v2973
      %v3899 = vunpack.c.l.b16 %v2974
      %v3900 = vunpack.c.l.b16 %v2975
      %v3901 = vunpack.c.l.b16 %v2976
      %v3902 = vunpack.c.l.b16 %v2977
      %v3903 = vunpack.c.l.b16 %v2978
      %v3904 = vunpack.c.l.b16 %v2979
      %v3905 = vunpack.c.l.b16 %v2980
      %v3906 = vunpack.c.l.b16 %v2981
      %v3907 = vunpack.c.l.b16 %v2982
      %v3908 = vunpack.c.l.b16 %v2983
      %v3909 = vunpack.c.l.b16 %v2984
      %v3910 = vunpack.c.l.b16 %v2985
      %v3911 = vunpack.c.l.b16 %v2986
      %v3912 = vunpack.c.l.b16 %v2987
      %v3913 = vunpack.c.l.b16 %v2988
      %v3914 = vunpack.c.l.b16 %v2989
      %v3915 = vunpack.c.l.b16 %v2990
      %v3916 = vunpack.c.l.b16 %v2991
      %v3917 = vunpack.c.l.b16 %v2992
      %v3918 = vunpack.c.l.b16 %v2993
      %v3919 = vunpack.c.l.b16 %v2994
      %v3920 = vunpack.c.l.b16 %v2995
      %v3921 = vunpack.c.l.b16 %v2996
      %v3922 = vunpack.c.l.b16 %v2997
      %v3923 = vunpack.c.l.b16 %v2998
      %v3924 = vunpack.c.l.b16 %v2999
      %v3925 = vunpack.c.l.b16 %v3000
      %v3926 = vunpack.c.l.b16 %v3001
      %v3927 = vunpack.c.l.b16 %v3002
      %v3928 = vunpack.c.l.b16 %v3003
      %v3929 = vunpack.c.l.b16 %v3004
      %v3930 = vunpack.c.l.b16 %v3005
      %v3931 = vunpack.c.l.b16 %v3006
      %v3932 = vunpack.c.l.b16 %v3007
      %v3933 = vunpack.c.l.b16 %v3008
      %v3934 = vunpack.c.l.b16 %v3009
      %v3935 = vunpack.c.l.b16 %v3010
      %v3936 = vunpack.c.l.b16 %v3011
      %v3937 = vunpack.c.l.b16 %v3012
      %v3938 = vunpack.c.l.b16 %v3013
      %v3939 = vunpack.c.l.b16 %v3014
      %v3940 = vunpack.c.l.b16 %v3015
      %v3941 = vunpack.c.l.b16 %v3016
      %v3942 = vunpack.c.l.b16 %v3017
      %v3943 = vunpack.c.l.b16 %v3018
      %v3944 = vunpack.c.l.b16 %v3019
      %v3945 = vunpack.c.l.b16 %v3020
      %v3946 = vunpack.c.l.b16 %v3021
      %v3947 = vunpack.c.l.b16 %v3022
      %v3948 = vunpack.c.l.b16 %v3023
      %v3949 = vunpack.c.l.b16 %v3024
      %v3950 = vunpack.c.l.b16 %v3025
      %v3951 = vunpack.c.l.b16 %v3026
      %v3952 = vunpack.c.l.b16 %v3027
      %v3953 = vunpack.c.l.b16 %v3028
      %v3954 = vunpack.c.l.b16 %v3029
      %v3955 = vunpack.c.l.b16 %v3030
      %v3956 = vunpack.c.l.b16 %v3031
      %v3957 = vunpack.c.l.b16 %v3032
      %v3958 = vunpack.c.l.b16 %v3033
      %v3959 = vunpack.c.l.b16 %v3034
      %v3960 = vunpack.c.l.b16 %v3035
      %v3961 = vunpack.c.l.b16 %v3036
      %v3962 = vunpack.c.l.b16 %v3037
      %v3963 = vunpack.c.l.b16 %v3038
      %v3964 = vunpack.c.l.b16 %v3039
      %v3965 = vunpack.c.l.b16 %v3040
      %v3966 = vunpack.c.l.b16 %v3041
      %v3967 = vunpack.c.l.b16 %v3042
      %v3968 = vunpack.c.l.b16 %v3043
      %v3969 = vunpack.c.l.b16 %v3044
      %v3970 = vunpack.c.l.b16 %v3045
      %v3971 = vunpack.c.l.b16 %v3046
      %v3972 = vunpack.c.l.b16 %v3047
      %v3973 = vunpack.c.l.b16 %v3048
      %v3974 = vunpack.c.l.b16 %v3049
      %v3975 = vunpack.c.l.b16 %v3050
      %v3976 = vunpack.c.l.b16 %v3051
      %v3977 = vunpack.c.l.b16 %v3052
      %v3978 = vunpack.c.l.b16 %v3053
      %v3979 = vunpack.c.l.b16 %v3054
      %v3980 = vunpack.c.l.b16 %v3055
      %v3981 = vunpack.c.l.b16 %v3056
      %v3982 = vunpack.c.l.b16 %v3057
      %v3983 = vunpack.c.l.b16 %v3058
      %v3984 = vunpack.c.l.b16 %v3059
      %v3985 = vunpack.c.l.b16 %v3060
      %v3986 = vunpack.c.l.b16 %v3061
      %v3987 = vunpack.c.l.b16 %v3062
      %v3988 = vunpack.c.l.b16 %v3063
      %v3989 = vunpack.c.l.b16 %v3064
      %v3990 = vunpack.c.l.b16 %v3065
      %v3991 = vunpack.c.l.b16 %v3066
      %v3992 = vunpack.c.l.b16 %v3067
      %v3993 = vunpack.c.l.b16 %v3068
      %v3994 = vunpack.c.l.b16 %v3069
      %v3995 = vunpack.c.l.b16 %v3070
      %v3996 = vunpack.c.l.b16 %v3071
      %v3997 = vunpack.c.l.b16 %v3072
      %v3998 = vunpack.c.l.b16 %v3073
      %v3999 = vunpack.c.l.b16 %v3074
      %v4000 = vunpack.c.l.b16 %v3075
      %v4001 = vunpack.c.l.b16 %v3076
      %v4002 = vunpack.c.l.b16 %v3077
      %v4003 = vunpack.c.l.b16 %v3078
      %v4004 = vunpack.c.l.b16 %v3079
      %v4005 = vunpack.c.l.b16 %v3080
      %v4006 = vunpack.c.l.b16 %v3081
      %v4007 = vunpack.c.l.b16 %v3082
      %v4008 = vunpack.c.l.b16 %v3083
      %v4009 = vunpack.c.l.b16 %v3084
      %v4010 = vunpack.c.l.b16 %v3085
      %v4011 = vunpack.c.l.b16 %v3086
      %v4012 = vunpack.c.l.b16 %v3087
      %v4013 = vunpack.c.l.b16 %v3088
      %v4014 = vpack.c.b16 %v3871, %v3870
      %v4015 = vpack.c.b16 %v3873, %v3872
      %v4016 = vpack.c.b16 %v3875, %v3874
      %v4017 = vpack.c.b16 %v3877, %v3876
      %v4018 = vpack.c.b16 %v3879, %v3878
      %v4019 = vpack.c.b16 %v3881, %v3880
      %v4020 = vpack.c.b16 %v3883, %v3882
      %v4021 = vpack.c.b16 %v3885, %v3884
      %v4022 = vpack.c.b16 %v3887, %v3886
      %v4023 = vpack.c.b16 %v3889, %v3888
      %v4024 = vpack.c.b16 %v3891, %v3890
      %v4025 = vpack.c.b16 %v3893, %v3892
      %v4026 = vpack.c.b16 %v3895, %v3894
      %v4027 = vpack.c.b16 %v3897, %v3896
      %v4028 = vpack.c.b16 %v3899, %v3898
      %v4029 = vpack.c.b16 %v3901, %v3900
      %v4030 = vpack.c.b16 %v3903, %v3902
      %v4031 = vpack.c.b16 %v3905, %v3904
      %v4032 = vpack.c.b16 %v3907, %v3906
      %v4033 = vpack.c.b16 %v3909, %v3908
      %v4034 = vpack.c.b16 %v3911, %v3910
      %v4035 = vpack.c.b16 %v3913, %v3912
      %v4036 = vpack.c.b16 %v3915, %v3914
      %v4037 = vpack.c.b16 %v3917, %v3916
      %v4038 = vpack.c.b16 %v3919, %v3918
      %v4039 = vpack.c.b16 %v3921, %v3920
      %v4040 = vpack.c.b16 %v3923, %v3922
      %v4041 = vpack.c.b16 %v3925, %v3924
      %v4042 = vpack.c.b16 %v3927, %v3926
      %v4043 = vpack.c.b16 %v3929, %v3928
      %v4044 = vpack.c.b16 %v3931, %v3930
      %v4045 = vpack.c.b16 %v3933, %v3932
      %v4046 = vpack.c.b16 %v3935, %v3934
      %v4047 = vpack.c.b16 %v3937, %v3936
      %v4048 = vpack.c.b16 %v3939, %v3938
      %v4049 = vpack.c.b16 %v3941, %v3940
      %v4050 = vpack.c.b16 %v3943, %v3942
      %v4051 = vpack.c.b16 %v3945, %v3944
      %v4052 = vpack.c.b16 %v3947, %v3946
      %v4053 = vpack.c.b16 %v3949, %v3948
      %v4054 = vpack.c.b16 %v3951, %v3950
      %v4055 = vpack.c.b16 %v3953, %v3952
      %v4056 = vpack.c.b16 %v3955, %v3954
      %v4057 = vpack.c.b16 %v3957, %v3956
      %v4058 = vpack.c.b16 %v3959, %v3958
      %v4059 = vpack.c.b16 %v3961, %v3960
      %v4060 = vpack.c.b16 %v3963, %v3962
      %v4061 = vpack.c.b16 %v3965, %v3964
      %v4062 = vpack.c.b16 %v3967, %v3966
      %v4063 = vpack.c.b16 %v3969, %v3968
      %v4064 = vpack.c.b16 %v3971, %v3970
      %v4065 = vpack.c.b16 %v3973, %v3972
      %v4066 = vpack.c.b16 %v3975, %v3974
      %v4067 = vpack.c.b16 %v3977, %v3976
      %v4068 = vpack.c.b16 %v3979, %v3978
      %v4069 = vpack.c.b16 %v3981, %v3980
      %v4070 = vpack.c.b16 %v3983, %v3982
      %v4071 = vpack.c.b16 %v3985, %v3984
      %v4072 = vpack.c.b16 %v3987, %v3986
      %v4073 = vpack.c.b16 %v3989, %v3988
      %v4074 = vpack.c.b16 %v3991, %v3990
      %v4075 = vpack.c.b16 %v3993, %v3992
      %v4076 = vpack.c.b16 %v3995, %v3994
      %v4077 = vpack.c.b16 %v3997, %v3996
      %v4078 = vpack.c.b16 %v3999, %v3998
      %v4079 = vpack.c.b16 %v4001, %v4000
      %v4080 = vpack.c.b16 %v4003, %v4002
      %v4081 = vpack.c.b16 %v4005, %v4004
      %v4082 = vpack.c.b16 %v4007, %v4006
      %v4083 = vpack.c.b16 %v4009, %v4008
      %v4084 = vpack.c.b16 %v4011, %v4010
      %v4085 = vpack.c.b16 %v4013, %v4012
      %4158 = vmatprep.subr.bf16.mxu0 0
      %4159 = vmatpush1.bf16.msra.mxu0 %v4021
      %4160 = vmatprep.subr.bf16.mxu0 0
      %4161 = vmatpush1.bf16.msra.mxu0 %v4020
      %4162 = vmatprep.subr.bf16.mxu0 0
      %4163 = vmatpush1.bf16.msra.mxu0 %v4019
      %4164 = vmatprep.subr.bf16.mxu0 0
      %4165 = vmatpush1.bf16.msra.mxu0 %v4018
      %4166 = vmatprep.subr.bf16.mxu0 0
      %4167 = vmatpush1.bf16.msra.mxu0 %v4017
      %4168 = vmatprep.subr.bf16.mxu0 0
      %4169 = vmatpush1.bf16.msra.mxu0 %v4016
      %4170 = vmatprep.subr.bf16.mxu0 0
      %4171 = vmatpush1.bf16.msra.mxu0 %v4015
      %4172 = vmatprep.subr.bf16.mxu0 0
      %4173 = vmatpush1.bf16.msra.mxu0 %v4014
      %4174 = vmatprep.subr.bf16.mxu0 0
      %4175 = vmatpush2.bf16.msra.mxu0 %v4029
      %4176 = vmatprep.subr.bf16.mxu0 0
      %4177 = vmatpush2.bf16.msra.mxu0 %v4028
      %4178 = vmatprep.subr.bf16.mxu0 0
      %4179 = vmatpush2.bf16.msra.mxu0 %v4027
      %4180 = vmatprep.subr.bf16.mxu0 0
      %4181 = vmatpush2.bf16.msra.mxu0 %v4026
      %4182 = vmatprep.subr.bf16.mxu0 0
      %4183 = vmatpush2.bf16.msra.mxu0 %v4025
      %4184 = vmatprep.subr.bf16.mxu0 0
      %4185 = vmatpush2.bf16.msra.mxu0 %v4024
      %4186 = vmatprep.subr.bf16.mxu0 0
      %4187 = vmatpush2.bf16.msra.mxu0 %v4023
      %4188 = vmatprep.subr.bf16.mxu0 0
      %4189 = vmatpush2.bf16.msra.mxu0 %v4022
      %4190 = vmatprep.mubr.bf16.mxu0 %v3473
      %4191 = vmatmul.mubr.bf16.gmra.mxu0 %v3457
      %v4192 = vpop.f32.mrf.mxu0
      %v4193 = vadd.f32 0.0, %v4192
      %v4194 = vpop.f32.mrf.mxu0
      %v4195 = vpop.f32.mrf.mxu0
      %v4196 = vadd.f32 0.0, %v4195
      %v4197 = vpop.f32.mrf.mxu0
      %4198 = vmatprep.mubr.bf16.mxu0 %v3474
      %4199 = vmatmul.mubr.bf16.gmra.mxu0 %v3458
      %v4200 = vpop.f32.mrf.mxu0
      %v4201 = vadd.f32 0.0, %v4200
      %v4202 = vpop.f32.mrf.mxu0
      %v4203 = vpop.f32.mrf.mxu0
      %v4204 = vadd.f32 0.0, %v4203
      %v4205 = vpop.f32.mrf.mxu0
      %4206 = vmatprep.mubr.bf16.mxu0 %v3475
      %4207 = vmatmul.mubr.bf16.gmra.mxu0 %v3459
      %v4208 = vpop.f32.mrf.mxu0
      %v4209 = vadd.f32 0.0, %v4208
      %v4210 = vpop.f32.mrf.mxu0
      %v4211 = vpop.f32.mrf.mxu0
      %v4212 = vadd.f32 0.0, %v4211
      %v4213 = vpop.f32.mrf.mxu0
      %4214 = vmatprep.mubr.bf16.mxu0 %v3476
      %4215 = vmatmul.mubr.bf16.gmra.mxu0 %v3460
      %v4216 = vpop.f32.mrf.mxu0
      %v4217 = vadd.f32 0.0, %v4216
      %v4218 = vpop.f32.mrf.mxu0
      %v4219 = vpop.f32.mrf.mxu0
      %v4220 = vadd.f32 0.0, %v4219
      %v4221 = vpop.f32.mrf.mxu0
      %4222 = vmatprep.mubr.bf16.mxu0 %v3477
      %4223 = vmatmul.mubr.bf16.gmra.mxu0 %v3461
      %v4224 = vpop.f32.mrf.mxu0
      %v4225 = vadd.f32 0.0, %v4224
      %v4226 = vpop.f32.mrf.mxu0
      %v4227 = vpop.f32.mrf.mxu0
      %v4228 = vadd.f32 0.0, %v4227
      %v4229 = vpop.f32.mrf.mxu0
      %4230 = vmatprep.mubr.bf16.mxu0 %v3478
      %4231 = vmatmul.mubr.bf16.gmra.mxu0 %v3462
      %v4232 = vpop.f32.mrf.mxu0
      %v4233 = vadd.f32 0.0, %v4232
      %v4234 = vpop.f32.mrf.mxu0
      %v4235 = vpop.f32.mrf.mxu0
      %v4236 = vadd.f32 0.0, %v4235
      %v4237 = vpop.f32.mrf.mxu0
      %4238 = vmatprep.mubr.bf16.mxu0 %v3479
      %4239 = vmatmul.mubr.bf16.gmra.mxu0 %v3463
      %v4240 = vpop.f32.mrf.mxu0
      %v4241 = vadd.f32 0.0, %v4240
      %v4242 = vpop.f32.mrf.mxu0
      %v4243 = vpop.f32.mrf.mxu0
      %v4244 = vadd.f32 0.0, %v4243
      %v4245 = vpop.f32.mrf.mxu0
      %4246 = vmatprep.mubr.bf16.mxu0 %v3480
      %4247 = vmatmul.mubr.bf16.gmra.mxu0 %v3464
      %v4248 = vpop.f32.mrf.mxu0
      %v4249 = vadd.f32 0.0, %v4248
      %v4250 = vpop.f32.mrf.mxu0
      %v4251 = vpop.f32.mrf.mxu0
      %v4252 = vadd.f32 0.0, %v4251
      %v4253 = vpop.f32.mrf.mxu0
      %4254 = vmatprep.mubr.bf16.mxu0 %v3481
      %4255 = vmatmul.mubr.bf16.gmra.mxu0 %v3465
      %v4256 = vpop.f32.mrf.mxu0
      %v4257 = vadd.f32 0.0, %v4256
      %v4258 = vpop.f32.mrf.mxu0
      %v4259 = vpop.f32.mrf.mxu0
      %v4260 = vadd.f32 0.0, %v4259
      %v4261 = vpop.f32.mrf.mxu0
      %4262 = vmatprep.mubr.bf16.mxu0 %v3482
      %4263 = vmatmul.mubr.bf16.gmra.mxu0 %v3466
      %v4264 = vpop.f32.mrf.mxu0
      %v4265 = vadd.f32 0.0, %v4264
      %v4266 = vpop.f32.mrf.mxu0
      %v4267 = vpop.f32.mrf.mxu0
      %v4268 = vadd.f32 0.0, %v4267
      %v4269 = vpop.f32.mrf.mxu0
      %4270 = vmatprep.mubr.bf16.mxu0 %v3483
      %4271 = vmatmul.mubr.bf16.gmra.mxu0 %v3467
      %v4272 = vpop.f32.mrf.mxu0
      %v4273 = vadd.f32 0.0, %v4272
      %v4274 = vpop.f32.mrf.mxu0
      %v4275 = vpop.f32.mrf.mxu0
      %v4276 = vadd.f32 0.0, %v4275
      %v4277 = vpop.f32.mrf.mxu0
      %4278 = vmatprep.mubr.bf16.mxu0 %v3484
      %4279 = vmatmul.mubr.bf16.gmra.mxu0 %v3468
      %v4280 = vpop.f32.mrf.mxu0
      %v4281 = vadd.f32 0.0, %v4280
      %v4282 = vpop.f32.mrf.mxu0
      %v4283 = vpop.f32.mrf.mxu0
      %v4284 = vadd.f32 0.0, %v4283
      %v4285 = vpop.f32.mrf.mxu0
      %4286 = vmatprep.mubr.bf16.mxu0 %v3485
      %4287 = vmatmul.mubr.bf16.gmra.mxu0 %v3469
      %v4288 = vpop.f32.mrf.mxu0
      %v4289 = vadd.f32 0.0, %v4288
      %v4290 = vpop.f32.mrf.mxu0
      %v4291 = vpop.f32.mrf.mxu0
      %v4292 = vadd.f32 0.0, %v4291
      %v4293 = vpop.f32.mrf.mxu0
      %4294 = vmatprep.mubr.bf16.mxu0 %v3486
      %4295 = vmatmul.mubr.bf16.gmra.mxu0 %v3470
      %v4296 = vpop.f32.mrf.mxu0
      %v4297 = vadd.f32 0.0, %v4296
      %v4298 = vpop.f32.mrf.mxu0
      %v4299 = vpop.f32.mrf.mxu0
      %v4300 = vadd.f32 0.0, %v4299
      %v4301 = vpop.f32.mrf.mxu0
      %4302 = vmatprep.mubr.bf16.mxu0 %v3487
      %4303 = vmatmul.mubr.bf16.gmra.mxu0 %v3471
      %v4304 = vpop.f32.mrf.mxu0
      %v4305 = vadd.f32 0.0, %v4304
      %v4306 = vpop.f32.mrf.mxu0
      %v4307 = vpop.f32.mrf.mxu0
      %v4308 = vadd.f32 0.0, %v4307
      %v4309 = vpop.f32.mrf.mxu0
      %4310 = vmatprep.mubr.bf16.mxu0 %v3488
      %4311 = vmatmul.mubr.bf16.gmra.mxu0 %v3472
      %v4312 = vpop.f32.mrf.mxu0
      %v4313 = vadd.f32 0.0, %v4312
      %v4314 = vpop.f32.mrf.mxu0
      %v4315 = vpop.f32.mrf.mxu0
      %v4316 = vadd.f32 0.0, %v4315
      %v4317 = vpop.f32.mrf.mxu0
      %4318 = vdwg.mxu0
      %4319 = vmatprep.subr.bf16.mxu0 0
      %4320 = vmatpush1.bf16.msra.mxu0 %v4037
      %4321 = vmatprep.subr.bf16.mxu0 0
      %4322 = vmatpush1.bf16.msra.mxu0 %v4036
      %4323 = vmatprep.subr.bf16.mxu0 0
      %4324 = vmatpush1.bf16.msra.mxu0 %v4035
      %4325 = vmatprep.subr.bf16.mxu0 0
      %4326 = vmatpush1.bf16.msra.mxu0 %v4034
      %4327 = vmatprep.subr.bf16.mxu0 0
      %4328 = vmatpush1.bf16.msra.mxu0 %v4033
      %4329 = vmatprep.subr.bf16.mxu0 0
      %4330 = vmatpush1.bf16.msra.mxu0 %v4032
      %4331 = vmatprep.subr.bf16.mxu0 0
      %4332 = vmatpush1.bf16.msra.mxu0 %v4031
      %4333 = vmatprep.subr.bf16.mxu0 0
      %4334 = vmatpush1.bf16.msra.mxu0 %v4030
      %4335 = vmatprep.subr.bf16.mxu0 0
      %4336 = vmatpush2.bf16.msra.mxu0 %v4045
      %4337 = vmatprep.subr.bf16.mxu0 0
      %4338 = vmatpush2.bf16.msra.mxu0 %v4044
      %4339 = vmatprep.subr.bf16.mxu0 0
      %4340 = vmatpush2.bf16.msra.mxu0 %v4043
      %4341 = vmatprep.subr.bf16.mxu0 0
      %4342 = vmatpush2.bf16.msra.mxu0 %v4042
      %4343 = vmatprep.subr.bf16.mxu0 0
      %4344 = vmatpush2.bf16.msra.mxu0 %v4041
      %4345 = vmatprep.subr.bf16.mxu0 0
      %4346 = vmatpush2.bf16.msra.mxu0 %v4040
      %4347 = vmatprep.subr.bf16.mxu0 0
      %4348 = vmatpush2.bf16.msra.mxu0 %v4039
      %4349 = vmatprep.subr.bf16.mxu0 0
      %4350 = vmatpush2.bf16.msra.mxu0 %v4038
      %4351 = vmatprep.mubr.bf16.mxu0 %v3665
      %4352 = vmatmul.mubr.bf16.gmra.mxu0 %v3489
      %v4353 = vpop.f32.mrf.mxu0
      %v4354 = vadd.f32 %v4193, %v4353
      %v4355 = vpop.f32.mrf.mxu0
      %v4356 = vpop.f32.mrf.mxu0
      %v4357 = vadd.f32 %v4196, %v4356
      %v4358 = vpop.f32.mrf.mxu0
      %4359 = vmatprep.mubr.bf16.mxu0 %v3666
      %4360 = vmatmul.mubr.bf16.gmra.mxu0 %v3490
      %v4361 = vpop.f32.mrf.mxu0
      %v4362 = vadd.f32 %v4201, %v4361
      %v4363 = vpop.f32.mrf.mxu0
      %v4364 = vpop.f32.mrf.mxu0
      %v4365 = vadd.f32 %v4204, %v4364
      %v4366 = vpop.f32.mrf.mxu0
      %4367 = vmatprep.mubr.bf16.mxu0 %v3667
      %4368 = vmatmul.mubr.bf16.gmra.mxu0 %v3491
      %v4369 = vpop.f32.mrf.mxu0
      %v4370 = vadd.f32 %v4209, %v4369
      %v4371 = vpop.f32.mrf.mxu0
      %v4372 = vpop.f32.mrf.mxu0
      %v4373 = vadd.f32 %v4212, %v4372
      %v4374 = vpop.f32.mrf.mxu0
      %4375 = vmatprep.mubr.bf16.mxu0 %v3668
      %4376 = vmatmul.mubr.bf16.gmra.mxu0 %v3492
      %v4377 = vpop.f32.mrf.mxu0
      %v4378 = vadd.f32 %v4217, %v4377
      %v4379 = vpop.f32.mrf.mxu0
      %v4380 = vpop.f32.mrf.mxu0
      %v4381 = vadd.f32 %v4220, %v4380
      %v4382 = vpop.f32.mrf.mxu0
      %4383 = vmatprep.mubr.bf16.mxu0 %v3669
      %4384 = vmatmul.mubr.bf16.gmra.mxu0 %v3493
      %v4385 = vpop.f32.mrf.mxu0
      %v4386 = vadd.f32 %v4225, %v4385
      %v4387 = vpop.f32.mrf.mxu0
      %v4388 = vpop.f32.mrf.mxu0
      %v4389 = vadd.f32 %v4228, %v4388
      %v4390 = vpop.f32.mrf.mxu0
      %4391 = vmatprep.mubr.bf16.mxu0 %v3670
      %4392 = vmatmul.mubr.bf16.gmra.mxu0 %v3494
      %v4393 = vpop.f32.mrf.mxu0
      %v4394 = vadd.f32 %v4233, %v4393
      %v4395 = vpop.f32.mrf.mxu0
      %v4396 = vpop.f32.mrf.mxu0
      %v4397 = vadd.f32 %v4236, %v4396
      %v4398 = vpop.f32.mrf.mxu0
      %4399 = vmatprep.mubr.bf16.mxu0 %v3671
      %4400 = vmatmul.mubr.bf16.gmra.mxu0 %v3495
      %v4401 = vpop.f32.mrf.mxu0
      %v4402 = vadd.f32 %v4241, %v4401
      %v4403 = vpop.f32.mrf.mxu0
      %v4404 = vpop.f32.mrf.mxu0
      %v4405 = vadd.f32 %v4244, %v4404
      %v4406 = vpop.f32.mrf.mxu0
      %4407 = vmatprep.mubr.bf16.mxu0 %v3672
      %4408 = vmatmul.mubr.bf16.gmra.mxu0 %v3496
      %v4409 = vpop.f32.mrf.mxu0
      %v4410 = vadd.f32 %v4249, %v4409
      %v4411 = vpop.f32.mrf.mxu0
      %v4412 = vpop.f32.mrf.mxu0
      %v4413 = vadd.f32 %v4252, %v4412
      %v4414 = vpop.f32.mrf.mxu0
      %4415 = vmatprep.mubr.bf16.mxu0 %v3673
      %4416 = vmatmul.mubr.bf16.gmra.mxu0 %v3497
      %v4417 = vpop.f32.mrf.mxu0
      %v4418 = vadd.f32 %v4257, %v4417
      %v4419 = vpop.f32.mrf.mxu0
      %v4420 = vpop.f32.mrf.mxu0
      %v4421 = vadd.f32 %v4260, %v4420
      %v4422 = vpop.f32.mrf.mxu0
      %4423 = vmatprep.mubr.bf16.mxu0 %v3674
      %4424 = vmatmul.mubr.bf16.gmra.mxu0 %v3498
      %v4425 = vpop.f32.mrf.mxu0
      %v4426 = vadd.f32 %v4265, %v4425
      %v4427 = vpop.f32.mrf.mxu0
      %v4428 = vpop.f32.mrf.mxu0
      %v4429 = vadd.f32 %v4268, %v4428
      %v4430 = vpop.f32.mrf.mxu0
      %4431 = vmatprep.mubr.bf16.mxu0 %v3675
      %4432 = vmatmul.mubr.bf16.gmra.mxu0 %v3499
      %v4433 = vpop.f32.mrf.mxu0
      %v4434 = vadd.f32 %v4273, %v4433
      %v4435 = vpop.f32.mrf.mxu0
      %v4436 = vpop.f32.mrf.mxu0
      %v4437 = vadd.f32 %v4276, %v4436
      %v4438 = vpop.f32.mrf.mxu0
      %4439 = vmatprep.mubr.bf16.mxu0 %v3676
      %4440 = vmatmul.mubr.bf16.gmra.mxu0 %v3500
      %v4441 = vpop.f32.mrf.mxu0
      %v4442 = vadd.f32 %v4281, %v4441
      %v4443 = vpop.f32.mrf.mxu0
      %v4444 = vpop.f32.mrf.mxu0
      %v4445 = vadd.f32 %v4284, %v4444
      %v4446 = vpop.f32.mrf.mxu0
      %4447 = vmatprep.mubr.bf16.mxu0 %v3677
      %4448 = vmatmul.mubr.bf16.gmra.mxu0 %v3501
      %v4449 = vpop.f32.mrf.mxu0
      %v4450 = vadd.f32 %v4289, %v4449
      %v4451 = vpop.f32.mrf.mxu0
      %v4452 = vpop.f32.mrf.mxu0
      %v4453 = vadd.f32 %v4292, %v4452
      %v4454 = vpop.f32.mrf.mxu0
      %4455 = vmatprep.mubr.bf16.mxu0 %v3678
      %4456 = vmatmul.mubr.bf16.gmra.mxu0 %v3502
      %v4457 = vpop.f32.mrf.mxu0
      %v4458 = vadd.f32 %v4297, %v4457
      %v4459 = vpop.f32.mrf.mxu0
      %v4460 = vpop.f32.mrf.mxu0
      %v4461 = vadd.f32 %v4300, %v4460
      %v4462 = vpop.f32.mrf.mxu0
      %4463 = vmatprep.mubr.bf16.mxu0 %v3679
      %4464 = vmatmul.mubr.bf16.gmra.mxu0 %v3503
      %v4465 = vpop.f32.mrf.mxu0
      %v4466 = vadd.f32 %v4305, %v4465
      %v4467 = vpop.f32.mrf.mxu0
      %v4468 = vpop.f32.mrf.mxu0
      %v4469 = vadd.f32 %v4308, %v4468
      %v4470 = vpop.f32.mrf.mxu0
      %4471 = vmatprep.mubr.bf16.mxu0 %v3680
      %4472 = vmatmul.mubr.bf16.gmra.mxu0 %v3504
      %v4473 = vpop.f32.mrf.mxu0
      %v4474 = vadd.f32 %v4313, %v4473
      %v4475 = vpop.f32.mrf.mxu0
      %v4476 = vpop.f32.mrf.mxu0
      %v4477 = vadd.f32 %v4316, %v4476
      %v4478 = vpop.f32.mrf.mxu0
      %4479 = vdwg.mxu0
      %4480 = vmatprep.subr.bf16.mxu0 0
      %4481 = vmatpush1.bf16.msra.mxu0 %v4053
      %4482 = vmatprep.subr.bf16.mxu0 0
      %4483 = vmatpush1.bf16.msra.mxu0 %v4052
      %4484 = vmatprep.subr.bf16.mxu0 0
      %4485 = vmatpush1.bf16.msra.mxu0 %v4051
      %4486 = vmatprep.subr.bf16.mxu0 0
      %4487 = vmatpush1.bf16.msra.mxu0 %v4050
      %4488 = vmatprep.subr.bf16.mxu0 0
      %4489 = vmatpush1.bf16.msra.mxu0 %v4049
      %4490 = vmatprep.subr.bf16.mxu0 0
      %4491 = vmatpush1.bf16.msra.mxu0 %v4048
      %4492 = vmatprep.subr.bf16.mxu0 0
      %4493 = vmatpush1.bf16.msra.mxu0 %v4047
      %4494 = vmatprep.subr.bf16.mxu0 0
      %4495 = vmatpush1.bf16.msra.mxu0 %v4046
      %4496 = vmatprep.subr.bf16.mxu0 0
      %4497 = vmatpush2.bf16.msra.mxu0 %v4061
      %4498 = vmatprep.subr.bf16.mxu0 0
      %4499 = vmatpush2.bf16.msra.mxu0 %v4060
      %4500 = vmatprep.subr.bf16.mxu0 0
      %4501 = vmatpush2.bf16.msra.mxu0 %v4059
      %4502 = vmatprep.subr.bf16.mxu0 0
      %4503 = vmatpush2.bf16.msra.mxu0 %v4058
      %4504 = vmatprep.subr.bf16.mxu0 0
      %4505 = vmatpush2.bf16.msra.mxu0 %v4057
      %4506 = vmatprep.subr.bf16.mxu0 0
      %4507 = vmatpush2.bf16.msra.mxu0 %v4056
      %4508 = vmatprep.subr.bf16.mxu0 0
      %4509 = vmatpush2.bf16.msra.mxu0 %v4055
      %4510 = vmatprep.subr.bf16.mxu0 0
      %4511 = vmatpush2.bf16.msra.mxu0 %v4054
      %4512 = vmatprep.mubr.bf16.mxu0 %v3697
      %4513 = vmatmul.mubr.bf16.gmra.mxu0 %v3681
      %v4514 = vpop.f32.mrf.mxu0
      %v4515 = vadd.f32 %v4354, %v4514
      %v4516 = vpop.f32.mrf.mxu0
      %v4517 = vpop.f32.mrf.mxu0
      %v4518 = vadd.f32 %v4357, %v4517
      %v4519 = vpop.f32.mrf.mxu0
      %4520 = vmatprep.mubr.bf16.mxu0 %v3698
      %4521 = vmatmul.mubr.bf16.gmra.mxu0 %v3682
      %v4522 = vpop.f32.mrf.mxu0
      %v4523 = vadd.f32 %v4362, %v4522
      %v4524 = vpop.f32.mrf.mxu0
      %v4525 = vpop.f32.mrf.mxu0
      %v4526 = vadd.f32 %v4365, %v4525
      %v4527 = vpop.f32.mrf.mxu0
      %4528 = vmatprep.mubr.bf16.mxu0 %v3699
      %4529 = vmatmul.mubr.bf16.gmra.mxu0 %v3683
      %v4530 = vpop.f32.mrf.mxu0
      %v4531 = vadd.f32 %v4370, %v4530
      %v4532 = vpop.f32.mrf.mxu0
      %v4533 = vpop.f32.mrf.mxu0
      %v4534 = vadd.f32 %v4373, %v4533
      %v4535 = vpop.f32.mrf.mxu0
      %4536 = vmatprep.mubr.bf16.mxu0 %v3700
      %4537 = vmatmul.mubr.bf16.gmra.mxu0 %v3684
      %v4538 = vpop.f32.mrf.mxu0
      %v4539 = vadd.f32 %v4378, %v4538
      %v4540 = vpop.f32.mrf.mxu0
      %v4541 = vpop.f32.mrf.mxu0
      %v4542 = vadd.f32 %v4381, %v4541
      %v4543 = vpop.f32.mrf.mxu0
      %4544 = vmatprep.mubr.bf16.mxu0 %v3701
      %4545 = vmatmul.mubr.bf16.gmra.mxu0 %v3685
      %v4546 = vpop.f32.mrf.mxu0
      %v4547 = vadd.f32 %v4386, %v4546
      %v4548 = vpop.f32.mrf.mxu0
      %v4549 = vpop.f32.mrf.mxu0
      %v4550 = vadd.f32 %v4389, %v4549
      %v4551 = vpop.f32.mrf.mxu0
      %4552 = vmatprep.mubr.bf16.mxu0 %v3702
      %4553 = vmatmul.mubr.bf16.gmra.mxu0 %v3686
      %v4554 = vpop.f32.mrf.mxu0
      %v4555 = vadd.f32 %v4394, %v4554
      %v4556 = vpop.f32.mrf.mxu0
      %v4557 = vpop.f32.mrf.mxu0
      %v4558 = vadd.f32 %v4397, %v4557
      %v4559 = vpop.f32.mrf.mxu0
      %4560 = vmatprep.mubr.bf16.mxu0 %v3703
      %4561 = vmatmul.mubr.bf16.gmra.mxu0 %v3687
      %v4562 = vpop.f32.mrf.mxu0
      %v4563 = vadd.f32 %v4402, %v4562
      %v4564 = vpop.f32.mrf.mxu0
      %v4565 = vpop.f32.mrf.mxu0
      %v4566 = vadd.f32 %v4405, %v4565
      %v4567 = vpop.f32.mrf.mxu0
      %4568 = vmatprep.mubr.bf16.mxu0 %v3704
      %4569 = vmatmul.mubr.bf16.gmra.mxu0 %v3688
      %v4570 = vpop.f32.mrf.mxu0
      %v4571 = vadd.f32 %v4410, %v4570
      %v4572 = vpop.f32.mrf.mxu0
      %v4573 = vpop.f32.mrf.mxu0
      %v4574 = vadd.f32 %v4413, %v4573
      %v4575 = vpop.f32.mrf.mxu0
      %4576 = vmatprep.mubr.bf16.mxu0 %v3705
      %4577 = vmatmul.mubr.bf16.gmra.mxu0 %v3689
      %v4578 = vpop.f32.mrf.mxu0
      %v4579 = vadd.f32 %v4418, %v4578
      %v4580 = vpop.f32.mrf.mxu0
      %v4581 = vpop.f32.mrf.mxu0
      %v4582 = vadd.f32 %v4421, %v4581
      %v4583 = vpop.f32.mrf.mxu0
      %4584 = vmatprep.mubr.bf16.mxu0 %v3706
      %4585 = vmatmul.mubr.bf16.gmra.mxu0 %v3690
      %v4586 = vpop.f32.mrf.mxu0
      %v4587 = vadd.f32 %v4426, %v4586
      %v4588 = vpop.f32.mrf.mxu0
      %v4589 = vpop.f32.mrf.mxu0
      %v4590 = vadd.f32 %v4429, %v4589
      %v4591 = vpop.f32.mrf.mxu0
      %4592 = vmatprep.mubr.bf16.mxu0 %v3707
      %4593 = vmatmul.mubr.bf16.gmra.mxu0 %v3691
      %v4594 = vpop.f32.mrf.mxu0
      %v4595 = vadd.f32 %v4434, %v4594
      %v4596 = vpop.f32.mrf.mxu0
      %v4597 = vpop.f32.mrf.mxu0
      %v4598 = vadd.f32 %v4437, %v4597
      %v4599 = vpop.f32.mrf.mxu0
      %4600 = vmatprep.mubr.bf16.mxu0 %v3708
      %4601 = vmatmul.mubr.bf16.gmra.mxu0 %v3692
      %v4602 = vpop.f32.mrf.mxu0
      %v4603 = vadd.f32 %v4442, %v4602
      %v4604 = vpop.f32.mrf.mxu0
      %v4605 = vpop.f32.mrf.mxu0
      %v4606 = vadd.f32 %v4445, %v4605
      %v4607 = vpop.f32.mrf.mxu0
      %4608 = vmatprep.mubr.bf16.mxu0 %v3709
      %4609 = vmatmul.mubr.bf16.gmra.mxu0 %v3693
      %v4610 = vpop.f32.mrf.mxu0
      %v4611 = vadd.f32 %v4450, %v4610
      %v4612 = vpop.f32.mrf.mxu0
      %v4613 = vpop.f32.mrf.mxu0
      %v4614 = vadd.f32 %v4453, %v4613
      %v4615 = vpop.f32.mrf.mxu0
      %4616 = vmatprep.mubr.bf16.mxu0 %v3710
      %4617 = vmatmul.mubr.bf16.gmra.mxu0 %v3694
      %v4618 = vpop.f32.mrf.mxu0
      %v4619 = vadd.f32 %v4458, %v4618
      %v4620 = vpop.f32.mrf.mxu0
      %v4621 = vpop.f32.mrf.mxu0
      %v4622 = vadd.f32 %v4461, %v4621
      %v4623 = vpop.f32.mrf.mxu0
      %4624 = vmatprep.mubr.bf16.mxu0 %v3711
      %4625 = vmatmul.mubr.bf16.gmra.mxu0 %v3695
      %v4626 = vpop.f32.mrf.mxu0
      %v4627 = vadd.f32 %v4466, %v4626
      %v4628 = vpop.f32.mrf.mxu0
      %v4629 = vpop.f32.mrf.mxu0
      %v4630 = vadd.f32 %v4469, %v4629
      %v4631 = vpop.f32.mrf.mxu0
      %4632 = vmatprep.mubr.bf16.mxu0 %v3712
      %4633 = vmatmul.mubr.bf16.gmra.mxu0 %v3696
      %v4634 = vpop.f32.mrf.mxu0
      %v4635 = vadd.f32 %v4474, %v4634
      %v4636 = vpop.f32.mrf.mxu0
      %v4637 = vpop.f32.mrf.mxu0
      %v4638 = vadd.f32 %v4477, %v4637
      %v4639 = vpop.f32.mrf.mxu0
      %4640 = vdwg.mxu0
      %4641 = vmatprep.subr.bf16.mxu0 0
      %4642 = vmatpush1.bf16.msra.mxu0 %v4069
      %4643 = vmatprep.subr.bf16.mxu0 0
      %4644 = vmatpush1.bf16.msra.mxu0 %v4068
      %4645 = vmatprep.subr.bf16.mxu0 0
      %4646 = vmatpush1.bf16.msra.mxu0 %v4067
      %4647 = vmatprep.subr.bf16.mxu0 0
      %4648 = vmatpush1.bf16.msra.mxu0 %v4066
      %4649 = vmatprep.subr.bf16.mxu0 0
      %4650 = vmatpush1.bf16.msra.mxu0 %v4065
      %4651 = vmatprep.subr.bf16.mxu0 0
      %4652 = vmatpush1.bf16.msra.mxu0 %v4064
      %4653 = vmatprep.subr.bf16.mxu0 0
      %4654 = vmatpush1.bf16.msra.mxu0 %v4063
      %4655 = vmatprep.subr.bf16.mxu0 0
      %4656 = vmatpush1.bf16.msra.mxu0 %v4062
      %4657 = vmatprep.subr.bf16.mxu0 0
      %4658 = vmatpush2.bf16.msra.mxu0 %v4077
      %4659 = vmatprep.subr.bf16.mxu0 0
      %4660 = vmatpush2.bf16.msra.mxu0 %v4076
      %4661 = vmatprep.subr.bf16.mxu0 0
      %4662 = vmatpush2.bf16.msra.mxu0 %v4075
      %4663 = vmatprep.subr.bf16.mxu0 0
      %4664 = vmatpush2.bf16.msra.mxu0 %v4074
      %4665 = vmatprep.subr.bf16.mxu0 0
      %4666 = vmatpush2.bf16.msra.mxu0 %v4073
      %4667 = vmatprep.subr.bf16.mxu0 0
      %4668 = vmatpush2.bf16.msra.mxu0 %v4072
      %4669 = vmatprep.subr.bf16.mxu0 0
      %4670 = vmatpush2.bf16.msra.mxu0 %v4071
      %4671 = vmatprep.subr.bf16.mxu0 0
      %4672 = vmatpush2.bf16.msra.mxu0 %v4070
      %4673 = vmatprep.mubr.bf16.mxu0 %v3474
      %4674 = vmatmul.mubr.bf16.gmra.mxu0 %v3458
      %v4675 = vpop.f32.mrf.mxu0
      %v4676 = vadd.f32 %v4515, %v4675
      %v4677 = vpop.f32.mrf.mxu0
      %v4678 = vpop.f32.mrf.mxu0
      %v4679 = vadd.f32 %v4518, %v4678
      %v4680 = vpop.f32.mrf.mxu0
      %4681 = vmatprep.mubr.bf16.mxu0 %v3475
      %4682 = vmatmul.mubr.bf16.gmra.mxu0 %v3459
      %v4683 = vpop.f32.mrf.mxu0
      %v4684 = vadd.f32 %v4523, %v4683
      %v4685 = vpop.f32.mrf.mxu0
      %v4686 = vpop.f32.mrf.mxu0
      %v4687 = vadd.f32 %v4526, %v4686
      %v4688 = vpop.f32.mrf.mxu0
      %4689 = vmatprep.mubr.bf16.mxu0 %v3476
      %4690 = vmatmul.mubr.bf16.gmra.mxu0 %v3460
      %v4691 = vpop.f32.mrf.mxu0
      %v4692 = vadd.f32 %v4531, %v4691
      %v4693 = vpop.f32.mrf.mxu0
      %v4694 = vpop.f32.mrf.mxu0
      %v4695 = vadd.f32 %v4534, %v4694
      %v4696 = vpop.f32.mrf.mxu0
      %4697 = vmatprep.mubr.bf16.mxu0 %v3477
      %4698 = vmatmul.mubr.bf16.gmra.mxu0 %v3461
      %v4699 = vpop.f32.mrf.mxu0
      %v4700 = vadd.f32 %v4539, %v4699
      %v4701 = vpop.f32.mrf.mxu0
      %v4702 = vpop.f32.mrf.mxu0
      %v4703 = vadd.f32 %v4542, %v4702
      %v4704 = vpop.f32.mrf.mxu0
      %4705 = vmatprep.mubr.bf16.mxu0 %v3478
      %4706 = vmatmul.mubr.bf16.gmra.mxu0 %v3462
      %v4707 = vpop.f32.mrf.mxu0
      %v4708 = vadd.f32 %v4547, %v4707
      %v4709 = vpop.f32.mrf.mxu0
      %v4710 = vpop.f32.mrf.mxu0
      %v4711 = vadd.f32 %v4550, %v4710
      %v4712 = vpop.f32.mrf.mxu0
      %4713 = vmatprep.mubr.bf16.mxu0 %v3479
      %4714 = vmatmul.mubr.bf16.gmra.mxu0 %v3463
      %v4715 = vpop.f32.mrf.mxu0
      %v4716 = vadd.f32 %v4555, %v4715
      %v4717 = vpop.f32.mrf.mxu0
      %v4718 = vpop.f32.mrf.mxu0
      %v4719 = vadd.f32 %v4558, %v4718
      %v4720 = vpop.f32.mrf.mxu0
      %4721 = vmatprep.mubr.bf16.mxu0 %v3480
      %4722 = vmatmul.mubr.bf16.gmra.mxu0 %v3464
      %v4723 = vpop.f32.mrf.mxu0
      %v4724 = vadd.f32 %v4563, %v4723
      %v4725 = vpop.f32.mrf.mxu0
      %v4726 = vpop.f32.mrf.mxu0
      %v4727 = vadd.f32 %v4566, %v4726
      %v4728 = vpop.f32.mrf.mxu0
      %4729 = vmatprep.mubr.bf16.mxu0 %v3481
      %4730 = vmatmul.mubr.bf16.gmra.mxu0 %v3465
      %v4731 = vpop.f32.mrf.mxu0
      %v4732 = vadd.f32 %v4571, %v4731
      %v4733 = vpop.f32.mrf.mxu0
      %v4734 = vpop.f32.mrf.mxu0
      %v4735 = vadd.f32 %v4574, %v4734
      %v4736 = vpop.f32.mrf.mxu0
      %4737 = vmatprep.mubr.bf16.mxu0 %v3482
      %4738 = vmatmul.mubr.bf16.gmra.mxu0 %v3466
      %v4739 = vpop.f32.mrf.mxu0
      %v4740 = vadd.f32 %v4579, %v4739
      %v4741 = vpop.f32.mrf.mxu0
      %v4742 = vpop.f32.mrf.mxu0
      %v4743 = vadd.f32 %v4582, %v4742
      %v4744 = vpop.f32.mrf.mxu0
      %4745 = vmatprep.mubr.bf16.mxu0 %v3483
      %4746 = vmatmul.mubr.bf16.gmra.mxu0 %v3467
      %v4747 = vpop.f32.mrf.mxu0
      %v4748 = vadd.f32 %v4587, %v4747
      %v4749 = vpop.f32.mrf.mxu0
      %v4750 = vpop.f32.mrf.mxu0
      %v4751 = vadd.f32 %v4590, %v4750
      %v4752 = vpop.f32.mrf.mxu0
      %4753 = vmatprep.mubr.bf16.mxu0 %v3484
      %4754 = vmatmul.mubr.bf16.gmra.mxu0 %v3468
      %v4755 = vpop.f32.mrf.mxu0
      %v4756 = vadd.f32 %v4595, %v4755
      %v4757 = vpop.f32.mrf.mxu0
      %v4758 = vpop.f32.mrf.mxu0
      %v4759 = vadd.f32 %v4598, %v4758
      %v4760 = vpop.f32.mrf.mxu0
      %4761 = vmatprep.mubr.bf16.mxu0 %v3485
      %4762 = vmatmul.mubr.bf16.gmra.mxu0 %v3469
      %v4763 = vpop.f32.mrf.mxu0
      %v4764 = vadd.f32 %v4603, %v4763
      %v4765 = vpop.f32.mrf.mxu0
      %v4766 = vpop.f32.mrf.mxu0
      %v4767 = vadd.f32 %v4606, %v4766
      %v4768 = vpop.f32.mrf.mxu0
      %4769 = vmatprep.mubr.bf16.mxu0 %v3486
      %4770 = vmatmul.mubr.bf16.gmra.mxu0 %v3470
      %v4771 = vpop.f32.mrf.mxu0
      %v4772 = vadd.f32 %v4611, %v4771
      %v4773 = vpop.f32.mrf.mxu0
      %v4774 = vpop.f32.mrf.mxu0
      %v4775 = vadd.f32 %v4614, %v4774
      %v4776 = vpop.f32.mrf.mxu0
      %4777 = vmatprep.mubr.bf16.mxu0 %v3487
      %4778 = vmatmul.mubr.bf16.gmra.mxu0 %v3471
      %v4779 = vpop.f32.mrf.mxu0
      %v4780 = vadd.f32 %v4619, %v4779
      %v4781 = vpop.f32.mrf.mxu0
      %v4782 = vpop.f32.mrf.mxu0
      %v4783 = vadd.f32 %v4622, %v4782
      %v4784 = vpop.f32.mrf.mxu0
      %4785 = vmatprep.mubr.bf16.mxu0 %v3488
      %4786 = vmatmul.mubr.bf16.gmra.mxu0 %v3472
      %v4787 = vpop.f32.mrf.mxu0
      %v4788 = vadd.f32 %v4627, %v4787
      %v4789 = vpop.f32.mrf.mxu0
      %v4790 = vpop.f32.mrf.mxu0
      %v4791 = vadd.f32 %v4630, %v4790
      %v4792 = vpop.f32.mrf.mxu0
      %4793 = vmatprep.mubr.bf16.mxu0 %v3724
      %4794 = vmatmul.mubr.bf16.gmra.mxu0 %v3723
      %v4795 = vpop.f32.mrf.mxu0
      %v4796 = vadd.f32 %v4635, %v4795
      %v4797 = vpop.f32.mrf.mxu0
      %v4798 = vpop.f32.mrf.mxu0
      %v4799 = vadd.f32 %v4638, %v4798
      %v4800 = vpop.f32.mrf.mxu0
      %4801 = vdwg.mxu0
      %4802 = vmatprep.subr.bf16.mxu0 0
      %4803 = vmatpush1.bf16.msra.mxu0 %v4085
      %4804 = vmatprep.subr.bf16.mxu0 0
      %4805 = vmatpush1.bf16.msra.mxu0 %v4084
      %4806 = vmatprep.subr.bf16.mxu0 0
      %4807 = vmatpush1.bf16.msra.mxu0 %v4083
      %4808 = vmatprep.subr.bf16.mxu0 0
      %4809 = vmatpush1.bf16.msra.mxu0 %v4082
      %4810 = vmatprep.subr.bf16.mxu0 0
      %4811 = vmatpush1.bf16.msra.mxu0 %v4081
      %4812 = vmatprep.subr.bf16.mxu0 0
      %4813 = vmatpush1.bf16.msra.mxu0 %v4080
      %4814 = vmatprep.subr.bf16.mxu0 0
      %4815 = vmatpush1.bf16.msra.mxu0 %v4079
      %4816 = vmatprep.subr.bf16.mxu0 0
      %4817 = vmatpush1.bf16.msra.mxu0 %v4078
      %4818 = vmatprep.subr.bf16.mxu0 0
      %4819 = vmatpush2.bf16.msra.mxu0 0
      %4820 = vmatprep.subr.bf16.mxu0 0
      %4821 = vmatpush2.bf16.msra.mxu0 0
      %4822 = vmatprep.subr.bf16.mxu0 0
      %4823 = vmatpush2.bf16.msra.mxu0 0
      %4824 = vmatprep.subr.bf16.mxu0 0
      %4825 = vmatpush2.bf16.msra.mxu0 0
      %4826 = vmatprep.subr.bf16.mxu0 0
      %4827 = vmatpush2.bf16.msra.mxu0 0
      %4828 = vmatprep.subr.bf16.mxu0 0
      %4829 = vmatpush2.bf16.msra.mxu0 0
      %4830 = vmatprep.subr.bf16.mxu0 0
      %4831 = vmatpush2.bf16.msra.mxu0 0
      %4832 = vmatprep.subr.bf16.mxu0 0
      %4833 = vmatpush2.bf16.msra.mxu0 0
      %4834 = vmatprep.mubr.bf16.mxu0 0
      %4835 = vmatmul.mubr.bf16.gmra.mxu0 %v3490
      %v4836 = vpop.f32.mrf.mxu0
      %v4837 = vadd.f32 %v4676, %v4836
      %v4838 = vpop.f32.mrf.mxu0
      %v4839 = vpop.f32.mrf.mxu0
      %v4840 = vadd.f32 %v4679, %v4839
      %v4841 = vpop.f32.mrf.mxu0
      %4842 = vmatprep.mubr.bf16.mxu0 0
      %4843 = vmatmul.mubr.bf16.gmra.mxu0 %v3491
      %v4844 = vpop.f32.mrf.mxu0
      %v4845 = vadd.f32 %v4684, %v4844
      %v4846 = vpop.f32.mrf.mxu0
      %v4847 = vpop.f32.mrf.mxu0
      %v4848 = vadd.f32 %v4687, %v4847
      %v4849 = vpop.f32.mrf.mxu0
      %4850 = vmatprep.mubr.bf16.mxu0 0
      %4851 = vmatmul.mubr.bf16.gmra.mxu0 %v3492
      %v4852 = vpop.f32.mrf.mxu0
      %v4853 = vadd.f32 %v4692, %v4852
      %v4854 = vpop.f32.mrf.mxu0
      %v4855 = vpop.f32.mrf.mxu0
      %v4856 = vadd.f32 %v4695, %v4855
      %v4857 = vpop.f32.mrf.mxu0
      %4858 = vmatprep.mubr.bf16.mxu0 0
      %4859 = vmatmul.mubr.bf16.gmra.mxu0 %v3493
      %v4860 = vpop.f32.mrf.mxu0
      %v4861 = vadd.f32 %v4700, %v4860
      %v4862 = vpop.f32.mrf.mxu0
      %v4863 = vpop.f32.mrf.mxu0
      %v4864 = vadd.f32 %v4703, %v4863
      %v4865 = vpop.f32.mrf.mxu0
      %4866 = vmatprep.mubr.bf16.mxu0 0
      %4867 = vmatmul.mubr.bf16.gmra.mxu0 %v3494
      %v4868 = vpop.f32.mrf.mxu0
      %v4869 = vadd.f32 %v4708, %v4868
      %v4870 = vpop.f32.mrf.mxu0
      %v4871 = vpop.f32.mrf.mxu0
      %v4872 = vadd.f32 %v4711, %v4871
      %v4873 = vpop.f32.mrf.mxu0
      %4874 = vmatprep.mubr.bf16.mxu0 0
      %4875 = vmatmul.mubr.bf16.gmra.mxu0 %v3495
      %v4876 = vpop.f32.mrf.mxu0
      %v4877 = vadd.f32 %v4716, %v4876
      %v4878 = vpop.f32.mrf.mxu0
      %v4879 = vpop.f32.mrf.mxu0
      %v4880 = vadd.f32 %v4719, %v4879
      %v4881 = vpop.f32.mrf.mxu0
      %4882 = vmatprep.mubr.bf16.mxu0 0
      %4883 = vmatmul.mubr.bf16.gmra.mxu0 %v3496
      %v4884 = vpop.f32.mrf.mxu0
      %v4885 = vadd.f32 %v4724, %v4884
      %v4886 = vpop.f32.mrf.mxu0
      %v4887 = vpop.f32.mrf.mxu0
      %v4888 = vadd.f32 %v4727, %v4887
      %v4889 = vpop.f32.mrf.mxu0
      %4890 = vmatprep.mubr.bf16.mxu0 0
      %4891 = vmatmul.mubr.bf16.gmra.mxu0 %v3497
      %v4892 = vpop.f32.mrf.mxu0
      %v4893 = vadd.f32 %v4732, %v4892
      %v4894 = vpop.f32.mrf.mxu0
      %v4895 = vpop.f32.mrf.mxu0
      %v4896 = vadd.f32 %v4735, %v4895
      %v4897 = vpop.f32.mrf.mxu0
      %4898 = vmatprep.mubr.bf16.mxu0 0
      %4899 = vmatmul.mubr.bf16.gmra.mxu0 %v3498
      %v4900 = vpop.f32.mrf.mxu0
      %v4901 = vadd.f32 %v4740, %v4900
      %v4902 = vpop.f32.mrf.mxu0
      %v4903 = vpop.f32.mrf.mxu0
      %v4904 = vadd.f32 %v4743, %v4903
      %v4905 = vpop.f32.mrf.mxu0
      %4906 = vmatprep.mubr.bf16.mxu0 0
      %4907 = vmatmul.mubr.bf16.gmra.mxu0 %v3499
      %v4908 = vpop.f32.mrf.mxu0
      %v4909 = vadd.f32 %v4748, %v4908
      %v4910 = vpop.f32.mrf.mxu0
      %v4911 = vpop.f32.mrf.mxu0
      %v4912 = vadd.f32 %v4751, %v4911
      %v4913 = vpop.f32.mrf.mxu0
      %4914 = vmatprep.mubr.bf16.mxu0 0
      %4915 = vmatmul.mubr.bf16.gmra.mxu0 %v3500
      %v4916 = vpop.f32.mrf.mxu0
      %v4917 = vadd.f32 %v4756, %v4916
      %v4918 = vpop.f32.mrf.mxu0
      %v4919 = vpop.f32.mrf.mxu0
      %v4920 = vadd.f32 %v4759, %v4919
      %v4921 = vpop.f32.mrf.mxu0
      %4922 = vmatprep.mubr.bf16.mxu0 0
      %4923 = vmatmul.mubr.bf16.gmra.mxu0 %v3501
      %v4924 = vpop.f32.mrf.mxu0
      %v4925 = vadd.f32 %v4764, %v4924
      %v4926 = vpop.f32.mrf.mxu0
      %v4927 = vpop.f32.mrf.mxu0
      %v4928 = vadd.f32 %v4767, %v4927
      %v4929 = vpop.f32.mrf.mxu0
      %4930 = vmatprep.mubr.bf16.mxu0 0
      %4931 = vmatmul.mubr.bf16.gmra.mxu0 %v3502
      %v4932 = vpop.f32.mrf.mxu0
      %v4933 = vadd.f32 %v4772, %v4932
      %v4934 = vpop.f32.mrf.mxu0
      %v4935 = vpop.f32.mrf.mxu0
      %v4936 = vadd.f32 %v4775, %v4935
      %v4937 = vpop.f32.mrf.mxu0
      %4938 = vmatprep.mubr.bf16.mxu0 0
      %4939 = vmatmul.mubr.bf16.gmra.mxu0 %v3503
      %v4940 = vpop.f32.mrf.mxu0
      %v4941 = vadd.f32 %v4780, %v4940
      %v4942 = vpop.f32.mrf.mxu0
      %v4943 = vpop.f32.mrf.mxu0
      %v4944 = vadd.f32 %v4783, %v4943
      %v4945 = vpop.f32.mrf.mxu0
      %4946 = vmatprep.mubr.bf16.mxu0 0
      %4947 = vmatmul.mubr.bf16.gmra.mxu0 %v3504
      %v4948 = vpop.f32.mrf.mxu0
      %v4949 = vadd.f32 %v4788, %v4948
      %v4950 = vpop.f32.mrf.mxu0
      %v4951 = vpop.f32.mrf.mxu0
      %v4952 = vadd.f32 %v4791, %v4951
      %v4953 = vpop.f32.mrf.mxu0
      %4954 = vmatprep.mubr.bf16.mxu0 0
      %4955 = vmatmul.mubr.bf16.gmra.mxu0 %v3725
      %v4956 = vpop.f32.mrf.mxu0
      %v4957 = vadd.f32 %v4796, %v4956
      %v4958 = vpop.f32.mrf.mxu0
      %v4959 = vpop.f32.mrf.mxu0
      %v4960 = vadd.f32 %v4799, %v4959
      %v4961 = vpop.f32.mrf.mxu0
      %4962 = vdwg.mxu0
      %v4963 = vadd.f32 %v4837, %v4840
      %v4964 = vadd.f32 %v4963, %v4845
      %v4965 = vadd.f32 %v4964, %v4848
      %v4966 = vadd.f32 %v4965, %v4853
      %v4967 = vadd.f32 %v4966, %v4856
      %v4968 = vadd.f32 %v4967, %v4861
      %v4969 = vadd.f32 %v4968, %v4864
      %v4970 = vadd.f32 %v4969, %v4869
      %v4971 = vadd.f32 %v4970, %v4872
      %v4972 = vadd.f32 %v4971, %v4877
      %v4973 = vadd.f32 %v4972, %v4880
      %v4974 = vadd.f32 %v4973, %v4885
      %v4975 = vadd.f32 %v4974, %v4888
      %v4976 = vadd.f32 %v4975, %v4893
      %v4977 = vadd.f32 %v4976, %v4896
      %v4978 = vadd.f32 %v4977, %v4901
      %v4979 = vadd.f32 %v4978, %v4904
      %v4980 = vadd.f32 %v4979, %v4909
      %v4981 = vadd.f32 %v4980, %v4912
      %v4982 = vadd.f32 %v4981, %v4917
      %v4983 = vadd.f32 %v4982, %v4920
      %v4984 = vadd.f32 %v4983, %v4925
      %v4985 = vadd.f32 %v4984, %v4928
      %v4986 = vadd.f32 %v4985, %v4933
      %v4987 = vadd.f32 %v4986, %v4936
      %v4988 = vadd.f32 %v4987, %v4941
      %v4989 = vadd.f32 %v4988, %v4944
      %v4990 = vadd.f32 %v4989, %v4949
      %v4991 = vadd.f32 %v4990, %v4952
      %v4992 = vadd.f32 %v4991, %v4957
      %v4993 = vadd.f32 %v4992, %v4960
      %v4994 = vrot.slane %v4993, 4
      %v4995 = vadd.f32 %v4993, %v4994
      %v4996 = vrot.slane %v4995, 2
      %v4997 = vadd.f32 %v4995, %v4996
      %v4998 = vrot.slane %v4997, 1
      %v4999 = vadd.f32 %v4997, %v4998
      %v5000 = vadd.f32 %v4999, 0.0
      %v5001 = vmul.f32 %v4837, %v4837
      %v5002 = vmul.f32 %v4840, %v4840
      %v5003 = vmul.f32 %v4845, %v4845
      %v5004 = vmul.f32 %v4848, %v4848
      %v5005 = vmul.f32 %v4853, %v4853
      %v5006 = vmul.f32 %v4856, %v4856
      %v5007 = vmul.f32 %v4861, %v4861
      %v5008 = vmul.f32 %v4864, %v4864
      %v5009 = vmul.f32 %v4869, %v4869
      %v5010 = vmul.f32 %v4872, %v4872
      %v5011 = vmul.f32 %v4877, %v4877
      %v5012 = vmul.f32 %v4880, %v4880
      %v5013 = vmul.f32 %v4885, %v4885
      %v5014 = vmul.f32 %v4888, %v4888
      %v5015 = vmul.f32 %v4893, %v4893
      %v5016 = vmul.f32 %v4896, %v4896
      %v5017 = vmul.f32 %v4901, %v4901
      %v5018 = vmul.f32 %v4904, %v4904
      %v5019 = vmul.f32 %v4909, %v4909
      %v5020 = vmul.f32 %v4912, %v4912
      %v5021 = vmul.f32 %v4917, %v4917
      %v5022 = vmul.f32 %v4920, %v4920
      %v5023 = vmul.f32 %v4925, %v4925
      %v5024 = vmul.f32 %v4928, %v4928
      %v5025 = vmul.f32 %v4933, %v4933
      %v5026 = vmul.f32 %v4936, %v4936
      %v5027 = vmul.f32 %v4941, %v4941
      %v5028 = vmul.f32 %v4944, %v4944
      %v5029 = vmul.f32 %v4949, %v4949
      %v5030 = vmul.f32 %v4952, %v4952
      %v5031 = vmul.f32 %v4957, %v4957
      %v5032 = vmul.f32 %v4960, %v4960
      %v5033 = vadd.f32 %v5001, %v5002
      %v5034 = vadd.f32 %v5033, %v5003
      %v5035 = vadd.f32 %v5034, %v5004
      %v5036 = vadd.f32 %v5035, %v5005
      %v5037 = vadd.f32 %v5036, %v5006
      %v5038 = vadd.f32 %v5037, %v5007
      %v5039 = vadd.f32 %v5038, %v5008
      %v5040 = vadd.f32 %v5039, %v5009
      %v5041 = vadd.f32 %v5040, %v5010
      %v5042 = vadd.f32 %v5041, %v5011
      %v5043 = vadd.f32 %v5042, %v5012
      %v5044 = vadd.f32 %v5043, %v5013
      %v5045 = vadd.f32 %v5044, %v5014
      %v5046 = vadd.f32 %v5045, %v5015
      %v5047 = vadd.f32 %v5046, %v5016
      %v5048 = vadd.f32 %v5047, %v5017
      %v5049 = vadd.f32 %v5048, %v5018
      %v5050 = vadd.f32 %v5049, %v5019
      %v5051 = vadd.f32 %v5050, %v5020
      %v5052 = vadd.f32 %v5051, %v5021
      %v5053 = vadd.f32 %v5052, %v5022
      %v5054 = vadd.f32 %v5053, %v5023
      %v5055 = vadd.f32 %v5054, %v5024
      %v5056 = vadd.f32 %v5055, %v5025
      %v5057 = vadd.f32 %v5056, %v5026
      %v5058 = vadd.f32 %v5057, %v5027
      %v5059 = vadd.f32 %v5058, %v5028
      %v5060 = vadd.f32 %v5059, %v5029
      %v5061 = vadd.f32 %v5060, %v5030
      %v5062 = vadd.f32 %v5061, %v5031
      %v5063 = vadd.f32 %v5062, %v5032
      %v5064 = vrot.slane %v5063, 4
      %v5065 = vadd.f32 %v5063, %v5064
      %v5066 = vrot.slane %v5065, 2
      %v5067 = vadd.f32 %v5065, %v5066
      %v5068 = vrot.slane %v5067, 1
      %v5069 = vadd.f32 %v5067, %v5068
      %v5070 = vadd.f32 %v5069, 0.0
      %5071 = vst [vmem:[#allocation3] sm:$0xff] %v4837
      %5072 = vst [vmem:[#allocation3 + $0x8] sm:$0xff] %v4840
      %5073 = vst [vmem:[#allocation3 + $0x10] sm:$0xff] %v4845
      %5074 = vst [vmem:[#allocation3 + $0x18] sm:$0xff] %v4848
      %5075 = vst [vmem:[#allocation3 + $0x20] sm:$0xff] %v4853
      %5076 = vst [vmem:[#allocation3 + $0x28] sm:$0xff] %v4856
      %5077 = vst [vmem:[#allocation3 + $0x30] sm:$0xff] %v4861
      %5078 = vst [vmem:[#allocation3 + $0x38] sm:$0xff] %v4864
      %5079 = vst [vmem:[#allocation3 + $0x40] sm:$0xff] %v4869
      %5080 = vst [vmem:[#allocation3 + $0x48] sm:$0xff] %v4872
      %5081 = vst [vmem:[#allocation3 + $0x50] sm:$0xff] %v4877
      %5082 = vst [vmem:[#allocation3 + $0x58] sm:$0xff] %v4880
      %5083 = vst [vmem:[#allocation3 + $0x60] sm:$0xff] %v4885
      %5084 = vst [vmem:[#allocation3 + $0x68] sm:$0xff] %v4888
      %5085 = vst [vmem:[#allocation3 + $0x70] sm:$0xff] %v4893
      %5086 = vst [vmem:[#allocation3 + $0x78] sm:$0xff] %v4896
      %5087 = vst [vmem:[#allocation3 + $0x80] sm:$0xff] %v4901
      %5088 = vst [vmem:[#allocation3 + $0x88] sm:$0xff] %v4904
      %5089 = vst [vmem:[#allocation3 + $0x90] sm:$0xff] %v4909
      %5090 = vst [vmem:[#allocation3 + $0x98] sm:$0xff] %v4912
      %5091 = vst [vmem:[#allocation3 + $0xa0] sm:$0xff] %v4917
      %5092 = vst [vmem:[#allocation3 + $0xa8] sm:$0xff] %v4920
      %5093 = vst [vmem:[#allocation3 + $0xb0] sm:$0xff] %v4925
      %5094 = vst [vmem:[#allocation3 + $0xb8] sm:$0xff] %v4928
      %5095 = vst [vmem:[#allocation3 + $0xc0] sm:$0xff] %v4933
      %5096 = vst [vmem:[#allocation3 + $0xc8] sm:$0xff] %v4936
      %5097 = vst [vmem:[#allocation3 + $0xd0] sm:$0xff] %v4941
      %5098 = vst [vmem:[#allocation3 + $0xd8] sm:$0xff] %v4944
      %5099 = vst [vmem:[#allocation3 + $0xe0] sm:$0xff] %v4949
      %5100 = vst [vmem:[#allocation3 + $0xe8] sm:$0xff] %v4952
      %5101 = vst [vmem:[#allocation3 + $0xf0] sm:$0xff] %v4957
      %5102 = vst [vmem:[#allocation3 + $0xf8] sm:$0xff] %v4960
      %v5151 = vrot.slane %v3193, 1
      %v5152 = vrot.slane %v3194, 1
      %v5153 = vsel %vm575, %v5151, %v5152
      %v5154 = vrot.slane %v3195, 1
      %v5155 = vsel %vm575, %v5152, %v5154
      %v5156 = vrot.slane %v3196, 1
      %v5157 = vrot.slane %v3197, 1
      %v5158 = vsel %vm575, %v5156, %v5157
      %v5159 = vrot.slane %v3198, 1
      %v5160 = vsel %vm575, %v5157, %v5159
      %v5161 = vrot.slane %v3199, 1
      %v5162 = vrot.slane %v3200, 1
      %v5163 = vsel %vm575, %v5161, %v5162
      %v5164 = vrot.slane %v3201, 1
      %v5165 = vsel %vm575, %v5162, %v5164
      %v5166 = vrot.slane %v3202, 1
      %v5167 = vrot.slane %v3203, 1
      %v5168 = vsel %vm575, %v5166, %v5167
      %v5169 = vrot.slane %v3204, 1
      %v5170 = vsel %vm575, %v5167, %v5169
      %v5171 = vrot.slane %v3205, 1
      %v5172 = vrot.slane %v3206, 1
      %v5173 = vsel %vm575, %v5171, %v5172
      %v5174 = vrot.slane %v3207, 1
      %v5175 = vsel %vm575, %v5172, %v5174
      %v5176 = vrot.slane %v3208, 1
      %v5177 = vrot.slane %v3209, 1
      %v5178 = vsel %vm575, %v5176, %v5177
      %v5179 = vrot.slane %v3210, 1
      %v5180 = vsel %vm575, %v5177, %v5179
      %v5181 = vrot.slane %v3211, 1
      %v5182 = vrot.slane %v3212, 1
      %v5183 = vsel %vm575, %v5181, %v5182
      %v5184 = vrot.slane %v3213, 1
      %v5185 = vsel %vm575, %v5182, %v5184
      %v5186 = vrot.slane %v3214, 1
      %v5187 = vrot.slane %v3215, 1
      %v5188 = vsel %vm575, %v5186, %v5187
      %v5189 = vrot.slane %v3216, 1
      %v5190 = vsel %vm575, %v5187, %v5189
      %v5191 = vrot.slane %v3217, 1
      %v5192 = vrot.slane %v3218, 1
      %v5193 = vsel %vm575, %v5191, %v5192
      %v5194 = vrot.slane %v3219, 1
      %v5195 = vsel %vm575, %v5192, %v5194
      %v5196 = vrot.slane %v3220, 1
      %v5197 = vrot.slane %v3221, 1
      %v5198 = vsel %vm575, %v5196, %v5197
      %v5199 = vrot.slane %v3222, 1
      %v5200 = vsel %vm575, %v5197, %v5199
      %v5201 = vrot.slane %v3223, 1
      %v5202 = vrot.slane %v3224, 1
      %v5203 = vsel %vm575, %v5201, %v5202
      %v5204 = vrot.slane %v3225, 1
      %v5205 = vsel %vm575, %v5202, %v5204
      %v5206 = vrot.slane %v3226, 1
      %v5207 = vrot.slane %v3227, 1
      %v5208 = vsel %vm575, %v5206, %v5207
      %v5209 = vrot.slane %v3228, 1
      %v5210 = vsel %vm575, %v5207, %v5209
      %v5211 = vrot.slane %v3229, 1
      %v5212 = vrot.slane %v3230, 1
      %v5213 = vsel %vm575, %v5211, %v5212
      %v5214 = vrot.slane %v3231, 1
      %v5215 = vsel %vm575, %v5212, %v5214
      %v5216 = vrot.slane %v3232, 1
      %v5217 = vrot.slane %v3233, 1
      %v5218 = vsel %vm575, %v5216, %v5217
      %v5219 = vrot.slane %v3234, 1
      %v5220 = vsel %vm575, %v5217, %v5219
      %v5221 = vrot.slane %v3235, 1
      %v5222 = vrot.slane %v3236, 1
      %v5223 = vsel %vm575, %v5221, %v5222
      %v5224 = vrot.slane %v3237, 1
      %v5225 = vsel %vm575, %v5222, %v5224
      %v5226 = vrot.slane %v3238, 1
      %v5227 = vrot.slane %v3239, 1
      %v5228 = vsel %vm575, %v5226, %v5227
      %v5229 = vrot.slane %v3240, 1
      %v5230 = vsel %vm575, %v5227, %v5229
      %v5263 = vpack.c.bf16 %v5155, %v5153
      %v5264 = vpack.c.bf16 %v5160, %v5158
      %v5265 = vpack.c.bf16 %v5165, %v5163
      %v5266 = vpack.c.bf16 %v5170, %v5168
      %v5267 = vpack.c.bf16 %v5175, %v5173
      %v5268 = vpack.c.bf16 %v5180, %v5178
      %v5269 = vpack.c.bf16 %v5185, %v5183
      %v5270 = vpack.c.bf16 %v5190, %v5188
      %v5271 = vpack.c.bf16 %v5195, %v5193
      %v5272 = vpack.c.bf16 %v5200, %v5198
      %v5273 = vpack.c.bf16 %v5205, %v5203
      %v5274 = vpack.c.bf16 %v5210, %v5208
      %v5275 = vpack.c.bf16 %v5215, %v5213
      %v5276 = vpack.c.bf16 %v5220, %v5218
      %v5277 = vpack.c.bf16 %v5225, %v5223
      %v5278 = vpack.c.bf16 %v5230, %v5228
      %v5327 = vrot.slane %v3089, 1
      %v5328 = vrot.slane %v3090, 1
      %v5329 = vsel %vm575, %v5327, %v5328
      %v5330 = vrot.slane %v3091, 1
      %v5331 = vsel %vm575, %v5328, %v5330
      %v5332 = vrot.slane %v3092, 1
      %v5333 = vrot.slane %v3093, 1
      %v5334 = vsel %vm575, %v5332, %v5333
      %v5335 = vrot.slane %v3094, 1
      %v5336 = vsel %vm575, %v5333, %v5335
      %v5337 = vrot.slane %v3095, 1
      %v5338 = vrot.slane %v3096, 1
      %v5339 = vsel %vm575, %v5337, %v5338
      %v5340 = vrot.slane %v3097, 1
      %v5341 = vsel %vm575, %v5338, %v5340
      %v5342 = vrot.slane %v3098, 1
      %v5343 = vrot.slane %v3099, 1
      %v5344 = vsel %vm575, %v5342, %v5343
      %v5345 = vrot.slane %v3100, 1
      %v5346 = vsel %vm575, %v5343, %v5345
      %v5347 = vrot.slane %v3101, 1
      %v5348 = vrot.slane %v3102, 1
      %v5349 = vsel %vm575, %v5347, %v5348
      %v5350 = vrot.slane %v3103, 1
      %v5351 = vsel %vm575, %v5348, %v5350
      %v5352 = vrot.slane %v3104, 1
      %v5353 = vrot.slane %v3105, 1
      %v5354 = vsel %vm575, %v5352, %v5353
      %v5355 = vrot.slane %v3106, 1
      %v5356 = vsel %vm575, %v5353, %v5355
      %v5357 = vrot.slane %v3107, 1
      %v5358 = vrot.slane %v3108, 1
      %v5359 = vsel %vm575, %v5357, %v5358
      %v5360 = vrot.slane %v3109, 1
      %v5361 = vsel %vm575, %v5358, %v5360
      %v5362 = vrot.slane %v3110, 1
      %v5363 = vrot.slane %v3111, 1
      %v5364 = vsel %vm575, %v5362, %v5363
      %v5365 = vrot.slane %v3112, 1
      %v5366 = vsel %vm575, %v5363, %v5365
      %v5367 = vrot.slane %v3113, 1
      %v5368 = vrot.slane %v3114, 1
      %v5369 = vsel %vm575, %v5367, %v5368
      %v5370 = vrot.slane %v3115, 1
      %v5371 = vsel %vm575, %v5368, %v5370
      %v5372 = vrot.slane %v3116, 1
      %v5373 = vrot.slane %v3117, 1
      %v5374 = vsel %vm575, %v5372, %v5373
      %v5375 = vrot.slane %v3118, 1
      %v5376 = vsel %vm575, %v5373, %v5375
      %v5377 = vrot.slane %v3119, 1
      %v5378 = vrot.slane %v3120, 1
      %v5379 = vsel %vm575, %v5377, %v5378
      %v5380 = vrot.slane %v3121, 1
      %v5381 = vsel %vm575, %v5378, %v5380
      %v5382 = vrot.slane %v3122, 1
      %v5383 = vrot.slane %v3123, 1
      %v5384 = vsel %vm575, %v5382, %v5383
      %v5385 = vrot.slane %v3124, 1
      %v5386 = vsel %vm575, %v5383, %v5385
      %v5387 = vrot.slane %v3125, 1
      %v5388 = vrot.slane %v3126, 1
      %v5389 = vsel %vm575, %v5387, %v5388
      %v5390 = vrot.slane %v3127, 1
      %v5391 = vsel %vm575, %v5388, %v5390
      %v5392 = vrot.slane %v3128, 1
      %v5393 = vrot.slane %v3129, 1
      %v5394 = vsel %vm575, %v5392, %v5393
      %v5395 = vrot.slane %v3130, 1
      %v5396 = vsel %vm575, %v5393, %v5395
      %v5397 = vrot.slane %v3131, 1
      %v5398 = vrot.slane %v3132, 1
      %v5399 = vsel %vm575, %v5397, %v5398
      %v5400 = vrot.slane %v3133, 1
      %v5401 = vsel %vm575, %v5398, %v5400
      %v5402 = vrot.slane %v3134, 1
      %v5403 = vrot.slane %v3135, 1
      %v5404 = vsel %vm575, %v5402, %v5403
      %v5405 = vrot.slane %v3136, 1
      %v5406 = vsel %vm575, %v5403, %v5405
      %v5439 = vpack.c.bf16 %v5331, %v5329
      %v5440 = vpack.c.bf16 %v5336, %v5334
      %v5441 = vpack.c.bf16 %v5341, %v5339
      %v5442 = vpack.c.bf16 %v5346, %v5344
      %v5443 = vpack.c.bf16 %v5351, %v5349
      %v5444 = vpack.c.bf16 %v5356, %v5354
      %v5445 = vpack.c.bf16 %v5361, %v5359
      %v5446 = vpack.c.bf16 %v5366, %v5364
      %v5447 = vpack.c.bf16 %v5371, %v5369
      %v5448 = vpack.c.bf16 %v5376, %v5374
      %v5449 = vpack.c.bf16 %v5381, %v5379
      %v5450 = vpack.c.bf16 %v5386, %v5384
      %v5451 = vpack.c.bf16 %v5391, %v5389
      %v5452 = vpack.c.bf16 %v5396, %v5394
      %v5453 = vpack.c.bf16 %v5401, %v5399
      %v5454 = vpack.c.bf16 %v5406, %v5404
      %v5458 = vrot.slane %v3241, 1
      %v5459 = vrot.slane %v3242, 1
      %v5460 = vsel %vm575, %v5458, %v5459
      %v5461 = vrot.slane %v3243, 1
      %v5462 = vsel %vm575, %v5459, %v5461
      %v5465 = vpack.c.bf16 %v5462, %v5460
      %5466 = vmatprep.subr.bf16.mxu0 0
      %5467 = vmatpush1.bf16.msra.mxu0 %v4021
      %5468 = vmatprep.subr.bf16.mxu0 0
      %5469 = vmatpush1.bf16.msra.mxu0 %v4020
      %5470 = vmatprep.subr.bf16.mxu0 0
      %5471 = vmatpush1.bf16.msra.mxu0 %v4019
      %5472 = vmatprep.subr.bf16.mxu0 0
      %5473 = vmatpush1.bf16.msra.mxu0 %v4018
      %5474 = vmatprep.subr.bf16.mxu0 0
      %5475 = vmatpush1.bf16.msra.mxu0 %v4017
      %5476 = vmatprep.subr.bf16.mxu0 0
      %5477 = vmatpush1.bf16.msra.mxu0 %v4016
      %5478 = vmatprep.subr.bf16.mxu0 0
      %5479 = vmatpush1.bf16.msra.mxu0 %v4015
      %5480 = vmatprep.subr.bf16.mxu0 0
      %5481 = vmatpush1.bf16.msra.mxu0 %v4014
      %5482 = vmatprep.subr.bf16.mxu0 0
      %5483 = vmatpush2.bf16.msra.mxu0 %v4029
      %5484 = vmatprep.subr.bf16.mxu0 0
      %5485 = vmatpush2.bf16.msra.mxu0 %v4028
      %5486 = vmatprep.subr.bf16.mxu0 0
      %5487 = vmatpush2.bf16.msra.mxu0 %v4027
      %5488 = vmatprep.subr.bf16.mxu0 0
      %5489 = vmatpush2.bf16.msra.mxu0 %v4026
      %5490 = vmatprep.subr.bf16.mxu0 0
      %5491 = vmatpush2.bf16.msra.mxu0 %v4025
      %5492 = vmatprep.subr.bf16.mxu0 0
      %5493 = vmatpush2.bf16.msra.mxu0 %v4024
      %5494 = vmatprep.subr.bf16.mxu0 0
      %5495 = vmatpush2.bf16.msra.mxu0 %v4023
      %5496 = vmatprep.subr.bf16.mxu0 0
      %5497 = vmatpush2.bf16.msra.mxu0 %v4022
      %5498 = vmatprep.mubr.bf16.mxu0 %v3489
      %5499 = vmatmul.mubr.bf16.gmra.mxu0 %v3473
      %v5500 = vpop.f32.mrf.mxu0
      %v5501 = vadd.f32 0.0, %v5500
      %v5502 = vpop.f32.mrf.mxu0
      %v5503 = vpop.f32.mrf.mxu0
      %v5504 = vadd.f32 0.0, %v5503
      %v5505 = vpop.f32.mrf.mxu0
      %5506 = vmatprep.mubr.bf16.mxu0 %v3490
      %5507 = vmatmul.mubr.bf16.gmra.mxu0 %v3474
      %v5508 = vpop.f32.mrf.mxu0
      %v5509 = vadd.f32 0.0, %v5508
      %v5510 = vpop.f32.mrf.mxu0
      %v5511 = vpop.f32.mrf.mxu0
      %v5512 = vadd.f32 0.0, %v5511
      %v5513 = vpop.f32.mrf.mxu0
      %5514 = vmatprep.mubr.bf16.mxu0 %v3491
      %5515 = vmatmul.mubr.bf16.gmra.mxu0 %v3475
      %v5516 = vpop.f32.mrf.mxu0
      %v5517 = vadd.f32 0.0, %v5516
      %v5518 = vpop.f32.mrf.mxu0
      %v5519 = vpop.f32.mrf.mxu0
      %v5520 = vadd.f32 0.0, %v5519
      %v5521 = vpop.f32.mrf.mxu0
      %5522 = vmatprep.mubr.bf16.mxu0 %v3492
      %5523 = vmatmul.mubr.bf16.gmra.mxu0 %v3476
      %v5524 = vpop.f32.mrf.mxu0
      %v5525 = vadd.f32 0.0, %v5524
      %v5526 = vpop.f32.mrf.mxu0
      %v5527 = vpop.f32.mrf.mxu0
      %v5528 = vadd.f32 0.0, %v5527
      %v5529 = vpop.f32.mrf.mxu0
      %5530 = vmatprep.mubr.bf16.mxu0 %v3493
      %5531 = vmatmul.mubr.bf16.gmra.mxu0 %v3477
      %v5532 = vpop.f32.mrf.mxu0
      %v5533 = vadd.f32 0.0, %v5532
      %v5534 = vpop.f32.mrf.mxu0
      %v5535 = vpop.f32.mrf.mxu0
      %v5536 = vadd.f32 0.0, %v5535
      %v5537 = vpop.f32.mrf.mxu0
      %5538 = vmatprep.mubr.bf16.mxu0 %v3494
      %5539 = vmatmul.mubr.bf16.gmra.mxu0 %v3478
      %v5540 = vpop.f32.mrf.mxu0
      %v5541 = vadd.f32 0.0, %v5540
      %v5542 = vpop.f32.mrf.mxu0
      %v5543 = vpop.f32.mrf.mxu0
      %v5544 = vadd.f32 0.0, %v5543
      %v5545 = vpop.f32.mrf.mxu0
      %5546 = vmatprep.mubr.bf16.mxu0 %v3495
      %5547 = vmatmul.mubr.bf16.gmra.mxu0 %v3479
      %v5548 = vpop.f32.mrf.mxu0
      %v5549 = vadd.f32 0.0, %v5548
      %v5550 = vpop.f32.mrf.mxu0
      %v5551 = vpop.f32.mrf.mxu0
      %v5552 = vadd.f32 0.0, %v5551
      %v5553 = vpop.f32.mrf.mxu0
      %5554 = vmatprep.mubr.bf16.mxu0 %v3496
      %5555 = vmatmul.mubr.bf16.gmra.mxu0 %v3480
      %v5556 = vpop.f32.mrf.mxu0
      %v5557 = vadd.f32 0.0, %v5556
      %v5558 = vpop.f32.mrf.mxu0
      %v5559 = vpop.f32.mrf.mxu0
      %v5560 = vadd.f32 0.0, %v5559
      %v5561 = vpop.f32.mrf.mxu0
      %5562 = vmatprep.mubr.bf16.mxu0 %v3497
      %5563 = vmatmul.mubr.bf16.gmra.mxu0 %v3481
      %v5564 = vpop.f32.mrf.mxu0
      %v5565 = vadd.f32 0.0, %v5564
      %v5566 = vpop.f32.mrf.mxu0
      %v5567 = vpop.f32.mrf.mxu0
      %v5568 = vadd.f32 0.0, %v5567
      %v5569 = vpop.f32.mrf.mxu0
      %5570 = vmatprep.mubr.bf16.mxu0 %v3498
      %5571 = vmatmul.mubr.bf16.gmra.mxu0 %v3482
      %v5572 = vpop.f32.mrf.mxu0
      %v5573 = vadd.f32 0.0, %v5572
      %v5574 = vpop.f32.mrf.mxu0
      %v5575 = vpop.f32.mrf.mxu0
      %v5576 = vadd.f32 0.0, %v5575
      %v5577 = vpop.f32.mrf.mxu0
      %5578 = vmatprep.mubr.bf16.mxu0 %v3499
      %5579 = vmatmul.mubr.bf16.gmra.mxu0 %v3483
      %v5580 = vpop.f32.mrf.mxu0
      %v5581 = vadd.f32 0.0, %v5580
      %v5582 = vpop.f32.mrf.mxu0
      %v5583 = vpop.f32.mrf.mxu0
      %v5584 = vadd.f32 0.0, %v5583
      %v5585 = vpop.f32.mrf.mxu0
      %5586 = vmatprep.mubr.bf16.mxu0 %v3500
      %5587 = vmatmul.mubr.bf16.gmra.mxu0 %v3484
      %v5588 = vpop.f32.mrf.mxu0
      %v5589 = vadd.f32 0.0, %v5588
      %v5590 = vpop.f32.mrf.mxu0
      %v5591 = vpop.f32.mrf.mxu0
      %v5592 = vadd.f32 0.0, %v5591
      %v5593 = vpop.f32.mrf.mxu0
      %5594 = vmatprep.mubr.bf16.mxu0 %v3501
      %5595 = vmatmul.mubr.bf16.gmra.mxu0 %v3485
      %v5596 = vpop.f32.mrf.mxu0
      %v5597 = vadd.f32 0.0, %v5596
      %v5598 = vpop.f32.mrf.mxu0
      %v5599 = vpop.f32.mrf.mxu0
      %v5600 = vadd.f32 0.0, %v5599
      %v5601 = vpop.f32.mrf.mxu0
      %5602 = vmatprep.mubr.bf16.mxu0 %v3502
      %5603 = vmatmul.mubr.bf16.gmra.mxu0 %v3486
      %v5604 = vpop.f32.mrf.mxu0
      %v5605 = vadd.f32 0.0, %v5604
      %v5606 = vpop.f32.mrf.mxu0
      %v5607 = vpop.f32.mrf.mxu0
      %v5608 = vadd.f32 0.0, %v5607
      %v5609 = vpop.f32.mrf.mxu0
      %5610 = vmatprep.mubr.bf16.mxu0 %v3503
      %5611 = vmatmul.mubr.bf16.gmra.mxu0 %v3487
      %v5612 = vpop.f32.mrf.mxu0
      %v5613 = vadd.f32 0.0, %v5612
      %v5614 = vpop.f32.mrf.mxu0
      %v5615 = vpop.f32.mrf.mxu0
      %v5616 = vadd.f32 0.0, %v5615
      %v5617 = vpop.f32.mrf.mxu0
      %5618 = vmatprep.mubr.bf16.mxu0 %v3504
      %5619 = vmatmul.mubr.bf16.gmra.mxu0 %v3488
      %v5620 = vpop.f32.mrf.mxu0
      %v5621 = vadd.f32 0.0, %v5620
      %v5622 = vpop.f32.mrf.mxu0
      %v5623 = vpop.f32.mrf.mxu0
      %v5624 = vadd.f32 0.0, %v5623
      %v5625 = vpop.f32.mrf.mxu0
      %5626 = vdwg.mxu0
      %5627 = vmatprep.subr.bf16.mxu0 0
      %5628 = vmatpush1.bf16.msra.mxu0 %v4037
      %5629 = vmatprep.subr.bf16.mxu0 0
      %5630 = vmatpush1.bf16.msra.mxu0 %v4036
      %5631 = vmatprep.subr.bf16.mxu0 0
      %5632 = vmatpush1.bf16.msra.mxu0 %v4035
      %5633 = vmatprep.subr.bf16.mxu0 0
      %5634 = vmatpush1.bf16.msra.mxu0 %v4034
      %5635 = vmatprep.subr.bf16.mxu0 0
      %5636 = vmatpush1.bf16.msra.mxu0 %v4033
      %5637 = vmatprep.subr.bf16.mxu0 0
      %5638 = vmatpush1.bf16.msra.mxu0 %v4032
      %5639 = vmatprep.subr.bf16.mxu0 0
      %5640 = vmatpush1.bf16.msra.mxu0 %v4031
      %5641 = vmatprep.subr.bf16.mxu0 0
      %5642 = vmatpush1.bf16.msra.mxu0 %v4030
      %5643 = vmatprep.subr.bf16.mxu0 0
      %5644 = vmatpush2.bf16.msra.mxu0 %v4045
      %5645 = vmatprep.subr.bf16.mxu0 0
      %5646 = vmatpush2.bf16.msra.mxu0 %v4044
      %5647 = vmatprep.subr.bf16.mxu0 0
      %5648 = vmatpush2.bf16.msra.mxu0 %v4043
      %5649 = vmatprep.subr.bf16.mxu0 0
      %5650 = vmatpush2.bf16.msra.mxu0 %v4042
      %5651 = vmatprep.subr.bf16.mxu0 0
      %5652 = vmatpush2.bf16.msra.mxu0 %v4041
      %5653 = vmatprep.subr.bf16.mxu0 0
      %5654 = vmatpush2.bf16.msra.mxu0 %v4040
      %5655 = vmatprep.subr.bf16.mxu0 0
      %5656 = vmatpush2.bf16.msra.mxu0 %v4039
      %5657 = vmatprep.subr.bf16.mxu0 0
      %5658 = vmatpush2.bf16.msra.mxu0 %v4038
      %5659 = vmatprep.mubr.bf16.mxu0 %v3681
      %5660 = vmatmul.mubr.bf16.gmra.mxu0 %v5263
      %v5661 = vpop.f32.mrf.mxu0
      %v5662 = vadd.f32 %v5501, %v5661
      %v5663 = vpop.f32.mrf.mxu0
      %v5664 = vpop.f32.mrf.mxu0
      %v5665 = vadd.f32 %v5504, %v5664
      %v5666 = vpop.f32.mrf.mxu0
      %5667 = vmatprep.mubr.bf16.mxu0 %v3682
      %5668 = vmatmul.mubr.bf16.gmra.mxu0 %v5264
      %v5669 = vpop.f32.mrf.mxu0
      %v5670 = vadd.f32 %v5509, %v5669
      %v5671 = vpop.f32.mrf.mxu0
      %v5672 = vpop.f32.mrf.mxu0
      %v5673 = vadd.f32 %v5512, %v5672
      %v5674 = vpop.f32.mrf.mxu0
      %5675 = vmatprep.mubr.bf16.mxu0 %v3683
      %5676 = vmatmul.mubr.bf16.gmra.mxu0 %v5265
      %v5677 = vpop.f32.mrf.mxu0
      %v5678 = vadd.f32 %v5517, %v5677
      %v5679 = vpop.f32.mrf.mxu0
      %v5680 = vpop.f32.mrf.mxu0
      %v5681 = vadd.f32 %v5520, %v5680
      %v5682 = vpop.f32.mrf.mxu0
      %5683 = vmatprep.mubr.bf16.mxu0 %v3684
      %5684 = vmatmul.mubr.bf16.gmra.mxu0 %v5266
      %v5685 = vpop.f32.mrf.mxu0
      %v5686 = vadd.f32 %v5525, %v5685
      %v5687 = vpop.f32.mrf.mxu0
      %v5688 = vpop.f32.mrf.mxu0
      %v5689 = vadd.f32 %v5528, %v5688
      %v5690 = vpop.f32.mrf.mxu0
      %5691 = vmatprep.mubr.bf16.mxu0 %v3685
      %5692 = vmatmul.mubr.bf16.gmra.mxu0 %v5267
      %v5693 = vpop.f32.mrf.mxu0
      %v5694 = vadd.f32 %v5533, %v5693
      %v5695 = vpop.f32.mrf.mxu0
      %v5696 = vpop.f32.mrf.mxu0
      %v5697 = vadd.f32 %v5536, %v5696
      %v5698 = vpop.f32.mrf.mxu0
      %5699 = vmatprep.mubr.bf16.mxu0 %v3686
      %5700 = vmatmul.mubr.bf16.gmra.mxu0 %v5268
      %v5701 = vpop.f32.mrf.mxu0
      %v5702 = vadd.f32 %v5541, %v5701
      %v5703 = vpop.f32.mrf.mxu0
      %v5704 = vpop.f32.mrf.mxu0
      %v5705 = vadd.f32 %v5544, %v5704
      %v5706 = vpop.f32.mrf.mxu0
      %5707 = vmatprep.mubr.bf16.mxu0 %v3687
      %5708 = vmatmul.mubr.bf16.gmra.mxu0 %v5269
      %v5709 = vpop.f32.mrf.mxu0
      %v5710 = vadd.f32 %v5549, %v5709
      %v5711 = vpop.f32.mrf.mxu0
      %v5712 = vpop.f32.mrf.mxu0
      %v5713 = vadd.f32 %v5552, %v5712
      %v5714 = vpop.f32.mrf.mxu0
      %5715 = vmatprep.mubr.bf16.mxu0 %v3688
      %5716 = vmatmul.mubr.bf16.gmra.mxu0 %v5270
      %v5717 = vpop.f32.mrf.mxu0
      %v5718 = vadd.f32 %v5557, %v5717
      %v5719 = vpop.f32.mrf.mxu0
      %v5720 = vpop.f32.mrf.mxu0
      %v5721 = vadd.f32 %v5560, %v5720
      %v5722 = vpop.f32.mrf.mxu0
      %5723 = vmatprep.mubr.bf16.mxu0 %v3689
      %5724 = vmatmul.mubr.bf16.gmra.mxu0 %v5271
      %v5725 = vpop.f32.mrf.mxu0
      %v5726 = vadd.f32 %v5565, %v5725
      %v5727 = vpop.f32.mrf.mxu0
      %v5728 = vpop.f32.mrf.mxu0
      %v5729 = vadd.f32 %v5568, %v5728
      %v5730 = vpop.f32.mrf.mxu0
      %5731 = vmatprep.mubr.bf16.mxu0 %v3690
      %5732 = vmatmul.mubr.bf16.gmra.mxu0 %v5272
      %v5733 = vpop.f32.mrf.mxu0
      %v5734 = vadd.f32 %v5573, %v5733
      %v5735 = vpop.f32.mrf.mxu0
      %v5736 = vpop.f32.mrf.mxu0
      %v5737 = vadd.f32 %v5576, %v5736
      %v5738 = vpop.f32.mrf.mxu0
      %5739 = vmatprep.mubr.bf16.mxu0 %v3691
      %5740 = vmatmul.mubr.bf16.gmra.mxu0 %v5273
      %v5741 = vpop.f32.mrf.mxu0
      %v5742 = vadd.f32 %v5581, %v5741
      %v5743 = vpop.f32.mrf.mxu0
      %v5744 = vpop.f32.mrf.mxu0
      %v5745 = vadd.f32 %v5584, %v5744
      %v5746 = vpop.f32.mrf.mxu0
      %5747 = vmatprep.mubr.bf16.mxu0 %v3692
      %5748 = vmatmul.mubr.bf16.gmra.mxu0 %v5274
      %v5749 = vpop.f32.mrf.mxu0
      %v5750 = vadd.f32 %v5589, %v5749
      %v5751 = vpop.f32.mrf.mxu0
      %v5752 = vpop.f32.mrf.mxu0
      %v5753 = vadd.f32 %v5592, %v5752
      %v5754 = vpop.f32.mrf.mxu0
      %5755 = vmatprep.mubr.bf16.mxu0 %v3693
      %5756 = vmatmul.mubr.bf16.gmra.mxu0 %v5275
      %v5757 = vpop.f32.mrf.mxu0
      %v5758 = vadd.f32 %v5597, %v5757
      %v5759 = vpop.f32.mrf.mxu0
      %v5760 = vpop.f32.mrf.mxu0
      %v5761 = vadd.f32 %v5600, %v5760
      %v5762 = vpop.f32.mrf.mxu0
      %5763 = vmatprep.mubr.bf16.mxu0 %v3694
      %5764 = vmatmul.mubr.bf16.gmra.mxu0 %v5276
      %v5765 = vpop.f32.mrf.mxu0
      %v5766 = vadd.f32 %v5605, %v5765
      %v5767 = vpop.f32.mrf.mxu0
      %v5768 = vpop.f32.mrf.mxu0
      %v5769 = vadd.f32 %v5608, %v5768
      %v5770 = vpop.f32.mrf.mxu0
      %5771 = vmatprep.mubr.bf16.mxu0 %v3695
      %5772 = vmatmul.mubr.bf16.gmra.mxu0 %v5277
      %v5773 = vpop.f32.mrf.mxu0
      %v5774 = vadd.f32 %v5613, %v5773
      %v5775 = vpop.f32.mrf.mxu0
      %v5776 = vpop.f32.mrf.mxu0
      %v5777 = vadd.f32 %v5616, %v5776
      %v5778 = vpop.f32.mrf.mxu0
      %5779 = vmatprep.mubr.bf16.mxu0 %v3696
      %5780 = vmatmul.mubr.bf16.gmra.mxu0 %v5278
      %v5781 = vpop.f32.mrf.mxu0
      %v5782 = vadd.f32 %v5621, %v5781
      %v5783 = vpop.f32.mrf.mxu0
      %v5784 = vpop.f32.mrf.mxu0
      %v5785 = vadd.f32 %v5624, %v5784
      %v5786 = vpop.f32.mrf.mxu0
      %5787 = vdwg.mxu0
      %5788 = vmatprep.subr.bf16.mxu0 0
      %5789 = vmatpush1.bf16.msra.mxu0 %v4053
      %5790 = vmatprep.subr.bf16.mxu0 0
      %5791 = vmatpush1.bf16.msra.mxu0 %v4052
      %5792 = vmatprep.subr.bf16.mxu0 0
      %5793 = vmatpush1.bf16.msra.mxu0 %v4051
      %5794 = vmatprep.subr.bf16.mxu0 0
      %5795 = vmatpush1.bf16.msra.mxu0 %v4050
      %5796 = vmatprep.subr.bf16.mxu0 0
      %5797 = vmatpush1.bf16.msra.mxu0 %v4049
      %5798 = vmatprep.subr.bf16.mxu0 0
      %5799 = vmatpush1.bf16.msra.mxu0 %v4048
      %5800 = vmatprep.subr.bf16.mxu0 0
      %5801 = vmatpush1.bf16.msra.mxu0 %v4047
      %5802 = vmatprep.subr.bf16.mxu0 0
      %5803 = vmatpush1.bf16.msra.mxu0 %v4046
      %5804 = vmatprep.subr.bf16.mxu0 0
      %5805 = vmatpush2.bf16.msra.mxu0 %v4061
      %5806 = vmatprep.subr.bf16.mxu0 0
      %5807 = vmatpush2.bf16.msra.mxu0 %v4060
      %5808 = vmatprep.subr.bf16.mxu0 0
      %5809 = vmatpush2.bf16.msra.mxu0 %v4059
      %5810 = vmatprep.subr.bf16.mxu0 0
      %5811 = vmatpush2.bf16.msra.mxu0 %v4058
      %5812 = vmatprep.subr.bf16.mxu0 0
      %5813 = vmatpush2.bf16.msra.mxu0 %v4057
      %5814 = vmatprep.subr.bf16.mxu0 0
      %5815 = vmatpush2.bf16.msra.mxu0 %v4056
      %5816 = vmatprep.subr.bf16.mxu0 0
      %5817 = vmatpush2.bf16.msra.mxu0 %v4055
      %5818 = vmatprep.subr.bf16.mxu0 0
      %5819 = vmatpush2.bf16.msra.mxu0 %v4054
      %5820 = vmatprep.mubr.bf16.mxu0 %v5439
      %5821 = vmatmul.mubr.bf16.gmra.mxu0 %v3697
      %v5822 = vpop.f32.mrf.mxu0
      %v5823 = vadd.f32 %v5662, %v5822
      %v5824 = vpop.f32.mrf.mxu0
      %v5825 = vpop.f32.mrf.mxu0
      %v5826 = vadd.f32 %v5665, %v5825
      %v5827 = vpop.f32.mrf.mxu0
      %5828 = vmatprep.mubr.bf16.mxu0 %v5440
      %5829 = vmatmul.mubr.bf16.gmra.mxu0 %v3698
      %v5830 = vpop.f32.mrf.mxu0
      %v5831 = vadd.f32 %v5670, %v5830
      %v5832 = vpop.f32.mrf.mxu0
      %v5833 = vpop.f32.mrf.mxu0
      %v5834 = vadd.f32 %v5673, %v5833
      %v5835 = vpop.f32.mrf.mxu0
      %5836 = vmatprep.mubr.bf16.mxu0 %v5441
      %5837 = vmatmul.mubr.bf16.gmra.mxu0 %v3699
      %v5838 = vpop.f32.mrf.mxu0
      %v5839 = vadd.f32 %v5678, %v5838
      %v5840 = vpop.f32.mrf.mxu0
      %v5841 = vpop.f32.mrf.mxu0
      %v5842 = vadd.f32 %v5681, %v5841
      %v5843 = vpop.f32.mrf.mxu0
      %5844 = vmatprep.mubr.bf16.mxu0 %v5442
      %5845 = vmatmul.mubr.bf16.gmra.mxu0 %v3700
      %v5846 = vpop.f32.mrf.mxu0
      %v5847 = vadd.f32 %v5686, %v5846
      %v5848 = vpop.f32.mrf.mxu0
      %v5849 = vpop.f32.mrf.mxu0
      %v5850 = vadd.f32 %v5689, %v5849
      %v5851 = vpop.f32.mrf.mxu0
      %5852 = vmatprep.mubr.bf16.mxu0 %v5443
      %5853 = vmatmul.mubr.bf16.gmra.mxu0 %v3701
      %v5854 = vpop.f32.mrf.mxu0
      %v5855 = vadd.f32 %v5694, %v5854
      %v5856 = vpop.f32.mrf.mxu0
      %v5857 = vpop.f32.mrf.mxu0
      %v5858 = vadd.f32 %v5697, %v5857
      %v5859 = vpop.f32.mrf.mxu0
      %5860 = vmatprep.mubr.bf16.mxu0 %v5444
      %5861 = vmatmul.mubr.bf16.gmra.mxu0 %v3702
      %v5862 = vpop.f32.mrf.mxu0
      %v5863 = vadd.f32 %v5702, %v5862
      %v5864 = vpop.f32.mrf.mxu0
      %v5865 = vpop.f32.mrf.mxu0
      %v5866 = vadd.f32 %v5705, %v5865
      %v5867 = vpop.f32.mrf.mxu0
      %5868 = vmatprep.mubr.bf16.mxu0 %v5445
      %5869 = vmatmul.mubr.bf16.gmra.mxu0 %v3703
      %v5870 = vpop.f32.mrf.mxu0
      %v5871 = vadd.f32 %v5710, %v5870
      %v5872 = vpop.f32.mrf.mxu0
      %v5873 = vpop.f32.mrf.mxu0
      %v5874 = vadd.f32 %v5713, %v5873
      %v5875 = vpop.f32.mrf.mxu0
      %5876 = vmatprep.mubr.bf16.mxu0 %v5446
      %5877 = vmatmul.mubr.bf16.gmra.mxu0 %v3704
      %v5878 = vpop.f32.mrf.mxu0
      %v5879 = vadd.f32 %v5718, %v5878
      %v5880 = vpop.f32.mrf.mxu0
      %v5881 = vpop.f32.mrf.mxu0
      %v5882 = vadd.f32 %v5721, %v5881
      %v5883 = vpop.f32.mrf.mxu0
      %5884 = vmatprep.mubr.bf16.mxu0 %v5447
      %5885 = vmatmul.mubr.bf16.gmra.mxu0 %v3705
      %v5886 = vpop.f32.mrf.mxu0
      %v5887 = vadd.f32 %v5726, %v5886
      %v5888 = vpop.f32.mrf.mxu0
      %v5889 = vpop.f32.mrf.mxu0
      %v5890 = vadd.f32 %v5729, %v5889
      %v5891 = vpop.f32.mrf.mxu0
      %5892 = vmatprep.mubr.bf16.mxu0 %v5448
      %5893 = vmatmul.mubr.bf16.gmra.mxu0 %v3706
      %v5894 = vpop.f32.mrf.mxu0
      %v5895 = vadd.f32 %v5734, %v5894
      %v5896 = vpop.f32.mrf.mxu0
      %v5897 = vpop.f32.mrf.mxu0
      %v5898 = vadd.f32 %v5737, %v5897
      %v5899 = vpop.f32.mrf.mxu0
      %5900 = vmatprep.mubr.bf16.mxu0 %v5449
      %5901 = vmatmul.mubr.bf16.gmra.mxu0 %v3707
      %v5902 = vpop.f32.mrf.mxu0
      %v5903 = vadd.f32 %v5742, %v5902
      %v5904 = vpop.f32.mrf.mxu0
      %v5905 = vpop.f32.mrf.mxu0
      %v5906 = vadd.f32 %v5745, %v5905
      %v5907 = vpop.f32.mrf.mxu0
      %5908 = vmatprep.mubr.bf16.mxu0 %v5450
      %5909 = vmatmul.mubr.bf16.gmra.mxu0 %v3708
      %v5910 = vpop.f32.mrf.mxu0
      %v5911 = vadd.f32 %v5750, %v5910
      %v5912 = vpop.f32.mrf.mxu0
      %v5913 = vpop.f32.mrf.mxu0
      %v5914 = vadd.f32 %v5753, %v5913
      %v5915 = vpop.f32.mrf.mxu0
      %5916 = vmatprep.mubr.bf16.mxu0 %v5451
      %5917 = vmatmul.mubr.bf16.gmra.mxu0 %v3709
      %v5918 = vpop.f32.mrf.mxu0
      %v5919 = vadd.f32 %v5758, %v5918
      %v5920 = vpop.f32.mrf.mxu0
      %v5921 = vpop.f32.mrf.mxu0
      %v5922 = vadd.f32 %v5761, %v5921
      %v5923 = vpop.f32.mrf.mxu0
      %5924 = vmatprep.mubr.bf16.mxu0 %v5452
      %5925 = vmatmul.mubr.bf16.gmra.mxu0 %v3710
      %v5926 = vpop.f32.mrf.mxu0
      %v5927 = vadd.f32 %v5766, %v5926
      %v5928 = vpop.f32.mrf.mxu0
      %v5929 = vpop.f32.mrf.mxu0
      %v5930 = vadd.f32 %v5769, %v5929
      %v5931 = vpop.f32.mrf.mxu0
      %5932 = vmatprep.mubr.bf16.mxu0 %v5453
      %5933 = vmatmul.mubr.bf16.gmra.mxu0 %v3711
      %v5934 = vpop.f32.mrf.mxu0
      %v5935 = vadd.f32 %v5774, %v5934
      %v5936 = vpop.f32.mrf.mxu0
      %v5937 = vpop.f32.mrf.mxu0
      %v5938 = vadd.f32 %v5777, %v5937
      %v5939 = vpop.f32.mrf.mxu0
      %5940 = vmatprep.mubr.bf16.mxu0 %v5454
      %5941 = vmatmul.mubr.bf16.gmra.mxu0 %v3712
      %v5942 = vpop.f32.mrf.mxu0
      %v5943 = vadd.f32 %v5782, %v5942
      %v5944 = vpop.f32.mrf.mxu0
      %v5945 = vpop.f32.mrf.mxu0
      %v5946 = vadd.f32 %v5785, %v5945
      %v5947 = vpop.f32.mrf.mxu0
      %5948 = vdwg.mxu0
      %5949 = vmatprep.subr.bf16.mxu0 0
      %5950 = vmatpush1.bf16.msra.mxu0 %v4069
      %5951 = vmatprep.subr.bf16.mxu0 0
      %5952 = vmatpush1.bf16.msra.mxu0 %v4068
      %5953 = vmatprep.subr.bf16.mxu0 0
      %5954 = vmatpush1.bf16.msra.mxu0 %v4067
      %5955 = vmatprep.subr.bf16.mxu0 0
      %5956 = vmatpush1.bf16.msra.mxu0 %v4066
      %5957 = vmatprep.subr.bf16.mxu0 0
      %5958 = vmatpush1.bf16.msra.mxu0 %v4065
      %5959 = vmatprep.subr.bf16.mxu0 0
      %5960 = vmatpush1.bf16.msra.mxu0 %v4064
      %5961 = vmatprep.subr.bf16.mxu0 0
      %5962 = vmatpush1.bf16.msra.mxu0 %v4063
      %5963 = vmatprep.subr.bf16.mxu0 0
      %5964 = vmatpush1.bf16.msra.mxu0 %v4062
      %5965 = vmatprep.subr.bf16.mxu0 0
      %5966 = vmatpush2.bf16.msra.mxu0 %v4077
      %5967 = vmatprep.subr.bf16.mxu0 0
      %5968 = vmatpush2.bf16.msra.mxu0 %v4076
      %5969 = vmatprep.subr.bf16.mxu0 0
      %5970 = vmatpush2.bf16.msra.mxu0 %v4075
      %5971 = vmatprep.subr.bf16.mxu0 0
      %5972 = vmatpush2.bf16.msra.mxu0 %v4074
      %5973 = vmatprep.subr.bf16.mxu0 0
      %5974 = vmatpush2.bf16.msra.mxu0 %v4073
      %5975 = vmatprep.subr.bf16.mxu0 0
      %5976 = vmatpush2.bf16.msra.mxu0 %v4072
      %5977 = vmatprep.subr.bf16.mxu0 0
      %5978 = vmatpush2.bf16.msra.mxu0 %v4071
      %5979 = vmatprep.subr.bf16.mxu0 0
      %5980 = vmatpush2.bf16.msra.mxu0 %v4070
      %5981 = vmatprep.mubr.bf16.mxu0 %v3490
      %5982 = vmatmul.mubr.bf16.gmra.mxu0 %v3474
      %v5983 = vpop.f32.mrf.mxu0
      %v5984 = vadd.f32 %v5823, %v5983
      %v5985 = vpop.f32.mrf.mxu0
      %v5986 = vpop.f32.mrf.mxu0
      %v5987 = vadd.f32 %v5826, %v5986
      %v5988 = vpop.f32.mrf.mxu0
      %5989 = vmatprep.mubr.bf16.mxu0 %v3491
      %5990 = vmatmul.mubr.bf16.gmra.mxu0 %v3475
      %v5991 = vpop.f32.mrf.mxu0
      %v5992 = vadd.f32 %v5831, %v5991
      %v5993 = vpop.f32.mrf.mxu0
      %v5994 = vpop.f32.mrf.mxu0
      %v5995 = vadd.f32 %v5834, %v5994
      %v5996 = vpop.f32.mrf.mxu0
      %5997 = vmatprep.mubr.bf16.mxu0 %v3492
      %5998 = vmatmul.mubr.bf16.gmra.mxu0 %v3476
      %v5999 = vpop.f32.mrf.mxu0
      %v6000 = vadd.f32 %v5839, %v5999
      %v6001 = vpop.f32.mrf.mxu0
      %v6002 = vpop.f32.mrf.mxu0
      %v6003 = vadd.f32 %v5842, %v6002
      %v6004 = vpop.f32.mrf.mxu0
      %6005 = vmatprep.mubr.bf16.mxu0 %v3493
      %6006 = vmatmul.mubr.bf16.gmra.mxu0 %v3477
      %v6007 = vpop.f32.mrf.mxu0
      %v6008 = vadd.f32 %v5847, %v6007
      %v6009 = vpop.f32.mrf.mxu0
      %v6010 = vpop.f32.mrf.mxu0
      %v6011 = vadd.f32 %v5850, %v6010
      %v6012 = vpop.f32.mrf.mxu0
      %6013 = vmatprep.mubr.bf16.mxu0 %v3494
      %6014 = vmatmul.mubr.bf16.gmra.mxu0 %v3478
      %v6015 = vpop.f32.mrf.mxu0
      %v6016 = vadd.f32 %v5855, %v6015
      %v6017 = vpop.f32.mrf.mxu0
      %v6018 = vpop.f32.mrf.mxu0
      %v6019 = vadd.f32 %v5858, %v6018
      %v6020 = vpop.f32.mrf.mxu0
      %6021 = vmatprep.mubr.bf16.mxu0 %v3495
      %6022 = vmatmul.mubr.bf16.gmra.mxu0 %v3479
      %v6023 = vpop.f32.mrf.mxu0
      %v6024 = vadd.f32 %v5863, %v6023
      %v6025 = vpop.f32.mrf.mxu0
      %v6026 = vpop.f32.mrf.mxu0
      %v6027 = vadd.f32 %v5866, %v6026
      %v6028 = vpop.f32.mrf.mxu0
      %6029 = vmatprep.mubr.bf16.mxu0 %v3496
      %6030 = vmatmul.mubr.bf16.gmra.mxu0 %v3480
      %v6031 = vpop.f32.mrf.mxu0
      %v6032 = vadd.f32 %v5871, %v6031
      %v6033 = vpop.f32.mrf.mxu0
      %v6034 = vpop.f32.mrf.mxu0
      %v6035 = vadd.f32 %v5874, %v6034
      %v6036 = vpop.f32.mrf.mxu0
      %6037 = vmatprep.mubr.bf16.mxu0 %v3497
      %6038 = vmatmul.mubr.bf16.gmra.mxu0 %v3481
      %v6039 = vpop.f32.mrf.mxu0
      %v6040 = vadd.f32 %v5879, %v6039
      %v6041 = vpop.f32.mrf.mxu0
      %v6042 = vpop.f32.mrf.mxu0
      %v6043 = vadd.f32 %v5882, %v6042
      %v6044 = vpop.f32.mrf.mxu0
      %6045 = vmatprep.mubr.bf16.mxu0 %v3498
      %6046 = vmatmul.mubr.bf16.gmra.mxu0 %v3482
      %v6047 = vpop.f32.mrf.mxu0
      %v6048 = vadd.f32 %v5887, %v6047
      %v6049 = vpop.f32.mrf.mxu0
      %v6050 = vpop.f32.mrf.mxu0
      %v6051 = vadd.f32 %v5890, %v6050
      %v6052 = vpop.f32.mrf.mxu0
      %6053 = vmatprep.mubr.bf16.mxu0 %v3499
      %6054 = vmatmul.mubr.bf16.gmra.mxu0 %v3483
      %v6055 = vpop.f32.mrf.mxu0
      %v6056 = vadd.f32 %v5895, %v6055
      %v6057 = vpop.f32.mrf.mxu0
      %v6058 = vpop.f32.mrf.mxu0
      %v6059 = vadd.f32 %v5898, %v6058
      %v6060 = vpop.f32.mrf.mxu0
      %6061 = vmatprep.mubr.bf16.mxu0 %v3500
      %6062 = vmatmul.mubr.bf16.gmra.mxu0 %v3484
      %v6063 = vpop.f32.mrf.mxu0
      %v6064 = vadd.f32 %v5903, %v6063
      %v6065 = vpop.f32.mrf.mxu0
      %v6066 = vpop.f32.mrf.mxu0
      %v6067 = vadd.f32 %v5906, %v6066
      %v6068 = vpop.f32.mrf.mxu0
      %6069 = vmatprep.mubr.bf16.mxu0 %v3501
      %6070 = vmatmul.mubr.bf16.gmra.mxu0 %v3485
      %v6071 = vpop.f32.mrf.mxu0
      %v6072 = vadd.f32 %v5911, %v6071
      %v6073 = vpop.f32.mrf.mxu0
      %v6074 = vpop.f32.mrf.mxu0
      %v6075 = vadd.f32 %v5914, %v6074
      %v6076 = vpop.f32.mrf.mxu0
      %6077 = vmatprep.mubr.bf16.mxu0 %v3502
      %6078 = vmatmul.mubr.bf16.gmra.mxu0 %v3486
      %v6079 = vpop.f32.mrf.mxu0
      %v6080 = vadd.f32 %v5919, %v6079
      %v6081 = vpop.f32.mrf.mxu0
      %v6082 = vpop.f32.mrf.mxu0
      %v6083 = vadd.f32 %v5922, %v6082
      %v6084 = vpop.f32.mrf.mxu0
      %6085 = vmatprep.mubr.bf16.mxu0 %v3503
      %6086 = vmatmul.mubr.bf16.gmra.mxu0 %v3487
      %v6087 = vpop.f32.mrf.mxu0
      %v6088 = vadd.f32 %v5927, %v6087
      %v6089 = vpop.f32.mrf.mxu0
      %v6090 = vpop.f32.mrf.mxu0
      %v6091 = vadd.f32 %v5930, %v6090
      %v6092 = vpop.f32.mrf.mxu0
      %6093 = vmatprep.mubr.bf16.mxu0 %v3504
      %6094 = vmatmul.mubr.bf16.gmra.mxu0 %v3488
      %v6095 = vpop.f32.mrf.mxu0
      %v6096 = vadd.f32 %v5935, %v6095
      %v6097 = vpop.f32.mrf.mxu0
      %v6098 = vpop.f32.mrf.mxu0
      %v6099 = vadd.f32 %v5938, %v6098
      %v6100 = vpop.f32.mrf.mxu0
      %6101 = vmatprep.mubr.bf16.mxu0 %v3725
      %6102 = vmatmul.mubr.bf16.gmra.mxu0 %v3724
      %v6103 = vpop.f32.mrf.mxu0
      %v6104 = vadd.f32 %v5943, %v6103
      %v6105 = vpop.f32.mrf.mxu0
      %v6106 = vpop.f32.mrf.mxu0
      %v6107 = vadd.f32 %v5946, %v6106
      %v6108 = vpop.f32.mrf.mxu0
      %6109 = vdwg.mxu0
      %6110 = vmatprep.subr.bf16.mxu0 0
      %6111 = vmatpush1.bf16.msra.mxu0 %v4085
      %6112 = vmatprep.subr.bf16.mxu0 0
      %6113 = vmatpush1.bf16.msra.mxu0 %v4084
      %6114 = vmatprep.subr.bf16.mxu0 0
      %6115 = vmatpush1.bf16.msra.mxu0 %v4083
      %6116 = vmatprep.subr.bf16.mxu0 0
      %6117 = vmatpush1.bf16.msra.mxu0 %v4082
      %6118 = vmatprep.subr.bf16.mxu0 0
      %6119 = vmatpush1.bf16.msra.mxu0 %v4081
      %6120 = vmatprep.subr.bf16.mxu0 0
      %6121 = vmatpush1.bf16.msra.mxu0 %v4080
      %6122 = vmatprep.subr.bf16.mxu0 0
      %6123 = vmatpush1.bf16.msra.mxu0 %v4079
      %6124 = vmatprep.subr.bf16.mxu0 0
      %6125 = vmatpush1.bf16.msra.mxu0 %v4078
      %6126 = vmatprep.subr.bf16.mxu0 0
      %6127 = vmatpush2.bf16.msra.mxu0 0
      %6128 = vmatprep.subr.bf16.mxu0 0
      %6129 = vmatpush2.bf16.msra.mxu0 0
      %6130 = vmatprep.subr.bf16.mxu0 0
      %6131 = vmatpush2.bf16.msra.mxu0 0
      %6132 = vmatprep.subr.bf16.mxu0 0
      %6133 = vmatpush2.bf16.msra.mxu0 0
      %6134 = vmatprep.subr.bf16.mxu0 0
      %6135 = vmatpush2.bf16.msra.mxu0 0
      %6136 = vmatprep.subr.bf16.mxu0 0
      %6137 = vmatpush2.bf16.msra.mxu0 0
      %6138 = vmatprep.subr.bf16.mxu0 0
      %6139 = vmatpush2.bf16.msra.mxu0 0
      %6140 = vmatprep.subr.bf16.mxu0 0
      %6141 = vmatpush2.bf16.msra.mxu0 0
      %6142 = vmatprep.mubr.bf16.mxu0 0
      %6143 = vmatmul.mubr.bf16.gmra.mxu0 %v5264
      %v6144 = vpop.f32.mrf.mxu0
      %v6145 = vadd.f32 %v5984, %v6144
      %v6146 = vpop.f32.mrf.mxu0
      %v6147 = vpop.f32.mrf.mxu0
      %v6148 = vadd.f32 %v5987, %v6147
      %v6149 = vpop.f32.mrf.mxu0
      %6150 = vmatprep.mubr.bf16.mxu0 0
      %6151 = vmatmul.mubr.bf16.gmra.mxu0 %v5265
      %v6152 = vpop.f32.mrf.mxu0
      %v6153 = vadd.f32 %v5992, %v6152
      %v6154 = vpop.f32.mrf.mxu0
      %v6155 = vpop.f32.mrf.mxu0
      %v6156 = vadd.f32 %v5995, %v6155
      %v6157 = vpop.f32.mrf.mxu0
      %6158 = vmatprep.mubr.bf16.mxu0 0
      %6159 = vmatmul.mubr.bf16.gmra.mxu0 %v5266
      %v6160 = vpop.f32.mrf.mxu0
      %v6161 = vadd.f32 %v6000, %v6160
      %v6162 = vpop.f32.mrf.mxu0
      %v6163 = vpop.f32.mrf.mxu0
      %v6164 = vadd.f32 %v6003, %v6163
      %v6165 = vpop.f32.mrf.mxu0
      %6166 = vmatprep.mubr.bf16.mxu0 0
      %6167 = vmatmul.mubr.bf16.gmra.mxu0 %v5267
      %v6168 = vpop.f32.mrf.mxu0
      %v6169 = vadd.f32 %v6008, %v6168
      %v6170 = vpop.f32.mrf.mxu0
      %v6171 = vpop.f32.mrf.mxu0
      %v6172 = vadd.f32 %v6011, %v6171
      %v6173 = vpop.f32.mrf.mxu0
      %6174 = vmatprep.mubr.bf16.mxu0 0
      %6175 = vmatmul.mubr.bf16.gmra.mxu0 %v5268
      %v6176 = vpop.f32.mrf.mxu0
      %v6177 = vadd.f32 %v6016, %v6176
      %v6178 = vpop.f32.mrf.mxu0
      %v6179 = vpop.f32.mrf.mxu0
      %v6180 = vadd.f32 %v6019, %v6179
      %v6181 = vpop.f32.mrf.mxu0
      %6182 = vmatprep.mubr.bf16.mxu0 0
      %6183 = vmatmul.mubr.bf16.gmra.mxu0 %v5269
      %v6184 = vpop.f32.mrf.mxu0
      %v6185 = vadd.f32 %v6024, %v6184
      %v6186 = vpop.f32.mrf.mxu0
      %v6187 = vpop.f32.mrf.mxu0
      %v6188 = vadd.f32 %v6027, %v6187
      %v6189 = vpop.f32.mrf.mxu0
      %6190 = vmatprep.mubr.bf16.mxu0 0
      %6191 = vmatmul.mubr.bf16.gmra.mxu0 %v5270
      %v6192 = vpop.f32.mrf.mxu0
      %v6193 = vadd.f32 %v6032, %v6192
      %v6194 = vpop.f32.mrf.mxu0
      %v6195 = vpop.f32.mrf.mxu0
      %v6196 = vadd.f32 %v6035, %v6195
      %v6197 = vpop.f32.mrf.mxu0
      %6198 = vmatprep.mubr.bf16.mxu0 0
      %6199 = vmatmul.mubr.bf16.gmra.mxu0 %v5271
      %v6200 = vpop.f32.mrf.mxu0
      %v6201 = vadd.f32 %v6040, %v6200
      %v6202 = vpop.f32.mrf.mxu0
      %v6203 = vpop.f32.mrf.mxu0
      %v6204 = vadd.f32 %v6043, %v6203
      %v6205 = vpop.f32.mrf.mxu0
      %6206 = vmatprep.mubr.bf16.mxu0 0
      %6207 = vmatmul.mubr.bf16.gmra.mxu0 %v5272
      %v6208 = vpop.f32.mrf.mxu0
      %v6209 = vadd.f32 %v6048, %v6208
      %v6210 = vpop.f32.mrf.mxu0
      %v6211 = vpop.f32.mrf.mxu0
      %v6212 = vadd.f32 %v6051, %v6211
      %v6213 = vpop.f32.mrf.mxu0
      %6214 = vmatprep.mubr.bf16.mxu0 0
      %6215 = vmatmul.mubr.bf16.gmra.mxu0 %v5273
      %v6216 = vpop.f32.mrf.mxu0
      %v6217 = vadd.f32 %v6056, %v6216
      %v6218 = vpop.f32.mrf.mxu0
      %v6219 = vpop.f32.mrf.mxu0
      %v6220 = vadd.f32 %v6059, %v6219
      %v6221 = vpop.f32.mrf.mxu0
      %6222 = vmatprep.mubr.bf16.mxu0 0
      %6223 = vmatmul.mubr.bf16.gmra.mxu0 %v5274
      %v6224 = vpop.f32.mrf.mxu0
      %v6225 = vadd.f32 %v6064, %v6224
      %v6226 = vpop.f32.mrf.mxu0
      %v6227 = vpop.f32.mrf.mxu0
      %v6228 = vadd.f32 %v6067, %v6227
      %v6229 = vpop.f32.mrf.mxu0
      %6230 = vmatprep.mubr.bf16.mxu0 0
      %6231 = vmatmul.mubr.bf16.gmra.mxu0 %v5275
      %v6232 = vpop.f32.mrf.mxu0
      %v6233 = vadd.f32 %v6072, %v6232
      %v6234 = vpop.f32.mrf.mxu0
      %v6235 = vpop.f32.mrf.mxu0
      %v6236 = vadd.f32 %v6075, %v6235
      %v6237 = vpop.f32.mrf.mxu0
      %6238 = vmatprep.mubr.bf16.mxu0 0
      %6239 = vmatmul.mubr.bf16.gmra.mxu0 %v5276
      %v6240 = vpop.f32.mrf.mxu0
      %v6241 = vadd.f32 %v6080, %v6240
      %v6242 = vpop.f32.mrf.mxu0
      %v6243 = vpop.f32.mrf.mxu0
      %v6244 = vadd.f32 %v6083, %v6243
      %v6245 = vpop.f32.mrf.mxu0
      %6246 = vmatprep.mubr.bf16.mxu0 0
      %6247 = vmatmul.mubr.bf16.gmra.mxu0 %v5277
      %v6248 = vpop.f32.mrf.mxu0
      %v6249 = vadd.f32 %v6088, %v6248
      %v6250 = vpop.f32.mrf.mxu0
      %v6251 = vpop.f32.mrf.mxu0
      %v6252 = vadd.f32 %v6091, %v6251
      %v6253 = vpop.f32.mrf.mxu0
      %6254 = vmatprep.mubr.bf16.mxu0 0
      %6255 = vmatmul.mubr.bf16.gmra.mxu0 %v5278
      %v6256 = vpop.f32.mrf.mxu0
      %v6257 = vadd.f32 %v6096, %v6256
      %v6258 = vpop.f32.mrf.mxu0
      %v6259 = vpop.f32.mrf.mxu0
      %v6260 = vadd.f32 %v6099, %v6259
      %v6261 = vpop.f32.mrf.mxu0
      %6262 = vmatprep.mubr.bf16.mxu0 0
      %6263 = vmatmul.mubr.bf16.gmra.mxu0 %v5465
      %v6264 = vpop.f32.mrf.mxu0
      %v6265 = vadd.f32 %v6104, %v6264
      %v6266 = vpop.f32.mrf.mxu0
      %v6267 = vpop.f32.mrf.mxu0
      %v6268 = vadd.f32 %v6107, %v6267
      %v6269 = vpop.f32.mrf.mxu0
      %6270 = vdwg.mxu0
      %v6271 = vadd.f32 %v6145, %v6148
      %v6272 = vadd.f32 %v6271, %v6153
      %v6273 = vadd.f32 %v6272, %v6156
      %v6274 = vadd.f32 %v6273, %v6161
      %v6275 = vadd.f32 %v6274, %v6164
      %v6276 = vadd.f32 %v6275, %v6169
      %v6277 = vadd.f32 %v6276, %v6172
      %v6278 = vadd.f32 %v6277, %v6177
      %v6279 = vadd.f32 %v6278, %v6180
      %v6280 = vadd.f32 %v6279, %v6185
      %v6281 = vadd.f32 %v6280, %v6188
      %v6282 = vadd.f32 %v6281, %v6193
      %v6283 = vadd.f32 %v6282, %v6196
      %v6284 = vadd.f32 %v6283, %v6201
      %v6285 = vadd.f32 %v6284, %v6204
      %v6286 = vadd.f32 %v6285, %v6209
      %v6287 = vadd.f32 %v6286, %v6212
      %v6288 = vadd.f32 %v6287, %v6217
      %v6289 = vadd.f32 %v6288, %v6220
      %v6290 = vadd.f32 %v6289, %v6225
      %v6291 = vadd.f32 %v6290, %v6228
      %v6292 = vadd.f32 %v6291, %v6233
      %v6293 = vadd.f32 %v6292, %v6236
      %v6294 = vadd.f32 %v6293, %v6241
      %v6295 = vadd.f32 %v6294, %v6244
      %v6296 = vadd.f32 %v6295, %v6249
      %v6297 = vadd.f32 %v6296, %v6252
      %v6298 = vadd.f32 %v6297, %v6257
      %v6299 = vadd.f32 %v6298, %v6260
      %v6300 = vadd.f32 %v6299, %v6265
      %v6301 = vadd.f32 %v6300, %v6268
      %v6302 = vrot.slane %v6301, 4
      %v6303 = vadd.f32 %v6301, %v6302
      %v6304 = vrot.slane %v6303, 2
      %v6305 = vadd.f32 %v6303, %v6304
      %v6306 = vrot.slane %v6305, 1
      %v6307 = vadd.f32 %v6305, %v6306
      %v6308 = vadd.f32 %v5000, %v6307
      %v6309 = vmul.f32 %v6145, %v6145
      %v6310 = vmul.f32 %v6148, %v6148
      %v6311 = vmul.f32 %v6153, %v6153
      %v6312 = vmul.f32 %v6156, %v6156
      %v6313 = vmul.f32 %v6161, %v6161
      %v6314 = vmul.f32 %v6164, %v6164
      %v6315 = vmul.f32 %v6169, %v6169
      %v6316 = vmul.f32 %v6172, %v6172
      %v6317 = vmul.f32 %v6177, %v6177
      %v6318 = vmul.f32 %v6180, %v6180
      %v6319 = vmul.f32 %v6185, %v6185
      %v6320 = vmul.f32 %v6188, %v6188
      %v6321 = vmul.f32 %v6193, %v6193
      %v6322 = vmul.f32 %v6196, %v6196
      %v6323 = vmul.f32 %v6201, %v6201
      %v6324 = vmul.f32 %v6204, %v6204
      %v6325 = vmul.f32 %v6209, %v6209
      %v6326 = vmul.f32 %v6212, %v6212
      %v6327 = vmul.f32 %v6217, %v6217
      %v6328 = vmul.f32 %v6220, %v6220
      %v6329 = vmul.f32 %v6225, %v6225
      %v6330 = vmul.f32 %v6228, %v6228
      %v6331 = vmul.f32 %v6233, %v6233
      %v6332 = vmul.f32 %v6236, %v6236
      %v6333 = vmul.f32 %v6241, %v6241
      %v6334 = vmul.f32 %v6244, %v6244
      %v6335 = vmul.f32 %v6249, %v6249
      %v6336 = vmul.f32 %v6252, %v6252
      %v6337 = vmul.f32 %v6257, %v6257
      %v6338 = vmul.f32 %v6260, %v6260
      %v6339 = vmul.f32 %v6265, %v6265
      %v6340 = vmul.f32 %v6268, %v6268
      %v6341 = vadd.f32 %v6309, %v6310
      %v6342 = vadd.f32 %v6341, %v6311
      %v6343 = vadd.f32 %v6342, %v6312
      %v6344 = vadd.f32 %v6343, %v6313
      %v6345 = vadd.f32 %v6344, %v6314
      %v6346 = vadd.f32 %v6345, %v6315
      %v6347 = vadd.f32 %v6346, %v6316
      %v6348 = vadd.f32 %v6347, %v6317
      %v6349 = vadd.f32 %v6348, %v6318
      %v6350 = vadd.f32 %v6349, %v6319
      %v6351 = vadd.f32 %v6350, %v6320
      %v6352 = vadd.f32 %v6351, %v6321
      %v6353 = vadd.f32 %v6352, %v6322
      %v6354 = vadd.f32 %v6353, %v6323
      %v6355 = vadd.f32 %v6354, %v6324
      %v6356 = vadd.f32 %v6355, %v6325
      %v6357 = vadd.f32 %v6356, %v6326
      %v6358 = vadd.f32 %v6357, %v6327
      %v6359 = vadd.f32 %v6358, %v6328
      %v6360 = vadd.f32 %v6359, %v6329
      %v6361 = vadd.f32 %v6360, %v6330
      %v6362 = vadd.f32 %v6361, %v6331
      %v6363 = vadd.f32 %v6362, %v6332
      %v6364 = vadd.f32 %v6363, %v6333
      %v6365 = vadd.f32 %v6364, %v6334
      %v6366 = vadd.f32 %v6365, %v6335
      %v6367 = vadd.f32 %v6366, %v6336
      %v6368 = vadd.f32 %v6367, %v6337
      %v6369 = vadd.f32 %v6368, %v6338
      %v6370 = vadd.f32 %v6369, %v6339
      %v6371 = vadd.f32 %v6370, %v6340
      %v6372 = vrot.slane %v6371, 4
      %v6373 = vadd.f32 %v6371, %v6372
      %v6374 = vrot.slane %v6373, 2
      %v6375 = vadd.f32 %v6373, %v6374
      %v6376 = vrot.slane %v6375, 1
      %v6377 = vadd.f32 %v6375, %v6376
      %v6378 = vadd.f32 %v5070, %v6377
      %s6379 = scalar_lea.vmem [#allocation3], 256
      %6380 = vst [vmem:[%s6379] sm:$0xff] %v6145
      %6381 = vst [vmem:[%s6379 + $0x8] sm:$0xff] %v6148
      %6382 = vst [vmem:[%s6379 + $0x10] sm:$0xff] %v6153
      %6383 = vst [vmem:[%s6379 + $0x18] sm:$0xff] %v6156
      %6384 = vst [vmem:[%s6379 + $0x20] sm:$0xff] %v6161
      %6385 = vst [vmem:[%s6379 + $0x28] sm:$0xff] %v6164
      %6386 = vst [vmem:[%s6379 + $0x30] sm:$0xff] %v6169
      %6387 = vst [vmem:[%s6379 + $0x38] sm:$0xff] %v6172
      %6388 = vst [vmem:[%s6379 + $0x40] sm:$0xff] %v6177
      %6389 = vst [vmem:[%s6379 + $0x48] sm:$0xff] %v6180
      %6390 = vst [vmem:[%s6379 + $0x50] sm:$0xff] %v6185
      %6391 = vst [vmem:[%s6379 + $0x58] sm:$0xff] %v6188
      %6392 = vst [vmem:[%s6379 + $0x60] sm:$0xff] %v6193
      %6393 = vst [vmem:[%s6379 + $0x68] sm:$0xff] %v6196
      %6394 = vst [vmem:[%s6379 + $0x70] sm:$0xff] %v6201
      %6395 = vst [vmem:[%s6379 + $0x78] sm:$0xff] %v6204
      %6396 = vst [vmem:[%s6379 + $0x80] sm:$0xff] %v6209
      %6397 = vst [vmem:[%s6379 + $0x88] sm:$0xff] %v6212
      %6398 = vst [vmem:[%s6379 + $0x90] sm:$0xff] %v6217
      %6399 = vst [vmem:[%s6379 + $0x98] sm:$0xff] %v6220
      %6400 = vst [vmem:[%s6379 + $0xa0] sm:$0xff] %v6225
      %6401 = vst [vmem:[%s6379 + $0xa8] sm:$0xff] %v6228
      %6402 = vst [vmem:[%s6379 + $0xb0] sm:$0xff] %v6233
      %6403 = vst [vmem:[%s6379 + $0xb8] sm:$0xff] %v6236
      %6404 = vst [vmem:[%s6379 + $0xc0] sm:$0xff] %v6241
      %6405 = vst [vmem:[%s6379 + $0xc8] sm:$0xff] %v6244
      %6406 = vst [vmem:[%s6379 + $0xd0] sm:$0xff] %v6249
      %6407 = vst [vmem:[%s6379 + $0xd8] sm:$0xff] %v6252
      %6408 = vst [vmem:[%s6379 + $0xe0] sm:$0xff] %v6257
      %6409 = vst [vmem:[%s6379 + $0xe8] sm:$0xff] %v6260
      %6410 = vst [vmem:[%s6379 + $0xf0] sm:$0xff] %v6265
      %6411 = vst [vmem:[%s6379 + $0xf8] sm:$0xff] %v6268
      %v6415 = vrot.slane %v3189, 7
      %v6416 = vrot.slane %v3190, 7
      %v6417 = vsel %vm3344, %v6415, %v6416
      %v6418 = vrot.slane %v3191, 7
      %v6419 = vsel %vm3344, %v6416, %v6418
      %v6422 = vpack.c.bf16 %v6419, %v6417
      %v6423 = vpack.c.bf16 %v3138, %v3137
      %v6424 = vpack.c.bf16 %v3191, %v3190
      %6425 = vmatprep.subr.bf16.mxu0 0
      %6426 = vmatpush1.bf16.msra.mxu0 %v4021
      %6427 = vmatprep.subr.bf16.mxu0 0
      %6428 = vmatpush1.bf16.msra.mxu0 %v4020
      %6429 = vmatprep.subr.bf16.mxu0 0
      %6430 = vmatpush1.bf16.msra.mxu0 %v4019
      %6431 = vmatprep.subr.bf16.mxu0 0
      %6432 = vmatpush1.bf16.msra.mxu0 %v4018
      %6433 = vmatprep.subr.bf16.mxu0 0
      %6434 = vmatpush1.bf16.msra.mxu0 %v4017
      %6435 = vmatprep.subr.bf16.mxu0 0
      %6436 = vmatpush1.bf16.msra.mxu0 %v4016
      %6437 = vmatprep.subr.bf16.mxu0 0
      %6438 = vmatpush1.bf16.msra.mxu0 %v4015
      %6439 = vmatprep.subr.bf16.mxu0 0
      %6440 = vmatpush1.bf16.msra.mxu0 %v4014
      %6441 = vmatprep.subr.bf16.mxu0 0
      %6442 = vmatpush2.bf16.msra.mxu0 %v4029
      %6443 = vmatprep.subr.bf16.mxu0 0
      %6444 = vmatpush2.bf16.msra.mxu0 %v4028
      %6445 = vmatprep.subr.bf16.mxu0 0
      %6446 = vmatpush2.bf16.msra.mxu0 %v4027
      %6447 = vmatprep.subr.bf16.mxu0 0
      %6448 = vmatpush2.bf16.msra.mxu0 %v4026
      %6449 = vmatprep.subr.bf16.mxu0 0
      %6450 = vmatpush2.bf16.msra.mxu0 %v4025
      %6451 = vmatprep.subr.bf16.mxu0 0
      %6452 = vmatpush2.bf16.msra.mxu0 %v4024
      %6453 = vmatprep.subr.bf16.mxu0 0
      %6454 = vmatpush2.bf16.msra.mxu0 %v4023
      %6455 = vmatprep.subr.bf16.mxu0 0
      %6456 = vmatpush2.bf16.msra.mxu0 %v4022
      %6457 = vmatprep.mubr.bf16.mxu0 %v3681
      %6458 = vmatmul.mubr.bf16.gmra.mxu0 %v3665
      %v6459 = vpop.f32.mrf.mxu0
      %v6460 = vadd.f32 0.0, %v6459
      %v6461 = vpop.f32.mrf.mxu0
      %v6462 = vpop.f32.mrf.mxu0
      %v6463 = vadd.f32 0.0, %v6462
      %v6464 = vpop.f32.mrf.mxu0
      %6465 = vmatprep.mubr.bf16.mxu0 %v3682
      %6466 = vmatmul.mubr.bf16.gmra.mxu0 %v3666
      %v6467 = vpop.f32.mrf.mxu0
      %v6468 = vadd.f32 0.0, %v6467
      %v6469 = vpop.f32.mrf.mxu0
      %v6470 = vpop.f32.mrf.mxu0
      %v6471 = vadd.f32 0.0, %v6470
      %v6472 = vpop.f32.mrf.mxu0
      %6473 = vmatprep.mubr.bf16.mxu0 %v3683
      %6474 = vmatmul.mubr.bf16.gmra.mxu0 %v3667
      %v6475 = vpop.f32.mrf.mxu0
      %v6476 = vadd.f32 0.0, %v6475
      %v6477 = vpop.f32.mrf.mxu0
      %v6478 = vpop.f32.mrf.mxu0
      %v6479 = vadd.f32 0.0, %v6478
      %v6480 = vpop.f32.mrf.mxu0
      %6481 = vmatprep.mubr.bf16.mxu0 %v3684
      %6482 = vmatmul.mubr.bf16.gmra.mxu0 %v3668
      %v6483 = vpop.f32.mrf.mxu0
      %v6484 = vadd.f32 0.0, %v6483
      %v6485 = vpop.f32.mrf.mxu0
      %v6486 = vpop.f32.mrf.mxu0
      %v6487 = vadd.f32 0.0, %v6486
      %v6488 = vpop.f32.mrf.mxu0
      %6489 = vmatprep.mubr.bf16.mxu0 %v3685
      %6490 = vmatmul.mubr.bf16.gmra.mxu0 %v3669
      %v6491 = vpop.f32.mrf.mxu0
      %v6492 = vadd.f32 0.0, %v6491
      %v6493 = vpop.f32.mrf.mxu0
      %v6494 = vpop.f32.mrf.mxu0
      %v6495 = vadd.f32 0.0, %v6494
      %v6496 = vpop.f32.mrf.mxu0
      %6497 = vmatprep.mubr.bf16.mxu0 %v3686
      %6498 = vmatmul.mubr.bf16.gmra.mxu0 %v3670
      %v6499 = vpop.f32.mrf.mxu0
      %v6500 = vadd.f32 0.0, %v6499
      %v6501 = vpop.f32.mrf.mxu0
      %v6502 = vpop.f32.mrf.mxu0
      %v6503 = vadd.f32 0.0, %v6502
      %v6504 = vpop.f32.mrf.mxu0
      %6505 = vmatprep.mubr.bf16.mxu0 %v3687
      %6506 = vmatmul.mubr.bf16.gmra.mxu0 %v3671
      %v6507 = vpop.f32.mrf.mxu0
      %v6508 = vadd.f32 0.0, %v6507
      %v6509 = vpop.f32.mrf.mxu0
      %v6510 = vpop.f32.mrf.mxu0
      %v6511 = vadd.f32 0.0, %v6510
      %v6512 = vpop.f32.mrf.mxu0
      %6513 = vmatprep.mubr.bf16.mxu0 %v3688
      %6514 = vmatmul.mubr.bf16.gmra.mxu0 %v3672
      %v6515 = vpop.f32.mrf.mxu0
      %v6516 = vadd.f32 0.0, %v6515
      %v6517 = vpop.f32.mrf.mxu0
      %v6518 = vpop.f32.mrf.mxu0
      %v6519 = vadd.f32 0.0, %v6518
      %v6520 = vpop.f32.mrf.mxu0
      %6521 = vmatprep.mubr.bf16.mxu0 %v3689
      %6522 = vmatmul.mubr.bf16.gmra.mxu0 %v3673
      %v6523 = vpop.f32.mrf.mxu0
      %v6524 = vadd.f32 0.0, %v6523
      %v6525 = vpop.f32.mrf.mxu0
      %v6526 = vpop.f32.mrf.mxu0
      %v6527 = vadd.f32 0.0, %v6526
      %v6528 = vpop.f32.mrf.mxu0
      %6529 = vmatprep.mubr.bf16.mxu0 %v3690
      %6530 = vmatmul.mubr.bf16.gmra.mxu0 %v3674
      %v6531 = vpop.f32.mrf.mxu0
      %v6532 = vadd.f32 0.0, %v6531
      %v6533 = vpop.f32.mrf.mxu0
      %v6534 = vpop.f32.mrf.mxu0
      %v6535 = vadd.f32 0.0, %v6534
      %v6536 = vpop.f32.mrf.mxu0
      %6537 = vmatprep.mubr.bf16.mxu0 %v3691
      %6538 = vmatmul.mubr.bf16.gmra.mxu0 %v3675
      %v6539 = vpop.f32.mrf.mxu0
      %v6540 = vadd.f32 0.0, %v6539
      %v6541 = vpop.f32.mrf.mxu0
      %v6542 = vpop.f32.mrf.mxu0
      %v6543 = vadd.f32 0.0, %v6542
      %v6544 = vpop.f32.mrf.mxu0
      %6545 = vmatprep.mubr.bf16.mxu0 %v3692
      %6546 = vmatmul.mubr.bf16.gmra.mxu0 %v3676
      %v6547 = vpop.f32.mrf.mxu0
      %v6548 = vadd.f32 0.0, %v6547
      %v6549 = vpop.f32.mrf.mxu0
      %v6550 = vpop.f32.mrf.mxu0
      %v6551 = vadd.f32 0.0, %v6550
      %v6552 = vpop.f32.mrf.mxu0
      %6553 = vmatprep.mubr.bf16.mxu0 %v3693
      %6554 = vmatmul.mubr.bf16.gmra.mxu0 %v3677
      %v6555 = vpop.f32.mrf.mxu0
      %v6556 = vadd.f32 0.0, %v6555
      %v6557 = vpop.f32.mrf.mxu0
      %v6558 = vpop.f32.mrf.mxu0
      %v6559 = vadd.f32 0.0, %v6558
      %v6560 = vpop.f32.mrf.mxu0
      %6561 = vmatprep.mubr.bf16.mxu0 %v3694
      %6562 = vmatmul.mubr.bf16.gmra.mxu0 %v3678
      %v6563 = vpop.f32.mrf.mxu0
      %v6564 = vadd.f32 0.0, %v6563
      %v6565 = vpop.f32.mrf.mxu0
      %v6566 = vpop.f32.mrf.mxu0
      %v6567 = vadd.f32 0.0, %v6566
      %v6568 = vpop.f32.mrf.mxu0
      %6569 = vmatprep.mubr.bf16.mxu0 %v3695
      %6570 = vmatmul.mubr.bf16.gmra.mxu0 %v3679
      %v6571 = vpop.f32.mrf.mxu0
      %v6572 = vadd.f32 0.0, %v6571
      %v6573 = vpop.f32.mrf.mxu0
      %v6574 = vpop.f32.mrf.mxu0
      %v6575 = vadd.f32 0.0, %v6574
      %v6576 = vpop.f32.mrf.mxu0
      %6577 = vmatprep.mubr.bf16.mxu0 %v3696
      %6578 = vmatmul.mubr.bf16.gmra.mxu0 %v3680
      %v6579 = vpop.f32.mrf.mxu0
      %v6580 = vadd.f32 0.0, %v6579
      %v6581 = vpop.f32.mrf.mxu0
      %v6582 = vpop.f32.mrf.mxu0
      %v6583 = vadd.f32 0.0, %v6582
      %v6584 = vpop.f32.mrf.mxu0
      %6585 = vdwg.mxu0
      %6586 = vmatprep.subr.bf16.mxu0 0
      %6587 = vmatpush1.bf16.msra.mxu0 %v4037
      %6588 = vmatprep.subr.bf16.mxu0 0
      %6589 = vmatpush1.bf16.msra.mxu0 %v4036
      %6590 = vmatprep.subr.bf16.mxu0 0
      %6591 = vmatpush1.bf16.msra.mxu0 %v4035
      %6592 = vmatprep.subr.bf16.mxu0 0
      %6593 = vmatpush1.bf16.msra.mxu0 %v4034
      %6594 = vmatprep.subr.bf16.mxu0 0
      %6595 = vmatpush1.bf16.msra.mxu0 %v4033
      %6596 = vmatprep.subr.bf16.mxu0 0
      %6597 = vmatpush1.bf16.msra.mxu0 %v4032
      %6598 = vmatprep.subr.bf16.mxu0 0
      %6599 = vmatpush1.bf16.msra.mxu0 %v4031
      %6600 = vmatprep.subr.bf16.mxu0 0
      %6601 = vmatpush1.bf16.msra.mxu0 %v4030
      %6602 = vmatprep.subr.bf16.mxu0 0
      %6603 = vmatpush2.bf16.msra.mxu0 %v4045
      %6604 = vmatprep.subr.bf16.mxu0 0
      %6605 = vmatpush2.bf16.msra.mxu0 %v4044
      %6606 = vmatprep.subr.bf16.mxu0 0
      %6607 = vmatpush2.bf16.msra.mxu0 %v4043
      %6608 = vmatprep.subr.bf16.mxu0 0
      %6609 = vmatpush2.bf16.msra.mxu0 %v4042
      %6610 = vmatprep.subr.bf16.mxu0 0
      %6611 = vmatpush2.bf16.msra.mxu0 %v4041
      %6612 = vmatprep.subr.bf16.mxu0 0
      %6613 = vmatpush2.bf16.msra.mxu0 %v4040
      %6614 = vmatprep.subr.bf16.mxu0 0
      %6615 = vmatpush2.bf16.msra.mxu0 %v4039
      %6616 = vmatprep.subr.bf16.mxu0 0
      %6617 = vmatpush2.bf16.msra.mxu0 %v4038
      %6618 = vmatprep.mubr.bf16.mxu0 %v3458
      %6619 = vmatmul.mubr.bf16.gmra.mxu0 %v3697
      %v6620 = vpop.f32.mrf.mxu0
      %v6621 = vadd.f32 %v6460, %v6620
      %v6622 = vpop.f32.mrf.mxu0
      %v6623 = vpop.f32.mrf.mxu0
      %v6624 = vadd.f32 %v6463, %v6623
      %v6625 = vpop.f32.mrf.mxu0
      %6626 = vmatprep.mubr.bf16.mxu0 %v3459
      %6627 = vmatmul.mubr.bf16.gmra.mxu0 %v3698
      %v6628 = vpop.f32.mrf.mxu0
      %v6629 = vadd.f32 %v6468, %v6628
      %v6630 = vpop.f32.mrf.mxu0
      %v6631 = vpop.f32.mrf.mxu0
      %v6632 = vadd.f32 %v6471, %v6631
      %v6633 = vpop.f32.mrf.mxu0
      %6634 = vmatprep.mubr.bf16.mxu0 %v3460
      %6635 = vmatmul.mubr.bf16.gmra.mxu0 %v3699
      %v6636 = vpop.f32.mrf.mxu0
      %v6637 = vadd.f32 %v6476, %v6636
      %v6638 = vpop.f32.mrf.mxu0
      %v6639 = vpop.f32.mrf.mxu0
      %v6640 = vadd.f32 %v6479, %v6639
      %v6641 = vpop.f32.mrf.mxu0
      %6642 = vmatprep.mubr.bf16.mxu0 %v3461
      %6643 = vmatmul.mubr.bf16.gmra.mxu0 %v3700
      %v6644 = vpop.f32.mrf.mxu0
      %v6645 = vadd.f32 %v6484, %v6644
      %v6646 = vpop.f32.mrf.mxu0
      %v6647 = vpop.f32.mrf.mxu0
      %v6648 = vadd.f32 %v6487, %v6647
      %v6649 = vpop.f32.mrf.mxu0
      %6650 = vmatprep.mubr.bf16.mxu0 %v3462
      %6651 = vmatmul.mubr.bf16.gmra.mxu0 %v3701
      %v6652 = vpop.f32.mrf.mxu0
      %v6653 = vadd.f32 %v6492, %v6652
      %v6654 = vpop.f32.mrf.mxu0
      %v6655 = vpop.f32.mrf.mxu0
      %v6656 = vadd.f32 %v6495, %v6655
      %v6657 = vpop.f32.mrf.mxu0
      %6658 = vmatprep.mubr.bf16.mxu0 %v3463
      %6659 = vmatmul.mubr.bf16.gmra.mxu0 %v3702
      %v6660 = vpop.f32.mrf.mxu0
      %v6661 = vadd.f32 %v6500, %v6660
      %v6662 = vpop.f32.mrf.mxu0
      %v6663 = vpop.f32.mrf.mxu0
      %v6664 = vadd.f32 %v6503, %v6663
      %v6665 = vpop.f32.mrf.mxu0
      %6666 = vmatprep.mubr.bf16.mxu0 %v3464
      %6667 = vmatmul.mubr.bf16.gmra.mxu0 %v3703
      %v6668 = vpop.f32.mrf.mxu0
      %v6669 = vadd.f32 %v6508, %v6668
      %v6670 = vpop.f32.mrf.mxu0
      %v6671 = vpop.f32.mrf.mxu0
      %v6672 = vadd.f32 %v6511, %v6671
      %v6673 = vpop.f32.mrf.mxu0
      %6674 = vmatprep.mubr.bf16.mxu0 %v3465
      %6675 = vmatmul.mubr.bf16.gmra.mxu0 %v3704
      %v6676 = vpop.f32.mrf.mxu0
      %v6677 = vadd.f32 %v6516, %v6676
      %v6678 = vpop.f32.mrf.mxu0
      %v6679 = vpop.f32.mrf.mxu0
      %v6680 = vadd.f32 %v6519, %v6679
      %v6681 = vpop.f32.mrf.mxu0
      %6682 = vmatprep.mubr.bf16.mxu0 %v3466
      %6683 = vmatmul.mubr.bf16.gmra.mxu0 %v3705
      %v6684 = vpop.f32.mrf.mxu0
      %v6685 = vadd.f32 %v6524, %v6684
      %v6686 = vpop.f32.mrf.mxu0
      %v6687 = vpop.f32.mrf.mxu0
      %v6688 = vadd.f32 %v6527, %v6687
      %v6689 = vpop.f32.mrf.mxu0
      %6690 = vmatprep.mubr.bf16.mxu0 %v3467
      %6691 = vmatmul.mubr.bf16.gmra.mxu0 %v3706
      %v6692 = vpop.f32.mrf.mxu0
      %v6693 = vadd.f32 %v6532, %v6692
      %v6694 = vpop.f32.mrf.mxu0
      %v6695 = vpop.f32.mrf.mxu0
      %v6696 = vadd.f32 %v6535, %v6695
      %v6697 = vpop.f32.mrf.mxu0
      %6698 = vmatprep.mubr.bf16.mxu0 %v3468
      %6699 = vmatmul.mubr.bf16.gmra.mxu0 %v3707
      %v6700 = vpop.f32.mrf.mxu0
      %v6701 = vadd.f32 %v6540, %v6700
      %v6702 = vpop.f32.mrf.mxu0
      %v6703 = vpop.f32.mrf.mxu0
      %v6704 = vadd.f32 %v6543, %v6703
      %v6705 = vpop.f32.mrf.mxu0
      %6706 = vmatprep.mubr.bf16.mxu0 %v3469
      %6707 = vmatmul.mubr.bf16.gmra.mxu0 %v3708
      %v6708 = vpop.f32.mrf.mxu0
      %v6709 = vadd.f32 %v6548, %v6708
      %v6710 = vpop.f32.mrf.mxu0
      %v6711 = vpop.f32.mrf.mxu0
      %v6712 = vadd.f32 %v6551, %v6711
      %v6713 = vpop.f32.mrf.mxu0
      %6714 = vmatprep.mubr.bf16.mxu0 %v3470
      %6715 = vmatmul.mubr.bf16.gmra.mxu0 %v3709
      %v6716 = vpop.f32.mrf.mxu0
      %v6717 = vadd.f32 %v6556, %v6716
      %v6718 = vpop.f32.mrf.mxu0
      %v6719 = vpop.f32.mrf.mxu0
      %v6720 = vadd.f32 %v6559, %v6719
      %v6721 = vpop.f32.mrf.mxu0
      %6722 = vmatprep.mubr.bf16.mxu0 %v3471
      %6723 = vmatmul.mubr.bf16.gmra.mxu0 %v3710
      %v6724 = vpop.f32.mrf.mxu0
      %v6725 = vadd.f32 %v6564, %v6724
      %v6726 = vpop.f32.mrf.mxu0
      %v6727 = vpop.f32.mrf.mxu0
      %v6728 = vadd.f32 %v6567, %v6727
      %v6729 = vpop.f32.mrf.mxu0
      %6730 = vmatprep.mubr.bf16.mxu0 %v3472
      %6731 = vmatmul.mubr.bf16.gmra.mxu0 %v3711
      %v6732 = vpop.f32.mrf.mxu0
      %v6733 = vadd.f32 %v6572, %v6732
      %v6734 = vpop.f32.mrf.mxu0
      %v6735 = vpop.f32.mrf.mxu0
      %v6736 = vadd.f32 %v6575, %v6735
      %v6737 = vpop.f32.mrf.mxu0
      %6738 = vmatprep.mubr.bf16.mxu0 %v3723
      %6739 = vmatmul.mubr.bf16.gmra.mxu0 %v3712
      %v6740 = vpop.f32.mrf.mxu0
      %v6741 = vadd.f32 %v6580, %v6740
      %v6742 = vpop.f32.mrf.mxu0
      %v6743 = vpop.f32.mrf.mxu0
      %v6744 = vadd.f32 %v6583, %v6743
      %v6745 = vpop.f32.mrf.mxu0
      %6746 = vdwg.mxu0
      %6747 = vmatprep.subr.bf16.mxu0 0
      %6748 = vmatpush1.bf16.msra.mxu0 %v4053
      %6749 = vmatprep.subr.bf16.mxu0 0
      %6750 = vmatpush1.bf16.msra.mxu0 %v4052
      %6751 = vmatprep.subr.bf16.mxu0 0
      %6752 = vmatpush1.bf16.msra.mxu0 %v4051
      %6753 = vmatprep.subr.bf16.mxu0 0
      %6754 = vmatpush1.bf16.msra.mxu0 %v4050
      %6755 = vmatprep.subr.bf16.mxu0 0
      %6756 = vmatpush1.bf16.msra.mxu0 %v4049
      %6757 = vmatprep.subr.bf16.mxu0 0
      %6758 = vmatpush1.bf16.msra.mxu0 %v4048
      %6759 = vmatprep.subr.bf16.mxu0 0
      %6760 = vmatpush1.bf16.msra.mxu0 %v4047
      %6761 = vmatprep.subr.bf16.mxu0 0
      %6762 = vmatpush1.bf16.msra.mxu0 %v4046
      %6763 = vmatprep.subr.bf16.mxu0 0
      %6764 = vmatpush2.bf16.msra.mxu0 %v4061
      %6765 = vmatprep.subr.bf16.mxu0 0
      %6766 = vmatpush2.bf16.msra.mxu0 %v4060
      %6767 = vmatprep.subr.bf16.mxu0 0
      %6768 = vmatpush2.bf16.msra.mxu0 %v4059
      %6769 = vmatprep.subr.bf16.mxu0 0
      %6770 = vmatpush2.bf16.msra.mxu0 %v4058
      %6771 = vmatprep.subr.bf16.mxu0 0
      %6772 = vmatpush2.bf16.msra.mxu0 %v4057
      %6773 = vmatprep.subr.bf16.mxu0 0
      %6774 = vmatpush2.bf16.msra.mxu0 %v4056
      %6775 = vmatprep.subr.bf16.mxu0 0
      %6776 = vmatpush2.bf16.msra.mxu0 %v4055
      %6777 = vmatprep.subr.bf16.mxu0 0
      %6778 = vmatpush2.bf16.msra.mxu0 %v4054
      %6779 = vmatprep.mubr.bf16.mxu0 %v3490
      %6780 = vmatmul.mubr.bf16.gmra.mxu0 %v3474
      %v6781 = vpop.f32.mrf.mxu0
      %v6782 = vadd.f32 %v6621, %v6781
      %v6783 = vpop.f32.mrf.mxu0
      %v6784 = vpop.f32.mrf.mxu0
      %v6785 = vadd.f32 %v6624, %v6784
      %v6786 = vpop.f32.mrf.mxu0
      %6787 = vmatprep.mubr.bf16.mxu0 %v3491
      %6788 = vmatmul.mubr.bf16.gmra.mxu0 %v3475
      %v6789 = vpop.f32.mrf.mxu0
      %v6790 = vadd.f32 %v6629, %v6789
      %v6791 = vpop.f32.mrf.mxu0
      %v6792 = vpop.f32.mrf.mxu0
      %v6793 = vadd.f32 %v6632, %v6792
      %v6794 = vpop.f32.mrf.mxu0
      %6795 = vmatprep.mubr.bf16.mxu0 %v3492
      %6796 = vmatmul.mubr.bf16.gmra.mxu0 %v3476
      %v6797 = vpop.f32.mrf.mxu0
      %v6798 = vadd.f32 %v6637, %v6797
      %v6799 = vpop.f32.mrf.mxu0
      %v6800 = vpop.f32.mrf.mxu0
      %v6801 = vadd.f32 %v6640, %v6800
      %v6802 = vpop.f32.mrf.mxu0
      %6803 = vmatprep.mubr.bf16.mxu0 %v3493
      %6804 = vmatmul.mubr.bf16.gmra.mxu0 %v3477
      %v6805 = vpop.f32.mrf.mxu0
      %v6806 = vadd.f32 %v6645, %v6805
      %v6807 = vpop.f32.mrf.mxu0
      %v6808 = vpop.f32.mrf.mxu0
      %v6809 = vadd.f32 %v6648, %v6808
      %v6810 = vpop.f32.mrf.mxu0
      %6811 = vmatprep.mubr.bf16.mxu0 %v3494
      %6812 = vmatmul.mubr.bf16.gmra.mxu0 %v3478
      %v6813 = vpop.f32.mrf.mxu0
      %v6814 = vadd.f32 %v6653, %v6813
      %v6815 = vpop.f32.mrf.mxu0
      %v6816 = vpop.f32.mrf.mxu0
      %v6817 = vadd.f32 %v6656, %v6816
      %v6818 = vpop.f32.mrf.mxu0
      %6819 = vmatprep.mubr.bf16.mxu0 %v3495
      %6820 = vmatmul.mubr.bf16.gmra.mxu0 %v3479
      %v6821 = vpop.f32.mrf.mxu0
      %v6822 = vadd.f32 %v6661, %v6821
      %v6823 = vpop.f32.mrf.mxu0
      %v6824 = vpop.f32.mrf.mxu0
      %v6825 = vadd.f32 %v6664, %v6824
      %v6826 = vpop.f32.mrf.mxu0
      %6827 = vmatprep.mubr.bf16.mxu0 %v3496
      %6828 = vmatmul.mubr.bf16.gmra.mxu0 %v3480
      %v6829 = vpop.f32.mrf.mxu0
      %v6830 = vadd.f32 %v6669, %v6829
      %v6831 = vpop.f32.mrf.mxu0
      %v6832 = vpop.f32.mrf.mxu0
      %v6833 = vadd.f32 %v6672, %v6832
      %v6834 = vpop.f32.mrf.mxu0
      %6835 = vmatprep.mubr.bf16.mxu0 %v3497
      %6836 = vmatmul.mubr.bf16.gmra.mxu0 %v3481
      %v6837 = vpop.f32.mrf.mxu0
      %v6838 = vadd.f32 %v6677, %v6837
      %v6839 = vpop.f32.mrf.mxu0
      %v6840 = vpop.f32.mrf.mxu0
      %v6841 = vadd.f32 %v6680, %v6840
      %v6842 = vpop.f32.mrf.mxu0
      %6843 = vmatprep.mubr.bf16.mxu0 %v3498
      %6844 = vmatmul.mubr.bf16.gmra.mxu0 %v3482
      %v6845 = vpop.f32.mrf.mxu0
      %v6846 = vadd.f32 %v6685, %v6845
      %v6847 = vpop.f32.mrf.mxu0
      %v6848 = vpop.f32.mrf.mxu0
      %v6849 = vadd.f32 %v6688, %v6848
      %v6850 = vpop.f32.mrf.mxu0
      %6851 = vmatprep.mubr.bf16.mxu0 %v3499
      %6852 = vmatmul.mubr.bf16.gmra.mxu0 %v3483
      %v6853 = vpop.f32.mrf.mxu0
      %v6854 = vadd.f32 %v6693, %v6853
      %v6855 = vpop.f32.mrf.mxu0
      %v6856 = vpop.f32.mrf.mxu0
      %v6857 = vadd.f32 %v6696, %v6856
      %v6858 = vpop.f32.mrf.mxu0
      %6859 = vmatprep.mubr.bf16.mxu0 %v3500
      %6860 = vmatmul.mubr.bf16.gmra.mxu0 %v3484
      %v6861 = vpop.f32.mrf.mxu0
      %v6862 = vadd.f32 %v6701, %v6861
      %v6863 = vpop.f32.mrf.mxu0
      %v6864 = vpop.f32.mrf.mxu0
      %v6865 = vadd.f32 %v6704, %v6864
      %v6866 = vpop.f32.mrf.mxu0
      %6867 = vmatprep.mubr.bf16.mxu0 %v3501
      %6868 = vmatmul.mubr.bf16.gmra.mxu0 %v3485
      %v6869 = vpop.f32.mrf.mxu0
      %v6870 = vadd.f32 %v6709, %v6869
      %v6871 = vpop.f32.mrf.mxu0
      %v6872 = vpop.f32.mrf.mxu0
      %v6873 = vadd.f32 %v6712, %v6872
      %v6874 = vpop.f32.mrf.mxu0
      %6875 = vmatprep.mubr.bf16.mxu0 %v3502
      %6876 = vmatmul.mubr.bf16.gmra.mxu0 %v3486
      %v6877 = vpop.f32.mrf.mxu0
      %v6878 = vadd.f32 %v6717, %v6877
      %v6879 = vpop.f32.mrf.mxu0
      %v6880 = vpop.f32.mrf.mxu0
      %v6881 = vadd.f32 %v6720, %v6880
      %v6882 = vpop.f32.mrf.mxu0
      %6883 = vmatprep.mubr.bf16.mxu0 %v3503
      %6884 = vmatmul.mubr.bf16.gmra.mxu0 %v3487
      %v6885 = vpop.f32.mrf.mxu0
      %v6886 = vadd.f32 %v6725, %v6885
      %v6887 = vpop.f32.mrf.mxu0
      %v6888 = vpop.f32.mrf.mxu0
      %v6889 = vadd.f32 %v6728, %v6888
      %v6890 = vpop.f32.mrf.mxu0
      %6891 = vmatprep.mubr.bf16.mxu0 %v3504
      %6892 = vmatmul.mubr.bf16.gmra.mxu0 %v3488
      %v6893 = vpop.f32.mrf.mxu0
      %v6894 = vadd.f32 %v6733, %v6893
      %v6895 = vpop.f32.mrf.mxu0
      %v6896 = vpop.f32.mrf.mxu0
      %v6897 = vadd.f32 %v6736, %v6896
      %v6898 = vpop.f32.mrf.mxu0
      %6899 = vmatprep.mubr.bf16.mxu0 %v3725
      %6900 = vmatmul.mubr.bf16.gmra.mxu0 %v3724
      %v6901 = vpop.f32.mrf.mxu0
      %v6902 = vadd.f32 %v6741, %v6901
      %v6903 = vpop.f32.mrf.mxu0
      %v6904 = vpop.f32.mrf.mxu0
      %v6905 = vadd.f32 %v6744, %v6904
      %v6906 = vpop.f32.mrf.mxu0
      %6907 = vdwg.mxu0
      %6908 = vmatprep.subr.bf16.mxu0 0
      %6909 = vmatpush1.bf16.msra.mxu0 %v4069
      %6910 = vmatprep.subr.bf16.mxu0 0
      %6911 = vmatpush1.bf16.msra.mxu0 %v4068
      %6912 = vmatprep.subr.bf16.mxu0 0
      %6913 = vmatpush1.bf16.msra.mxu0 %v4067
      %6914 = vmatprep.subr.bf16.mxu0 0
      %6915 = vmatpush1.bf16.msra.mxu0 %v4066
      %6916 = vmatprep.subr.bf16.mxu0 0
      %6917 = vmatpush1.bf16.msra.mxu0 %v4065
      %6918 = vmatprep.subr.bf16.mxu0 0
      %6919 = vmatpush1.bf16.msra.mxu0 %v4064
      %6920 = vmatprep.subr.bf16.mxu0 0
      %6921 = vmatpush1.bf16.msra.mxu0 %v4063
      %6922 = vmatprep.subr.bf16.mxu0 0
      %6923 = vmatpush1.bf16.msra.mxu0 %v4062
      %6924 = vmatprep.subr.bf16.mxu0 0
      %6925 = vmatpush2.bf16.msra.mxu0 %v4077
      %6926 = vmatprep.subr.bf16.mxu0 0
      %6927 = vmatpush2.bf16.msra.mxu0 %v4076
      %6928 = vmatprep.subr.bf16.mxu0 0
      %6929 = vmatpush2.bf16.msra.mxu0 %v4075
      %6930 = vmatprep.subr.bf16.mxu0 0
      %6931 = vmatpush2.bf16.msra.mxu0 %v4074
      %6932 = vmatprep.subr.bf16.mxu0 0
      %6933 = vmatpush2.bf16.msra.mxu0 %v4073
      %6934 = vmatprep.subr.bf16.mxu0 0
      %6935 = vmatpush2.bf16.msra.mxu0 %v4072
      %6936 = vmatprep.subr.bf16.mxu0 0
      %6937 = vmatpush2.bf16.msra.mxu0 %v4071
      %6938 = vmatprep.subr.bf16.mxu0 0
      %6939 = vmatpush2.bf16.msra.mxu0 %v4070
      %6940 = vmatprep.mubr.bf16.mxu0 %v3682
      %6941 = vmatmul.mubr.bf16.gmra.mxu0 %v3666
      %v6942 = vpop.f32.mrf.mxu0
      %v6943 = vadd.f32 %v6782, %v6942
      %v6944 = vpop.f32.mrf.mxu0
      %v6945 = vpop.f32.mrf.mxu0
      %v6946 = vadd.f32 %v6785, %v6945
      %v6947 = vpop.f32.mrf.mxu0
      %6948 = vmatprep.mubr.bf16.mxu0 %v3683
      %6949 = vmatmul.mubr.bf16.gmra.mxu0 %v3667
      %v6950 = vpop.f32.mrf.mxu0
      %v6951 = vadd.f32 %v6790, %v6950
      %v6952 = vpop.f32.mrf.mxu0
      %v6953 = vpop.f32.mrf.mxu0
      %v6954 = vadd.f32 %v6793, %v6953
      %v6955 = vpop.f32.mrf.mxu0
      %6956 = vmatprep.mubr.bf16.mxu0 %v3684
      %6957 = vmatmul.mubr.bf16.gmra.mxu0 %v3668
      %v6958 = vpop.f32.mrf.mxu0
      %v6959 = vadd.f32 %v6798, %v6958
      %v6960 = vpop.f32.mrf.mxu0
      %v6961 = vpop.f32.mrf.mxu0
      %v6962 = vadd.f32 %v6801, %v6961
      %v6963 = vpop.f32.mrf.mxu0
      %6964 = vmatprep.mubr.bf16.mxu0 %v3685
      %6965 = vmatmul.mubr.bf16.gmra.mxu0 %v3669
      %v6966 = vpop.f32.mrf.mxu0
      %v6967 = vadd.f32 %v6806, %v6966
      %v6968 = vpop.f32.mrf.mxu0
      %v6969 = vpop.f32.mrf.mxu0
      %v6970 = vadd.f32 %v6809, %v6969
      %v6971 = vpop.f32.mrf.mxu0
      %6972 = vmatprep.mubr.bf16.mxu0 %v3686
      %6973 = vmatmul.mubr.bf16.gmra.mxu0 %v3670
      %v6974 = vpop.f32.mrf.mxu0
      %v6975 = vadd.f32 %v6814, %v6974
      %v6976 = vpop.f32.mrf.mxu0
      %v6977 = vpop.f32.mrf.mxu0
      %v6978 = vadd.f32 %v6817, %v6977
      %v6979 = vpop.f32.mrf.mxu0
      %6980 = vmatprep.mubr.bf16.mxu0 %v3687
      %6981 = vmatmul.mubr.bf16.gmra.mxu0 %v3671
      %v6982 = vpop.f32.mrf.mxu0
      %v6983 = vadd.f32 %v6822, %v6982
      %v6984 = vpop.f32.mrf.mxu0
      %v6985 = vpop.f32.mrf.mxu0
      %v6986 = vadd.f32 %v6825, %v6985
      %v6987 = vpop.f32.mrf.mxu0
      %6988 = vmatprep.mubr.bf16.mxu0 %v3688
      %6989 = vmatmul.mubr.bf16.gmra.mxu0 %v3672
      %v6990 = vpop.f32.mrf.mxu0
      %v6991 = vadd.f32 %v6830, %v6990
      %v6992 = vpop.f32.mrf.mxu0
      %v6993 = vpop.f32.mrf.mxu0
      %v6994 = vadd.f32 %v6833, %v6993
      %v6995 = vpop.f32.mrf.mxu0
      %6996 = vmatprep.mubr.bf16.mxu0 %v3689
      %6997 = vmatmul.mubr.bf16.gmra.mxu0 %v3673
      %v6998 = vpop.f32.mrf.mxu0
      %v6999 = vadd.f32 %v6838, %v6998
      %v7000 = vpop.f32.mrf.mxu0
      %v7001 = vpop.f32.mrf.mxu0
      %v7002 = vadd.f32 %v6841, %v7001
      %v7003 = vpop.f32.mrf.mxu0
      %7004 = vmatprep.mubr.bf16.mxu0 %v3690
      %7005 = vmatmul.mubr.bf16.gmra.mxu0 %v3674
      %v7006 = vpop.f32.mrf.mxu0
      %v7007 = vadd.f32 %v6846, %v7006
      %v7008 = vpop.f32.mrf.mxu0
      %v7009 = vpop.f32.mrf.mxu0
      %v7010 = vadd.f32 %v6849, %v7009
      %v7011 = vpop.f32.mrf.mxu0
      %7012 = vmatprep.mubr.bf16.mxu0 %v3691
      %7013 = vmatmul.mubr.bf16.gmra.mxu0 %v3675
      %v7014 = vpop.f32.mrf.mxu0
      %v7015 = vadd.f32 %v6854, %v7014
      %v7016 = vpop.f32.mrf.mxu0
      %v7017 = vpop.f32.mrf.mxu0
      %v7018 = vadd.f32 %v6857, %v7017
      %v7019 = vpop.f32.mrf.mxu0
      %7020 = vmatprep.mubr.bf16.mxu0 %v3692
      %7021 = vmatmul.mubr.bf16.gmra.mxu0 %v3676
      %v7022 = vpop.f32.mrf.mxu0
      %v7023 = vadd.f32 %v6862, %v7022
      %v7024 = vpop.f32.mrf.mxu0
      %v7025 = vpop.f32.mrf.mxu0
      %v7026 = vadd.f32 %v6865, %v7025
      %v7027 = vpop.f32.mrf.mxu0
      %7028 = vmatprep.mubr.bf16.mxu0 %v3693
      %7029 = vmatmul.mubr.bf16.gmra.mxu0 %v3677
      %v7030 = vpop.f32.mrf.mxu0
      %v7031 = vadd.f32 %v6870, %v7030
      %v7032 = vpop.f32.mrf.mxu0
      %v7033 = vpop.f32.mrf.mxu0
      %v7034 = vadd.f32 %v6873, %v7033
      %v7035 = vpop.f32.mrf.mxu0
      %7036 = vmatprep.mubr.bf16.mxu0 %v3694
      %7037 = vmatmul.mubr.bf16.gmra.mxu0 %v3678
      %v7038 = vpop.f32.mrf.mxu0
      %v7039 = vadd.f32 %v6878, %v7038
      %v7040 = vpop.f32.mrf.mxu0
      %v7041 = vpop.f32.mrf.mxu0
      %v7042 = vadd.f32 %v6881, %v7041
      %v7043 = vpop.f32.mrf.mxu0
      %7044 = vmatprep.mubr.bf16.mxu0 %v3695
      %7045 = vmatmul.mubr.bf16.gmra.mxu0 %v3679
      %v7046 = vpop.f32.mrf.mxu0
      %v7047 = vadd.f32 %v6886, %v7046
      %v7048 = vpop.f32.mrf.mxu0
      %v7049 = vpop.f32.mrf.mxu0
      %v7050 = vadd.f32 %v6889, %v7049
      %v7051 = vpop.f32.mrf.mxu0
      %7052 = vmatprep.mubr.bf16.mxu0 %v3696
      %7053 = vmatmul.mubr.bf16.gmra.mxu0 %v3680
      %v7054 = vpop.f32.mrf.mxu0
      %v7055 = vadd.f32 %v6894, %v7054
      %v7056 = vpop.f32.mrf.mxu0
      %v7057 = vpop.f32.mrf.mxu0
      %v7058 = vadd.f32 %v6897, %v7057
      %v7059 = vpop.f32.mrf.mxu0
      %7060 = vmatprep.mubr.bf16.mxu0 %v6423
      %7061 = vmatmul.mubr.bf16.gmra.mxu0 %v6422
      %v7062 = vpop.f32.mrf.mxu0
      %v7063 = vadd.f32 %v6902, %v7062
      %v7064 = vpop.f32.mrf.mxu0
      %v7065 = vpop.f32.mrf.mxu0
      %v7066 = vadd.f32 %v6905, %v7065
      %v7067 = vpop.f32.mrf.mxu0
      %7068 = vdwg.mxu0
      %7069 = vmatprep.subr.bf16.mxu0 0
      %7070 = vmatpush1.bf16.msra.mxu0 %v4085
      %7071 = vmatprep.subr.bf16.mxu0 0
      %7072 = vmatpush1.bf16.msra.mxu0 %v4084
      %7073 = vmatprep.subr.bf16.mxu0 0
      %7074 = vmatpush1.bf16.msra.mxu0 %v4083
      %7075 = vmatprep.subr.bf16.mxu0 0
      %7076 = vmatpush1.bf16.msra.mxu0 %v4082
      %7077 = vmatprep.subr.bf16.mxu0 0
      %7078 = vmatpush1.bf16.msra.mxu0 %v4081
      %7079 = vmatprep.subr.bf16.mxu0 0
      %7080 = vmatpush1.bf16.msra.mxu0 %v4080
      %7081 = vmatprep.subr.bf16.mxu0 0
      %7082 = vmatpush1.bf16.msra.mxu0 %v4079
      %7083 = vmatprep.subr.bf16.mxu0 0
      %7084 = vmatpush1.bf16.msra.mxu0 %v4078
      %7085 = vmatprep.subr.bf16.mxu0 0
      %7086 = vmatpush2.bf16.msra.mxu0 0
      %7087 = vmatprep.subr.bf16.mxu0 0
      %7088 = vmatpush2.bf16.msra.mxu0 0
      %7089 = vmatprep.subr.bf16.mxu0 0
      %7090 = vmatpush2.bf16.msra.mxu0 0
      %7091 = vmatprep.subr.bf16.mxu0 0
      %7092 = vmatpush2.bf16.msra.mxu0 0
      %7093 = vmatprep.subr.bf16.mxu0 0
      %7094 = vmatpush2.bf16.msra.mxu0 0
      %7095 = vmatprep.subr.bf16.mxu0 0
      %7096 = vmatpush2.bf16.msra.mxu0 0
      %7097 = vmatprep.subr.bf16.mxu0 0
      %7098 = vmatpush2.bf16.msra.mxu0 0
      %7099 = vmatprep.subr.bf16.mxu0 0
      %7100 = vmatpush2.bf16.msra.mxu0 0
      %7101 = vmatprep.mubr.bf16.mxu0 0
      %7102 = vmatmul.mubr.bf16.gmra.mxu0 %v3698
      %v7103 = vpop.f32.mrf.mxu0
      %v7104 = vadd.f32 %v6943, %v7103
      %v7105 = vpop.f32.mrf.mxu0
      %v7106 = vpop.f32.mrf.mxu0
      %v7107 = vadd.f32 %v6946, %v7106
      %v7108 = vpop.f32.mrf.mxu0
      %7109 = vmatprep.mubr.bf16.mxu0 0
      %7110 = vmatmul.mubr.bf16.gmra.mxu0 %v3699
      %v7111 = vpop.f32.mrf.mxu0
      %v7112 = vadd.f32 %v6951, %v7111
      %v7113 = vpop.f32.mrf.mxu0
      %v7114 = vpop.f32.mrf.mxu0
      %v7115 = vadd.f32 %v6954, %v7114
      %v7116 = vpop.f32.mrf.mxu0
      %7117 = vmatprep.mubr.bf16.mxu0 0
      %7118 = vmatmul.mubr.bf16.gmra.mxu0 %v3700
      %v7119 = vpop.f32.mrf.mxu0
      %v7120 = vadd.f32 %v6959, %v7119
      %v7121 = vpop.f32.mrf.mxu0
      %v7122 = vpop.f32.mrf.mxu0
      %v7123 = vadd.f32 %v6962, %v7122
      %v7124 = vpop.f32.mrf.mxu0
      %7125 = vmatprep.mubr.bf16.mxu0 0
      %7126 = vmatmul.mubr.bf16.gmra.mxu0 %v3701
      %v7127 = vpop.f32.mrf.mxu0
      %v7128 = vadd.f32 %v6967, %v7127
      %v7129 = vpop.f32.mrf.mxu0
      %v7130 = vpop.f32.mrf.mxu0
      %v7131 = vadd.f32 %v6970, %v7130
      %v7132 = vpop.f32.mrf.mxu0
      %7133 = vmatprep.mubr.bf16.mxu0 0
      %7134 = vmatmul.mubr.bf16.gmra.mxu0 %v3702
      %v7135 = vpop.f32.mrf.mxu0
      %v7136 = vadd.f32 %v6975, %v7135
      %v7137 = vpop.f32.mrf.mxu0
      %v7138 = vpop.f32.mrf.mxu0
      %v7139 = vadd.f32 %v6978, %v7138
      %v7140 = vpop.f32.mrf.mxu0
      %7141 = vmatprep.mubr.bf16.mxu0 0
      %7142 = vmatmul.mubr.bf16.gmra.mxu0 %v3703
      %v7143 = vpop.f32.mrf.mxu0
      %v7144 = vadd.f32 %v6983, %v7143
      %v7145 = vpop.f32.mrf.mxu0
      %v7146 = vpop.f32.mrf.mxu0
      %v7147 = vadd.f32 %v6986, %v7146
      %v7148 = vpop.f32.mrf.mxu0
      %7149 = vmatprep.mubr.bf16.mxu0 0
      %7150 = vmatmul.mubr.bf16.gmra.mxu0 %v3704
      %v7151 = vpop.f32.mrf.mxu0
      %v7152 = vadd.f32 %v6991, %v7151
      %v7153 = vpop.f32.mrf.mxu0
      %v7154 = vpop.f32.mrf.mxu0
      %v7155 = vadd.f32 %v6994, %v7154
      %v7156 = vpop.f32.mrf.mxu0
      %7157 = vmatprep.mubr.bf16.mxu0 0
      %7158 = vmatmul.mubr.bf16.gmra.mxu0 %v3705
      %v7159 = vpop.f32.mrf.mxu0
      %v7160 = vadd.f32 %v6999, %v7159
      %v7161 = vpop.f32.mrf.mxu0
      %v7162 = vpop.f32.mrf.mxu0
      %v7163 = vadd.f32 %v7002, %v7162
      %v7164 = vpop.f32.mrf.mxu0
      %7165 = vmatprep.mubr.bf16.mxu0 0
      %7166 = vmatmul.mubr.bf16.gmra.mxu0 %v3706
      %v7167 = vpop.f32.mrf.mxu0
      %v7168 = vadd.f32 %v7007, %v7167
      %v7169 = vpop.f32.mrf.mxu0
      %v7170 = vpop.f32.mrf.mxu0
      %v7171 = vadd.f32 %v7010, %v7170
      %v7172 = vpop.f32.mrf.mxu0
      %7173 = vmatprep.mubr.bf16.mxu0 0
      %7174 = vmatmul.mubr.bf16.gmra.mxu0 %v3707
      %v7175 = vpop.f32.mrf.mxu0
      %v7176 = vadd.f32 %v7015, %v7175
      %v7177 = vpop.f32.mrf.mxu0
      %v7178 = vpop.f32.mrf.mxu0
      %v7179 = vadd.f32 %v7018, %v7178
      %v7180 = vpop.f32.mrf.mxu0
      %7181 = vmatprep.mubr.bf16.mxu0 0
      %7182 = vmatmul.mubr.bf16.gmra.mxu0 %v3708
      %v7183 = vpop.f32.mrf.mxu0
      %v7184 = vadd.f32 %v7023, %v7183
      %v7185 = vpop.f32.mrf.mxu0
      %v7186 = vpop.f32.mrf.mxu0
      %v7187 = vadd.f32 %v7026, %v7186
      %v7188 = vpop.f32.mrf.mxu0
      %7189 = vmatprep.mubr.bf16.mxu0 0
      %7190 = vmatmul.mubr.bf16.gmra.mxu0 %v3709
      %v7191 = vpop.f32.mrf.mxu0
      %v7192 = vadd.f32 %v7031, %v7191
      %v7193 = vpop.f32.mrf.mxu0
      %v7194 = vpop.f32.mrf.mxu0
      %v7195 = vadd.f32 %v7034, %v7194
      %v7196 = vpop.f32.mrf.mxu0
      %7197 = vmatprep.mubr.bf16.mxu0 0
      %7198 = vmatmul.mubr.bf16.gmra.mxu0 %v3710
      %v7199 = vpop.f32.mrf.mxu0
      %v7200 = vadd.f32 %v7039, %v7199
      %v7201 = vpop.f32.mrf.mxu0
      %v7202 = vpop.f32.mrf.mxu0
      %v7203 = vadd.f32 %v7042, %v7202
      %v7204 = vpop.f32.mrf.mxu0
      %7205 = vmatprep.mubr.bf16.mxu0 0
      %7206 = vmatmul.mubr.bf16.gmra.mxu0 %v3711
      %v7207 = vpop.f32.mrf.mxu0
      %v7208 = vadd.f32 %v7047, %v7207
      %v7209 = vpop.f32.mrf.mxu0
      %v7210 = vpop.f32.mrf.mxu0
      %v7211 = vadd.f32 %v7050, %v7210
      %v7212 = vpop.f32.mrf.mxu0
      %7213 = vmatprep.mubr.bf16.mxu0 0
      %7214 = vmatmul.mubr.bf16.gmra.mxu0 %v3712
      %v7215 = vpop.f32.mrf.mxu0
      %v7216 = vadd.f32 %v7055, %v7215
      %v7217 = vpop.f32.mrf.mxu0
      %v7218 = vpop.f32.mrf.mxu0
      %v7219 = vadd.f32 %v7058, %v7218
      %v7220 = vpop.f32.mrf.mxu0
      %7221 = vmatprep.mubr.bf16.mxu0 0
      %7222 = vmatmul.mubr.bf16.gmra.mxu0 %v6424
      %v7223 = vpop.f32.mrf.mxu0
      %v7224 = vadd.f32 %v7063, %v7223
      %v7225 = vpop.f32.mrf.mxu0
      %v7226 = vpop.f32.mrf.mxu0
      %v7227 = vadd.f32 %v7066, %v7226
      %v7228 = vpop.f32.mrf.mxu0
      %7229 = vdwg.mxu0
      %v7230 = vadd.f32 %v7104, %v7107
      %v7231 = vadd.f32 %v7230, %v7112
      %v7232 = vadd.f32 %v7231, %v7115
      %v7233 = vadd.f32 %v7232, %v7120
      %v7234 = vadd.f32 %v7233, %v7123
      %v7235 = vadd.f32 %v7234, %v7128
      %v7236 = vadd.f32 %v7235, %v7131
      %v7237 = vadd.f32 %v7236, %v7136
      %v7238 = vadd.f32 %v7237, %v7139
      %v7239 = vadd.f32 %v7238, %v7144
      %v7240 = vadd.f32 %v7239, %v7147
      %v7241 = vadd.f32 %v7240, %v7152
      %v7242 = vadd.f32 %v7241, %v7155
      %v7243 = vadd.f32 %v7242, %v7160
      %v7244 = vadd.f32 %v7243, %v7163
      %v7245 = vadd.f32 %v7244, %v7168
      %v7246 = vadd.f32 %v7245, %v7171
      %v7247 = vadd.f32 %v7246, %v7176
      %v7248 = vadd.f32 %v7247, %v7179
      %v7249 = vadd.f32 %v7248, %v7184
      %v7250 = vadd.f32 %v7249, %v7187
      %v7251 = vadd.f32 %v7250, %v7192
      %v7252 = vadd.f32 %v7251, %v7195
      %v7253 = vadd.f32 %v7252, %v7200
      %v7254 = vadd.f32 %v7253, %v7203
      %v7255 = vadd.f32 %v7254, %v7208
      %v7256 = vadd.f32 %v7255, %v7211
      %v7257 = vadd.f32 %v7256, %v7216
      %v7258 = vadd.f32 %v7257, %v7219
      %v7259 = vadd.f32 %v7258, %v7224
      %v7260 = vadd.f32 %v7259, %v7227
      %v7261 = vrot.slane %v7260, 4
      %v7262 = vadd.f32 %v7260, %v7261
      %v7263 = vrot.slane %v7262, 2
      %v7264 = vadd.f32 %v7262, %v7263
      %v7265 = vrot.slane %v7264, 1
      %v7266 = vadd.f32 %v7264, %v7265
      %v7267 = vadd.f32 %v6308, %v7266
      %v7268 = vmul.f32 %v7104, %v7104
      %v7269 = vmul.f32 %v7107, %v7107
      %v7270 = vmul.f32 %v7112, %v7112
      %v7271 = vmul.f32 %v7115, %v7115
      %v7272 = vmul.f32 %v7120, %v7120
      %v7273 = vmul.f32 %v7123, %v7123
      %v7274 = vmul.f32 %v7128, %v7128
      %v7275 = vmul.f32 %v7131, %v7131
      %v7276 = vmul.f32 %v7136, %v7136
      %v7277 = vmul.f32 %v7139, %v7139
      %v7278 = vmul.f32 %v7144, %v7144
      %v7279 = vmul.f32 %v7147, %v7147
      %v7280 = vmul.f32 %v7152, %v7152
      %v7281 = vmul.f32 %v7155, %v7155
      %v7282 = vmul.f32 %v7160, %v7160
      %v7283 = vmul.f32 %v7163, %v7163
      %v7284 = vmul.f32 %v7168, %v7168
      %v7285 = vmul.f32 %v7171, %v7171
      %v7286 = vmul.f32 %v7176, %v7176
      %v7287 = vmul.f32 %v7179, %v7179
      %v7288 = vmul.f32 %v7184, %v7184
      %v7289 = vmul.f32 %v7187, %v7187
      %v7290 = vmul.f32 %v7192, %v7192
      %v7291 = vmul.f32 %v7195, %v7195
      %v7292 = vmul.f32 %v7200, %v7200
      %v7293 = vmul.f32 %v7203, %v7203
      %v7294 = vmul.f32 %v7208, %v7208
      %v7295 = vmul.f32 %v7211, %v7211
      %v7296 = vmul.f32 %v7216, %v7216
      %v7297 = vmul.f32 %v7219, %v7219
      %v7298 = vmul.f32 %v7224, %v7224
      %v7299 = vmul.f32 %v7227, %v7227
      %v7300 = vadd.f32 %v7268, %v7269
      %v7301 = vadd.f32 %v7300, %v7270
      %v7302 = vadd.f32 %v7301, %v7271
      %v7303 = vadd.f32 %v7302, %v7272
      %v7304 = vadd.f32 %v7303, %v7273
      %v7305 = vadd.f32 %v7304, %v7274
      %v7306 = vadd.f32 %v7305, %v7275
      %v7307 = vadd.f32 %v7306, %v7276
      %v7308 = vadd.f32 %v7307, %v7277
      %v7309 = vadd.f32 %v7308, %v7278
      %v7310 = vadd.f32 %v7309, %v7279
      %v7311 = vadd.f32 %v7310, %v7280
      %v7312 = vadd.f32 %v7311, %v7281
      %v7313 = vadd.f32 %v7312, %v7282
      %v7314 = vadd.f32 %v7313, %v7283
      %v7315 = vadd.f32 %v7314, %v7284
      %v7316 = vadd.f32 %v7315, %v7285
      %v7317 = vadd.f32 %v7316, %v7286
      %v7318 = vadd.f32 %v7317, %v7287
      %v7319 = vadd.f32 %v7318, %v7288
      %v7320 = vadd.f32 %v7319, %v7289
      %v7321 = vadd.f32 %v7320, %v7290
      %v7322 = vadd.f32 %v7321, %v7291
      %v7323 = vadd.f32 %v7322, %v7292
      %v7324 = vadd.f32 %v7323, %v7293
      %v7325 = vadd.f32 %v7324, %v7294
      %v7326 = vadd.f32 %v7325, %v7295
      %v7327 = vadd.f32 %v7326, %v7296
      %v7328 = vadd.f32 %v7327, %v7297
      %v7329 = vadd.f32 %v7328, %v7298
      %v7330 = vadd.f32 %v7329, %v7299
      %v7331 = vrot.slane %v7330, 4
      %v7332 = vadd.f32 %v7330, %v7331
      %v7333 = vrot.slane %v7332, 2
      %v7334 = vadd.f32 %v7332, %v7333
      %v7335 = vrot.slane %v7334, 1
      %v7336 = vadd.f32 %v7334, %v7335
      %v7337 = vadd.f32 %v6378, %v7336
      %s7338 = scalar_lea.vmem [#allocation3], 512
      %7339 = vst [vmem:[%s7338] sm:$0xff] %v7104
      %7340 = vst [vmem:[%s7338 + $0x8] sm:$0xff] %v7107
      %7341 = vst [vmem:[%s7338 + $0x10] sm:$0xff] %v7112
      %7342 = vst [vmem:[%s7338 + $0x18] sm:$0xff] %v7115
      %7343 = vst [vmem:[%s7338 + $0x20] sm:$0xff] %v7120
      %7344 = vst [vmem:[%s7338 + $0x28] sm:$0xff] %v7123
      %7345 = vst [vmem:[%s7338 + $0x30] sm:$0xff] %v7128
      %7346 = vst [vmem:[%s7338 + $0x38] sm:$0xff] %v7131
      %7347 = vst [vmem:[%s7338 + $0x40] sm:$0xff] %v7136
      %7348 = vst [vmem:[%s7338 + $0x48] sm:$0xff] %v7139
      %7349 = vst [vmem:[%s7338 + $0x50] sm:$0xff] %v7144
      %7350 = vst [vmem:[%s7338 + $0x58] sm:$0xff] %v7147
      %7351 = vst [vmem:[%s7338 + $0x60] sm:$0xff] %v7152
      %7352 = vst [vmem:[%s7338 + $0x68] sm:$0xff] %v7155
      %7353 = vst [vmem:[%s7338 + $0x70] sm:$0xff] %v7160
      %7354 = vst [vmem:[%s7338 + $0x78] sm:$0xff] %v7163
      %7355 = vst [vmem:[%s7338 + $0x80] sm:$0xff] %v7168
      %7356 = vst [vmem:[%s7338 + $0x88] sm:$0xff] %v7171
      %7357 = vst [vmem:[%s7338 + $0x90] sm:$0xff] %v7176
      %7358 = vst [vmem:[%s7338 + $0x98] sm:$0xff] %v7179
      %7359 = vst [vmem:[%s7338 + $0xa0] sm:$0xff] %v7184
      %7360 = vst [vmem:[%s7338 + $0xa8] sm:$0xff] %v7187
      %7361 = vst [vmem:[%s7338 + $0xb0] sm:$0xff] %v7192
      %7362 = vst [vmem:[%s7338 + $0xb8] sm:$0xff] %v7195
      %7363 = vst [vmem:[%s7338 + $0xc0] sm:$0xff] %v7200
      %7364 = vst [vmem:[%s7338 + $0xc8] sm:$0xff] %v7203
      %7365 = vst [vmem:[%s7338 + $0xd0] sm:$0xff] %v7208
      %7366 = vst [vmem:[%s7338 + $0xd8] sm:$0xff] %v7211
      %7367 = vst [vmem:[%s7338 + $0xe0] sm:$0xff] %v7216
      %7368 = vst [vmem:[%s7338 + $0xe8] sm:$0xff] %v7219
      %7369 = vst [vmem:[%s7338 + $0xf0] sm:$0xff] %v7224
      %7370 = vst [vmem:[%s7338 + $0xf8] sm:$0xff] %v7227
      %v7374 = vrot.slane %v3137, 1
      %v7375 = vrot.slane %v3138, 1
      %v7376 = vsel %vm575, %v7374, %v7375
      %v7377 = vrot.slane %v3139, 1
      %v7378 = vsel %vm575, %v7375, %v7377
      %v7381 = vpack.c.bf16 %v7378, %v7376
      %7382 = vmatprep.subr.bf16.mxu0 0
      %7383 = vmatpush1.bf16.msra.mxu0 %v4021
      %7384 = vmatprep.subr.bf16.mxu0 0
      %7385 = vmatpush1.bf16.msra.mxu0 %v4020
      %7386 = vmatprep.subr.bf16.mxu0 0
      %7387 = vmatpush1.bf16.msra.mxu0 %v4019
      %7388 = vmatprep.subr.bf16.mxu0 0
      %7389 = vmatpush1.bf16.msra.mxu0 %v4018
      %7390 = vmatprep.subr.bf16.mxu0 0
      %7391 = vmatpush1.bf16.msra.mxu0 %v4017
      %7392 = vmatprep.subr.bf16.mxu0 0
      %7393 = vmatpush1.bf16.msra.mxu0 %v4016
      %7394 = vmatprep.subr.bf16.mxu0 0
      %7395 = vmatpush1.bf16.msra.mxu0 %v4015
      %7396 = vmatprep.subr.bf16.mxu0 0
      %7397 = vmatpush1.bf16.msra.mxu0 %v4014
      %7398 = vmatprep.subr.bf16.mxu0 0
      %7399 = vmatpush2.bf16.msra.mxu0 %v4029
      %7400 = vmatprep.subr.bf16.mxu0 0
      %7401 = vmatpush2.bf16.msra.mxu0 %v4028
      %7402 = vmatprep.subr.bf16.mxu0 0
      %7403 = vmatpush2.bf16.msra.mxu0 %v4027
      %7404 = vmatprep.subr.bf16.mxu0 0
      %7405 = vmatpush2.bf16.msra.mxu0 %v4026
      %7406 = vmatprep.subr.bf16.mxu0 0
      %7407 = vmatpush2.bf16.msra.mxu0 %v4025
      %7408 = vmatprep.subr.bf16.mxu0 0
      %7409 = vmatpush2.bf16.msra.mxu0 %v4024
      %7410 = vmatprep.subr.bf16.mxu0 0
      %7411 = vmatpush2.bf16.msra.mxu0 %v4023
      %7412 = vmatprep.subr.bf16.mxu0 0
      %7413 = vmatpush2.bf16.msra.mxu0 %v4022
      %7414 = vmatprep.mubr.bf16.mxu0 %v3697
      %7415 = vmatmul.mubr.bf16.gmra.mxu0 %v3681
      %v7416 = vpop.f32.mrf.mxu0
      %v7417 = vadd.f32 0.0, %v7416
      %v7418 = vpop.f32.mrf.mxu0
      %v7419 = vpop.f32.mrf.mxu0
      %v7420 = vadd.f32 0.0, %v7419
      %v7421 = vpop.f32.mrf.mxu0
      %7422 = vmatprep.mubr.bf16.mxu0 %v3698
      %7423 = vmatmul.mubr.bf16.gmra.mxu0 %v3682
      %v7424 = vpop.f32.mrf.mxu0
      %v7425 = vadd.f32 0.0, %v7424
      %v7426 = vpop.f32.mrf.mxu0
      %v7427 = vpop.f32.mrf.mxu0
      %v7428 = vadd.f32 0.0, %v7427
      %v7429 = vpop.f32.mrf.mxu0
      %7430 = vmatprep.mubr.bf16.mxu0 %v3699
      %7431 = vmatmul.mubr.bf16.gmra.mxu0 %v3683
      %v7432 = vpop.f32.mrf.mxu0
      %v7433 = vadd.f32 0.0, %v7432
      %v7434 = vpop.f32.mrf.mxu0
      %v7435 = vpop.f32.mrf.mxu0
      %v7436 = vadd.f32 0.0, %v7435
      %v7437 = vpop.f32.mrf.mxu0
      %7438 = vmatprep.mubr.bf16.mxu0 %v3700
      %7439 = vmatmul.mubr.bf16.gmra.mxu0 %v3684
      %v7440 = vpop.f32.mrf.mxu0
      %v7441 = vadd.f32 0.0, %v7440
      %v7442 = vpop.f32.mrf.mxu0
      %v7443 = vpop.f32.mrf.mxu0
      %v7444 = vadd.f32 0.0, %v7443
      %v7445 = vpop.f32.mrf.mxu0
      %7446 = vmatprep.mubr.bf16.mxu0 %v3701
      %7447 = vmatmul.mubr.bf16.gmra.mxu0 %v3685
      %v7448 = vpop.f32.mrf.mxu0
      %v7449 = vadd.f32 0.0, %v7448
      %v7450 = vpop.f32.mrf.mxu0
      %v7451 = vpop.f32.mrf.mxu0
      %v7452 = vadd.f32 0.0, %v7451
      %v7453 = vpop.f32.mrf.mxu0
      %7454 = vmatprep.mubr.bf16.mxu0 %v3702
      %7455 = vmatmul.mubr.bf16.gmra.mxu0 %v3686
      %v7456 = vpop.f32.mrf.mxu0
      %v7457 = vadd.f32 0.0, %v7456
      %v7458 = vpop.f32.mrf.mxu0
      %v7459 = vpop.f32.mrf.mxu0
      %v7460 = vadd.f32 0.0, %v7459
      %v7461 = vpop.f32.mrf.mxu0
      %7462 = vmatprep.mubr.bf16.mxu0 %v3703
      %7463 = vmatmul.mubr.bf16.gmra.mxu0 %v3687
      %v7464 = vpop.f32.mrf.mxu0
      %v7465 = vadd.f32 0.0, %v7464
      %v7466 = vpop.f32.mrf.mxu0
      %v7467 = vpop.f32.mrf.mxu0
      %v7468 = vadd.f32 0.0, %v7467
      %v7469 = vpop.f32.mrf.mxu0
      %7470 = vmatprep.mubr.bf16.mxu0 %v3704
      %7471 = vmatmul.mubr.bf16.gmra.mxu0 %v3688
      %v7472 = vpop.f32.mrf.mxu0
      %v7473 = vadd.f32 0.0, %v7472
      %v7474 = vpop.f32.mrf.mxu0
      %v7475 = vpop.f32.mrf.mxu0
      %v7476 = vadd.f32 0.0, %v7475
      %v7477 = vpop.f32.mrf.mxu0
      %7478 = vmatprep.mubr.bf16.mxu0 %v3705
      %7479 = vmatmul.mubr.bf16.gmra.mxu0 %v3689
      %v7480 = vpop.f32.mrf.mxu0
      %v7481 = vadd.f32 0.0, %v7480
      %v7482 = vpop.f32.mrf.mxu0
      %v7483 = vpop.f32.mrf.mxu0
      %v7484 = vadd.f32 0.0, %v7483
      %v7485 = vpop.f32.mrf.mxu0
      %7486 = vmatprep.mubr.bf16.mxu0 %v3706
      %7487 = vmatmul.mubr.bf16.gmra.mxu0 %v3690
      %v7488 = vpop.f32.mrf.mxu0
      %v7489 = vadd.f32 0.0, %v7488
      %v7490 = vpop.f32.mrf.mxu0
      %v7491 = vpop.f32.mrf.mxu0
      %v7492 = vadd.f32 0.0, %v7491
      %v7493 = vpop.f32.mrf.mxu0
      %7494 = vmatprep.mubr.bf16.mxu0 %v3707
      %7495 = vmatmul.mubr.bf16.gmra.mxu0 %v3691
      %v7496 = vpop.f32.mrf.mxu0
      %v7497 = vadd.f32 0.0, %v7496
      %v7498 = vpop.f32.mrf.mxu0
      %v7499 = vpop.f32.mrf.mxu0
      %v7500 = vadd.f32 0.0, %v7499
      %v7501 = vpop.f32.mrf.mxu0
      %7502 = vmatprep.mubr.bf16.mxu0 %v3708
      %7503 = vmatmul.mubr.bf16.gmra.mxu0 %v3692
      %v7504 = vpop.f32.mrf.mxu0
      %v7505 = vadd.f32 0.0, %v7504
      %v7506 = vpop.f32.mrf.mxu0
      %v7507 = vpop.f32.mrf.mxu0
      %v7508 = vadd.f32 0.0, %v7507
      %v7509 = vpop.f32.mrf.mxu0
      %7510 = vmatprep.mubr.bf16.mxu0 %v3709
      %7511 = vmatmul.mubr.bf16.gmra.mxu0 %v3693
      %v7512 = vpop.f32.mrf.mxu0
      %v7513 = vadd.f32 0.0, %v7512
      %v7514 = vpop.f32.mrf.mxu0
      %v7515 = vpop.f32.mrf.mxu0
      %v7516 = vadd.f32 0.0, %v7515
      %v7517 = vpop.f32.mrf.mxu0
      %7518 = vmatprep.mubr.bf16.mxu0 %v3710
      %7519 = vmatmul.mubr.bf16.gmra.mxu0 %v3694
      %v7520 = vpop.f32.mrf.mxu0
      %v7521 = vadd.f32 0.0, %v7520
      %v7522 = vpop.f32.mrf.mxu0
      %v7523 = vpop.f32.mrf.mxu0
      %v7524 = vadd.f32 0.0, %v7523
      %v7525 = vpop.f32.mrf.mxu0
      %7526 = vmatprep.mubr.bf16.mxu0 %v3711
      %7527 = vmatmul.mubr.bf16.gmra.mxu0 %v3695
      %v7528 = vpop.f32.mrf.mxu0
      %v7529 = vadd.f32 0.0, %v7528
      %v7530 = vpop.f32.mrf.mxu0
      %v7531 = vpop.f32.mrf.mxu0
      %v7532 = vadd.f32 0.0, %v7531
      %v7533 = vpop.f32.mrf.mxu0
      %7534 = vmatprep.mubr.bf16.mxu0 %v3712
      %7535 = vmatmul.mubr.bf16.gmra.mxu0 %v3696
      %v7536 = vpop.f32.mrf.mxu0
      %v7537 = vadd.f32 0.0, %v7536
      %v7538 = vpop.f32.mrf.mxu0
      %v7539 = vpop.f32.mrf.mxu0
      %v7540 = vadd.f32 0.0, %v7539
      %v7541 = vpop.f32.mrf.mxu0
      %7542 = vdwg.mxu0
      %7543 = vmatprep.subr.bf16.mxu0 0
      %7544 = vmatpush1.bf16.msra.mxu0 %v4037
      %7545 = vmatprep.subr.bf16.mxu0 0
      %7546 = vmatpush1.bf16.msra.mxu0 %v4036
      %7547 = vmatprep.subr.bf16.mxu0 0
      %7548 = vmatpush1.bf16.msra.mxu0 %v4035
      %7549 = vmatprep.subr.bf16.mxu0 0
      %7550 = vmatpush1.bf16.msra.mxu0 %v4034
      %7551 = vmatprep.subr.bf16.mxu0 0
      %7552 = vmatpush1.bf16.msra.mxu0 %v4033
      %7553 = vmatprep.subr.bf16.mxu0 0
      %7554 = vmatpush1.bf16.msra.mxu0 %v4032
      %7555 = vmatprep.subr.bf16.mxu0 0
      %7556 = vmatpush1.bf16.msra.mxu0 %v4031
      %7557 = vmatprep.subr.bf16.mxu0 0
      %7558 = vmatpush1.bf16.msra.mxu0 %v4030
      %7559 = vmatprep.subr.bf16.mxu0 0
      %7560 = vmatpush2.bf16.msra.mxu0 %v4045
      %7561 = vmatprep.subr.bf16.mxu0 0
      %7562 = vmatpush2.bf16.msra.mxu0 %v4044
      %7563 = vmatprep.subr.bf16.mxu0 0
      %7564 = vmatpush2.bf16.msra.mxu0 %v4043
      %7565 = vmatprep.subr.bf16.mxu0 0
      %7566 = vmatpush2.bf16.msra.mxu0 %v4042
      %7567 = vmatprep.subr.bf16.mxu0 0
      %7568 = vmatpush2.bf16.msra.mxu0 %v4041
      %7569 = vmatprep.subr.bf16.mxu0 0
      %7570 = vmatpush2.bf16.msra.mxu0 %v4040
      %7571 = vmatprep.subr.bf16.mxu0 0
      %7572 = vmatpush2.bf16.msra.mxu0 %v4039
      %7573 = vmatprep.subr.bf16.mxu0 0
      %7574 = vmatpush2.bf16.msra.mxu0 %v4038
      %7575 = vmatprep.mubr.bf16.mxu0 %v3474
      %7576 = vmatmul.mubr.bf16.gmra.mxu0 %v5439
      %v7577 = vpop.f32.mrf.mxu0
      %v7578 = vadd.f32 %v7417, %v7577
      %v7579 = vpop.f32.mrf.mxu0
      %v7580 = vpop.f32.mrf.mxu0
      %v7581 = vadd.f32 %v7420, %v7580
      %v7582 = vpop.f32.mrf.mxu0
      %7583 = vmatprep.mubr.bf16.mxu0 %v3475
      %7584 = vmatmul.mubr.bf16.gmra.mxu0 %v5440
      %v7585 = vpop.f32.mrf.mxu0
      %v7586 = vadd.f32 %v7425, %v7585
      %v7587 = vpop.f32.mrf.mxu0
      %v7588 = vpop.f32.mrf.mxu0
      %v7589 = vadd.f32 %v7428, %v7588
      %v7590 = vpop.f32.mrf.mxu0
      %7591 = vmatprep.mubr.bf16.mxu0 %v3476
      %7592 = vmatmul.mubr.bf16.gmra.mxu0 %v5441
      %v7593 = vpop.f32.mrf.mxu0
      %v7594 = vadd.f32 %v7433, %v7593
      %v7595 = vpop.f32.mrf.mxu0
      %v7596 = vpop.f32.mrf.mxu0
      %v7597 = vadd.f32 %v7436, %v7596
      %v7598 = vpop.f32.mrf.mxu0
      %7599 = vmatprep.mubr.bf16.mxu0 %v3477
      %7600 = vmatmul.mubr.bf16.gmra.mxu0 %v5442
      %v7601 = vpop.f32.mrf.mxu0
      %v7602 = vadd.f32 %v7441, %v7601
      %v7603 = vpop.f32.mrf.mxu0
      %v7604 = vpop.f32.mrf.mxu0
      %v7605 = vadd.f32 %v7444, %v7604
      %v7606 = vpop.f32.mrf.mxu0
      %7607 = vmatprep.mubr.bf16.mxu0 %v3478
      %7608 = vmatmul.mubr.bf16.gmra.mxu0 %v5443
      %v7609 = vpop.f32.mrf.mxu0
      %v7610 = vadd.f32 %v7449, %v7609
      %v7611 = vpop.f32.mrf.mxu0
      %v7612 = vpop.f32.mrf.mxu0
      %v7613 = vadd.f32 %v7452, %v7612
      %v7614 = vpop.f32.mrf.mxu0
      %7615 = vmatprep.mubr.bf16.mxu0 %v3479
      %7616 = vmatmul.mubr.bf16.gmra.mxu0 %v5444
      %v7617 = vpop.f32.mrf.mxu0
      %v7618 = vadd.f32 %v7457, %v7617
      %v7619 = vpop.f32.mrf.mxu0
      %v7620 = vpop.f32.mrf.mxu0
      %v7621 = vadd.f32 %v7460, %v7620
      %v7622 = vpop.f32.mrf.mxu0
      %7623 = vmatprep.mubr.bf16.mxu0 %v3480
      %7624 = vmatmul.mubr.bf16.gmra.mxu0 %v5445
      %v7625 = vpop.f32.mrf.mxu0
      %v7626 = vadd.f32 %v7465, %v7625
      %v7627 = vpop.f32.mrf.mxu0
      %v7628 = vpop.f32.mrf.mxu0
      %v7629 = vadd.f32 %v7468, %v7628
      %v7630 = vpop.f32.mrf.mxu0
      %7631 = vmatprep.mubr.bf16.mxu0 %v3481
      %7632 = vmatmul.mubr.bf16.gmra.mxu0 %v5446
      %v7633 = vpop.f32.mrf.mxu0
      %v7634 = vadd.f32 %v7473, %v7633
      %v7635 = vpop.f32.mrf.mxu0
      %v7636 = vpop.f32.mrf.mxu0
      %v7637 = vadd.f32 %v7476, %v7636
      %v7638 = vpop.f32.mrf.mxu0
      %7639 = vmatprep.mubr.bf16.mxu0 %v3482
      %7640 = vmatmul.mubr.bf16.gmra.mxu0 %v5447
      %v7641 = vpop.f32.mrf.mxu0
      %v7642 = vadd.f32 %v7481, %v7641
      %v7643 = vpop.f32.mrf.mxu0
      %v7644 = vpop.f32.mrf.mxu0
      %v7645 = vadd.f32 %v7484, %v7644
      %v7646 = vpop.f32.mrf.mxu0
      %7647 = vmatprep.mubr.bf16.mxu0 %v3483
      %7648 = vmatmul.mubr.bf16.gmra.mxu0 %v5448
      %v7649 = vpop.f32.mrf.mxu0
      %v7650 = vadd.f32 %v7489, %v7649
      %v7651 = vpop.f32.mrf.mxu0
      %v7652 = vpop.f32.mrf.mxu0
      %v7653 = vadd.f32 %v7492, %v7652
      %v7654 = vpop.f32.mrf.mxu0
      %7655 = vmatprep.mubr.bf16.mxu0 %v3484
      %7656 = vmatmul.mubr.bf16.gmra.mxu0 %v5449
      %v7657 = vpop.f32.mrf.mxu0
      %v7658 = vadd.f32 %v7497, %v7657
      %v7659 = vpop.f32.mrf.mxu0
      %v7660 = vpop.f32.mrf.mxu0
      %v7661 = vadd.f32 %v7500, %v7660
      %v7662 = vpop.f32.mrf.mxu0
      %7663 = vmatprep.mubr.bf16.mxu0 %v3485
      %7664 = vmatmul.mubr.bf16.gmra.mxu0 %v5450
      %v7665 = vpop.f32.mrf.mxu0
      %v7666 = vadd.f32 %v7505, %v7665
      %v7667 = vpop.f32.mrf.mxu0
      %v7668 = vpop.f32.mrf.mxu0
      %v7669 = vadd.f32 %v7508, %v7668
      %v7670 = vpop.f32.mrf.mxu0
      %7671 = vmatprep.mubr.bf16.mxu0 %v3486
      %7672 = vmatmul.mubr.bf16.gmra.mxu0 %v5451
      %v7673 = vpop.f32.mrf.mxu0
      %v7674 = vadd.f32 %v7513, %v7673
      %v7675 = vpop.f32.mrf.mxu0
      %v7676 = vpop.f32.mrf.mxu0
      %v7677 = vadd.f32 %v7516, %v7676
      %v7678 = vpop.f32.mrf.mxu0
      %7679 = vmatprep.mubr.bf16.mxu0 %v3487
      %7680 = vmatmul.mubr.bf16.gmra.mxu0 %v5452
      %v7681 = vpop.f32.mrf.mxu0
      %v7682 = vadd.f32 %v7521, %v7681
      %v7683 = vpop.f32.mrf.mxu0
      %v7684 = vpop.f32.mrf.mxu0
      %v7685 = vadd.f32 %v7524, %v7684
      %v7686 = vpop.f32.mrf.mxu0
      %7687 = vmatprep.mubr.bf16.mxu0 %v3488
      %7688 = vmatmul.mubr.bf16.gmra.mxu0 %v5453
      %v7689 = vpop.f32.mrf.mxu0
      %v7690 = vadd.f32 %v7529, %v7689
      %v7691 = vpop.f32.mrf.mxu0
      %v7692 = vpop.f32.mrf.mxu0
      %v7693 = vadd.f32 %v7532, %v7692
      %v7694 = vpop.f32.mrf.mxu0
      %7695 = vmatprep.mubr.bf16.mxu0 %v3724
      %7696 = vmatmul.mubr.bf16.gmra.mxu0 %v5454
      %v7697 = vpop.f32.mrf.mxu0
      %v7698 = vadd.f32 %v7537, %v7697
      %v7699 = vpop.f32.mrf.mxu0
      %v7700 = vpop.f32.mrf.mxu0
      %v7701 = vadd.f32 %v7540, %v7700
      %v7702 = vpop.f32.mrf.mxu0
      %7703 = vdwg.mxu0
      %7704 = vmatprep.subr.bf16.mxu0 0
      %7705 = vmatpush1.bf16.msra.mxu0 %v4053
      %7706 = vmatprep.subr.bf16.mxu0 0
      %7707 = vmatpush1.bf16.msra.mxu0 %v4052
      %7708 = vmatprep.subr.bf16.mxu0 0
      %7709 = vmatpush1.bf16.msra.mxu0 %v4051
      %7710 = vmatprep.subr.bf16.mxu0 0
      %7711 = vmatpush1.bf16.msra.mxu0 %v4050
      %7712 = vmatprep.subr.bf16.mxu0 0
      %7713 = vmatpush1.bf16.msra.mxu0 %v4049
      %7714 = vmatprep.subr.bf16.mxu0 0
      %7715 = vmatpush1.bf16.msra.mxu0 %v4048
      %7716 = vmatprep.subr.bf16.mxu0 0
      %7717 = vmatpush1.bf16.msra.mxu0 %v4047
      %7718 = vmatprep.subr.bf16.mxu0 0
      %7719 = vmatpush1.bf16.msra.mxu0 %v4046
      %7720 = vmatprep.subr.bf16.mxu0 0
      %7721 = vmatpush2.bf16.msra.mxu0 %v4061
      %7722 = vmatprep.subr.bf16.mxu0 0
      %7723 = vmatpush2.bf16.msra.mxu0 %v4060
      %7724 = vmatprep.subr.bf16.mxu0 0
      %7725 = vmatpush2.bf16.msra.mxu0 %v4059
      %7726 = vmatprep.subr.bf16.mxu0 0
      %7727 = vmatpush2.bf16.msra.mxu0 %v4058
      %7728 = vmatprep.subr.bf16.mxu0 0
      %7729 = vmatpush2.bf16.msra.mxu0 %v4057
      %7730 = vmatprep.subr.bf16.mxu0 0
      %7731 = vmatpush2.bf16.msra.mxu0 %v4056
      %7732 = vmatprep.subr.bf16.mxu0 0
      %7733 = vmatpush2.bf16.msra.mxu0 %v4055
      %7734 = vmatprep.subr.bf16.mxu0 0
      %7735 = vmatpush2.bf16.msra.mxu0 %v4054
      %7736 = vmatprep.mubr.bf16.mxu0 %v5264
      %7737 = vmatmul.mubr.bf16.gmra.mxu0 %v3490
      %v7738 = vpop.f32.mrf.mxu0
      %v7739 = vadd.f32 %v7578, %v7738
      %v7740 = vpop.f32.mrf.mxu0
      %v7741 = vpop.f32.mrf.mxu0
      %v7742 = vadd.f32 %v7581, %v7741
      %v7743 = vpop.f32.mrf.mxu0
      %7744 = vmatprep.mubr.bf16.mxu0 %v5265
      %7745 = vmatmul.mubr.bf16.gmra.mxu0 %v3491
      %v7746 = vpop.f32.mrf.mxu0
      %v7747 = vadd.f32 %v7586, %v7746
      %v7748 = vpop.f32.mrf.mxu0
      %v7749 = vpop.f32.mrf.mxu0
      %v7750 = vadd.f32 %v7589, %v7749
      %v7751 = vpop.f32.mrf.mxu0
      %7752 = vmatprep.mubr.bf16.mxu0 %v5266
      %7753 = vmatmul.mubr.bf16.gmra.mxu0 %v3492
      %v7754 = vpop.f32.mrf.mxu0
      %v7755 = vadd.f32 %v7594, %v7754
      %v7756 = vpop.f32.mrf.mxu0
      %v7757 = vpop.f32.mrf.mxu0
      %v7758 = vadd.f32 %v7597, %v7757
      %v7759 = vpop.f32.mrf.mxu0
      %7760 = vmatprep.mubr.bf16.mxu0 %v5267
      %7761 = vmatmul.mubr.bf16.gmra.mxu0 %v3493
      %v7762 = vpop.f32.mrf.mxu0
      %v7763 = vadd.f32 %v7602, %v7762
      %v7764 = vpop.f32.mrf.mxu0
      %v7765 = vpop.f32.mrf.mxu0
      %v7766 = vadd.f32 %v7605, %v7765
      %v7767 = vpop.f32.mrf.mxu0
      %7768 = vmatprep.mubr.bf16.mxu0 %v5268
      %7769 = vmatmul.mubr.bf16.gmra.mxu0 %v3494
      %v7770 = vpop.f32.mrf.mxu0
      %v7771 = vadd.f32 %v7610, %v7770
      %v7772 = vpop.f32.mrf.mxu0
      %v7773 = vpop.f32.mrf.mxu0
      %v7774 = vadd.f32 %v7613, %v7773
      %v7775 = vpop.f32.mrf.mxu0
      %7776 = vmatprep.mubr.bf16.mxu0 %v5269
      %7777 = vmatmul.mubr.bf16.gmra.mxu0 %v3495
      %v7778 = vpop.f32.mrf.mxu0
      %v7779 = vadd.f32 %v7618, %v7778
      %v7780 = vpop.f32.mrf.mxu0
      %v7781 = vpop.f32.mrf.mxu0
      %v7782 = vadd.f32 %v7621, %v7781
      %v7783 = vpop.f32.mrf.mxu0
      %7784 = vmatprep.mubr.bf16.mxu0 %v5270
      %7785 = vmatmul.mubr.bf16.gmra.mxu0 %v3496
      %v7786 = vpop.f32.mrf.mxu0
      %v7787 = vadd.f32 %v7626, %v7786
      %v7788 = vpop.f32.mrf.mxu0
      %v7789 = vpop.f32.mrf.mxu0
      %v7790 = vadd.f32 %v7629, %v7789
      %v7791 = vpop.f32.mrf.mxu0
      %7792 = vmatprep.mubr.bf16.mxu0 %v5271
      %7793 = vmatmul.mubr.bf16.gmra.mxu0 %v3497
      %v7794 = vpop.f32.mrf.mxu0
      %v7795 = vadd.f32 %v7634, %v7794
      %v7796 = vpop.f32.mrf.mxu0
      %v7797 = vpop.f32.mrf.mxu0
      %v7798 = vadd.f32 %v7637, %v7797
      %v7799 = vpop.f32.mrf.mxu0
      %7800 = vmatprep.mubr.bf16.mxu0 %v5272
      %7801 = vmatmul.mubr.bf16.gmra.mxu0 %v3498
      %v7802 = vpop.f32.mrf.mxu0
      %v7803 = vadd.f32 %v7642, %v7802
      %v7804 = vpop.f32.mrf.mxu0
      %v7805 = vpop.f32.mrf.mxu0
      %v7806 = vadd.f32 %v7645, %v7805
      %v7807 = vpop.f32.mrf.mxu0
      %7808 = vmatprep.mubr.bf16.mxu0 %v5273
      %7809 = vmatmul.mubr.bf16.gmra.mxu0 %v3499
      %v7810 = vpop.f32.mrf.mxu0
      %v7811 = vadd.f32 %v7650, %v7810
      %v7812 = vpop.f32.mrf.mxu0
      %v7813 = vpop.f32.mrf.mxu0
      %v7814 = vadd.f32 %v7653, %v7813
      %v7815 = vpop.f32.mrf.mxu0
      %7816 = vmatprep.mubr.bf16.mxu0 %v5274
      %7817 = vmatmul.mubr.bf16.gmra.mxu0 %v3500
      %v7818 = vpop.f32.mrf.mxu0
      %v7819 = vadd.f32 %v7658, %v7818
      %v7820 = vpop.f32.mrf.mxu0
      %v7821 = vpop.f32.mrf.mxu0
      %v7822 = vadd.f32 %v7661, %v7821
      %v7823 = vpop.f32.mrf.mxu0
      %7824 = vmatprep.mubr.bf16.mxu0 %v5275
      %7825 = vmatmul.mubr.bf16.gmra.mxu0 %v3501
      %v7826 = vpop.f32.mrf.mxu0
      %v7827 = vadd.f32 %v7666, %v7826
      %v7828 = vpop.f32.mrf.mxu0
      %v7829 = vpop.f32.mrf.mxu0
      %v7830 = vadd.f32 %v7669, %v7829
      %v7831 = vpop.f32.mrf.mxu0
      %7832 = vmatprep.mubr.bf16.mxu0 %v5276
      %7833 = vmatmul.mubr.bf16.gmra.mxu0 %v3502
      %v7834 = vpop.f32.mrf.mxu0
      %v7835 = vadd.f32 %v7674, %v7834
      %v7836 = vpop.f32.mrf.mxu0
      %v7837 = vpop.f32.mrf.mxu0
      %v7838 = vadd.f32 %v7677, %v7837
      %v7839 = vpop.f32.mrf.mxu0
      %7840 = vmatprep.mubr.bf16.mxu0 %v5277
      %7841 = vmatmul.mubr.bf16.gmra.mxu0 %v3503
      %v7842 = vpop.f32.mrf.mxu0
      %v7843 = vadd.f32 %v7682, %v7842
      %v7844 = vpop.f32.mrf.mxu0
      %v7845 = vpop.f32.mrf.mxu0
      %v7846 = vadd.f32 %v7685, %v7845
      %v7847 = vpop.f32.mrf.mxu0
      %7848 = vmatprep.mubr.bf16.mxu0 %v5278
      %7849 = vmatmul.mubr.bf16.gmra.mxu0 %v3504
      %v7850 = vpop.f32.mrf.mxu0
      %v7851 = vadd.f32 %v7690, %v7850
      %v7852 = vpop.f32.mrf.mxu0
      %v7853 = vpop.f32.mrf.mxu0
      %v7854 = vadd.f32 %v7693, %v7853
      %v7855 = vpop.f32.mrf.mxu0
      %7856 = vmatprep.mubr.bf16.mxu0 %v5465
      %7857 = vmatmul.mubr.bf16.gmra.mxu0 %v3725
      %v7858 = vpop.f32.mrf.mxu0
      %v7859 = vadd.f32 %v7698, %v7858
      %v7860 = vpop.f32.mrf.mxu0
      %v7861 = vpop.f32.mrf.mxu0
      %v7862 = vadd.f32 %v7701, %v7861
      %v7863 = vpop.f32.mrf.mxu0
      %7864 = vdwg.mxu0
      %7865 = vmatprep.subr.bf16.mxu0 0
      %7866 = vmatpush1.bf16.msra.mxu0 %v4069
      %7867 = vmatprep.subr.bf16.mxu0 0
      %7868 = vmatpush1.bf16.msra.mxu0 %v4068
      %7869 = vmatprep.subr.bf16.mxu0 0
      %7870 = vmatpush1.bf16.msra.mxu0 %v4067
      %7871 = vmatprep.subr.bf16.mxu0 0
      %7872 = vmatpush1.bf16.msra.mxu0 %v4066
      %7873 = vmatprep.subr.bf16.mxu0 0
      %7874 = vmatpush1.bf16.msra.mxu0 %v4065
      %7875 = vmatprep.subr.bf16.mxu0 0
      %7876 = vmatpush1.bf16.msra.mxu0 %v4064
      %7877 = vmatprep.subr.bf16.mxu0 0
      %7878 = vmatpush1.bf16.msra.mxu0 %v4063
      %7879 = vmatprep.subr.bf16.mxu0 0
      %7880 = vmatpush1.bf16.msra.mxu0 %v4062
      %7881 = vmatprep.subr.bf16.mxu0 0
      %7882 = vmatpush2.bf16.msra.mxu0 %v4077
      %7883 = vmatprep.subr.bf16.mxu0 0
      %7884 = vmatpush2.bf16.msra.mxu0 %v4076
      %7885 = vmatprep.subr.bf16.mxu0 0
      %7886 = vmatpush2.bf16.msra.mxu0 %v4075
      %7887 = vmatprep.subr.bf16.mxu0 0
      %7888 = vmatpush2.bf16.msra.mxu0 %v4074
      %7889 = vmatprep.subr.bf16.mxu0 0
      %7890 = vmatpush2.bf16.msra.mxu0 %v4073
      %7891 = vmatprep.subr.bf16.mxu0 0
      %7892 = vmatpush2.bf16.msra.mxu0 %v4072
      %7893 = vmatprep.subr.bf16.mxu0 0
      %7894 = vmatpush2.bf16.msra.mxu0 %v4071
      %7895 = vmatprep.subr.bf16.mxu0 0
      %7896 = vmatpush2.bf16.msra.mxu0 %v4070
      %7897 = vmatprep.mubr.bf16.mxu0 %v3698
      %7898 = vmatmul.mubr.bf16.gmra.mxu0 %v3682
      %v7899 = vpop.f32.mrf.mxu0
      %v7900 = vadd.f32 %v7739, %v7899
      %v7901 = vpop.f32.mrf.mxu0
      %v7902 = vpop.f32.mrf.mxu0
      %v7903 = vadd.f32 %v7742, %v7902
      %v7904 = vpop.f32.mrf.mxu0
      %7905 = vmatprep.mubr.bf16.mxu0 %v3699
      %7906 = vmatmul.mubr.bf16.gmra.mxu0 %v3683
      %v7907 = vpop.f32.mrf.mxu0
      %v7908 = vadd.f32 %v7747, %v7907
      %v7909 = vpop.f32.mrf.mxu0
      %v7910 = vpop.f32.mrf.mxu0
      %v7911 = vadd.f32 %v7750, %v7910
      %v7912 = vpop.f32.mrf.mxu0
      %7913 = vmatprep.mubr.bf16.mxu0 %v3700
      %7914 = vmatmul.mubr.bf16.gmra.mxu0 %v3684
      %v7915 = vpop.f32.mrf.mxu0
      %v7916 = vadd.f32 %v7755, %v7915
      %v7917 = vpop.f32.mrf.mxu0
      %v7918 = vpop.f32.mrf.mxu0
      %v7919 = vadd.f32 %v7758, %v7918
      %v7920 = vpop.f32.mrf.mxu0
      %7921 = vmatprep.mubr.bf16.mxu0 %v3701
      %7922 = vmatmul.mubr.bf16.gmra.mxu0 %v3685
      %v7923 = vpop.f32.mrf.mxu0
      %v7924 = vadd.f32 %v7763, %v7923
      %v7925 = vpop.f32.mrf.mxu0
      %v7926 = vpop.f32.mrf.mxu0
      %v7927 = vadd.f32 %v7766, %v7926
      %v7928 = vpop.f32.mrf.mxu0
      %7929 = vmatprep.mubr.bf16.mxu0 %v3702
      %7930 = vmatmul.mubr.bf16.gmra.mxu0 %v3686
      %v7931 = vpop.f32.mrf.mxu0
      %v7932 = vadd.f32 %v7771, %v7931
      %v7933 = vpop.f32.mrf.mxu0
      %v7934 = vpop.f32.mrf.mxu0
      %v7935 = vadd.f32 %v7774, %v7934
      %v7936 = vpop.f32.mrf.mxu0
      %7937 = vmatprep.mubr.bf16.mxu0 %v3703
      %7938 = vmatmul.mubr.bf16.gmra.mxu0 %v3687
      %v7939 = vpop.f32.mrf.mxu0
      %v7940 = vadd.f32 %v7779, %v7939
      %v7941 = vpop.f32.mrf.mxu0
      %v7942 = vpop.f32.mrf.mxu0
      %v7943 = vadd.f32 %v7782, %v7942
      %v7944 = vpop.f32.mrf.mxu0
      %7945 = vmatprep.mubr.bf16.mxu0 %v3704
      %7946 = vmatmul.mubr.bf16.gmra.mxu0 %v3688
      %v7947 = vpop.f32.mrf.mxu0
      %v7948 = vadd.f32 %v7787, %v7947
      %v7949 = vpop.f32.mrf.mxu0
      %v7950 = vpop.f32.mrf.mxu0
      %v7951 = vadd.f32 %v7790, %v7950
      %v7952 = vpop.f32.mrf.mxu0
      %7953 = vmatprep.mubr.bf16.mxu0 %v3705
      %7954 = vmatmul.mubr.bf16.gmra.mxu0 %v3689
      %v7955 = vpop.f32.mrf.mxu0
      %v7956 = vadd.f32 %v7795, %v7955
      %v7957 = vpop.f32.mrf.mxu0
      %v7958 = vpop.f32.mrf.mxu0
      %v7959 = vadd.f32 %v7798, %v7958
      %v7960 = vpop.f32.mrf.mxu0
      %7961 = vmatprep.mubr.bf16.mxu0 %v3706
      %7962 = vmatmul.mubr.bf16.gmra.mxu0 %v3690
      %v7963 = vpop.f32.mrf.mxu0
      %v7964 = vadd.f32 %v7803, %v7963
      %v7965 = vpop.f32.mrf.mxu0
      %v7966 = vpop.f32.mrf.mxu0
      %v7967 = vadd.f32 %v7806, %v7966
      %v7968 = vpop.f32.mrf.mxu0
      %7969 = vmatprep.mubr.bf16.mxu0 %v3707
      %7970 = vmatmul.mubr.bf16.gmra.mxu0 %v3691
      %v7971 = vpop.f32.mrf.mxu0
      %v7972 = vadd.f32 %v7811, %v7971
      %v7973 = vpop.f32.mrf.mxu0
      %v7974 = vpop.f32.mrf.mxu0
      %v7975 = vadd.f32 %v7814, %v7974
      %v7976 = vpop.f32.mrf.mxu0
      %7977 = vmatprep.mubr.bf16.mxu0 %v3708
      %7978 = vmatmul.mubr.bf16.gmra.mxu0 %v3692
      %v7979 = vpop.f32.mrf.mxu0
      %v7980 = vadd.f32 %v7819, %v7979
      %v7981 = vpop.f32.mrf.mxu0
      %v7982 = vpop.f32.mrf.mxu0
      %v7983 = vadd.f32 %v7822, %v7982
      %v7984 = vpop.f32.mrf.mxu0
      %7985 = vmatprep.mubr.bf16.mxu0 %v3709
      %7986 = vmatmul.mubr.bf16.gmra.mxu0 %v3693
      %v7987 = vpop.f32.mrf.mxu0
      %v7988 = vadd.f32 %v7827, %v7987
      %v7989 = vpop.f32.mrf.mxu0
      %v7990 = vpop.f32.mrf.mxu0
      %v7991 = vadd.f32 %v7830, %v7990
      %v7992 = vpop.f32.mrf.mxu0
      %7993 = vmatprep.mubr.bf16.mxu0 %v3710
      %7994 = vmatmul.mubr.bf16.gmra.mxu0 %v3694
      %v7995 = vpop.f32.mrf.mxu0
      %v7996 = vadd.f32 %v7835, %v7995
      %v7997 = vpop.f32.mrf.mxu0
      %v7998 = vpop.f32.mrf.mxu0
      %v7999 = vadd.f32 %v7838, %v7998
      %v8000 = vpop.f32.mrf.mxu0
      %8001 = vmatprep.mubr.bf16.mxu0 %v3711
      %8002 = vmatmul.mubr.bf16.gmra.mxu0 %v3695
      %v8003 = vpop.f32.mrf.mxu0
      %v8004 = vadd.f32 %v7843, %v8003
      %v8005 = vpop.f32.mrf.mxu0
      %v8006 = vpop.f32.mrf.mxu0
      %v8007 = vadd.f32 %v7846, %v8006
      %v8008 = vpop.f32.mrf.mxu0
      %8009 = vmatprep.mubr.bf16.mxu0 %v3712
      %8010 = vmatmul.mubr.bf16.gmra.mxu0 %v3696
      %v8011 = vpop.f32.mrf.mxu0
      %v8012 = vadd.f32 %v7851, %v8011
      %v8013 = vpop.f32.mrf.mxu0
      %v8014 = vpop.f32.mrf.mxu0
      %v8015 = vadd.f32 %v7854, %v8014
      %v8016 = vpop.f32.mrf.mxu0
      %8017 = vmatprep.mubr.bf16.mxu0 %v6424
      %8018 = vmatmul.mubr.bf16.gmra.mxu0 %v6423
      %v8019 = vpop.f32.mrf.mxu0
      %v8020 = vadd.f32 %v7859, %v8019
      %v8021 = vpop.f32.mrf.mxu0
      %v8022 = vpop.f32.mrf.mxu0
      %v8023 = vadd.f32 %v7862, %v8022
      %v8024 = vpop.f32.mrf.mxu0
      %8025 = vdwg.mxu0
      %8026 = vmatprep.subr.bf16.mxu0 0
      %8027 = vmatpush1.bf16.msra.mxu0 %v4085
      %8028 = vmatprep.subr.bf16.mxu0 0
      %8029 = vmatpush1.bf16.msra.mxu0 %v4084
      %8030 = vmatprep.subr.bf16.mxu0 0
      %8031 = vmatpush1.bf16.msra.mxu0 %v4083
      %8032 = vmatprep.subr.bf16.mxu0 0
      %8033 = vmatpush1.bf16.msra.mxu0 %v4082
      %8034 = vmatprep.subr.bf16.mxu0 0
      %8035 = vmatpush1.bf16.msra.mxu0 %v4081
      %8036 = vmatprep.subr.bf16.mxu0 0
      %8037 = vmatpush1.bf16.msra.mxu0 %v4080
      %8038 = vmatprep.subr.bf16.mxu0 0
      %8039 = vmatpush1.bf16.msra.mxu0 %v4079
      %8040 = vmatprep.subr.bf16.mxu0 0
      %8041 = vmatpush1.bf16.msra.mxu0 %v4078
      %8042 = vmatprep.subr.bf16.mxu0 0
      %8043 = vmatpush2.bf16.msra.mxu0 0
      %8044 = vmatprep.subr.bf16.mxu0 0
      %8045 = vmatpush2.bf16.msra.mxu0 0
      %8046 = vmatprep.subr.bf16.mxu0 0
      %8047 = vmatpush2.bf16.msra.mxu0 0
      %8048 = vmatprep.subr.bf16.mxu0 0
      %8049 = vmatpush2.bf16.msra.mxu0 0
      %8050 = vmatprep.subr.bf16.mxu0 0
      %8051 = vmatpush2.bf16.msra.mxu0 0
      %8052 = vmatprep.subr.bf16.mxu0 0
      %8053 = vmatpush2.bf16.msra.mxu0 0
      %8054 = vmatprep.subr.bf16.mxu0 0
      %8055 = vmatpush2.bf16.msra.mxu0 0
      %8056 = vmatprep.subr.bf16.mxu0 0
      %8057 = vmatpush2.bf16.msra.mxu0 0
      %8058 = vmatprep.mubr.bf16.mxu0 0
      %8059 = vmatmul.mubr.bf16.gmra.mxu0 %v5440
      %v8060 = vpop.f32.mrf.mxu0
      %v8061 = vadd.f32 %v7900, %v8060
      %v8062 = vpop.f32.mrf.mxu0
      %v8063 = vpop.f32.mrf.mxu0
      %v8064 = vadd.f32 %v7903, %v8063
      %v8065 = vpop.f32.mrf.mxu0
      %8066 = vmatprep.mubr.bf16.mxu0 0
      %8067 = vmatmul.mubr.bf16.gmra.mxu0 %v5441
      %v8068 = vpop.f32.mrf.mxu0
      %v8069 = vadd.f32 %v7908, %v8068
      %v8070 = vpop.f32.mrf.mxu0
      %v8071 = vpop.f32.mrf.mxu0
      %v8072 = vadd.f32 %v7911, %v8071
      %v8073 = vpop.f32.mrf.mxu0
      %8074 = vmatprep.mubr.bf16.mxu0 0
      %8075 = vmatmul.mubr.bf16.gmra.mxu0 %v5442
      %v8076 = vpop.f32.mrf.mxu0
      %v8077 = vadd.f32 %v7916, %v8076
      %v8078 = vpop.f32.mrf.mxu0
      %v8079 = vpop.f32.mrf.mxu0
      %v8080 = vadd.f32 %v7919, %v8079
      %v8081 = vpop.f32.mrf.mxu0
      %8082 = vmatprep.mubr.bf16.mxu0 0
      %8083 = vmatmul.mubr.bf16.gmra.mxu0 %v5443
      %v8084 = vpop.f32.mrf.mxu0
      %v8085 = vadd.f32 %v7924, %v8084
      %v8086 = vpop.f32.mrf.mxu0
      %v8087 = vpop.f32.mrf.mxu0
      %v8088 = vadd.f32 %v7927, %v8087
      %v8089 = vpop.f32.mrf.mxu0
      %8090 = vmatprep.mubr.bf16.mxu0 0
      %8091 = vmatmul.mubr.bf16.gmra.mxu0 %v5444
      %v8092 = vpop.f32.mrf.mxu0
      %v8093 = vadd.f32 %v7932, %v8092
      %v8094 = vpop.f32.mrf.mxu0
      %v8095 = vpop.f32.mrf.mxu0
      %v8096 = vadd.f32 %v7935, %v8095
      %v8097 = vpop.f32.mrf.mxu0
      %8098 = vmatprep.mubr.bf16.mxu0 0
      %8099 = vmatmul.mubr.bf16.gmra.mxu0 %v5445
      %v8100 = vpop.f32.mrf.mxu0
      %v8101 = vadd.f32 %v7940, %v8100
      %v8102 = vpop.f32.mrf.mxu0
      %v8103 = vpop.f32.mrf.mxu0
      %v8104 = vadd.f32 %v7943, %v8103
      %v8105 = vpop.f32.mrf.mxu0
      %8106 = vmatprep.mubr.bf16.mxu0 0
      %8107 = vmatmul.mubr.bf16.gmra.mxu0 %v5446
      %v8108 = vpop.f32.mrf.mxu0
      %v8109 = vadd.f32 %v7948, %v8108
      %v8110 = vpop.f32.mrf.mxu0
      %v8111 = vpop.f32.mrf.mxu0
      %v8112 = vadd.f32 %v7951, %v8111
      %v8113 = vpop.f32.mrf.mxu0
      %8114 = vmatprep.mubr.bf16.mxu0 0
      %8115 = vmatmul.mubr.bf16.gmra.mxu0 %v5447
      %v8116 = vpop.f32.mrf.mxu0
      %v8117 = vadd.f32 %v7956, %v8116
      %v8118 = vpop.f32.mrf.mxu0
      %v8119 = vpop.f32.mrf.mxu0
      %v8120 = vadd.f32 %v7959, %v8119
      %v8121 = vpop.f32.mrf.mxu0
      %8122 = vmatprep.mubr.bf16.mxu0 0
      %8123 = vmatmul.mubr.bf16.gmra.mxu0 %v5448
      %v8124 = vpop.f32.mrf.mxu0
      %v8125 = vadd.f32 %v7964, %v8124
      %v8126 = vpop.f32.mrf.mxu0
      %v8127 = vpop.f32.mrf.mxu0
      %v8128 = vadd.f32 %v7967, %v8127
      %v8129 = vpop.f32.mrf.mxu0
      %8130 = vmatprep.mubr.bf16.mxu0 0
      %8131 = vmatmul.mubr.bf16.gmra.mxu0 %v5449
      %v8132 = vpop.f32.mrf.mxu0
      %v8133 = vadd.f32 %v7972, %v8132
      %v8134 = vpop.f32.mrf.mxu0
      %v8135 = vpop.f32.mrf.mxu0
      %v8136 = vadd.f32 %v7975, %v8135
      %v8137 = vpop.f32.mrf.mxu0
      %8138 = vmatprep.mubr.bf16.mxu0 0
      %8139 = vmatmul.mubr.bf16.gmra.mxu0 %v5450
      %v8140 = vpop.f32.mrf.mxu0
      %v8141 = vadd.f32 %v7980, %v8140
      %v8142 = vpop.f32.mrf.mxu0
      %v8143 = vpop.f32.mrf.mxu0
      %v8144 = vadd.f32 %v7983, %v8143
      %v8145 = vpop.f32.mrf.mxu0
      %8146 = vmatprep.mubr.bf16.mxu0 0
      %8147 = vmatmul.mubr.bf16.gmra.mxu0 %v5451
      %v8148 = vpop.f32.mrf.mxu0
      %v8149 = vadd.f32 %v7988, %v8148
      %v8150 = vpop.f32.mrf.mxu0
      %v8151 = vpop.f32.mrf.mxu0
      %v8152 = vadd.f32 %v7991, %v8151
      %v8153 = vpop.f32.mrf.mxu0
      %8154 = vmatprep.mubr.bf16.mxu0 0
      %8155 = vmatmul.mubr.bf16.gmra.mxu0 %v5452
      %v8156 = vpop.f32.mrf.mxu0
      %v8157 = vadd.f32 %v7996, %v8156
      %v8158 = vpop.f32.mrf.mxu0
      %v8159 = vpop.f32.mrf.mxu0
      %v8160 = vadd.f32 %v7999, %v8159
      %v8161 = vpop.f32.mrf.mxu0
      %8162 = vmatprep.mubr.bf16.mxu0 0
      %8163 = vmatmul.mubr.bf16.gmra.mxu0 %v5453
      %v8164 = vpop.f32.mrf.mxu0
      %v8165 = vadd.f32 %v8004, %v8164
      %v8166 = vpop.f32.mrf.mxu0
      %v8167 = vpop.f32.mrf.mxu0
      %v8168 = vadd.f32 %v8007, %v8167
      %v8169 = vpop.f32.mrf.mxu0
      %8170 = vmatprep.mubr.bf16.mxu0 0
      %8171 = vmatmul.mubr.bf16.gmra.mxu0 %v5454
      %v8172 = vpop.f32.mrf.mxu0
      %v8173 = vadd.f32 %v8012, %v8172
      %v8174 = vpop.f32.mrf.mxu0
      %v8175 = vpop.f32.mrf.mxu0
      %v8176 = vadd.f32 %v8015, %v8175
      %v8177 = vpop.f32.mrf.mxu0
      %8178 = vmatprep.mubr.bf16.mxu0 0
      %8179 = vmatmul.mubr.bf16.gmra.mxu0 %v7381
      %v8180 = vpop.f32.mrf.mxu0
      %v8181 = vadd.f32 %v8020, %v8180
      %v8182 = vpop.f32.mrf.mxu0
      %v8183 = vpop.f32.mrf.mxu0
      %v8184 = vadd.f32 %v8023, %v8183
      %v8185 = vpop.f32.mrf.mxu0
      %8186 = vdwg.mxu0
      %v8187 = vadd.f32 %v8061, %v8064
      %v8188 = vadd.f32 %v8187, %v8069
      %v8189 = vadd.f32 %v8188, %v8072
      %v8190 = vadd.f32 %v8189, %v8077
      %v8191 = vadd.f32 %v8190, %v8080
      %v8192 = vadd.f32 %v8191, %v8085
      %v8193 = vadd.f32 %v8192, %v8088
      %v8194 = vadd.f32 %v8193, %v8093
      %v8195 = vadd.f32 %v8194, %v8096
      %v8196 = vadd.f32 %v8195, %v8101
      %v8197 = vadd.f32 %v8196, %v8104
      %v8198 = vadd.f32 %v8197, %v8109
      %v8199 = vadd.f32 %v8198, %v8112
      %v8200 = vadd.f32 %v8199, %v8117
      %v8201 = vadd.f32 %v8200, %v8120
      %v8202 = vadd.f32 %v8201, %v8125
      %v8203 = vadd.f32 %v8202, %v8128
      %v8204 = vadd.f32 %v8203, %v8133
      %v8205 = vadd.f32 %v8204, %v8136
      %v8206 = vadd.f32 %v8205, %v8141
      %v8207 = vadd.f32 %v8206, %v8144
      %v8208 = vadd.f32 %v8207, %v8149
      %v8209 = vadd.f32 %v8208, %v8152
      %v8210 = vadd.f32 %v8209, %v8157
      %v8211 = vadd.f32 %v8210, %v8160
      %v8212 = vadd.f32 %v8211, %v8165
      %v8213 = vadd.f32 %v8212, %v8168
      %v8214 = vadd.f32 %v8213, %v8173
      %v8215 = vadd.f32 %v8214, %v8176
      %v8216 = vadd.f32 %v8215, %v8181
      %v8217 = vadd.f32 %v8216, %v8184
      %v8218 = vrot.slane %v8217, 4
      %v8219 = vadd.f32 %v8217, %v8218
      %v8220 = vrot.slane %v8219, 2
      %v8221 = vadd.f32 %v8219, %v8220
      %v8222 = vrot.slane %v8221, 1
      %v8223 = vadd.f32 %v8221, %v8222
      %v8224 = vadd.f32 %v7267, %v8223
      %v8225 = vmul.f32 %v8061, %v8061
      %v8226 = vmul.f32 %v8064, %v8064
      %v8227 = vmul.f32 %v8069, %v8069
      %v8228 = vmul.f32 %v8072, %v8072
      %v8229 = vmul.f32 %v8077, %v8077
      %v8230 = vmul.f32 %v8080, %v8080
      %v8231 = vmul.f32 %v8085, %v8085
      %v8232 = vmul.f32 %v8088, %v8088
      %v8233 = vmul.f32 %v8093, %v8093
      %v8234 = vmul.f32 %v8096, %v8096
      %v8235 = vmul.f32 %v8101, %v8101
      %v8236 = vmul.f32 %v8104, %v8104
      %v8237 = vmul.f32 %v8109, %v8109
      %v8238 = vmul.f32 %v8112, %v8112
      %v8239 = vmul.f32 %v8117, %v8117
      %v8240 = vmul.f32 %v8120, %v8120
      %v8241 = vmul.f32 %v8125, %v8125
      %v8242 = vmul.f32 %v8128, %v8128
      %v8243 = vmul.f32 %v8133, %v8133
      %v8244 = vmul.f32 %v8136, %v8136
      %v8245 = vmul.f32 %v8141, %v8141
      %v8246 = vmul.f32 %v8144, %v8144
      %v8247 = vmul.f32 %v8149, %v8149
      %v8248 = vmul.f32 %v8152, %v8152
      %v8249 = vmul.f32 %v8157, %v8157
      %v8250 = vmul.f32 %v8160, %v8160
      %v8251 = vmul.f32 %v8165, %v8165
      %v8252 = vmul.f32 %v8168, %v8168
      %v8253 = vmul.f32 %v8173, %v8173
      %v8254 = vmul.f32 %v8176, %v8176
      %v8255 = vmul.f32 %v8181, %v8181
      %v8256 = vmul.f32 %v8184, %v8184
      %v8257 = vadd.f32 %v8225, %v8226
      %v8258 = vadd.f32 %v8257, %v8227
      %v8259 = vadd.f32 %v8258, %v8228
      %v8260 = vadd.f32 %v8259, %v8229
      %v8261 = vadd.f32 %v8260, %v8230
      %v8262 = vadd.f32 %v8261, %v8231
      %v8263 = vadd.f32 %v8262, %v8232
      %v8264 = vadd.f32 %v8263, %v8233
      %v8265 = vadd.f32 %v8264, %v8234
      %v8266 = vadd.f32 %v8265, %v8235
      %v8267 = vadd.f32 %v8266, %v8236
      %v8268 = vadd.f32 %v8267, %v8237
      %v8269 = vadd.f32 %v8268, %v8238
      %v8270 = vadd.f32 %v8269, %v8239
      %v8271 = vadd.f32 %v8270, %v8240
      %v8272 = vadd.f32 %v8271, %v8241
      %v8273 = vadd.f32 %v8272, %v8242
      %v8274 = vadd.f32 %v8273, %v8243
      %v8275 = vadd.f32 %v8274, %v8244
      %v8276 = vadd.f32 %v8275, %v8245
      %v8277 = vadd.f32 %v8276, %v8246
      %v8278 = vadd.f32 %v8277, %v8247
      %v8279 = vadd.f32 %v8278, %v8248
      %v8280 = vadd.f32 %v8279, %v8249
      %v8281 = vadd.f32 %v8280, %v8250
      %v8282 = vadd.f32 %v8281, %v8251
      %v8283 = vadd.f32 %v8282, %v8252
      %v8284 = vadd.f32 %v8283, %v8253
      %v8285 = vadd.f32 %v8284, %v8254
      %v8286 = vadd.f32 %v8285, %v8255
      %v8287 = vadd.f32 %v8286, %v8256
      %v8288 = vrot.slane %v8287, 4
      %v8289 = vadd.f32 %v8287, %v8288
      %v8290 = vrot.slane %v8289, 2
      %v8291 = vadd.f32 %v8289, %v8290
      %v8292 = vrot.slane %v8291, 1
      %v8293 = vadd.f32 %v8291, %v8292
      %v8294 = vadd.f32 %v7337, %v8293
      %s8295 = scalar_lea.vmem [#allocation3], 768
      %8296 = vst [vmem:[%s8295] sm:$0xff] %v8061
      %8297 = vst [vmem:[%s8295 + $0x8] sm:$0xff] %v8064
      %8298 = vst [vmem:[%s8295 + $0x10] sm:$0xff] %v8069
      %8299 = vst [vmem:[%s8295 + $0x18] sm:$0xff] %v8072
      %8300 = vst [vmem:[%s8295 + $0x20] sm:$0xff] %v8077
      %8301 = vst [vmem:[%s8295 + $0x28] sm:$0xff] %v8080
      %8302 = vst [vmem:[%s8295 + $0x30] sm:$0xff] %v8085
      %8303 = vst [vmem:[%s8295 + $0x38] sm:$0xff] %v8088
      %8304 = vst [vmem:[%s8295 + $0x40] sm:$0xff] %v8093
      %8305 = vst [vmem:[%s8295 + $0x48] sm:$0xff] %v8096
      %8306 = vst [vmem:[%s8295 + $0x50] sm:$0xff] %v8101
      %8307 = vst [vmem:[%s8295 + $0x58] sm:$0xff] %v8104
      %8308 = vst [vmem:[%s8295 + $0x60] sm:$0xff] %v8109
      %8309 = vst [vmem:[%s8295 + $0x68] sm:$0xff] %v8112
      %8310 = vst [vmem:[%s8295 + $0x70] sm:$0xff] %v8117
      %8311 = vst [vmem:[%s8295 + $0x78] sm:$0xff] %v8120
      %8312 = vst [vmem:[%s8295 + $0x80] sm:$0xff] %v8125
      %8313 = vst [vmem:[%s8295 + $0x88] sm:$0xff] %v8128
      %8314 = vst [vmem:[%s8295 + $0x90] sm:$0xff] %v8133
      %8315 = vst [vmem:[%s8295 + $0x98] sm:$0xff] %v8136
      %8316 = vst [vmem:[%s8295 + $0xa0] sm:$0xff] %v8141
      %8317 = vst [vmem:[%s8295 + $0xa8] sm:$0xff] %v8144
      %8318 = vst [vmem:[%s8295 + $0xb0] sm:$0xff] %v8149
      %8319 = vst [vmem:[%s8295 + $0xb8] sm:$0xff] %v8152
      %8320 = vst [vmem:[%s8295 + $0xc0] sm:$0xff] %v8157
      %8321 = vst [vmem:[%s8295 + $0xc8] sm:$0xff] %v8160
      %8322 = vst [vmem:[%s8295 + $0xd0] sm:$0xff] %v8165
      %8323 = vst [vmem:[%s8295 + $0xd8] sm:$0xff] %v8168
      %8324 = vst [vmem:[%s8295 + $0xe0] sm:$0xff] %v8173
      %8325 = vst [vmem:[%s8295 + $0xe8] sm:$0xff] %v8176
      %8326 = vst [vmem:[%s8295 + $0xf0] sm:$0xff] %v8181
      %8327 = vst [vmem:[%s8295 + $0xf8] sm:$0xff] %v8184
      %v8328 = vmul.f32 %v8224, 0.0009765625
      %v8329 = vmul.f32 %v8294, 0.0009765625
      %v8330 = vmul.f32 %v8328, %v8328
      %v8331 = vsub.f32 %v8329, %v8330
      %v8332 = vadd.f32 %v8331, 1e-05
      %v8333 = vrsqrt.pop %v8332
      %v8334 = vld [vmem:[#allocation3] sm:$0xff]
      %v8335 = vld [vmem:[#allocation3 + $0x8] sm:$0xff]
      %v8336 = vld [vmem:[#allocation3 + $0x10] sm:$0xff]
      %v8337 = vld [vmem:[#allocation3 + $0x18] sm:$0xff]
      %v8338 = vld [vmem:[#allocation3 + $0x20] sm:$0xff]
      %v8339 = vld [vmem:[#allocation3 + $0x28] sm:$0xff]
      %v8340 = vld [vmem:[#allocation3 + $0x30] sm:$0xff]
      %v8341 = vld [vmem:[#allocation3 + $0x38] sm:$0xff]
      %v8342 = vld [vmem:[#allocation3 + $0x40] sm:$0xff]
      %v8343 = vld [vmem:[#allocation3 + $0x48] sm:$0xff]
      %v8344 = vld [vmem:[#allocation3 + $0x50] sm:$0xff]
      %v8345 = vld [vmem:[#allocation3 + $0x58] sm:$0xff]
      %v8346 = vld [vmem:[#allocation3 + $0x60] sm:$0xff]
      %v8347 = vld [vmem:[#allocation3 + $0x68] sm:$0xff]
      %v8348 = vld [vmem:[#allocation3 + $0x70] sm:$0xff]
      %v8349 = vld [vmem:[#allocation3 + $0x78] sm:$0xff]
      %v8350 = vld [vmem:[#allocation3 + $0x80] sm:$0xff]
      %v8351 = vld [vmem:[#allocation3 + $0x88] sm:$0xff]
      %v8352 = vld [vmem:[#allocation3 + $0x90] sm:$0xff]
      %v8353 = vld [vmem:[#allocation3 + $0x98] sm:$0xff]
      %v8354 = vld [vmem:[#allocation3 + $0xa0] sm:$0xff]
      %v8355 = vld [vmem:[#allocation3 + $0xa8] sm:$0xff]
      %v8356 = vld [vmem:[#allocation3 + $0xb0] sm:$0xff]
      %v8357 = vld [vmem:[#allocation3 + $0xb8] sm:$0xff]
      %v8358 = vld [vmem:[#allocation3 + $0xc0] sm:$0xff]
      %v8359 = vld [vmem:[#allocation3 + $0xc8] sm:$0xff]
      %v8360 = vld [vmem:[#allocation3 + $0xd0] sm:$0xff]
      %v8361 = vld [vmem:[#allocation3 + $0xd8] sm:$0xff]
      %v8362 = vld [vmem:[#allocation3 + $0xe0] sm:$0xff]
      %v8363 = vld [vmem:[#allocation3 + $0xe8] sm:$0xff]
      %v8364 = vld [vmem:[#allocation3 + $0xf0] sm:$0xff]
      %v8365 = vld [vmem:[#allocation3 + $0xf8] sm:$0xff]
      %v8366 = vsub.f32 %v8334, %v8328
      %v8367 = vsub.f32 %v8335, %v8328
      %v8368 = vsub.f32 %v8336, %v8328
      %v8369 = vsub.f32 %v8337, %v8328
      %v8370 = vsub.f32 %v8338, %v8328
      %v8371 = vsub.f32 %v8339, %v8328
      %v8372 = vsub.f32 %v8340, %v8328
      %v8373 = vsub.f32 %v8341, %v8328
      %v8374 = vsub.f32 %v8342, %v8328
      %v8375 = vsub.f32 %v8343, %v8328
      %v8376 = vsub.f32 %v8344, %v8328
      %v8377 = vsub.f32 %v8345, %v8328
      %v8378 = vsub.f32 %v8346, %v8328
      %v8379 = vsub.f32 %v8347, %v8328
      %v8380 = vsub.f32 %v8348, %v8328
      %v8381 = vsub.f32 %v8349, %v8328
      %v8382 = vsub.f32 %v8350, %v8328
      %v8383 = vsub.f32 %v8351, %v8328
      %v8384 = vsub.f32 %v8352, %v8328
      %v8385 = vsub.f32 %v8353, %v8328
      %v8386 = vsub.f32 %v8354, %v8328
      %v8387 = vsub.f32 %v8355, %v8328
      %v8388 = vsub.f32 %v8356, %v8328
      %v8389 = vsub.f32 %v8357, %v8328
      %v8390 = vsub.f32 %v8358, %v8328
      %v8391 = vsub.f32 %v8359, %v8328
      %v8392 = vsub.f32 %v8360, %v8328
      %v8393 = vsub.f32 %v8361, %v8328
      %v8394 = vsub.f32 %v8362, %v8328
      %v8395 = vsub.f32 %v8363, %v8328
      %v8396 = vsub.f32 %v8364, %v8328
      %v8397 = vsub.f32 %v8365, %v8328
      %v8398 = vmul.f32 %v8366, %v8333
      %v8399 = vmul.f32 %v8367, %v8333
      %v8400 = vmul.f32 %v8368, %v8333
      %v8401 = vmul.f32 %v8369, %v8333
      %v8402 = vmul.f32 %v8370, %v8333
      %v8403 = vmul.f32 %v8371, %v8333
      %v8404 = vmul.f32 %v8372, %v8333
      %v8405 = vmul.f32 %v8373, %v8333
      %v8406 = vmul.f32 %v8374, %v8333
      %v8407 = vmul.f32 %v8375, %v8333
      %v8408 = vmul.f32 %v8376, %v8333
      %v8409 = vmul.f32 %v8377, %v8333
      %v8410 = vmul.f32 %v8378, %v8333
      %v8411 = vmul.f32 %v8379, %v8333
      %v8412 = vmul.f32 %v8380, %v8333
      %v8413 = vmul.f32 %v8381, %v8333
      %v8414 = vmul.f32 %v8382, %v8333
      %v8415 = vmul.f32 %v8383, %v8333
      %v8416 = vmul.f32 %v8384, %v8333
      %v8417 = vmul.f32 %v8385, %v8333
      %v8418 = vmul.f32 %v8386, %v8333
      %v8419 = vmul.f32 %v8387, %v8333
      %v8420 = vmul.f32 %v8388, %v8333
      %v8421 = vmul.f32 %v8389, %v8333
      %v8422 = vmul.f32 %v8390, %v8333
      %v8423 = vmul.f32 %v8391, %v8333
      %v8424 = vmul.f32 %v8392, %v8333
      %v8425 = vmul.f32 %v8393, %v8333
      %v8426 = vmul.f32 %v8394, %v8333
      %v8427 = vmul.f32 %v8395, %v8333
      %v8428 = vmul.f32 %v8396, %v8333
      %v8429 = vmul.f32 %v8397, %v8333
      %vm8430 = vcmp.ge.f32.partialorder %v8398, 0.0
      %vm8431 = vcmp.ge.f32.partialorder %v8399, 0.0
      %vm8432 = vcmp.ge.f32.partialorder %v8400, 0.0
      %vm8433 = vcmp.ge.f32.partialorder %v8401, 0.0
      %vm8434 = vcmp.ge.f32.partialorder %v8402, 0.0
      %vm8435 = vcmp.ge.f32.partialorder %v8403, 0.0
      %vm8436 = vcmp.ge.f32.partialorder %v8404, 0.0
      %vm8437 = vcmp.ge.f32.partialorder %v8405, 0.0
      %vm8438 = vcmp.ge.f32.partialorder %v8406, 0.0
      %vm8439 = vcmp.ge.f32.partialorder %v8407, 0.0
      %vm8440 = vcmp.ge.f32.partialorder %v8408, 0.0
      %vm8441 = vcmp.ge.f32.partialorder %v8409, 0.0
      %vm8442 = vcmp.ge.f32.partialorder %v8410, 0.0
      %vm8443 = vcmp.ge.f32.partialorder %v8411, 0.0
      %vm8444 = vcmp.ge.f32.partialorder %v8412, 0.0
      %vm8445 = vcmp.ge.f32.partialorder %v8413, 0.0
      %vm8446 = vcmp.ge.f32.partialorder %v8414, 0.0
      %vm8447 = vcmp.ge.f32.partialorder %v8415, 0.0
      %vm8448 = vcmp.ge.f32.partialorder %v8416, 0.0
      %vm8449 = vcmp.ge.f32.partialorder %v8417, 0.0
      %vm8450 = vcmp.ge.f32.partialorder %v8418, 0.0
      %vm8451 = vcmp.ge.f32.partialorder %v8419, 0.0
      %vm8452 = vcmp.ge.f32.partialorder %v8420, 0.0
      %vm8453 = vcmp.ge.f32.partialorder %v8421, 0.0
      %vm8454 = vcmp.ge.f32.partialorder %v8422, 0.0
      %vm8455 = vcmp.ge.f32.partialorder %v8423, 0.0
      %vm8456 = vcmp.ge.f32.partialorder %v8424, 0.0
      %vm8457 = vcmp.ge.f32.partialorder %v8425, 0.0
      %vm8458 = vcmp.ge.f32.partialorder %v8426, 0.0
      %vm8459 = vcmp.ge.f32.partialorder %v8427, 0.0
      %vm8460 = vcmp.ge.f32.partialorder %v8428, 0.0
      %vm8461 = vcmp.ge.f32.partialorder %v8429, 0.0
      %v8462 = vmul.f32 %v8398, 0.01
      %v8463 = vmul.f32 %v8399, 0.01
      %v8464 = vmul.f32 %v8400, 0.01
      %v8465 = vmul.f32 %v8401, 0.01
      %v8466 = vmul.f32 %v8402, 0.01
      %v8467 = vmul.f32 %v8403, 0.01
      %v8468 = vmul.f32 %v8404, 0.01
      %v8469 = vmul.f32 %v8405, 0.01
      %v8470 = vmul.f32 %v8406, 0.01
      %v8471 = vmul.f32 %v8407, 0.01
      %v8472 = vmul.f32 %v8408, 0.01
      %v8473 = vmul.f32 %v8409, 0.01
      %v8474 = vmul.f32 %v8410, 0.01
      %v8475 = vmul.f32 %v8411, 0.01
      %v8476 = vmul.f32 %v8412, 0.01
      %v8477 = vmul.f32 %v8413, 0.01
      %v8478 = vmul.f32 %v8414, 0.01
      %v8479 = vmul.f32 %v8415, 0.01
      %v8480 = vmul.f32 %v8416, 0.01
      %v8481 = vmul.f32 %v8417, 0.01
      %v8482 = vmul.f32 %v8418, 0.01
      %v8483 = vmul.f32 %v8419, 0.01
      %v8484 = vmul.f32 %v8420, 0.01
      %v8485 = vmul.f32 %v8421, 0.01
      %v8486 = vmul.f32 %v8422, 0.01
      %v8487 = vmul.f32 %v8423, 0.01
      %v8488 = vmul.f32 %v8424, 0.01
      %v8489 = vmul.f32 %v8425, 0.01
      %v8490 = vmul.f32 %v8426, 0.01
      %v8491 = vmul.f32 %v8427, 0.01
      %v8492 = vmul.f32 %v8428, 0.01
      %v8493 = vmul.f32 %v8429, 0.01
      %v8494 = vsel %vm8430, %v8398, %v8462
      %v8495 = vsel %vm8431, %v8399, %v8463
      %v8496 = vsel %vm8432, %v8400, %v8464
      %v8497 = vsel %vm8433, %v8401, %v8465
      %v8498 = vsel %vm8434, %v8402, %v8466
      %v8499 = vsel %vm8435, %v8403, %v8467
      %v8500 = vsel %vm8436, %v8404, %v8468
      %v8501 = vsel %vm8437, %v8405, %v8469
      %v8502 = vsel %vm8438, %v8406, %v8470
      %v8503 = vsel %vm8439, %v8407, %v8471
      %v8504 = vsel %vm8440, %v8408, %v8472
      %v8505 = vsel %vm8441, %v8409, %v8473
      %v8506 = vsel %vm8442, %v8410, %v8474
      %v8507 = vsel %vm8443, %v8411, %v8475
      %v8508 = vsel %vm8444, %v8412, %v8476
      %v8509 = vsel %vm8445, %v8413, %v8477
      %v8510 = vsel %vm8446, %v8414, %v8478
      %v8511 = vsel %vm8447, %v8415, %v8479
      %v8512 = vsel %vm8448, %v8416, %v8480
      %v8513 = vsel %vm8449, %v8417, %v8481
      %v8514 = vsel %vm8450, %v8418, %v8482
      %v8515 = vsel %vm8451, %v8419, %v8483
      %v8516 = vsel %vm8452, %v8420, %v8484
      %v8517 = vsel %vm8453, %v8421, %v8485
      %v8518 = vsel %vm8454, %v8422, %v8486
      %v8519 = vsel %vm8455, %v8423, %v8487
      %v8520 = vsel %vm8456, %v8424, %v8488
      %v8521 = vsel %vm8457, %v8425, %v8489
      %v8522 = vsel %vm8458, %v8426, %v8490
      %v8523 = vsel %vm8459, %v8427, %v8491
      %v8524 = vsel %vm8460, %v8428, %v8492
      %v8525 = vsel %vm8461, %v8429, %v8493
      %8526 = vst [vmem:[%s170] sm:$0xff] %v8494
      %8527 = vst [vmem:[%s170 + $0x8] sm:$0xff] %v8495
      %8528 = vst [vmem:[%s170 + $0x10] sm:$0xff] %v8496
      %8529 = vst [vmem:[%s170 + $0x18] sm:$0xff] %v8497
      %8530 = vst [vmem:[%s170 + $0x20] sm:$0xff] %v8498
      %8531 = vst [vmem:[%s170 + $0x28] sm:$0xff] %v8499
      %8532 = vst [vmem:[%s170 + $0x30] sm:$0xff] %v8500
      %8533 = vst [vmem:[%s170 + $0x38] sm:$0xff] %v8501
      %8534 = vst [vmem:[%s170 + $0x40] sm:$0xff] %v8502
      %8535 = vst [vmem:[%s170 + $0x48] sm:$0xff] %v8503
      %8536 = vst [vmem:[%s170 + $0x50] sm:$0xff] %v8504
      %8537 = vst [vmem:[%s170 + $0x58] sm:$0xff] %v8505
      %8538 = vst [vmem:[%s170 + $0x60] sm:$0xff] %v8506
      %8539 = vst [vmem:[%s170 + $0x68] sm:$0xff] %v8507
      %8540 = vst [vmem:[%s170 + $0x70] sm:$0xff] %v8508
      %8541 = vst [vmem:[%s170 + $0x78] sm:$0xff] %v8509
      %8542 = vst [vmem:[%s170 + $0x80] sm:$0xff] %v8510
      %8543 = vst [vmem:[%s170 + $0x88] sm:$0xff] %v8511
      %8544 = vst [vmem:[%s170 + $0x90] sm:$0xff] %v8512
      %8545 = vst [vmem:[%s170 + $0x98] sm:$0xff] %v8513
      %8546 = vst [vmem:[%s170 + $0xa0] sm:$0xff] %v8514
      %8547 = vst [vmem:[%s170 + $0xa8] sm:$0xff] %v8515
      %8548 = vst [vmem:[%s170 + $0xb0] sm:$0xff] %v8516
      %8549 = vst [vmem:[%s170 + $0xb8] sm:$0xff] %v8517
      %8550 = vst [vmem:[%s170 + $0xc0] sm:$0xff] %v8518
      %8551 = vst [vmem:[%s170 + $0xc8] sm:$0xff] %v8519
      %8552 = vst [vmem:[%s170 + $0xd0] sm:$0xff] %v8520
      %8553 = vst [vmem:[%s170 + $0xd8] sm:$0xff] %v8521
      %8554 = vst [vmem:[%s170 + $0xe0] sm:$0xff] %v8522
      %8555 = vst [vmem:[%s170 + $0xe8] sm:$0xff] %v8523
      %8556 = vst [vmem:[%s170 + $0xf0] sm:$0xff] %v8524
      %8557 = vst [vmem:[%s170 + $0xf8] sm:$0xff] %v8525
      %v8558 = vld [vmem:[%s6379] sm:$0xff]
      %v8559 = vld [vmem:[%s6379 + $0x8] sm:$0xff]
      %v8560 = vld [vmem:[%s6379 + $0x10] sm:$0xff]
      %v8561 = vld [vmem:[%s6379 + $0x18] sm:$0xff]
      %v8562 = vld [vmem:[%s6379 + $0x20] sm:$0xff]
      %v8563 = vld [vmem:[%s6379 + $0x28] sm:$0xff]
      %v8564 = vld [vmem:[%s6379 + $0x30] sm:$0xff]
      %v8565 = vld [vmem:[%s6379 + $0x38] sm:$0xff]
      %v8566 = vld [vmem:[%s6379 + $0x40] sm:$0xff]
      %v8567 = vld [vmem:[%s6379 + $0x48] sm:$0xff]
      %v8568 = vld [vmem:[%s6379 + $0x50] sm:$0xff]
      %v8569 = vld [vmem:[%s6379 + $0x58] sm:$0xff]
      %v8570 = vld [vmem:[%s6379 + $0x60] sm:$0xff]
      %v8571 = vld [vmem:[%s6379 + $0x68] sm:$0xff]
      %v8572 = vld [vmem:[%s6379 + $0x70] sm:$0xff]
      %v8573 = vld [vmem:[%s6379 + $0x78] sm:$0xff]
      %v8574 = vld [vmem:[%s6379 + $0x80] sm:$0xff]
      %v8575 = vld [vmem:[%s6379 + $0x88] sm:$0xff]
      %v8576 = vld [vmem:[%s6379 + $0x90] sm:$0xff]
      %v8577 = vld [vmem:[%s6379 + $0x98] sm:$0xff]
      %v8578 = vld [vmem:[%s6379 + $0xa0] sm:$0xff]
      %v8579 = vld [vmem:[%s6379 + $0xa8] sm:$0xff]
      %v8580 = vld [vmem:[%s6379 + $0xb0] sm:$0xff]
      %v8581 = vld [vmem:[%s6379 + $0xb8] sm:$0xff]
      %v8582 = vld [vmem:[%s6379 + $0xc0] sm:$0xff]
      %v8583 = vld [vmem:[%s6379 + $0xc8] sm:$0xff]
      %v8584 = vld [vmem:[%s6379 + $0xd0] sm:$0xff]
      %v8585 = vld [vmem:[%s6379 + $0xd8] sm:$0xff]
      %v8586 = vld [vmem:[%s6379 + $0xe0] sm:$0xff]
      %v8587 = vld [vmem:[%s6379 + $0xe8] sm:$0xff]
      %v8588 = vld [vmem:[%s6379 + $0xf0] sm:$0xff]
      %v8589 = vld [vmem:[%s6379 + $0xf8] sm:$0xff]
      %v8590 = vsub.f32 %v8558, %v8328
      %v8591 = vsub.f32 %v8559, %v8328
      %v8592 = vsub.f32 %v8560, %v8328
      %v8593 = vsub.f32 %v8561, %v8328
      %v8594 = vsub.f32 %v8562, %v8328
      %v8595 = vsub.f32 %v8563, %v8328
      %v8596 = vsub.f32 %v8564, %v8328
      %v8597 = vsub.f32 %v8565, %v8328
      %v8598 = vsub.f32 %v8566, %v8328
      %v8599 = vsub.f32 %v8567, %v8328
      %v8600 = vsub.f32 %v8568, %v8328
      %v8601 = vsub.f32 %v8569, %v8328
      %v8602 = vsub.f32 %v8570, %v8328
      %v8603 = vsub.f32 %v8571, %v8328
      %v8604 = vsub.f32 %v8572, %v8328
      %v8605 = vsub.f32 %v8573, %v8328
      %v8606 = vsub.f32 %v8574, %v8328
      %v8607 = vsub.f32 %v8575, %v8328
      %v8608 = vsub.f32 %v8576, %v8328
      %v8609 = vsub.f32 %v8577, %v8328
      %v8610 = vsub.f32 %v8578, %v8328
      %v8611 = vsub.f32 %v8579, %v8328
      %v8612 = vsub.f32 %v8580, %v8328
      %v8613 = vsub.f32 %v8581, %v8328
      %v8614 = vsub.f32 %v8582, %v8328
      %v8615 = vsub.f32 %v8583, %v8328
      %v8616 = vsub.f32 %v8584, %v8328
      %v8617 = vsub.f32 %v8585, %v8328
      %v8618 = vsub.f32 %v8586, %v8328
      %v8619 = vsub.f32 %v8587, %v8328
      %v8620 = vsub.f32 %v8588, %v8328
      %v8621 = vsub.f32 %v8589, %v8328
      %v8622 = vmul.f32 %v8590, %v8333
      %v8623 = vmul.f32 %v8591, %v8333
      %v8624 = vmul.f32 %v8592, %v8333
      %v8625 = vmul.f32 %v8593, %v8333
      %v8626 = vmul.f32 %v8594, %v8333
      %v8627 = vmul.f32 %v8595, %v8333
      %v8628 = vmul.f32 %v8596, %v8333
      %v8629 = vmul.f32 %v8597, %v8333
      %v8630 = vmul.f32 %v8598, %v8333
      %v8631 = vmul.f32 %v8599, %v8333
      %v8632 = vmul.f32 %v8600, %v8333
      %v8633 = vmul.f32 %v8601, %v8333
      %v8634 = vmul.f32 %v8602, %v8333
      %v8635 = vmul.f32 %v8603, %v8333
      %v8636 = vmul.f32 %v8604, %v8333
      %v8637 = vmul.f32 %v8605, %v8333
      %v8638 = vmul.f32 %v8606, %v8333
      %v8639 = vmul.f32 %v8607, %v8333
      %v8640 = vmul.f32 %v8608, %v8333
      %v8641 = vmul.f32 %v8609, %v8333
      %v8642 = vmul.f32 %v8610, %v8333
      %v8643 = vmul.f32 %v8611, %v8333
      %v8644 = vmul.f32 %v8612, %v8333
      %v8645 = vmul.f32 %v8613, %v8333
      %v8646 = vmul.f32 %v8614, %v8333
      %v8647 = vmul.f32 %v8615, %v8333
      %v8648 = vmul.f32 %v8616, %v8333
      %v8649 = vmul.f32 %v8617, %v8333
      %v8650 = vmul.f32 %v8618, %v8333
      %v8651 = vmul.f32 %v8619, %v8333
      %v8652 = vmul.f32 %v8620, %v8333
      %v8653 = vmul.f32 %v8621, %v8333
      %vm8654 = vcmp.ge.f32.partialorder %v8622, 0.0
      %vm8655 = vcmp.ge.f32.partialorder %v8623, 0.0
      %vm8656 = vcmp.ge.f32.partialorder %v8624, 0.0
      %vm8657 = vcmp.ge.f32.partialorder %v8625, 0.0
      %vm8658 = vcmp.ge.f32.partialorder %v8626, 0.0
      %vm8659 = vcmp.ge.f32.partialorder %v8627, 0.0
      %vm8660 = vcmp.ge.f32.partialorder %v8628, 0.0
      %vm8661 = vcmp.ge.f32.partialorder %v8629, 0.0
      %vm8662 = vcmp.ge.f32.partialorder %v8630, 0.0
      %vm8663 = vcmp.ge.f32.partialorder %v8631, 0.0
      %vm8664 = vcmp.ge.f32.partialorder %v8632, 0.0
      %vm8665 = vcmp.ge.f32.partialorder %v8633, 0.0
      %vm8666 = vcmp.ge.f32.partialorder %v8634, 0.0
      %vm8667 = vcmp.ge.f32.partialorder %v8635, 0.0
      %vm8668 = vcmp.ge.f32.partialorder %v8636, 0.0
      %vm8669 = vcmp.ge.f32.partialorder %v8637, 0.0
      %vm8670 = vcmp.ge.f32.partialorder %v8638, 0.0
      %vm8671 = vcmp.ge.f32.partialorder %v8639, 0.0
      %vm8672 = vcmp.ge.f32.partialorder %v8640, 0.0
      %vm8673 = vcmp.ge.f32.partialorder %v8641, 0.0
      %vm8674 = vcmp.ge.f32.partialorder %v8642, 0.0
      %vm8675 = vcmp.ge.f32.partialorder %v8643, 0.0
      %vm8676 = vcmp.ge.f32.partialorder %v8644, 0.0
      %vm8677 = vcmp.ge.f32.partialorder %v8645, 0.0
      %vm8678 = vcmp.ge.f32.partialorder %v8646, 0.0
      %vm8679 = vcmp.ge.f32.partialorder %v8647, 0.0
      %vm8680 = vcmp.ge.f32.partialorder %v8648, 0.0
      %vm8681 = vcmp.ge.f32.partialorder %v8649, 0.0
      %vm8682 = vcmp.ge.f32.partialorder %v8650, 0.0
      %vm8683 = vcmp.ge.f32.partialorder %v8651, 0.0
      %vm8684 = vcmp.ge.f32.partialorder %v8652, 0.0
      %vm8685 = vcmp.ge.f32.partialorder %v8653, 0.0
      %v8686 = vmul.f32 %v8622, 0.01
      %v8687 = vmul.f32 %v8623, 0.01
      %v8688 = vmul.f32 %v8624, 0.01
      %v8689 = vmul.f32 %v8625, 0.01
      %v8690 = vmul.f32 %v8626, 0.01
      %v8691 = vmul.f32 %v8627, 0.01
      %v8692 = vmul.f32 %v8628, 0.01
      %v8693 = vmul.f32 %v8629, 0.01
      %v8694 = vmul.f32 %v8630, 0.01
      %v8695 = vmul.f32 %v8631, 0.01
      %v8696 = vmul.f32 %v8632, 0.01
      %v8697 = vmul.f32 %v8633, 0.01
      %v8698 = vmul.f32 %v8634, 0.01
      %v8699 = vmul.f32 %v8635, 0.01
      %v8700 = vmul.f32 %v8636, 0.01
      %v8701 = vmul.f32 %v8637, 0.01
      %v8702 = vmul.f32 %v8638, 0.01
      %v8703 = vmul.f32 %v8639, 0.01
      %v8704 = vmul.f32 %v8640, 0.01
      %v8705 = vmul.f32 %v8641, 0.01
      %v8706 = vmul.f32 %v8642, 0.01
      %v8707 = vmul.f32 %v8643, 0.01
      %v8708 = vmul.f32 %v8644, 0.01
      %v8709 = vmul.f32 %v8645, 0.01
      %v8710 = vmul.f32 %v8646, 0.01
      %v8711 = vmul.f32 %v8647, 0.01
      %v8712 = vmul.f32 %v8648, 0.01
      %v8713 = vmul.f32 %v8649, 0.01
      %v8714 = vmul.f32 %v8650, 0.01
      %v8715 = vmul.f32 %v8651, 0.01
      %v8716 = vmul.f32 %v8652, 0.01
      %v8717 = vmul.f32 %v8653, 0.01
      %v8718 = vsel %vm8654, %v8622, %v8686
      %v8719 = vsel %vm8655, %v8623, %v8687
      %v8720 = vsel %vm8656, %v8624, %v8688
      %v8721 = vsel %vm8657, %v8625, %v8689
      %v8722 = vsel %vm8658, %v8626, %v8690
      %v8723 = vsel %vm8659, %v8627, %v8691
      %v8724 = vsel %vm8660, %v8628, %v8692
      %v8725 = vsel %vm8661, %v8629, %v8693
      %v8726 = vsel %vm8662, %v8630, %v8694
      %v8727 = vsel %vm8663, %v8631, %v8695
      %v8728 = vsel %vm8664, %v8632, %v8696
      %v8729 = vsel %vm8665, %v8633, %v8697
      %v8730 = vsel %vm8666, %v8634, %v8698
      %v8731 = vsel %vm8667, %v8635, %v8699
      %v8732 = vsel %vm8668, %v8636, %v8700
      %v8733 = vsel %vm8669, %v8637, %v8701
      %v8734 = vsel %vm8670, %v8638, %v8702
      %v8735 = vsel %vm8671, %v8639, %v8703
      %v8736 = vsel %vm8672, %v8640, %v8704
      %v8737 = vsel %vm8673, %v8641, %v8705
      %v8738 = vsel %vm8674, %v8642, %v8706
      %v8739 = vsel %vm8675, %v8643, %v8707
      %v8740 = vsel %vm8676, %v8644, %v8708
      %v8741 = vsel %vm8677, %v8645, %v8709
      %v8742 = vsel %vm8678, %v8646, %v8710
      %v8743 = vsel %vm8679, %v8647, %v8711
      %v8744 = vsel %vm8680, %v8648, %v8712
      %v8745 = vsel %vm8681, %v8649, %v8713
      %v8746 = vsel %vm8682, %v8650, %v8714
      %v8747 = vsel %vm8683, %v8651, %v8715
      %v8748 = vsel %vm8684, %v8652, %v8716
      %v8749 = vsel %vm8685, %v8653, %v8717
      %s8750 = scalar_lea.vmem %s170, 256
      %8751 = vst [vmem:[%s8750] sm:$0xff] %v8718
      %8752 = vst [vmem:[%s8750 + $0x8] sm:$0xff] %v8719
      %8753 = vst [vmem:[%s8750 + $0x10] sm:$0xff] %v8720
      %8754 = vst [vmem:[%s8750 + $0x18] sm:$0xff] %v8721
      %8755 = vst [vmem:[%s8750 + $0x20] sm:$0xff] %v8722
      %8756 = vst [vmem:[%s8750 + $0x28] sm:$0xff] %v8723
      %8757 = vst [vmem:[%s8750 + $0x30] sm:$0xff] %v8724
      %8758 = vst [vmem:[%s8750 + $0x38] sm:$0xff] %v8725
      %8759 = vst [vmem:[%s8750 + $0x40] sm:$0xff] %v8726
      %8760 = vst [vmem:[%s8750 + $0x48] sm:$0xff] %v8727
      %8761 = vst [vmem:[%s8750 + $0x50] sm:$0xff] %v8728
      %8762 = vst [vmem:[%s8750 + $0x58] sm:$0xff] %v8729
      %8763 = vst [vmem:[%s8750 + $0x60] sm:$0xff] %v8730
      %8764 = vst [vmem:[%s8750 + $0x68] sm:$0xff] %v8731
      %8765 = vst [vmem:[%s8750 + $0x70] sm:$0xff] %v8732
      %8766 = vst [vmem:[%s8750 + $0x78] sm:$0xff] %v8733
      %8767 = vst [vmem:[%s8750 + $0x80] sm:$0xff] %v8734
      %8768 = vst [vmem:[%s8750 + $0x88] sm:$0xff] %v8735
      %8769 = vst [vmem:[%s8750 + $0x90] sm:$0xff] %v8736
      %8770 = vst [vmem:[%s8750 + $0x98] sm:$0xff] %v8737
      %8771 = vst [vmem:[%s8750 + $0xa0] sm:$0xff] %v8738
      %8772 = vst [vmem:[%s8750 + $0xa8] sm:$0xff] %v8739
      %8773 = vst [vmem:[%s8750 + $0xb0] sm:$0xff] %v8740
      %8774 = vst [vmem:[%s8750 + $0xb8] sm:$0xff] %v8741
      %8775 = vst [vmem:[%s8750 + $0xc0] sm:$0xff] %v8742
      %8776 = vst [vmem:[%s8750 + $0xc8] sm:$0xff] %v8743
      %8777 = vst [vmem:[%s8750 + $0xd0] sm:$0xff] %v8744
      %8778 = vst [vmem:[%s8750 + $0xd8] sm:$0xff] %v8745
      %8779 = vst [vmem:[%s8750 + $0xe0] sm:$0xff] %v8746
      %8780 = vst [vmem:[%s8750 + $0xe8] sm:$0xff] %v8747
      %8781 = vst [vmem:[%s8750 + $0xf0] sm:$0xff] %v8748
      %8782 = vst [vmem:[%s8750 + $0xf8] sm:$0xff] %v8749
      %v8783 = vld [vmem:[%s7338] sm:$0xff]
      %v8784 = vld [vmem:[%s7338 + $0x8] sm:$0xff]
      %v8785 = vld [vmem:[%s7338 + $0x10] sm:$0xff]
      %v8786 = vld [vmem:[%s7338 + $0x18] sm:$0xff]
      %v8787 = vld [vmem:[%s7338 + $0x20] sm:$0xff]
      %v8788 = vld [vmem:[%s7338 + $0x28] sm:$0xff]
      %v8789 = vld [vmem:[%s7338 + $0x30] sm:$0xff]
      %v8790 = vld [vmem:[%s7338 + $0x38] sm:$0xff]
      %v8791 = vld [vmem:[%s7338 + $0x40] sm:$0xff]
      %v8792 = vld [vmem:[%s7338 + $0x48] sm:$0xff]
      %v8793 = vld [vmem:[%s7338 + $0x50] sm:$0xff]
      %v8794 = vld [vmem:[%s7338 + $0x58] sm:$0xff]
      %v8795 = vld [vmem:[%s7338 + $0x60] sm:$0xff]
      %v8796 = vld [vmem:[%s7338 + $0x68] sm:$0xff]
      %v8797 = vld [vmem:[%s7338 + $0x70] sm:$0xff]
      %v8798 = vld [vmem:[%s7338 + $0x78] sm:$0xff]
      %v8799 = vld [vmem:[%s7338 + $0x80] sm:$0xff]
      %v8800 = vld [vmem:[%s7338 + $0x88] sm:$0xff]
      %v8801 = vld [vmem:[%s7338 + $0x90] sm:$0xff]
      %v8802 = vld [vmem:[%s7338 + $0x98] sm:$0xff]
      %v8803 = vld [vmem:[%s7338 + $0xa0] sm:$0xff]
      %v8804 = vld [vmem:[%s7338 + $0xa8] sm:$0xff]
      %v8805 = vld [vmem:[%s7338 + $0xb0] sm:$0xff]
      %v8806 = vld [vmem:[%s7338 + $0xb8] sm:$0xff]
      %v8807 = vld [vmem:[%s7338 + $0xc0] sm:$0xff]
      %v8808 = vld [vmem:[%s7338 + $0xc8] sm:$0xff]
      %v8809 = vld [vmem:[%s7338 + $0xd0] sm:$0xff]
      %v8810 = vld [vmem:[%s7338 + $0xd8] sm:$0xff]
      %v8811 = vld [vmem:[%s7338 + $0xe0] sm:$0xff]
      %v8812 = vld [vmem:[%s7338 + $0xe8] sm:$0xff]
      %v8813 = vld [vmem:[%s7338 + $0xf0] sm:$0xff]
      %v8814 = vld [vmem:[%s7338 + $0xf8] sm:$0xff]
      %v8815 = vsub.f32 %v8783, %v8328
      %v8816 = vsub.f32 %v8784, %v8328
      %v8817 = vsub.f32 %v8785, %v8328
      %v8818 = vsub.f32 %v8786, %v8328
      %v8819 = vsub.f32 %v8787, %v8328
      %v8820 = vsub.f32 %v8788, %v8328
      %v8821 = vsub.f32 %v8789, %v8328
      %v8822 = vsub.f32 %v8790, %v8328
      %v8823 = vsub.f32 %v8791, %v8328
      %v8824 = vsub.f32 %v8792, %v8328
      %v8825 = vsub.f32 %v8793, %v8328
      %v8826 = vsub.f32 %v8794, %v8328
      %v8827 = vsub.f32 %v8795, %v8328
      %v8828 = vsub.f32 %v8796, %v8328
      %v8829 = vsub.f32 %v8797, %v8328
      %v8830 = vsub.f32 %v8798, %v8328
      %v8831 = vsub.f32 %v8799, %v8328
      %v8832 = vsub.f32 %v8800, %v8328
      %v8833 = vsub.f32 %v8801, %v8328
      %v8834 = vsub.f32 %v8802, %v8328
      %v8835 = vsub.f32 %v8803, %v8328
      %v8836 = vsub.f32 %v8804, %v8328
      %v8837 = vsub.f32 %v8805, %v8328
      %v8838 = vsub.f32 %v8806, %v8328
      %v8839 = vsub.f32 %v8807, %v8328
      %v8840 = vsub.f32 %v8808, %v8328
      %v8841 = vsub.f32 %v8809, %v8328
      %v8842 = vsub.f32 %v8810, %v8328
      %v8843 = vsub.f32 %v8811, %v8328
      %v8844 = vsub.f32 %v8812, %v8328
      %v8845 = vsub.f32 %v8813, %v8328
      %v8846 = vsub.f32 %v8814, %v8328
      %v8847 = vmul.f32 %v8815, %v8333
      %v8848 = vmul.f32 %v8816, %v8333
      %v8849 = vmul.f32 %v8817, %v8333
      %v8850 = vmul.f32 %v8818, %v8333
      %v8851 = vmul.f32 %v8819, %v8333
      %v8852 = vmul.f32 %v8820, %v8333
      %v8853 = vmul.f32 %v8821, %v8333
      %v8854 = vmul.f32 %v8822, %v8333
      %v8855 = vmul.f32 %v8823, %v8333
      %v8856 = vmul.f32 %v8824, %v8333
      %v8857 = vmul.f32 %v8825, %v8333
      %v8858 = vmul.f32 %v8826, %v8333
      %v8859 = vmul.f32 %v8827, %v8333
      %v8860 = vmul.f32 %v8828, %v8333
      %v8861 = vmul.f32 %v8829, %v8333
      %v8862 = vmul.f32 %v8830, %v8333
      %v8863 = vmul.f32 %v8831, %v8333
      %v8864 = vmul.f32 %v8832, %v8333
      %v8865 = vmul.f32 %v8833, %v8333
      %v8866 = vmul.f32 %v8834, %v8333
      %v8867 = vmul.f32 %v8835, %v8333
      %v8868 = vmul.f32 %v8836, %v8333
      %v8869 = vmul.f32 %v8837, %v8333
      %v8870 = vmul.f32 %v8838, %v8333
      %v8871 = vmul.f32 %v8839, %v8333
      %v8872 = vmul.f32 %v8840, %v8333
      %v8873 = vmul.f32 %v8841, %v8333
      %v8874 = vmul.f32 %v8842, %v8333
      %v8875 = vmul.f32 %v8843, %v8333
      %v8876 = vmul.f32 %v8844, %v8333
      %v8877 = vmul.f32 %v8845, %v8333
      %v8878 = vmul.f32 %v8846, %v8333
      %vm8879 = vcmp.ge.f32.partialorder %v8847, 0.0
      %vm8880 = vcmp.ge.f32.partialorder %v8848, 0.0
      %vm8881 = vcmp.ge.f32.partialorder %v8849, 0.0
      %vm8882 = vcmp.ge.f32.partialorder %v8850, 0.0
      %vm8883 = vcmp.ge.f32.partialorder %v8851, 0.0
      %vm8884 = vcmp.ge.f32.partialorder %v8852, 0.0
      %vm8885 = vcmp.ge.f32.partialorder %v8853, 0.0
      %vm8886 = vcmp.ge.f32.partialorder %v8854, 0.0
      %vm8887 = vcmp.ge.f32.partialorder %v8855, 0.0
      %vm8888 = vcmp.ge.f32.partialorder %v8856, 0.0
      %vm8889 = vcmp.ge.f32.partialorder %v8857, 0.0
      %vm8890 = vcmp.ge.f32.partialorder %v8858, 0.0
      %vm8891 = vcmp.ge.f32.partialorder %v8859, 0.0
      %vm8892 = vcmp.ge.f32.partialorder %v8860, 0.0
      %vm8893 = vcmp.ge.f32.partialorder %v8861, 0.0
      %vm8894 = vcmp.ge.f32.partialorder %v8862, 0.0
      %vm8895 = vcmp.ge.f32.partialorder %v8863, 0.0
      %vm8896 = vcmp.ge.f32.partialorder %v8864, 0.0
      %vm8897 = vcmp.ge.f32.partialorder %v8865, 0.0
      %vm8898 = vcmp.ge.f32.partialorder %v8866, 0.0
      %vm8899 = vcmp.ge.f32.partialorder %v8867, 0.0
      %vm8900 = vcmp.ge.f32.partialorder %v8868, 0.0
      %vm8901 = vcmp.ge.f32.partialorder %v8869, 0.0
      %vm8902 = vcmp.ge.f32.partialorder %v8870, 0.0
      %vm8903 = vcmp.ge.f32.partialorder %v8871, 0.0
      %vm8904 = vcmp.ge.f32.partialorder %v8872, 0.0
      %vm8905 = vcmp.ge.f32.partialorder %v8873, 0.0
      %vm8906 = vcmp.ge.f32.partialorder %v8874, 0.0
      %vm8907 = vcmp.ge.f32.partialorder %v8875, 0.0
      %vm8908 = vcmp.ge.f32.partialorder %v8876, 0.0
      %vm8909 = vcmp.ge.f32.partialorder %v8877, 0.0
      %vm8910 = vcmp.ge.f32.partialorder %v8878, 0.0
      %v8911 = vmul.f32 %v8847, 0.01
      %v8912 = vmul.f32 %v8848, 0.01
      %v8913 = vmul.f32 %v8849, 0.01
      %v8914 = vmul.f32 %v8850, 0.01
      %v8915 = vmul.f32 %v8851, 0.01
      %v8916 = vmul.f32 %v8852, 0.01
      %v8917 = vmul.f32 %v8853, 0.01
      %v8918 = vmul.f32 %v8854, 0.01
      %v8919 = vmul.f32 %v8855, 0.01
      %v8920 = vmul.f32 %v8856, 0.01
      %v8921 = vmul.f32 %v8857, 0.01
      %v8922 = vmul.f32 %v8858, 0.01
      %v8923 = vmul.f32 %v8859, 0.01
      %v8924 = vmul.f32 %v8860, 0.01
      %v8925 = vmul.f32 %v8861, 0.01
      %v8926 = vmul.f32 %v8862, 0.01
      %v8927 = vmul.f32 %v8863, 0.01
      %v8928 = vmul.f32 %v8864, 0.01
      %v8929 = vmul.f32 %v8865, 0.01
      %v8930 = vmul.f32 %v8866, 0.01
      %v8931 = vmul.f32 %v8867, 0.01
      %v8932 = vmul.f32 %v8868, 0.01
      %v8933 = vmul.f32 %v8869, 0.01
      %v8934 = vmul.f32 %v8870, 0.01
      %v8935 = vmul.f32 %v8871, 0.01
      %v8936 = vmul.f32 %v8872, 0.01
      %v8937 = vmul.f32 %v8873, 0.01
      %v8938 = vmul.f32 %v8874, 0.01
      %v8939 = vmul.f32 %v8875, 0.01
      %v8940 = vmul.f32 %v8876, 0.01
      %v8941 = vmul.f32 %v8877, 0.01
      %v8942 = vmul.f32 %v8878, 0.01
      %v8943 = vsel %vm8879, %v8847, %v8911
      %v8944 = vsel %vm8880, %v8848, %v8912
      %v8945 = vsel %vm8881, %v8849, %v8913
      %v8946 = vsel %vm8882, %v8850, %v8914
      %v8947 = vsel %vm8883, %v8851, %v8915
      %v8948 = vsel %vm8884, %v8852, %v8916
      %v8949 = vsel %vm8885, %v8853, %v8917
      %v8950 = vsel %vm8886, %v8854, %v8918
      %v8951 = vsel %vm8887, %v8855, %v8919
      %v8952 = vsel %vm8888, %v8856, %v8920
      %v8953 = vsel %vm8889, %v8857, %v8921
      %v8954 = vsel %vm8890, %v8858, %v8922
      %v8955 = vsel %vm8891, %v8859, %v8923
      %v8956 = vsel %vm8892, %v8860, %v8924
      %v8957 = vsel %vm8893, %v8861, %v8925
      %v8958 = vsel %vm8894, %v8862, %v8926
      %v8959 = vsel %vm8895, %v8863, %v8927
      %v8960 = vsel %vm8896, %v8864, %v8928
      %v8961 = vsel %vm8897, %v8865, %v8929
      %v8962 = vsel %vm8898, %v8866, %v8930
      %v8963 = vsel %vm8899, %v8867, %v8931
      %v8964 = vsel %vm8900, %v8868, %v8932
      %v8965 = vsel %vm8901, %v8869, %v8933
      %v8966 = vsel %vm8902, %v8870, %v8934
      %v8967 = vsel %vm8903, %v8871, %v8935
      %v8968 = vsel %vm8904, %v8872, %v8936
      %v8969 = vsel %vm8905, %v8873, %v8937
      %v8970 = vsel %vm8906, %v8874, %v8938
      %v8971 = vsel %vm8907, %v8875, %v8939
      %v8972 = vsel %vm8908, %v8876, %v8940
      %v8973 = vsel %vm8909, %v8877, %v8941
      %v8974 = vsel %vm8910, %v8878, %v8942
      %s8975 = scalar_lea.vmem %s170, 512
      %8976 = vst [vmem:[%s8975] sm:$0xff] %v8943
      %8977 = vst [vmem:[%s8975 + $0x8] sm:$0xff] %v8944
      %8978 = vst [vmem:[%s8975 + $0x10] sm:$0xff] %v8945
      %8979 = vst [vmem:[%s8975 + $0x18] sm:$0xff] %v8946
      %8980 = vst [vmem:[%s8975 + $0x20] sm:$0xff] %v8947
      %8981 = vst [vmem:[%s8975 + $0x28] sm:$0xff] %v8948
      %8982 = vst [vmem:[%s8975 + $0x30] sm:$0xff] %v8949
      %8983 = vst [vmem:[%s8975 + $0x38] sm:$0xff] %v8950
      %8984 = vst [vmem:[%s8975 + $0x40] sm:$0xff] %v8951
      %8985 = vst [vmem:[%s8975 + $0x48] sm:$0xff] %v8952
      %8986 = vst [vmem:[%s8975 + $0x50] sm:$0xff] %v8953
      %8987 = vst [vmem:[%s8975 + $0x58] sm:$0xff] %v8954
      %8988 = vst [vmem:[%s8975 + $0x60] sm:$0xff] %v8955
      %8989 = vst [vmem:[%s8975 + $0x68] sm:$0xff] %v8956
      %8990 = vst [vmem:[%s8975 + $0x70] sm:$0xff] %v8957
      %8991 = vst [vmem:[%s8975 + $0x78] sm:$0xff] %v8958
      %8992 = vst [vmem:[%s8975 + $0x80] sm:$0xff] %v8959
      %8993 = vst [vmem:[%s8975 + $0x88] sm:$0xff] %v8960
      %8994 = vst [vmem:[%s8975 + $0x90] sm:$0xff] %v8961
      %8995 = vst [vmem:[%s8975 + $0x98] sm:$0xff] %v8962
      %8996 = vst [vmem:[%s8975 + $0xa0] sm:$0xff] %v8963
      %8997 = vst [vmem:[%s8975 + $0xa8] sm:$0xff] %v8964
      %8998 = vst [vmem:[%s8975 + $0xb0] sm:$0xff] %v8965
      %8999 = vst [vmem:[%s8975 + $0xb8] sm:$0xff] %v8966
      %9000 = vst [vmem:[%s8975 + $0xc0] sm:$0xff] %v8967
      %9001 = vst [vmem:[%s8975 + $0xc8] sm:$0xff] %v8968
      %9002 = vst [vmem:[%s8975 + $0xd0] sm:$0xff] %v8969
      %9003 = vst [vmem:[%s8975 + $0xd8] sm:$0xff] %v8970
      %9004 = vst [vmem:[%s8975 + $0xe0] sm:$0xff] %v8971
      %9005 = vst [vmem:[%s8975 + $0xe8] sm:$0xff] %v8972
      %9006 = vst [vmem:[%s8975 + $0xf0] sm:$0xff] %v8973
      %9007 = vst [vmem:[%s8975 + $0xf8] sm:$0xff] %v8974
      %v9008 = vld [vmem:[%s8295] sm:$0xff]
      %v9009 = vld [vmem:[%s8295 + $0x8] sm:$0xff]
      %v9010 = vld [vmem:[%s8295 + $0x10] sm:$0xff]
      %v9011 = vld [vmem:[%s8295 + $0x18] sm:$0xff]
      %v9012 = vld [vmem:[%s8295 + $0x20] sm:$0xff]
      %v9013 = vld [vmem:[%s8295 + $0x28] sm:$0xff]
      %v9014 = vld [vmem:[%s8295 + $0x30] sm:$0xff]
      %v9015 = vld [vmem:[%s8295 + $0x38] sm:$0xff]
      %v9016 = vld [vmem:[%s8295 + $0x40] sm:$0xff]
      %v9017 = vld [vmem:[%s8295 + $0x48] sm:$0xff]
      %v9018 = vld [vmem:[%s8295 + $0x50] sm:$0xff]
      %v9019 = vld [vmem:[%s8295 + $0x58] sm:$0xff]
      %v9020 = vld [vmem:[%s8295 + $0x60] sm:$0xff]
      %v9021 = vld [vmem:[%s8295 + $0x68] sm:$0xff]
      %v9022 = vld [vmem:[%s8295 + $0x70] sm:$0xff]
      %v9023 = vld [vmem:[%s8295 + $0x78] sm:$0xff]
      %v9024 = vld [vmem:[%s8295 + $0x80] sm:$0xff]
      %v9025 = vld [vmem:[%s8295 + $0x88] sm:$0xff]
      %v9026 = vld [vmem:[%s8295 + $0x90] sm:$0xff]
      %v9027 = vld [vmem:[%s8295 + $0x98] sm:$0xff]
      %v9028 = vld [vmem:[%s8295 + $0xa0] sm:$0xff]
      %v9029 = vld [vmem:[%s8295 + $0xa8] sm:$0xff]
      %v9030 = vld [vmem:[%s8295 + $0xb0] sm:$0xff]
      %v9031 = vld [vmem:[%s8295 + $0xb8] sm:$0xff]
      %v9032 = vld [vmem:[%s8295 + $0xc0] sm:$0xff]
      %v9033 = vld [vmem:[%s8295 + $0xc8] sm:$0xff]
      %v9034 = vld [vmem:[%s8295 + $0xd0] sm:$0xff]
      %v9035 = vld [vmem:[%s8295 + $0xd8] sm:$0xff]
      %v9036 = vld [vmem:[%s8295 + $0xe0] sm:$0xff]
      %v9037 = vld [vmem:[%s8295 + $0xe8] sm:$0xff]
      %v9038 = vld [vmem:[%s8295 + $0xf0] sm:$0xff]
      %v9039 = vld [vmem:[%s8295 + $0xf8] sm:$0xff]
      %v9040 = vsub.f32 %v9008, %v8328
      %v9041 = vsub.f32 %v9009, %v8328
      %v9042 = vsub.f32 %v9010, %v8328
      %v9043 = vsub.f32 %v9011, %v8328
      %v9044 = vsub.f32 %v9012, %v8328
      %v9045 = vsub.f32 %v9013, %v8328
      %v9046 = vsub.f32 %v9014, %v8328
      %v9047 = vsub.f32 %v9015, %v8328
      %v9048 = vsub.f32 %v9016, %v8328
      %v9049 = vsub.f32 %v9017, %v8328
      %v9050 = vsub.f32 %v9018, %v8328
      %v9051 = vsub.f32 %v9019, %v8328
      %v9052 = vsub.f32 %v9020, %v8328
      %v9053 = vsub.f32 %v9021, %v8328
      %v9054 = vsub.f32 %v9022, %v8328
      %v9055 = vsub.f32 %v9023, %v8328
      %v9056 = vsub.f32 %v9024, %v8328
      %v9057 = vsub.f32 %v9025, %v8328
      %v9058 = vsub.f32 %v9026, %v8328
      %v9059 = vsub.f32 %v9027, %v8328
      %v9060 = vsub.f32 %v9028, %v8328
      %v9061 = vsub.f32 %v9029, %v8328
      %v9062 = vsub.f32 %v9030, %v8328
      %v9063 = vsub.f32 %v9031, %v8328
      %v9064 = vsub.f32 %v9032, %v8328
      %v9065 = vsub.f32 %v9033, %v8328
      %v9066 = vsub.f32 %v9034, %v8328
      %v9067 = vsub.f32 %v9035, %v8328
      %v9068 = vsub.f32 %v9036, %v8328
      %v9069 = vsub.f32 %v9037, %v8328
      %v9070 = vsub.f32 %v9038, %v8328
      %v9071 = vsub.f32 %v9039, %v8328
      %v9072 = vmul.f32 %v9040, %v8333
      %v9073 = vmul.f32 %v9041, %v8333
      %v9074 = vmul.f32 %v9042, %v8333
      %v9075 = vmul.f32 %v9043, %v8333
      %v9076 = vmul.f32 %v9044, %v8333
      %v9077 = vmul.f32 %v9045, %v8333
      %v9078 = vmul.f32 %v9046, %v8333
      %v9079 = vmul.f32 %v9047, %v8333
      %v9080 = vmul.f32 %v9048, %v8333
      %v9081 = vmul.f32 %v9049, %v8333
      %v9082 = vmul.f32 %v9050, %v8333
      %v9083 = vmul.f32 %v9051, %v8333
      %v9084 = vmul.f32 %v9052, %v8333
      %v9085 = vmul.f32 %v9053, %v8333
      %v9086 = vmul.f32 %v9054, %v8333
      %v9087 = vmul.f32 %v9055, %v8333
      %v9088 = vmul.f32 %v9056, %v8333
      %v9089 = vmul.f32 %v9057, %v8333
      %v9090 = vmul.f32 %v9058, %v8333
      %v9091 = vmul.f32 %v9059, %v8333
      %v9092 = vmul.f32 %v9060, %v8333
      %v9093 = vmul.f32 %v9061, %v8333
      %v9094 = vmul.f32 %v9062, %v8333
      %v9095 = vmul.f32 %v9063, %v8333
      %v9096 = vmul.f32 %v9064, %v8333
      %v9097 = vmul.f32 %v9065, %v8333
      %v9098 = vmul.f32 %v9066, %v8333
      %v9099 = vmul.f32 %v9067, %v8333
      %v9100 = vmul.f32 %v9068, %v8333
      %v9101 = vmul.f32 %v9069, %v8333
      %v9102 = vmul.f32 %v9070, %v8333
      %v9103 = vmul.f32 %v9071, %v8333
      %vm9104 = vcmp.ge.f32.partialorder %v9072, 0.0
      %vm9105 = vcmp.ge.f32.partialorder %v9073, 0.0
      %vm9106 = vcmp.ge.f32.partialorder %v9074, 0.0
      %vm9107 = vcmp.ge.f32.partialorder %v9075, 0.0
      %vm9108 = vcmp.ge.f32.partialorder %v9076, 0.0
      %vm9109 = vcmp.ge.f32.partialorder %v9077, 0.0
      %vm9110 = vcmp.ge.f32.partialorder %v9078, 0.0
      %vm9111 = vcmp.ge.f32.partialorder %v9079, 0.0
      %vm9112 = vcmp.ge.f32.partialorder %v9080, 0.0
      %vm9113 = vcmp.ge.f32.partialorder %v9081, 0.0
      %vm9114 = vcmp.ge.f32.partialorder %v9082, 0.0
      %vm9115 = vcmp.ge.f32.partialorder %v9083, 0.0
      %vm9116 = vcmp.ge.f32.partialorder %v9084, 0.0
      %vm9117 = vcmp.ge.f32.partialorder %v9085, 0.0
      %vm9118 = vcmp.ge.f32.partialorder %v9086, 0.0
      %vm9119 = vcmp.ge.f32.partialorder %v9087, 0.0
      %vm9120 = vcmp.ge.f32.partialorder %v9088, 0.0
      %vm9121 = vcmp.ge.f32.partialorder %v9089, 0.0
      %vm9122 = vcmp.ge.f32.partialorder %v9090, 0.0
      %vm9123 = vcmp.ge.f32.partialorder %v9091, 0.0
      %vm9124 = vcmp.ge.f32.partialorder %v9092, 0.0
      %vm9125 = vcmp.ge.f32.partialorder %v9093, 0.0
      %vm9126 = vcmp.ge.f32.partialorder %v9094, 0.0
      %vm9127 = vcmp.ge.f32.partialorder %v9095, 0.0
      %vm9128 = vcmp.ge.f32.partialorder %v9096, 0.0
      %vm9129 = vcmp.ge.f32.partialorder %v9097, 0.0
      %vm9130 = vcmp.ge.f32.partialorder %v9098, 0.0
      %vm9131 = vcmp.ge.f32.partialorder %v9099, 0.0
      %vm9132 = vcmp.ge.f32.partialorder %v9100, 0.0
      %vm9133 = vcmp.ge.f32.partialorder %v9101, 0.0
      %vm9134 = vcmp.ge.f32.partialorder %v9102, 0.0
      %vm9135 = vcmp.ge.f32.partialorder %v9103, 0.0
      %v9136 = vmul.f32 %v9072, 0.01
      %v9137 = vmul.f32 %v9073, 0.01
      %v9138 = vmul.f32 %v9074, 0.01
      %v9139 = vmul.f32 %v9075, 0.01
      %v9140 = vmul.f32 %v9076, 0.01
      %v9141 = vmul.f32 %v9077, 0.01
      %v9142 = vmul.f32 %v9078, 0.01
      %v9143 = vmul.f32 %v9079, 0.01
      %v9144 = vmul.f32 %v9080, 0.01
      %v9145 = vmul.f32 %v9081, 0.01
      %v9146 = vmul.f32 %v9082, 0.01
      %v9147 = vmul.f32 %v9083, 0.01
      %v9148 = vmul.f32 %v9084, 0.01
      %v9149 = vmul.f32 %v9085, 0.01
      %v9150 = vmul.f32 %v9086, 0.01
      %v9151 = vmul.f32 %v9087, 0.01
      %v9152 = vmul.f32 %v9088, 0.01
      %v9153 = vmul.f32 %v9089, 0.01
      %v9154 = vmul.f32 %v9090, 0.01
      %v9155 = vmul.f32 %v9091, 0.01
      %v9156 = vmul.f32 %v9092, 0.01
      %v9157 = vmul.f32 %v9093, 0.01
      %v9158 = vmul.f32 %v9094, 0.01
      %v9159 = vmul.f32 %v9095, 0.01
      %v9160 = vmul.f32 %v9096, 0.01
      %v9161 = vmul.f32 %v9097, 0.01
      %v9162 = vmul.f32 %v9098, 0.01
      %v9163 = vmul.f32 %v9099, 0.01
      %v9164 = vmul.f32 %v9100, 0.01
      %v9165 = vmul.f32 %v9101, 0.01
      %v9166 = vmul.f32 %v9102, 0.01
      %v9167 = vmul.f32 %v9103, 0.01
      %v9168 = vsel %vm9104, %v9072, %v9136
      %v9169 = vsel %vm9105, %v9073, %v9137
      %v9170 = vsel %vm9106, %v9074, %v9138
      %v9171 = vsel %vm9107, %v9075, %v9139
      %v9172 = vsel %vm9108, %v9076, %v9140
      %v9173 = vsel %vm9109, %v9077, %v9141
      %v9174 = vsel %vm9110, %v9078, %v9142
      %v9175 = vsel %vm9111, %v9079, %v9143
      %v9176 = vsel %vm9112, %v9080, %v9144
      %v9177 = vsel %vm9113, %v9081, %v9145
      %v9178 = vsel %vm9114, %v9082, %v9146
      %v9179 = vsel %vm9115, %v9083, %v9147
      %v9180 = vsel %vm9116, %v9084, %v9148
      %v9181 = vsel %vm9117, %v9085, %v9149
      %v9182 = vsel %vm9118, %v9086, %v9150
      %v9183 = vsel %vm9119, %v9087, %v9151
      %v9184 = vsel %vm9120, %v9088, %v9152
      %v9185 = vsel %vm9121, %v9089, %v9153
      %v9186 = vsel %vm9122, %v9090, %v9154
      %v9187 = vsel %vm9123, %v9091, %v9155
      %v9188 = vsel %vm9124, %v9092, %v9156
      %v9189 = vsel %vm9125, %v9093, %v9157
      %v9190 = vsel %vm9126, %v9094, %v9158
      %v9191 = vsel %vm9127, %v9095, %v9159
      %v9192 = vsel %vm9128, %v9096, %v9160
      %v9193 = vsel %vm9129, %v9097, %v9161
      %v9194 = vsel %vm9130, %v9098, %v9162
      %v9195 = vsel %vm9131, %v9099, %v9163
      %v9196 = vsel %vm9132, %v9100, %v9164
      %v9197 = vsel %vm9133, %v9101, %v9165
      %v9198 = vsel %vm9134, %v9102, %v9166
      %v9199 = vsel %vm9135, %v9103, %v9167
      %s9200 = scalar_lea.vmem %s170, 768
      %9201 = vst [vmem:[%s9200] sm:$0xff] %v9168
      %9202 = vst [vmem:[%s9200 + $0x8] sm:$0xff] %v9169
      %9203 = vst [vmem:[%s9200 + $0x10] sm:$0xff] %v9170
      %9204 = vst [vmem:[%s9200 + $0x18] sm:$0xff] %v9171
      %9205 = vst [vmem:[%s9200 + $0x20] sm:$0xff] %v9172
      %9206 = vst [vmem:[%s9200 + $0x28] sm:$0xff] %v9173
      %9207 = vst [vmem:[%s9200 + $0x30] sm:$0xff] %v9174
      %9208 = vst [vmem:[%s9200 + $0x38] sm:$0xff] %v9175
      %9209 = vst [vmem:[%s9200 + $0x40] sm:$0xff] %v9176
      %9210 = vst [vmem:[%s9200 + $0x48] sm:$0xff] %v9177
      %9211 = vst [vmem:[%s9200 + $0x50] sm:$0xff] %v9178
      %9212 = vst [vmem:[%s9200 + $0x58] sm:$0xff] %v9179
      %9213 = vst [vmem:[%s9200 + $0x60] sm:$0xff] %v9180
      %9214 = vst [vmem:[%s9200 + $0x68] sm:$0xff] %v9181
      %9215 = vst [vmem:[%s9200 + $0x70] sm:$0xff] %v9182
      %9216 = vst [vmem:[%s9200 + $0x78] sm:$0xff] %v9183
      %9217 = vst [vmem:[%s9200 + $0x80] sm:$0xff] %v9184
      %9218 = vst [vmem:[%s9200 + $0x88] sm:$0xff] %v9185
      %9219 = vst [vmem:[%s9200 + $0x90] sm:$0xff] %v9186
      %9220 = vst [vmem:[%s9200 + $0x98] sm:$0xff] %v9187
      %9221 = vst [vmem:[%s9200 + $0xa0] sm:$0xff] %v9188
      %9222 = vst [vmem:[%s9200 + $0xa8] sm:$0xff] %v9189
      %9223 = vst [vmem:[%s9200 + $0xb0] sm:$0xff] %v9190
      %9224 = vst [vmem:[%s9200 + $0xb8] sm:$0xff] %v9191
      %9225 = vst [vmem:[%s9200 + $0xc0] sm:$0xff] %v9192
      %9226 = vst [vmem:[%s9200 + $0xc8] sm:$0xff] %v9193
      %9227 = vst [vmem:[%s9200 + $0xd0] sm:$0xff] %v9194
      %9228 = vst [vmem:[%s9200 + $0xd8] sm:$0xff] %v9195
      %9229 = vst [vmem:[%s9200 + $0xe0] sm:$0xff] %v9196
      %9230 = vst [vmem:[%s9200 + $0xe8] sm:$0xff] %v9197
      %9231 = vst [vmem:[%s9200 + $0xf0] sm:$0xff] %v9198
      %9232 = vst [vmem:[%s9200 + $0xf8] sm:$0xff] %v9199
      %p9233 = scmp.lt.s32.totalorder %s14, 1
      %s9234 = scalar_select %p9233, %s14, 1
      %s9235 = smul.addr %s9234, 128
      %s9236 = smul.addr %s9235, 8
      %s9237 = scalar_lea.vmem %s3, %s9236
      // Predicated region
      $region33: #{upsample2d_forward.1} parent=31 // pred_check
        %p9238 = pneg %p100
      $region34: #{upsample2d_forward.1} parent=31 // pred_check_branch
        %9240 = sbr.rel (%p9238) target = $region36
      $region35: #{upsample2d_forward.1} parent=31 // pred_region
        _
      $region36: #{upsample2d_forward.1} parent=31 // pred_fallthru
        _
    $region32: #{upsample2d_forward.1} parent=5 // pred_fallthru
      _
    %p9241 = scmp.le.s32.totalorder 2, %s9
    // Predicated region
    $region37: #{upsample2d_forward.1} parent=5 // pred_check
      %p9242 = pneg %p9241
    $region38: #{upsample2d_forward.1} parent=5 // pred_check_branch
      %9244 = sbr.rel (%p9242) target = $region40
    $region39: #{upsample2d_forward.1} parent=5 // pred_region
      %s9245 = ssub.s32 %s9, 2
      // Predicated region
      $region41: #{upsample2d_forward.1} parent=39 // pred_check
        %p9246 = pneg %p106
      $region42: #{upsample2d_forward.1} parent=39 // pred_check_branch
        %9248 = sbr.rel (%p9246) target = $region44
      $region43: #{upsample2d_forward.1} parent=39 // pred_region
        %p9249 = scmp.lt.s32.totalorder %s15, 1
        %s9250 = scalar_select %p9249, %s15, 1
        %s9251 = smul.addr %s9250, 128
        %s9252 = smul.addr %s9251, 8
        %s9253 = scalar_lea.vmem %s3, %s9252
      $region44: #{upsample2d_forward.1} parent=39 // pred_fallthru
        _
    $region40: #{upsample2d_forward.1} parent=5 // pred_fallthru
      _
  $region6: #{upsample2d_forward.1} parent=0 // loop_footer
    %s13 = sadd.s32 1, %s9
  $region7: #{upsample2d_forward.1} parent=0 // loop_footer_branch
    %8 = sbr.rel target = $region3
  $region8: #{upsample2d_forward.1} parent=0 // loop_exit
    _

</llo_original>
